<compile_context>
chip_gen: v7x
topology: tpu7x:2x2x1
jax: 0.10.0
libtpu: 0.0.40
codegen_flags: <defaults>
</compile_context>

<pallas_src>
import functools

import jax
import jax.numpy as jnp
from jax.experimental import pallas as pl
from jax.experimental.pallas import tpu as pltpu


# --------------------------------------------------------------------------
# Kernel
# --------------------------------------------------------------------------
def _basic_block_kernel(x_ref, w1_ref, s1_ref, b1_ref,
                        w2_ref, s2_ref, b2_ref, *rest, has_projection):
    """One grid step == Nb batch elements, whole (padded) image in VMEM."""
    if has_projection:
        ws_ref, ss_ref, bs_ref, out_ref, opad_s = rest
    else:
        ws_ref = ss_ref = bs_ref = None
        out_ref, opad_s = rest

    Nb = x_ref.shape[0]
    H, W = out_ref.shape[1], out_ref.shape[2]
    Cp = x_ref.shape[3]
    Pp = out_ref.shape[3]
    M = Nb * H * W
    cdt = x_ref.dtype            # MXU compute dtype (bf16); accumulation is f32

    # ---- conv1: 9 shifted-window taps -> accumulated f32 MXU dots ----------
    # (x_ref already holds the spatially zero-padded image; no im2col buffer.)
    x_center = None
    acc1 = None
    for kh in range(3):
        for kw in range(3):
            patch = x_ref[:, kh:kh + H, kw:kw + W, :].reshape(M, Cp)
            if kh == 1 and kw == 1:
                x_center = patch            # reused by the shortcut path
            d = jnp.dot(patch, w1_ref[kh * 3 + kw],
                        preferred_element_type=jnp.float32)
            acc1 = d if acc1 is None else acc1 + d
    out1 = jnp.maximum(acc1 * s1_ref[...] + b1_ref[...], 0.0)   # bn1 + relu

    # ---- stage out1 into the spatially padded scratch for conv2 ------------
    # Border re-zeroed every step (scratch is per-core under megacore
    # sharding, so a program_id==0 guard is unsafe); interior fully rewritten.
    opad_s[:, 0:1, :, :] = jnp.zeros((Nb, 1, W + 2, Pp), cdt)
    opad_s[:, H + 1:H + 2, :, :] = jnp.zeros((Nb, 1, W + 2, Pp), cdt)
    opad_s[:, 1:H + 1, 0:1, :] = jnp.zeros((Nb, H, 1, Pp), cdt)
    opad_s[:, 1:H + 1, W + 1:W + 2, :] = jnp.zeros((Nb, H, 1, Pp), cdt)
    opad_s[:, 1:H + 1, 1:W + 1, :] = out1.reshape(Nb, H, W, Pp).astype(cdt)

    # ---- conv2: 9 shifted-window taps -> accumulated f32 MXU dots ----------
    acc2 = None
    for kh in range(3):
        for kw in range(3):
            patch = opad_s[:, kh:kh + H, kw:kw + W, :].reshape(M, Pp)
            d = jnp.dot(patch, w2_ref[kh * 3 + kw],
                        preferred_element_type=jnp.float32)
            acc2 = d if acc2 is None else acc2 + d
    out2 = acc2 * s2_ref[...] + b2_ref[...]                      # bn2

    # ---- shortcut -----------------------------------------------------------
    if has_projection:                      # 1x1 conv + BN
        sc = jnp.dot(x_center, ws_ref[...], preferred_element_type=jnp.float32)
        sc = sc * ss_ref[...] + bs_ref[...]
    else:                                   # identity (Cp == Pp), no matmul
        sc = x_center.astype(jnp.float32)

    # ---- residual add + relu (f32), lane-dense store ------------------------
    out = jnp.maximum(out2 + sc, 0.0)
    out_ref[...] = out.reshape(Nb, H, W, Pp).astype(out_ref.dtype)


# --------------------------------------------------------------------------
# Wrapper helpers
# --------------------------------------------------------------------------
def _round_up(v, m):
    return (v + m - 1) // m * m


def _fold_bn(gamma, beta, mean, var, eps=1e-5):
    scale = gamma / jnp.sqrt(var + eps)
    bias = beta - mean * scale
    return scale.astype(jnp.float32), bias.astype(jnp.float32)


def _pad_vec(v, n):
    return jnp.pad(v, ((0, n - v.shape[0]),)).reshape(1, n).astype(jnp.float32)


def _choose_nb(n, h, w):
    """Batch elements per grid step: fill the MXU M dimension (>=256) when the
    spatial extent is small, while keeping Nb a divisor of N."""
    nb = 1
    while nb * h * w < 256 and n % (nb * 2) == 0:
        nb *= 2
    return nb


def _grid_invariant_spec(shape):
    """Single-buffered block spec for weights/scales that never change across
    the grid (double-buffering them only wastes VMEM)."""
    index_map = lambda n: (0,) * len(shape)
    try:
        return pl.BlockSpec(shape, index_map, pipeline_mode=pl.Buffered(1))
    except Exception:  # older jax without BlockSpec.pipeline_mode — still correct
        return pl.BlockSpec(shape, index_map)


# --------------------------------------------------------------------------
# Wrappers
# --------------------------------------------------------------------------
@functools.partial(jax.jit, static_argnames=("compute_dtype", "out_dtype"))
def basic_block4gem_pallas_nhwc(x_nhwc, params, compute_dtype=jnp.bfloat16,
                                out_dtype=jnp.float32):
    """x_nhwc: (N, H, W, Cin) float32. Returns (N, H, W, P) out_dtype."""
    N, H, W, Cin = x_nhwc.shape
    P = params["w1"].shape[-1]
    has_projection = params.get("ws") is not None
    if not has_projection:
        assert Cin == P, "identity shortcut requires in_planes == planes"

    Cp = _round_up(max(Cin, 128), 128)
    Pp = _round_up(max(P, 128), 128)
    Nb = _choose_nb(N, H, W)
    cbytes = jnp.dtype(compute_dtype).itemsize
    obytes = jnp.dtype(out_dtype).itemsize

    # Lane-dense channel pad + 1-pixel spatial zero pad + MXU-dtype cast, all
    # one fused XLA pad/convert; the BlockSpec DMA then lands the already
    # padded image directly in VMEM (no in-kernel copy into a padded scratch).
    x = jnp.pad(x_nhwc, ((0, 0), (1, 1), (1, 1), (0, Cp - Cin))
                ).astype(compute_dtype)

    # Conv weights HWIO -> (tap, Cin, Cout) for per-tap MXU dots.
    w1 = jnp.pad(params["w1"],
                 ((0, 0), (0, 0), (0, Cp - Cin), (0, Pp - P))
                 ).reshape(9, Cp, Pp).astype(compute_dtype)
    w2 = jnp.pad(params["w2"],
                 ((0, 0), (0, 0), (0, Pp - P), (0, Pp - P))
                 ).reshape(9, Pp, Pp).astype(compute_dtype)

    s1, b1 = _fold_bn(params["g1"], params["be1"], params["m1"], params["v1"])
    s2, b2 = _fold_bn(params["g2"], params["be2"], params["m2"], params["v2"])
    s1, b1 = _pad_vec(s1, Pp), _pad_vec(b1, Pp)
    s2, b2 = _pad_vec(s2, Pp), _pad_vec(b2, Pp)

    inputs = [x, w1, s1, b1, w2, s2, b2]
    in_specs = [
        pl.BlockSpec((Nb, H + 2, W + 2, Cp), lambda n: (n, 0, 0, 0)),  # x (padded)
        _grid_invariant_spec((9, Cp, Pp)),   # w1 taps
        _grid_invariant_spec((1, Pp)),       # bn1 scale
        _grid_invariant_spec((1, Pp)),       # bn1 bias
        _grid_invariant_spec((9, Pp, Pp)),   # w2 taps
        _grid_invariant_spec((1, Pp)),       # bn2 scale
        _grid_invariant_spec((1, Pp)),       # bn2 bias
    ]
    weight_bytes = (9 * Cp * Pp + 9 * Pp * Pp) * cbytes + 4 * Pp * 4
    if has_projection:
        ws = jnp.pad(params["ws"], ((0, Cp - Cin), (0, Pp - P))
                     ).astype(compute_dtype)
        ss, bs = _fold_bn(params["gs"], params["bes"], params["ms"], params["vs"])
        inputs += [ws, _pad_vec(ss, Pp), _pad_vec(bs, Pp)]
        in_specs += [_grid_invariant_spec((Cp, Pp)),
                     _grid_invariant_spec((1, Pp)),
                     _grid_invariant_spec((1, Pp))]
        weight_bytes += Cp * Pp * cbytes + 2 * Pp * 4

    # Per-step VMEM footprint (double-buffered x/out, single-buffered weights,
    # padded-out1 scratch, plus f32 matmul temporaries that live outside
    # scratch_shapes) -> scoped-VMEM limit with ~1.5x headroom.
    step_bytes = (2 * Nb * (H + 2) * (W + 2) * Cp * cbytes       # x blocks
                  + weight_bytes                                 # weights
                  + 2 * Nb * H * W * Pp * obytes                 # out blocks
                  + Nb * (H + 2) * (W + 2) * Pp * cbytes         # opad scratch
                  + 6 * Nb * H * W * Pp * 4)                     # f32 temps
    vmem_limit = int(min(96 * 2**20, max(32 * 2**20, 3 * step_bytes // 2)))

    flops = 2 * N * H * W * Pp * (9 * Cp + 9 * Pp
                                  + (Cp if has_projection else 0))
    bytes_accessed = (N * (H + 2) * (W + 2) * Cp * cbytes
                      + N * H * W * Pp * obytes + weight_bytes)

    out = pl.pallas_call(
        functools.partial(_basic_block_kernel, has_projection=has_projection),
        out_shape=jax.ShapeDtypeStruct((N, H, W, Pp), out_dtype),
        grid_spec=pltpu.PrefetchScalarGridSpec(
            num_scalar_prefetch=0,
            grid=(N // Nb,),
            in_specs=in_specs,
            out_specs=pl.BlockSpec((Nb, H, W, Pp), lambda n: (n, 0, 0, 0)),
            scratch_shapes=[
                pltpu.VMEM((Nb, H + 2, W + 2, Pp), compute_dtype),  # padded out1
            ],
        ),
        compiler_params=pltpu.CompilerParams(
            dimension_semantics=("parallel",),
            vmem_limit_bytes=vmem_limit,
        ),
        cost_estimate=pl.CostEstimate(flops=int(flops), transcendentals=0,
                                      bytes_accessed=int(bytes_accessed)),
    )(*inputs)

    # TODO(synk): keep the channel-padded layout between blocks in a full
    # network to avoid this extra HBM slice pass.
    return out[..., :P]


def basic_block4gem_pallas(x_nchw, params, compute_dtype=jnp.bfloat16,
                           out_dtype=jnp.float32):
    """PyTorch-layout (NCHW) convenience wrapper.  Keep the model NHWC
    end-to-end and call basic_block4gem_pallas_nhwc directly for best perf."""
    x = jnp.transpose(x_nchw, (0, 2, 3, 1))
    out = basic_block4gem_pallas_nhwc(x, params, compute_dtype=compute_dtype,
                                      out_dtype=out_dtype)
    return jnp.transpose(out, (0, 3, 1, 2))


# --------------------------------------------------------------------------
# Pure-JAX reference (same bf16-matmul / f32-elementwise quantization points)
# --------------------------------------------------------------------------
def _conv3x3_ref(x, w, cdt):
    return jax.lax.conv_general_dilated(
        x.astype(cdt), w.astype(cdt),
        window_strides=(1, 1), padding=((1, 1), (1, 1)),
        dimension_numbers=("NHWC", "HWIO", "NHWC"),
        preferred_element_type=jnp.float32)


def basic_block4gem_ref(x_nchw, params, compute_dtype=jnp.bfloat16):
    x = jnp.transpose(x_nchw, (0, 2, 3, 1)).astype(jnp.float32)
    N, H, W, Cin = x.shape
    P = params["w1"].shape[-1]
    s1, b1 = _fold_bn(params["g1"], params["be1"], params["m1"], params["v1"])
    s2, b2 = _fold_bn(params["g2"], params["be2"], params["m2"], params["v2"])
    out = jax.nn.relu(_conv3x3_ref(x, params["w1"], compute_dtype) * s1 + b1)
    out = _conv3x3_ref(out, params["w2"], compute_dtype) * s2 + b2
    if params.get("ws") is not None:
        ss, bs = _fold_bn(params["gs"], params["bes"], params["ms"], params["vs"])
        sc = jnp.dot(x.astype(compute_dtype).reshape(-1, Cin),
                     params["ws"].astype(compute_dtype),
                     preferred_element_type=jnp.float32).reshape(N, H, W, P)
        sc = sc * ss + bs
    else:
        # kernel identity path adds x quantized to compute_dtype
        sc = x.astype(compute_dtype).astype(jnp.float32)
    out = jax.nn.relu(out + sc)
    return jnp.transpose(out, (0, 3, 1, 2))


# --------------------------------------------------------------------------
# Test
# --------------------------------------------------------------------------
if __name__ == "__main__":
    key = jax.random.PRNGKey(0)
    ks = jax.random.split(key, 48)

    def make_params(keys, cin, planes, projection):
        p = {
            "w1": 0.2 * jax.random.normal(keys[0], (3, 3, cin, planes), jnp.float32),
            "g1": 1.0 + 0.1 * jax.random.normal(keys[1], (planes,), jnp.float32),
            "be1": 0.1 * jax.random.normal(keys[2], (planes,), jnp.float32),
            "m1": 0.05 * jax.random.normal(keys[3], (planes,), jnp.float32),
            "v1": 0.5 + jax.random.uniform(keys[4], (planes,), jnp.float32),
            "w2": 0.2 * jax.random.normal(keys[5], (3, 3, planes, planes), jnp.float32),
            "g2": 1.0 + 0.1 * jax.random.normal(keys[6], (planes,), jnp.float32),
            "be2": 0.1 * jax.random.normal(keys[7], (planes,), jnp.float32),
            "m2": 0.05 * jax.random.normal(keys[8], (planes,), jnp.float32),
            "v2": 0.5 + jax.random.uniform(keys[9], (planes,), jnp.float32),
            "ws": None,
        }
        if projection:
            p.update({
                "ws": 0.3 * jax.random.normal(keys[10], (cin, planes), jnp.float32),
                "gs": 1.0 + 0.1 * jax.random.normal(keys[11], (planes,), jnp.float32),
                "bes": 0.1 * jax.random.normal(keys[12], (planes,), jnp.float32),
                "ms": 0.05 * jax.random.normal(keys[13], (planes,), jnp.float32),
                "vs": 0.5 + jax.random.uniform(keys[14], (planes,), jnp.float32),
            })
        return p

    # --- case 1: projection shortcut (in_planes != planes), 16x16 -----------
    N, Cin, H, W, P = 2, 4, 16, 16, 8
    x1 = jax.random.normal(ks[0], (N, Cin, H, W), jnp.float32)
    params1 = make_params(ks[1:16], Cin, P, projection=True)
    out1 = jax.block_until_ready(basic_block4gem_pallas(x1, params1))
    ref1 = basic_block4gem_ref(x1, params1)
    assert out1.shape == (N, P, H, W), out1.shape
    assert jnp.allclose(out1, ref1, rtol=1e-3, atol=1e-3), (
        float(jnp.max(jnp.abs(out1 - ref1))))

    # --- case 2: identity shortcut (in_planes == planes), 16x16 -------------
    x2 = jax.random.normal(ks[16], (N, Cin, H, W), jnp.float32)
    params2 = make_params(ks[17:32], Cin, Cin, projection=False)
    out2 = jax.block_until_ready(basic_block4gem_pallas(x2, params2))
    ref2 = basic_block4gem_ref(x2, params2)
    assert out2.shape == (N, Cin, H, W), out2.shape
    assert jnp.allclose(out2, ref2, rtol=1e-3, atol=1e-3), (
        float(jnp.max(jnp.abs(out2 - ref2))))

    # --- case 3: identity shortcut, 8x8 (exercises Nb=2 batch blocking) -----
    x3 = jax.random.normal(ks[32], (N, Cin, 8, 8), jnp.float32)
    params3 = make_params(ks[33:48], Cin, Cin, projection=False)
    out3 = jax.block_until_ready(basic_block4gem_pallas(x3, params3))
    ref3 = basic_block4gem_ref(x3, params3)
    assert out3.shape == (N, Cin, 8, 8), out3.shape
    assert jnp.allclose(out3, ref3, rtol=1e-3, atol=1e-3), (
        float(jnp.max(jnp.abs(out3 - ref3))))

    print("KERNEL_OK")
</pallas_src>

<mosaic_0001>
module attributes {stable_mosaic.version = 11 : i64} {
  func.func @_basic_block_kernel(%arg0: i32, %arg1: memref<1x18x18x128xbf16, #tpu.memory_space<vmem>>, %arg2: memref<9x128x128xbf16, #tpu.memory_space<vmem>>, %arg3: memref<1x128xf32, #tpu.memory_space<vmem>>, %arg4: memref<1x128xf32, #tpu.memory_space<vmem>>, %arg5: memref<9x128x128xbf16, #tpu.memory_space<vmem>>, %arg6: memref<1x128xf32, #tpu.memory_space<vmem>>, %arg7: memref<1x128xf32, #tpu.memory_space<vmem>>, %arg8: memref<128x128xbf16, #tpu.memory_space<vmem>>, %arg9: memref<1x128xf32, #tpu.memory_space<vmem>>, %arg10: memref<1x128xf32, #tpu.memory_space<vmem>>, %arg11: memref<1x16x16x128xf32, #tpu.memory_space<vmem>>, %arg12: memref<1x18x18x128xbf16, #tpu.memory_space<vmem>>) attributes {dimension_semantics = [#tpu.dimension_semantics<parallel>], iteration_bounds = array<i64: 2>, scalar_prefetch = 0 : i64, scratch_operands = 1 : i64, tpu.core_type = #tpu.core_type<tc>, window_params = [{transform_indices = @transform_0, window_bounds = array<i64: 1, 18, 18, 128>}, {pipeline_mode = #tpu.pipeline_mode<synchronous>, transform_indices = @transform_1, window_bounds = array<i64: 9, 128, 128>}, {pipeline_mode = #tpu.pipeline_mode<synchronous>, transform_indices = @transform_2, window_bounds = array<i64: 1, 128>}, {pipeline_mode = #tpu.pipeline_mode<synchronous>, transform_indices = @transform_3, window_bounds = array<i64: 1, 128>}, {pipeline_mode = #tpu.pipeline_mode<synchronous>, transform_indices = @transform_4, window_bounds = array<i64: 9, 128, 128>}, {pipeline_mode = #tpu.pipeline_mode<synchronous>, transform_indices = @transform_5, window_bounds = array<i64: 1, 128>}, {pipeline_mode = #tpu.pipeline_mode<synchronous>, transform_indices = @transform_6, window_bounds = array<i64: 1, 128>}, {pipeline_mode = #tpu.pipeline_mode<synchronous>, transform_indices = @transform_7, window_bounds = array<i64: 128, 128>}, {pipeline_mode = #tpu.pipeline_mode<synchronous>, transform_indices = @transform_8, window_bounds = array<i64: 1, 128>}, {pipeline_mode = #tpu.pipeline_mode<synchronous>, transform_indices = @transform_9, window_bounds = array<i64: 1, 128>}, {transform_indices = @transform_10, window_bounds = array<i64: 1, 16, 16, 128>}]} {
    %c0 = arith.constant 0 : index
    %c0_0 = arith.constant 0 : index
    %c0_1 = arith.constant 0 : index
    %c0_2 = arith.constant 0 : index
    %0 = vector.load %arg1[%c0, %c0_0, %c0_1, %c0_2] : memref<1x18x18x128xbf16, #tpu.memory_space<vmem>>, vector<1x16x16x128xbf16>
    %1 = vector.shape_cast %0 : vector<1x16x16x128xbf16> to vector<256x128xbf16>
    %c0_3 = arith.constant 0 : index
    %c0_4 = arith.constant 0 : index
    %c0_5 = arith.constant 0 : index
    %2 = vector.load %arg2[%c0_3, %c0_4, %c0_5] : memref<9x128x128xbf16, #tpu.memory_space<vmem>>, vector<1x128x128xbf16>
    %3 = vector.shape_cast %2 : vector<1x128x128xbf16> to vector<128x128xbf16>
    %cst = arith.constant dense<0.000000e+00> : vector<256x128xf32>
    %4 = tpu.matmul %1, %3, %cst {dimension_numbers = #tpu.dot_dimension_numbers<[1], [0], [0], [1], [0, 0, 1, 1], [], []>} : vector<256x128xbf16>, vector<128x128xbf16>, vector<256x128xf32> -> vector<256x128xf32>
    %c0_6 = arith.constant 0 : index
    %c0_7 = arith.constant 0 : index
    %c1 = arith.constant 1 : index
    %c0_8 = arith.constant 0 : index
    %5 = vector.load %arg1[%c0_6, %c0_7, %c1, %c0_8] : memref<1x18x18x128xbf16, #tpu.memory_space<vmem>>, vector<1x16x16x128xbf16>
    %6 = vector.shape_cast %5 : vector<1x16x16x128xbf16> to vector<256x128xbf16>
    %c1_9 = arith.constant 1 : index
    %c0_10 = arith.constant 0 : index
    %c0_11 = arith.constant 0 : index
    %7 = vector.load %arg2[%c1_9, %c0_10, %c0_11] : memref<9x128x128xbf16, #tpu.memory_space<vmem>>, vector<1x128x128xbf16>
    %8 = vector.shape_cast %7 : vector<1x128x128xbf16> to vector<128x128xbf16>
    %cst_12 = arith.constant dense<0.000000e+00> : vector<256x128xf32>
    %9 = tpu.matmul %6, %8, %cst_12 {dimension_numbers = #tpu.dot_dimension_numbers<[1], [0], [0], [1], [0, 0, 1, 1], [], []>} : vector<256x128xbf16>, vector<128x128xbf16>, vector<256x128xf32> -> vector<256x128xf32>
    %10 = arith.addf %4, %9 : vector<256x128xf32>
    %c0_13 = arith.constant 0 : index
    %c0_14 = arith.constant 0 : index
    %c2 = arith.constant 2 : index
    %c0_15 = arith.constant 0 : index
    %11 = vector.load %arg1[%c0_13, %c0_14, %c2, %c0_15] : memref<1x18x18x128xbf16, #tpu.memory_space<vmem>>, vector<1x16x16x128xbf16>
    %12 = vector.shape_cast %11 : vector<1x16x16x128xbf16> to vector<256x128xbf16>
    %c2_16 = arith.constant 2 : index
    %c0_17 = arith.constant 0 : index
    %c0_18 = arith.constant 0 : index
    %13 = vector.load %arg2[%c2_16, %c0_17, %c0_18] : memref<9x128x128xbf16, #tpu.memory_space<vmem>>, vector<1x128x128xbf16>
    %14 = vector.shape_cast %13 : vector<1x128x128xbf16> to vector<128x128xbf16>
    %cst_19 = arith.constant dense<0.000000e+00> : vector<256x128xf32>
    %15 = tpu.matmul %12, %14, %cst_19 {dimension_numbers = #tpu.dot_dimension_numbers<[1], [0], [0], [1], [0, 0, 1, 1], [], []>} : vector<256x128xbf16>, vector<128x128xbf16>, vector<256x128xf32> -> vector<256x128xf32>
    %16 = arith.addf %10, %15 : vector<256x128xf32>
    %c0_20 = arith.constant 0 : index
    %c1_21 = arith.constant 1 : index
    %c0_22 = arith.constant 0 : index
    %c0_23 = arith.constant 0 : index
    %17 = vector.load %arg1[%c0_20, %c1_21, %c0_22, %c0_23] : memref<1x18x18x128xbf16, #tpu.memory_space<vmem>>, vector<1x16x16x128xbf16>
    %18 = vector.shape_cast %17 : vector<1x16x16x128xbf16> to vector<256x128xbf16>
    %c3 = arith.constant 3 : index
    %c0_24 = arith.constant 0 : index
    %c0_25 = arith.constant 0 : index
    %19 = vector.load %arg2[%c3, %c0_24, %c0_25] : memref<9x128x128xbf16, #tpu.memory_space<vmem>>, vector<1x128x128xbf16>
    %20 = vector.shape_cast %19 : vector<1x128x128xbf16> to vector<128x128xbf16>
    %cst_26 = arith.constant dense<0.000000e+00> : vector<256x128xf32>
    %21 = tpu.matmul %18, %20, %cst_26 {dimension_numbers = #tpu.dot_dimension_numbers<[1], [0], [0], [1], [0, 0, 1, 1], [], []>} : vector<256x128xbf16>, vector<128x128xbf16>, vector<256x128xf32> -> vector<256x128xf32>
    %22 = arith.addf %16, %21 : vector<256x128xf32>
    %c0_27 = arith.constant 0 : index
    %c1_28 = arith.constant 1 : index
    %c1_29 = arith.constant 1 : index
    %c0_30 = arith.constant 0 : index
    %23 = vector.load %arg1[%c0_27, %c1_28, %c1_29, %c0_30] : memref<1x18x18x128xbf16, #tpu.memory_space<vmem>>, vector<1x16x16x128xbf16>
    %24 = vector.shape_cast %23 : vector<1x16x16x128xbf16> to vector<256x128xbf16>
    %c4 = arith.constant 4 : index
    %c0_31 = arith.constant 0 : index
    %c0_32 = arith.constant 0 : index
    %25 = vector.load %arg2[%c4, %c0_31, %c0_32] : memref<9x128x128xbf16, #tpu.memory_space<vmem>>, vector<1x128x128xbf16>
    %26 = vector.shape_cast %25 : vector<1x128x128xbf16> to vector<128x128xbf16>
    %cst_33 = arith.constant dense<0.000000e+00> : vector<256x128xf32>
    %27 = tpu.matmul %24, %26, %cst_33 {dimension_numbers = #tpu.dot_dimension_numbers<[1], [0], [0], [1], [0, 0, 1, 1], [], []>} : vector<256x128xbf16>, vector<128x128xbf16>, vector<256x128xf32> -> vector<256x128xf32>
    %28 = arith.addf %22, %27 : vector<256x128xf32>
    %c0_34 = arith.constant 0 : index
    %c1_35 = arith.constant 1 : index
    %c2_36 = arith.constant 2 : index
    %c0_37 = arith.constant 0 : index
    %29 = vector.load %arg1[%c0_34, %c1_35, %c2_36, %c0_37] : memref<1x18x18x128xbf16, #tpu.memory_space<vmem>>, vector<1x16x16x128xbf16>
    %30 = vector.shape_cast %29 : vector<1x16x16x128xbf16> to vector<256x128xbf16>
    %c5 = arith.constant 5 : index
    %c0_38 = arith.constant 0 : index
    %c0_39 = arith.constant 0 : index
    %31 = vector.load %arg2[%c5, %c0_38, %c0_39] : memref<9x128x128xbf16, #tpu.memory_space<vmem>>, vector<1x128x128xbf16>
    %32 = vector.shape_cast %31 : vector<1x128x128xbf16> to vector<128x128xbf16>
    %cst_40 = arith.constant dense<0.000000e+00> : vector<256x128xf32>
    %33 = tpu.matmul %30, %32, %cst_40 {dimension_numbers = #tpu.dot_dimension_numbers<[1], [0], [0], [1], [0, 0, 1, 1], [], []>} : vector<256x128xbf16>, vector<128x128xbf16>, vector<256x128xf32> -> vector<256x128xf32>
    %34 = arith.addf %28, %33 : vector<256x128xf32>
    %c0_41 = arith.constant 0 : index
    %c2_42 = arith.constant 2 : index
    %c0_43 = arith.constant 0 : index
    %c0_44 = arith.constant 0 : index
    %35 = vector.load %arg1[%c0_41, %c2_42, %c0_43, %c0_44] : memref<1x18x18x128xbf16, #tpu.memory_space<vmem>>, vector<1x16x16x128xbf16>
    %36 = vector.shape_cast %35 : vector<1x16x16x128xbf16> to vector<256x128xbf16>
    %c6 = arith.constant 6 : index
    %c0_45 = arith.constant 0 : index
    %c0_46 = arith.constant 0 : index
    %37 = vector.load %arg2[%c6, %c0_45, %c0_46] : memref<9x128x128xbf16, #tpu.memory_space<vmem>>, vector<1x128x128xbf16>
    %38 = vector.shape_cast %37 : vector<1x128x128xbf16> to vector<128x128xbf16>
    %cst_47 = arith.constant dense<0.000000e+00> : vector<256x128xf32>
    %39 = tpu.matmul %36, %38, %cst_47 {dimension_numbers = #tpu.dot_dimension_numbers<[1], [0], [0], [1], [0, 0, 1, 1], [], []>} : vector<256x128xbf16>, vector<128x128xbf16>, vector<256x128xf32> -> vector<256x128xf32>
    %40 = arith.addf %34, %39 : vector<256x128xf32>
    %c0_48 = arith.constant 0 : index
    %c2_49 = arith.constant 2 : index
    %c1_50 = arith.constant 1 : index
    %c0_51 = arith.constant 0 : index
    %41 = vector.load %arg1[%c0_48, %c2_49, %c1_50, %c0_51] : memref<1x18x18x128xbf16, #tpu.memory_space<vmem>>, vector<1x16x16x128xbf16>
    %42 = vector.shape_cast %41 : vector<1x16x16x128xbf16> to vector<256x128xbf16>
    %c7 = arith.constant 7 : index
    %c0_52 = arith.constant 0 : index
    %c0_53 = arith.constant 0 : index
    %43 = vector.load %arg2[%c7, %c0_52, %c0_53] : memref<9x128x128xbf16, #tpu.memory_space<vmem>>, vector<1x128x128xbf16>
    %44 = vector.shape_cast %43 : vector<1x128x128xbf16> to vector<128x128xbf16>
    %cst_54 = arith.constant dense<0.000000e+00> : vector<256x128xf32>
    %45 = tpu.matmul %42, %44, %cst_54 {dimension_numbers = #tpu.dot_dimension_numbers<[1], [0], [0], [1], [0, 0, 1, 1], [], []>} : vector<256x128xbf16>, vector<128x128xbf16>, vector<256x128xf32> -> vector<256x128xf32>
    %46 = arith.addf %40, %45 : vector<256x128xf32>
    %c0_55 = arith.constant 0 : index
    %c2_56 = arith.constant 2 : index
    %c2_57 = arith.constant 2 : index
    %c0_58 = arith.constant 0 : index
    %47 = vector.load %arg1[%c0_55, %c2_56, %c2_57, %c0_58] : memref<1x18x18x128xbf16, #tpu.memory_space<vmem>>, vector<1x16x16x128xbf16>
    %48 = vector.shape_cast %47 : vector<1x16x16x128xbf16> to vector<256x128xbf16>
    %c8 = arith.constant 8 : index
    %c0_59 = arith.constant 0 : index
    %c0_60 = arith.constant 0 : index
    %49 = vector.load %arg2[%c8, %c0_59, %c0_60] : memref<9x128x128xbf16, #tpu.memory_space<vmem>>, vector<1x128x128xbf16>
    %50 = vector.shape_cast %49 : vector<1x128x128xbf16> to vector<128x128xbf16>
    %cst_61 = arith.constant dense<0.000000e+00> : vector<256x128xf32>
    %51 = tpu.matmul %48, %50, %cst_61 {dimension_numbers = #tpu.dot_dimension_numbers<[1], [0], [0], [1], [0, 0, 1, 1], [], []>} : vector<256x128xbf16>, vector<128x128xbf16>, vector<256x128xf32> -> vector<256x128xf32>
    %52 = arith.addf %46, %51 : vector<256x128xf32>
    %c0_62 = arith.constant 0 : index
    %c0_63 = arith.constant 0 : index
    %53 = vector.load %arg3[%c0_62, %c0_63] : memref<1x128xf32, #tpu.memory_space<vmem>>, vector<1x128xf32>
    %54 = vector.broadcast %53 : vector<1x128xf32> to vector<256x128xf32>
    %55 = arith.mulf %52, %54 : vector<256x128xf32>
    %c0_64 = arith.constant 0 : index
    %c0_65 = arith.constant 0 : index
    %56 = vector.load %arg4[%c0_64, %c0_65] : memref<1x128xf32, #tpu.memory_space<vmem>>, vector<1x128xf32>
    %57 = vector.broadcast %56 : vector<1x128xf32> to vector<256x128xf32>
    %58 = arith.addf %55, %57 : vector<256x128xf32>
    %cst_66 = arith.constant 0.000000e+00 : f32
    %59 = vector.broadcast %cst_66 : f32 to vector<256x128xf32>
    %60 = arith.maximumf %58, %59 : vector<256x128xf32>
    %cst_67 = arith.constant 0.000000e+00 : bf16
    %61 = vector.broadcast %cst_67 : bf16 to vector<1x1x18x128xbf16>
    %c0_68 = arith.constant 0 : index
    %c0_69 = arith.constant 0 : index
    %c0_70 = arith.constant 0 : index
    %c0_71 = arith.constant 0 : index
    %62 = vector.load %arg12[%c0_68, %c0_69, %c0_70, %c0_71] : memref<1x18x18x128xbf16, #tpu.memory_space<vmem>>, vector<1x1x18x128xbf16>
    tpu.vector_store %arg12[%c0_68, %c0_69, %c0_70, %c0_71], %61 {strides = array<i32>} : memref<1x18x18x128xbf16, #tpu.memory_space<vmem>>, vector<1x1x18x128xbf16>,
    %cst_72 = arith.constant 0.000000e+00 : bf16
    %63 = vector.broadcast %cst_72 : bf16 to vector<1x1x18x128xbf16>
    %c0_73 = arith.constant 0 : index
    %c17 = arith.constant 17 : index
    %c0_74 = arith.constant 0 : index
    %c0_75 = arith.constant 0 : index
    %64 = vector.load %arg12[%c0_73, %c17, %c0_74, %c0_75] : memref<1x18x18x128xbf16, #tpu.memory_space<vmem>>, vector<1x1x18x128xbf16>
    tpu.vector_store %arg12[%c0_73, %c17, %c0_74, %c0_75], %63 {strides = array<i32>} : memref<1x18x18x128xbf16, #tpu.memory_space<vmem>>, vector<1x1x18x128xbf16>,
    %cst_76 = arith.constant 0.000000e+00 : bf16
    %65 = vector.broadcast %cst_76 : bf16 to vector<1x16x1x128xbf16>
    %c0_77 = arith.constant 0 : index
    %c1_78 = arith.constant 1 : index
    %c0_79 = arith.constant 0 : index
    %c0_80 = arith.constant 0 : index
    %66 = vector.load %arg12[%c0_77, %c1_78, %c0_79, %c0_80] : memref<1x18x18x128xbf16, #tpu.memory_space<vmem>>, vector<1x16x1x128xbf16>
    tpu.vector_store %arg12[%c0_77, %c1_78, %c0_79, %c0_80], %65 {strides = array<i32>} : memref<1x18x18x128xbf16, #tpu.memory_space<vmem>>, vector<1x16x1x128xbf16>,
    %cst_81 = arith.constant 0.000000e+00 : bf16
    %67 = vector.broadcast %cst_81 : bf16 to vector<1x16x1x128xbf16>
    %c0_82 = arith.constant 0 : index
    %c1_83 = arith.constant 1 : index
    %c17_84 = arith.constant 17 : index
    %c0_85 = arith.constant 0 : index
    %68 = vector.load %arg12[%c0_82, %c1_83, %c17_84, %c0_85] : memref<1x18x18x128xbf16, #tpu.memory_space<vmem>>, vector<1x16x1x128xbf16>
    tpu.vector_store %arg12[%c0_82, %c1_83, %c17_84, %c0_85], %67 {strides = array<i32>} : memref<1x18x18x128xbf16, #tpu.memory_space<vmem>>, vector<1x16x1x128xbf16>,
    %69 = vector.shape_cast %60 : vector<256x128xf32> to vector<1x16x16x128xf32>
    %70 = arith.truncf %69 : vector<1x16x16x128xf32> to vector<1x16x16x128xbf16>
    %c0_86 = arith.constant 0 : index
    %c1_87 = arith.constant 1 : index
    %c1_88 = arith.constant 1 : index
    %c0_89 = arith.constant 0 : index
    %71 = vector.load %arg12[%c0_86, %c1_87, %c1_88, %c0_89] : memref<1x18x18x128xbf16, #tpu.memory_space<vmem>>, vector<1x16x16x128xbf16>
    tpu.vector_store %arg12[%c0_86, %c1_87, %c1_88, %c0_89], %70 {strides = array<i32>} : memref<1x18x18x128xbf16, #tpu.memory_space<vmem>>, vector<1x16x16x128xbf16>,
    %c0_90 = arith.constant 0 : index
    %c0_91 = arith.constant 0 : index
    %c0_92 = arith.constant 0 : index
    %c0_93 = arith.constant 0 : index
    %72 = vector.load %arg12[%c0_90, %c0_91, %c0_92, %c0_93] : memref<1x18x18x128xbf16, #tpu.memory_space<vmem>>, vector<1x16x16x128xbf16>
    %73 = vector.shape_cast %72 : vector<1x16x16x128xbf16> to vector<256x128xbf16>
    %c0_94 = arith.constant 0 : index
    %c0_95 = arith.constant 0 : index
    %c0_96 = arith.constant 0 : index
    %74 = vector.load %arg5[%c0_94, %c0_95, %c0_96] : memref<9x128x128xbf16, #tpu.memory_space<vmem>>, vector<1x128x128xbf16>
    %75 = vector.shape_cast %74 : vector<1x128x128xbf16> to vector<128x128xbf16>
    %cst_97 = arith.constant dense<0.000000e+00> : vector<256x128xf32>
    %76 = tpu.matmul %73, %75, %cst_97 {dimension_numbers = #tpu.dot_dimension_numbers<[1], [0], [0], [1], [0, 0, 1, 1], [], []>} : vector<256x128xbf16>, vector<128x128xbf16>, vector<256x128xf32> -> vector<256x128xf32>
    %c0_98 = arith.constant 0 : index
    %c0_99 = arith.constant 0 : index
    %c1_100 = arith.constant 1 : index
    %c0_101 = arith.constant 0 : index
    %77 = vector.load %arg12[%c0_98, %c0_99, %c1_100, %c0_101] : memref<1x18x18x128xbf16, #tpu.memory_space<vmem>>, vector<1x16x16x128xbf16>
    %78 = vector.shape_cast %77 : vector<1x16x16x128xbf16> to vector<256x128xbf16>
    %c1_102 = arith.constant 1 : index
    %c0_103 = arith.constant 0 : index
    %c0_104 = arith.constant 0 : index
    %79 = vector.load %arg5[%c1_102, %c0_103, %c0_104] : memref<9x128x128xbf16, #tpu.memory_space<vmem>>, vector<1x128x128xbf16>
    %80 = vector.shape_cast %79 : vector<1x128x128xbf16> to vector<128x128xbf16>
    %cst_105 = arith.constant dense<0.000000e+00> : vector<256x128xf32>
    %81 = tpu.matmul %78, %80, %cst_105 {dimension_numbers = #tpu.dot_dimension_numbers<[1], [0], [0], [1], [0, 0, 1, 1], [], []>} : vector<256x128xbf16>, vector<128x128xbf16>, vector<256x128xf32> -> vector<256x128xf32>
    %82 = arith.addf %76, %81 : vector<256x128xf32>
    %c0_106 = arith.constant 0 : index
    %c0_107 = arith.constant 0 : index
    %c2_108 = arith.constant 2 : index
    %c0_109 = arith.constant 0 : index
    %83 = vector.load %arg12[%c0_106, %c0_107, %c2_108, %c0_109] : memref<1x18x18x128xbf16, #tpu.memory_space<vmem>>, vector<1x16x16x128xbf16>
    %84 = vector.shape_cast %83 : vector<1x16x16x128xbf16> to vector<256x128xbf16>
    %c2_110 = arith.constant 2 : index
    %c0_111 = arith.constant 0 : index
    %c0_112 = arith.constant 0 : index
    %85 = vector.load %arg5[%c2_110, %c0_111, %c0_112] : memref<9x128x128xbf16, #tpu.memory_space<vmem>>, vector<1x128x128xbf16>
    %86 = vector.shape_cast %85 : vector<1x128x128xbf16> to vector<128x128xbf16>
    %cst_113 = arith.constant dense<0.000000e+00> : vector<256x128xf32>
    %87 = tpu.matmul %84, %86, %cst_113 {dimension_numbers = #tpu.dot_dimension_numbers<[1], [0], [0], [1], [0, 0, 1, 1], [], []>} : vector<256x128xbf16>, vector<128x128xbf16>, vector<256x128xf32> -> vector<256x128xf32>
    %88 = arith.addf %82, %87 : vector<256x128xf32>
    %c0_114 = arith.constant 0 : index
    %c1_115 = arith.constant 1 : index
    %c0_116 = arith.constant 0 : index
    %c0_117 = arith.constant 0 : index
    %89 = vector.load %arg12[%c0_114, %c1_115, %c0_116, %c0_117] : memref<1x18x18x128xbf16, #tpu.memory_space<vmem>>, vector<1x16x16x128xbf16>
    %90 = vector.shape_cast %89 : vector<1x16x16x128xbf16> to vector<256x128xbf16>
    %c3_118 = arith.constant 3 : index
    %c0_119 = arith.constant 0 : index
    %c0_120 = arith.constant 0 : index
    %91 = vector.load %arg5[%c3_118, %c0_119, %c0_120] : memref<9x128x128xbf16, #tpu.memory_space<vmem>>, vector<1x128x128xbf16>
    %92 = vector.shape_cast %91 : vector<1x128x128xbf16> to vector<128x128xbf16>
    %cst_121 = arith.constant dense<0.000000e+00> : vector<256x128xf32>
    %93 = tpu.matmul %90, %92, %cst_121 {dimension_numbers = #tpu.dot_dimension_numbers<[1], [0], [0], [1], [0, 0, 1, 1], [], []>} : vector<256x128xbf16>, vector<128x128xbf16>, vector<256x128xf32> -> vector<256x128xf32>
    %94 = arith.addf %88, %93 : vector<256x128xf32>
    %c0_122 = arith.constant 0 : index
    %c1_123 = arith.constant 1 : index
    %c1_124 = arith.constant 1 : index
    %c0_125 = arith.constant 0 : index
    %95 = vector.load %arg12[%c0_122, %c1_123, %c1_124, %c0_125] : memref<1x18x18x128xbf16, #tpu.memory_space<vmem>>, vector<1x16x16x128xbf16>
    %96 = vector.shape_cast %95 : vector<1x16x16x128xbf16> to vector<256x128xbf16>
    %c4_126 = arith.constant 4 : index
    %c0_127 = arith.constant 0 : index
    %c0_128 = arith.constant 0 : index
    %97 = vector.load %arg5[%c4_126, %c0_127, %c0_128] : memref<9x128x128xbf16, #tpu.memory_space<vmem>>, vector<1x128x128xbf16>
    %98 = vector.shape_cast %97 : vector<1x128x128xbf16> to vector<128x128xbf16>
    %cst_129 = arith.constant dense<0.000000e+00> : vector<256x128xf32>
    %99 = tpu.matmul %96, %98, %cst_129 {dimension_numbers = #tpu.dot_dimension_numbers<[1], [0], [0], [1], [0, 0, 1, 1], [], []>} : vector<256x128xbf16>, vector<128x128xbf16>, vector<256x128xf32> -> vector<256x128xf32>
    %100 = arith.addf %94, %99 : vector<256x128xf32>
    %c0_130 = arith.constant 0 : index
    %c1_131 = arith.constant 1 : index
    %c2_132 = arith.constant 2 : index
    %c0_133 = arith.constant 0 : index
    %101 = vector.load %arg12[%c0_130, %c1_131, %c2_132, %c0_133] : memref<1x18x18x128xbf16, #tpu.memory_space<vmem>>, vector<1x16x16x128xbf16>
    %102 = vector.shape_cast %101 : vector<1x16x16x128xbf16> to vector<256x128xbf16>
    %c5_134 = arith.constant 5 : index
    %c0_135 = arith.constant 0 : index
    %c0_136 = arith.constant 0 : index
    %103 = vector.load %arg5[%c5_134, %c0_135, %c0_136] : memref<9x128x128xbf16, #tpu.memory_space<vmem>>, vector<1x128x128xbf16>
    %104 = vector.shape_cast %103 : vector<1x128x128xbf16> to vector<128x128xbf16>
    %cst_137 = arith.constant dense<0.000000e+00> : vector<256x128xf32>
    %105 = tpu.matmul %102, %104, %cst_137 {dimension_numbers = #tpu.dot_dimension_numbers<[1], [0], [0], [1], [0, 0, 1, 1], [], []>} : vector<256x128xbf16>, vector<128x128xbf16>, vector<256x128xf32> -> vector<256x128xf32>
    %106 = arith.addf %100, %105 : vector<256x128xf32>
    %c0_138 = arith.constant 0 : index
    %c2_139 = arith.constant 2 : index
    %c0_140 = arith.constant 0 : index
    %c0_141 = arith.constant 0 : index
    %107 = vector.load %arg12[%c0_138, %c2_139, %c0_140, %c0_141] : memref<1x18x18x128xbf16, #tpu.memory_space<vmem>>, vector<1x16x16x128xbf16>
    %108 = vector.shape_cast %107 : vector<1x16x16x128xbf16> to vector<256x128xbf16>
    %c6_142 = arith.constant 6 : index
    %c0_143 = arith.constant 0 : index
    %c0_144 = arith.constant 0 : index
    %109 = vector.load %arg5[%c6_142, %c0_143, %c0_144] : memref<9x128x128xbf16, #tpu.memory_space<vmem>>, vector<1x128x128xbf16>
    %110 = vector.shape_cast %109 : vector<1x128x128xbf16> to vector<128x128xbf16>
    %cst_145 = arith.constant dense<0.000000e+00> : vector<256x128xf32>
    %111 = tpu.matmul %108, %110, %cst_145 {dimension_numbers = #tpu.dot_dimension_numbers<[1], [0], [0], [1], [0, 0, 1, 1], [], []>} : vector<256x128xbf16>, vector<128x128xbf16>, vector<256x128xf32> -> vector<256x128xf32>
    %112 = arith.addf %106, %111 : vector<256x128xf32>
    %c0_146 = arith.constant 0 : index
    %c2_147 = arith.constant 2 : index
    %c1_148 = arith.constant 1 : index
    %c0_149 = arith.constant 0 : index
    %113 = vector.load %arg12[%c0_146, %c2_147, %c1_148, %c0_149] : memref<1x18x18x128xbf16, #tpu.memory_space<vmem>>, vector<1x16x16x128xbf16>
    %114 = vector.shape_cast %113 : vector<1x16x16x128xbf16> to vector<256x128xbf16>
    %c7_150 = arith.constant 7 : index
    %c0_151 = arith.constant 0 : index
    %c0_152 = arith.constant 0 : index
    %115 = vector.load %arg5[%c7_150, %c0_151, %c0_152] : memref<9x128x128xbf16, #tpu.memory_space<vmem>>, vector<1x128x128xbf16>
    %116 = vector.shape_cast %115 : vector<1x128x128xbf16> to vector<128x128xbf16>
    %cst_153 = arith.constant dense<0.000000e+00> : vector<256x128xf32>
    %117 = tpu.matmul %114, %116, %cst_153 {dimension_numbers = #tpu.dot_dimension_numbers<[1], [0], [0], [1], [0, 0, 1, 1], [], []>} : vector<256x128xbf16>, vector<128x128xbf16>, vector<256x128xf32> -> vector<256x128xf32>
    %118 = arith.addf %112, %117 : vector<256x128xf32>
    %c0_154 = arith.constant 0 : index
    %c2_155 = arith.constant 2 : index
    %c2_156 = arith.constant 2 : index
    %c0_157 = arith.constant 0 : index
    %119 = vector.load %arg12[%c0_154, %c2_155, %c2_156, %c0_157] : memref<1x18x18x128xbf16, #tpu.memory_space<vmem>>, vector<1x16x16x128xbf16>
    %120 = vector.shape_cast %119 : vector<1x16x16x128xbf16> to vector<256x128xbf16>
    %c8_158 = arith.constant 8 : index
    %c0_159 = arith.constant 0 : index
    %c0_160 = arith.constant 0 : index
    %121 = vector.load %arg5[%c8_158, %c0_159, %c0_160] : memref<9x128x128xbf16, #tpu.memory_space<vmem>>, vector<1x128x128xbf16>
    %122 = vector.shape_cast %121 : vector<1x128x128xbf16> to vector<128x128xbf16>
    %cst_161 = arith.constant dense<0.000000e+00> : vector<256x128xf32>
    %123 = tpu.matmul %120, %122, %cst_161 {dimension_numbers = #tpu.dot_dimension_numbers<[1], [0], [0], [1], [0, 0, 1, 1], [], []>} : vector<256x128xbf16>, vector<128x128xbf16>, vector<256x128xf32> -> vector<256x128xf32>
    %124 = arith.addf %118, %123 : vector<256x128xf32>
    %c0_162 = arith.constant 0 : index
    %c0_163 = arith.constant 0 : index
    %125 = vector.load %arg6[%c0_162, %c0_163] : memref<1x128xf32, #tpu.memory_space<vmem>>, vector<1x128xf32>
    %126 = vector.broadcast %125 : vector<1x128xf32> to vector<256x128xf32>
    %127 = arith.mulf %124, %126 : vector<256x128xf32>
    %c0_164 = arith.constant 0 : index
    %c0_165 = arith.constant 0 : index
    %128 = vector.load %arg7[%c0_164, %c0_165] : memref<1x128xf32, #tpu.memory_space<vmem>>, vector<1x128xf32>
    %129 = vector.broadcast %128 : vector<1x128xf32> to vector<256x128xf32>
    %130 = arith.addf %127, %129 : vector<256x128xf32>
    %c0_166 = arith.constant 0 : index
    %c0_167 = arith.constant 0 : index
    %131 = vector.load %arg8[%c0_166, %c0_167] : memref<128x128xbf16, #tpu.memory_space<vmem>>, vector<128x128xbf16>
    %cst_168 = arith.constant dense<0.000000e+00> : vector<256x128xf32>
    %132 = tpu.matmul %24, %131, %cst_168 {dimension_numbers = #tpu.dot_dimension_numbers<[1], [0], [0], [1], [0, 0, 1, 1], [], []>} : vector<256x128xbf16>, vector<128x128xbf16>, vector<256x128xf32> -> vector<256x128xf32>
    %c0_169 = arith.constant 0 : index
    %c0_170 = arith.constant 0 : index
    %133 = vector.load %arg9[%c0_169, %c0_170] : memref<1x128xf32, #tpu.memory_space<vmem>>, vector<1x128xf32>
    %134 = vector.broadcast %133 : vector<1x128xf32> to vector<256x128xf32>
    %135 = arith.mulf %132, %134 : vector<256x128xf32>
    %c0_171 = arith.constant 0 : index
    %c0_172 = arith.constant 0 : index
    %136 = vector.load %arg10[%c0_171, %c0_172] : memref<1x128xf32, #tpu.memory_space<vmem>>, vector<1x128xf32>
    %137 = vector.broadcast %136 : vector<1x128xf32> to vector<256x128xf32>
    %138 = arith.addf %135, %137 : vector<256x128xf32>
    %139 = arith.addf %130, %138 : vector<256x128xf32>
    %cst_173 = arith.constant 0.000000e+00 : f32
    %140 = vector.broadcast %cst_173 : f32 to vector<256x128xf32>
    %141 = arith.maximumf %139, %140 : vector<256x128xf32>
    %142 = vector.shape_cast %141 : vector<256x128xf32> to vector<1x16x16x128xf32>
    %c0_174 = arith.constant 0 : index
    %c0_175 = arith.constant 0 : index
    %c0_176 = arith.constant 0 : index
    %c0_177 = arith.constant 0 : index
    %143 = vector.load %arg11[%c0_174, %c0_175, %c0_176, %c0_177] : memref<1x16x16x128xf32, #tpu.memory_space<vmem>>, vector<1x16x16x128xf32>
    tpu.vector_store %arg11[%c0_174, %c0_175, %c0_176, %c0_177], %142 {strides = array<i32>} : memref<1x16x16x128xf32, #tpu.memory_space<vmem>>, vector<1x16x16x128xf32>,
    return
  }
  func.func @transform_0(%arg0: i32) -> (i32, i32, i32, i32) {
    %c0_i32 = arith.constant 0 : i32
    %c0_i32_0 = arith.constant 0 : i32
    %c0_i32_1 = arith.constant 0 : i32
    %c0_i32_2 = arith.constant 0 : i32
    return %arg0, %c0_i32, %c0_i32_0, %c0_i32_1 : i32, i32, i32, i32
  }
  func.func @transform_1(%arg0: i32) -> (i32, i32, i32) {
    %c0_i32 = arith.constant 0 : i32
    %c0_i32_0 = arith.constant 0 : i32
    %c0_i32_1 = arith.constant 0 : i32
    %c0_i32_2 = arith.constant 0 : i32
    return %c0_i32, %c0_i32_0, %c0_i32_1 : i32, i32, i32
  }
  func.func @transform_2(%arg0: i32) -> (i32, i32) {
    %c0_i32 = arith.constant 0 : i32
    %c0_i32_0 = arith.constant 0 : i32
    %c0_i32_1 = arith.constant 0 : i32
    return %c0_i32, %c0_i32_0 : i32, i32
  }
  func.func @transform_3(%arg0: i32) -> (i32, i32) {
    %c0_i32 = arith.constant 0 : i32
    %c0_i32_0 = arith.constant 0 : i32
    %c0_i32_1 = arith.constant 0 : i32
    return %c0_i32, %c0_i32_0 : i32, i32
  }
  func.func @transform_4(%arg0: i32) -> (i32, i32, i32) {
    %c0_i32 = arith.constant 0 : i32
    %c0_i32_0 = arith.constant 0 : i32
    %c0_i32_1 = arith.constant 0 : i32
    %c0_i32_2 = arith.constant 0 : i32
    return %c0_i32, %c0_i32_0, %c0_i32_1 : i32, i32, i32
  }
  func.func @transform_5(%arg0: i32) -> (i32, i32) {
    %c0_i32 = arith.constant 0 : i32
    %c0_i32_0 = arith.constant 0 : i32
    %c0_i32_1 = arith.constant 0 : i32
    return %c0_i32, %c0_i32_0 : i32, i32
  }
  func.func @transform_6(%arg0: i32) -> (i32, i32) {
    %c0_i32 = arith.constant 0 : i32
    %c0_i32_0 = arith.constant 0 : i32
    %c0_i32_1 = arith.constant 0 : i32
    return %c0_i32, %c0_i32_0 : i32, i32
  }
  func.func @transform_7(%arg0: i32) -> (i32, i32) {
    %c0_i32 = arith.constant 0 : i32
    %c0_i32_0 = arith.constant 0 : i32
    %c0_i32_1 = arith.constant 0 : i32
    return %c0_i32, %c0_i32_0 : i32, i32
  }
  func.func @transform_8(%arg0: i32) -> (i32, i32) {
    %c0_i32 = arith.constant 0 : i32
    %c0_i32_0 = arith.constant 0 : i32
    %c0_i32_1 = arith.constant 0 : i32
    return %c0_i32, %c0_i32_0 : i32, i32
  }
  func.func @transform_9(%arg0: i32) -> (i32, i32) {
    %c0_i32 = arith.constant 0 : i32
    %c0_i32_0 = arith.constant 0 : i32
    %c0_i32_1 = arith.constant 0 : i32
    return %c0_i32, %c0_i32_0 : i32, i32
  }
  func.func @transform_10(%arg0: i32) -> (i32, i32, i32, i32) {
    %c0_i32 = arith.constant 0 : i32
    %c0_i32_0 = arith.constant 0 : i32
    %c0_i32_1 = arith.constant 0 : i32
    %c0_i32_2 = arith.constant 0 : i32
    return %arg0, %c0_i32, %c0_i32_0, %c0_i32_1 : i32, i32, i32, i32
  }
}

</mosaic_0001>

<llo_original>
// kernel: basic_block4gem_pallas_nhwc.1
$region0: #{basic_block4gem_pallas_nhwc.1}
  #allocation0 [shape = 'u32[]', space=smem, size = 0x4, offset = 0x4, fixed_abs, tag = 'smem constant byte address 0x4 - core index']
  #allocation1 [shape = 'u32[144,128]{1,0:T(1,128)}', space=vmem, size = 0x12000, scoped, tag = 'internal scratch']
  #allocation2 [shape = 'bf16[1,18,18,128]{3,2,1,0:T(8,128)(2,1)}', space=vmem, size = 0x1b000, scoped, tag = 'scratch operand']
  %s0 = inlined_call_operand.vmem [shape: bf16[2,18,18,128], index: 0, kind: input, shape index: {}]
  %s1 = inlined_call_operand.vmem [shape: bf16[9,128,128], index: 1, kind: input, shape index: {}]
  %s2 = inlined_call_operand.vmem [shape: f32[1,128], index: 2, kind: input, shape index: {}]
  %s3 = inlined_call_operand.vmem [shape: f32[1,128], index: 3, kind: input, shape index: {}]
  %s4 = inlined_call_operand.vmem [shape: bf16[9,128,128], index: 4, kind: input, shape index: {}]
  %s5 = inlined_call_operand.vmem [shape: f32[1,128], index: 5, kind: input, shape index: {}]
  %s6 = inlined_call_operand.vmem [shape: f32[1,128], index: 6, kind: input, shape index: {}]
  %s7 = inlined_call_operand.vmem [shape: bf16[128,128], index: 7, kind: input, shape index: {}]
  %s8 = inlined_call_operand.vmem [shape: f32[1,128], index: 8, kind: input, shape index: {}]
  %s9 = inlined_call_operand.vmem [shape: f32[1,128], index: 9, kind: input, shape index: {}]
  %s10 = inlined_call_operand.vmem [shape: f32[2,16,16,128], index: 10, kind: output, shape index: {}]
  %s11 = sld [smem:[#allocation0]]
  $region73: #{basic_block4gem_pallas_nhwc.1} parent=0
    _
  %s13 = ssub.s32 1, %s11
  %s14 = scalar_select 0, %s13, %s11
  loop: start=0, step=1, limit=4
  $region2: #{basic_block4gem_pallas_nhwc.1} parent=0 // loop_pre_header
    _
  $region3: #{basic_block4gem_pallas_nhwc.1} parent=0 // loop_header
    %s16 = sphi 0, %s20
    %p17 = scmp.ge.s32.totalorder %s16, 4
    %s26 = sphi 0, %s28
    %s29 = sphi 0, %s26
    %s30 = sphi 0, %s29
    %s46 = sphi 0, %s30
    %s50 = sphi 0, %s50
    %s52 = sphi 0, %s50
    %s53 = sphi 0, %s52
    %s67 = sphi 0, %s53
    %s71 = sphi 0, %s71
    %s73 = sphi 0, %s71
    %s74 = sphi 0, %s73
    %s88 = sphi 0, %s74
    %s92 = sphi 0, %s92
    %s94 = sphi 0, %s92
    %s95 = sphi 0, %s94
    %s109 = sphi 0, %s95
    %s113 = sphi 0, %s113
    %s115 = sphi 0, %s113
    %s116 = sphi 0, %s115
    %s130 = sphi 0, %s116
    %s134 = sphi 0, %s134
    %s136 = sphi 0, %s134
    %s137 = sphi 0, %s136
    %s151 = sphi 0, %s137
    %s155 = sphi 0, %s155
    %s157 = sphi 0, %s155
    %s158 = sphi 0, %s157
    %s172 = sphi 0, %s158
    %s176 = sphi 0, %s176
    %s178 = sphi 0, %s176
    %s179 = sphi 0, %s178
    %s193 = sphi 0, %s179
    %s197 = sphi 0, %s197
    %s199 = sphi 0, %s197
    %s200 = sphi 0, %s199
    %s214 = sphi 0, %s200
    %s218 = sphi 0, %s218
    %s220 = sphi 0, %s218
    %s221 = sphi 0, %s220
    %s235 = sphi 0, %s221
    %s241 = sphi 0, %s243
    %s244 = sphi 0, %s241
    %s245 = sphi 0, %s244
    %s261 = sphi 0, %s245
  $region4: #{basic_block4gem_pallas_nhwc.1} parent=0 // loop_header_branch
    %19 = sbr.rel (%p17) target = $region8
  $region5: #{basic_block4gem_pallas_nhwc.1} parent=0 // loop_body
    %s21 = ssub.s32 %s16, 1
    %s22 = ssub.s32 %s16, 2
    %s23 = sadd.s32 %s16, 1
    %s24 = ssub.s32 %s16, %s23
    %p25 = scmp.eq.s32.totalorder %s24, 0
    %s27 = sadd.s32 %s26, 1
    %s28 = scalar_select %p25, %s26, %s27
    %p31 = pneg %p25
    %p32 = scmp.eq.s32.totalorder %s16, 1
    %p33 = por %p31, %p32
    %p34 = scmp.ne.s32.totalorder %s26, %s29
    %p35 = scmp.eq.s32.totalorder %s16, 0
    %p36 = por %p34, %p35
    %p37 = scmp.ne.s32.totalorder %s26, %s29
    %p38 = scmp.eq.s32.totalorder %s21, 1
    %p39 = por %p37, %p38
    %p40 = scmp.ne.s32.totalorder %s29, %s30
    %p41 = scmp.eq.s32.totalorder %s21, 0
    %p42 = por %p40, %p41
    %p43 = scmp.ne.s32.totalorder %s29, %s30
    %p44 = scmp.eq.s32.totalorder %s22, 1
    %p45 = por %p43, %p44
    %p47 = scmp.ne.s32.totalorder %s30, %s46
    %p48 = scmp.eq.s32.totalorder %s22, 0
    %p49 = por %p47, %p48
    %s51 = sadd.s32 %s50, 1
    %p54 = scmp.eq.s32.totalorder %s16, 1
    %p55 = scmp.ne.s32.totalorder %s50, %s52
    %p56 = scmp.eq.s32.totalorder %s16, 0
    %p57 = por %p55, %p56
    %p58 = scmp.ne.s32.totalorder %s50, %s52
    %p59 = scmp.eq.s32.totalorder %s21, 1
    %p60 = por %p58, %p59
    %p61 = scmp.ne.s32.totalorder %s52, %s53
    %p62 = scmp.eq.s32.totalorder %s21, 0
    %p63 = por %p61, %p62
    %p64 = scmp.ne.s32.totalorder %s52, %s53
    %p65 = scmp.eq.s32.totalorder %s22, 1
    %p66 = por %p64, %p65
    %p68 = scmp.ne.s32.totalorder %s53, %s67
    %p69 = scmp.eq.s32.totalorder %s22, 0
    %p70 = por %p68, %p69
    %s72 = sadd.s32 %s71, 1
    %p75 = scmp.eq.s32.totalorder %s16, 1
    %p76 = scmp.ne.s32.totalorder %s71, %s73
    %p77 = scmp.eq.s32.totalorder %s16, 0
    %p78 = por %p76, %p77
    %p79 = scmp.ne.s32.totalorder %s71, %s73
    %p80 = scmp.eq.s32.totalorder %s21, 1
    %p81 = por %p79, %p80
    %p82 = scmp.ne.s32.totalorder %s73, %s74
    %p83 = scmp.eq.s32.totalorder %s21, 0
    %p84 = por %p82, %p83
    %p85 = scmp.ne.s32.totalorder %s73, %s74
    %p86 = scmp.eq.s32.totalorder %s22, 1
    %p87 = por %p85, %p86
    %p89 = scmp.ne.s32.totalorder %s74, %s88
    %p90 = scmp.eq.s32.totalorder %s22, 0
    %p91 = por %p89, %p90
    %s93 = sadd.s32 %s92, 1
    %p96 = scmp.eq.s32.totalorder %s16, 1
    %p97 = scmp.ne.s32.totalorder %s92, %s94
    %p98 = scmp.eq.s32.totalorder %s16, 0
    %p99 = por %p97, %p98
    %p100 = scmp.ne.s32.totalorder %s92, %s94
    %p101 = scmp.eq.s32.totalorder %s21, 1
    %p102 = por %p100, %p101
    %p103 = scmp.ne.s32.totalorder %s94, %s95
    %p104 = scmp.eq.s32.totalorder %s21, 0
    %p105 = por %p103, %p104
    %p106 = scmp.ne.s32.totalorder %s94, %s95
    %p107 = scmp.eq.s32.totalorder %s22, 1
    %p108 = por %p106, %p107
    %p110 = scmp.ne.s32.totalorder %s95, %s109
    %p111 = scmp.eq.s32.totalorder %s22, 0
    %p112 = por %p110, %p111
    %s114 = sadd.s32 %s113, 1
    %p117 = scmp.eq.s32.totalorder %s16, 1
    %p118 = scmp.ne.s32.totalorder %s113, %s115
    %p119 = scmp.eq.s32.totalorder %s16, 0
    %p120 = por %p118, %p119
    %p121 = scmp.ne.s32.totalorder %s113, %s115
    %p122 = scmp.eq.s32.totalorder %s21, 1
    %p123 = por %p121, %p122
    %p124 = scmp.ne.s32.totalorder %s115, %s116
    %p125 = scmp.eq.s32.totalorder %s21, 0
    %p126 = por %p124, %p125
    %p127 = scmp.ne.s32.totalorder %s115, %s116
    %p128 = scmp.eq.s32.totalorder %s22, 1
    %p129 = por %p127, %p128
    %p131 = scmp.ne.s32.totalorder %s116, %s130
    %p132 = scmp.eq.s32.totalorder %s22, 0
    %p133 = por %p131, %p132
    %s135 = sadd.s32 %s134, 1
    %p138 = scmp.eq.s32.totalorder %s16, 1
    %p139 = scmp.ne.s32.totalorder %s134, %s136
    %p140 = scmp.eq.s32.totalorder %s16, 0
    %p141 = por %p139, %p140
    %p142 = scmp.ne.s32.totalorder %s134, %s136
    %p143 = scmp.eq.s32.totalorder %s21, 1
    %p144 = por %p142, %p143
    %p145 = scmp.ne.s32.totalorder %s136, %s137
    %p146 = scmp.eq.s32.totalorder %s21, 0
    %p147 = por %p145, %p146
    %p148 = scmp.ne.s32.totalorder %s136, %s137
    %p149 = scmp.eq.s32.totalorder %s22, 1
    %p150 = por %p148, %p149
    %p152 = scmp.ne.s32.totalorder %s137, %s151
    %p153 = scmp.eq.s32.totalorder %s22, 0
    %p154 = por %p152, %p153
    %s156 = sadd.s32 %s155, 1
    %p159 = scmp.eq.s32.totalorder %s16, 1
    %p160 = scmp.ne.s32.totalorder %s155, %s157
    %p161 = scmp.eq.s32.totalorder %s16, 0
    %p162 = por %p160, %p161
    %p163 = scmp.ne.s32.totalorder %s155, %s157
    %p164 = scmp.eq.s32.totalorder %s21, 1
    %p165 = por %p163, %p164
    %p166 = scmp.ne.s32.totalorder %s157, %s158
    %p167 = scmp.eq.s32.totalorder %s21, 0
    %p168 = por %p166, %p167
    %p169 = scmp.ne.s32.totalorder %s157, %s158
    %p170 = scmp.eq.s32.totalorder %s22, 1
    %p171 = por %p169, %p170
    %p173 = scmp.ne.s32.totalorder %s158, %s172
    %p174 = scmp.eq.s32.totalorder %s22, 0
    %p175 = por %p173, %p174
    %s177 = sadd.s32 %s176, 1
    %p180 = scmp.eq.s32.totalorder %s16, 1
    %p181 = scmp.ne.s32.totalorder %s176, %s178
    %p182 = scmp.eq.s32.totalorder %s16, 0
    %p183 = por %p181, %p182
    %p184 = scmp.ne.s32.totalorder %s176, %s178
    %p185 = scmp.eq.s32.totalorder %s21, 1
    %p186 = por %p184, %p185
    %p187 = scmp.ne.s32.totalorder %s178, %s179
    %p188 = scmp.eq.s32.totalorder %s21, 0
    %p189 = por %p187, %p188
    %p190 = scmp.ne.s32.totalorder %s178, %s179
    %p191 = scmp.eq.s32.totalorder %s22, 1
    %p192 = por %p190, %p191
    %p194 = scmp.ne.s32.totalorder %s179, %s193
    %p195 = scmp.eq.s32.totalorder %s22, 0
    %p196 = por %p194, %p195
    %s198 = sadd.s32 %s197, 1
    %p201 = scmp.eq.s32.totalorder %s16, 1
    %p202 = scmp.ne.s32.totalorder %s197, %s199
    %p203 = scmp.eq.s32.totalorder %s16, 0
    %p204 = por %p202, %p203
    %p205 = scmp.ne.s32.totalorder %s197, %s199
    %p206 = scmp.eq.s32.totalorder %s21, 1
    %p207 = por %p205, %p206
    %p208 = scmp.ne.s32.totalorder %s199, %s200
    %p209 = scmp.eq.s32.totalorder %s21, 0
    %p210 = por %p208, %p209
    %p211 = scmp.ne.s32.totalorder %s199, %s200
    %p212 = scmp.eq.s32.totalorder %s22, 1
    %p213 = por %p211, %p212
    %p215 = scmp.ne.s32.totalorder %s200, %s214
    %p216 = scmp.eq.s32.totalorder %s22, 0
    %p217 = por %p215, %p216
    %s219 = sadd.s32 %s218, 1
    %p222 = scmp.eq.s32.totalorder %s16, 1
    %p223 = scmp.ne.s32.totalorder %s218, %s220
    %p224 = scmp.eq.s32.totalorder %s16, 0
    %p225 = por %p223, %p224
    %p226 = scmp.ne.s32.totalorder %s218, %s220
    %p227 = scmp.eq.s32.totalorder %s21, 1
    %p228 = por %p226, %p227
    %p229 = scmp.ne.s32.totalorder %s220, %s221
    %p230 = scmp.eq.s32.totalorder %s21, 0
    %p231 = por %p229, %p230
    %p232 = scmp.ne.s32.totalorder %s220, %s221
    %p233 = scmp.eq.s32.totalorder %s22, 1
    %p234 = por %p232, %p233
    %p236 = scmp.ne.s32.totalorder %s221, %s235
    %p237 = scmp.eq.s32.totalorder %s22, 0
    %p238 = por %p236, %p237
    %s239 = ssub.s32 %s16, %s23
    %p240 = scmp.eq.s32.totalorder %s239, 0
    %s242 = sadd.s32 %s241, 1
    %s243 = scalar_select %p240, %s241, %s242
    %p246 = pneg %p240
    %p247 = scmp.eq.s32.totalorder %s16, 1
    %p248 = por %p246, %p247
    %p249 = scmp.ne.s32.totalorder %s241, %s244
    %p250 = scmp.eq.s32.totalorder %s16, 0
    %p251 = por %p249, %p250
    %p252 = scmp.ne.s32.totalorder %s241, %s244
    %p253 = scmp.eq.s32.totalorder %s21, 1
    %p254 = por %p252, %p253
    %p255 = scmp.ne.s32.totalorder %s244, %s245
    %p256 = scmp.eq.s32.totalorder %s21, 0
    %p257 = por %p255, %p256
    %p258 = scmp.ne.s32.totalorder %s244, %s245
    %p259 = scmp.eq.s32.totalorder %s22, 1
    %p260 = por %p258, %p259
    %p262 = scmp.ne.s32.totalorder %s245, %s261
    %p263 = scmp.eq.s32.totalorder %s22, 0
    %p264 = por %p262, %p263
    %p265 = scmp.le.s32.totalorder 1, %s16
    %p266 = scmp.lt.s32.totalorder %s16, 3
    %p267 = pnand %p265, %p266
    %p268 = pneg %p267
    // Predicated region
    $region9: #{basic_block4gem_pallas_nhwc.1} parent=5 // pred_check
      _
    $region10: #{basic_block4gem_pallas_nhwc.1} parent=5 // pred_check_branch
      %270 = sbr.rel (%p267) target = $region12
    $region11: #{basic_block4gem_pallas_nhwc.1} parent=5 // pred_region
      %s271 = ssub.s32 %s16, 1
      // Predicated region
      $region13: #{basic_block4gem_pallas_nhwc.1} parent=11 // pred_check
        %p272 = pneg %p63
      $region14: #{basic_block4gem_pallas_nhwc.1} parent=11 // pred_check_branch
        %274 = sbr.rel (%p272) target = $region16
      $region15: #{basic_block4gem_pallas_nhwc.1} parent=11 // pred_region
        _
      $region16: #{basic_block4gem_pallas_nhwc.1} parent=11 // pred_fallthru
        _
      // Predicated region
      $region17: #{basic_block4gem_pallas_nhwc.1} parent=11 // pred_check
        %p275 = pneg %p84
      $region18: #{basic_block4gem_pallas_nhwc.1} parent=11 // pred_check_branch
        %277 = sbr.rel (%p275) target = $region20
      $region19: #{basic_block4gem_pallas_nhwc.1} parent=11 // pred_region
        _
      $region20: #{basic_block4gem_pallas_nhwc.1} parent=11 // pred_fallthru
        _
      // Predicated region
      $region21: #{basic_block4gem_pallas_nhwc.1} parent=11 // pred_check
        %p278 = pneg %p105
      $region22: #{basic_block4gem_pallas_nhwc.1} parent=11 // pred_check_branch
        %280 = sbr.rel (%p278) target = $region24
      $region23: #{basic_block4gem_pallas_nhwc.1} parent=11 // pred_region
        _
      $region24: #{basic_block4gem_pallas_nhwc.1} parent=11 // pred_fallthru
        _
      // Predicated region
      $region25: #{basic_block4gem_pallas_nhwc.1} parent=11 // pred_check
        %p281 = pneg %p126
      $region26: #{basic_block4gem_pallas_nhwc.1} parent=11 // pred_check_branch
        %283 = sbr.rel (%p281) target = $region28
      $region27: #{basic_block4gem_pallas_nhwc.1} parent=11 // pred_region
        _
      $region28: #{basic_block4gem_pallas_nhwc.1} parent=11 // pred_fallthru
        _
      // Predicated region
      $region29: #{basic_block4gem_pallas_nhwc.1} parent=11 // pred_check
        %p284 = pneg %p147
      $region30: #{basic_block4gem_pallas_nhwc.1} parent=11 // pred_check_branch
        %286 = sbr.rel (%p284) target = $region32
      $region31: #{basic_block4gem_pallas_nhwc.1} parent=11 // pred_region
        _
      $region32: #{basic_block4gem_pallas_nhwc.1} parent=11 // pred_fallthru
        _
      // Predicated region
      $region33: #{basic_block4gem_pallas_nhwc.1} parent=11 // pred_check
        %p287 = pneg %p168
      $region34: #{basic_block4gem_pallas_nhwc.1} parent=11 // pred_check_branch
        %289 = sbr.rel (%p287) target = $region36
      $region35: #{basic_block4gem_pallas_nhwc.1} parent=11 // pred_region
        _
      $region36: #{basic_block4gem_pallas_nhwc.1} parent=11 // pred_fallthru
        _
      // Predicated region
      $region37: #{basic_block4gem_pallas_nhwc.1} parent=11 // pred_check
        %p290 = pneg %p189
      $region38: #{basic_block4gem_pallas_nhwc.1} parent=11 // pred_check_branch
        %292 = sbr.rel (%p290) target = $region40
      $region39: #{basic_block4gem_pallas_nhwc.1} parent=11 // pred_region
        _
      $region40: #{basic_block4gem_pallas_nhwc.1} parent=11 // pred_fallthru
        _
      // Predicated region
      $region41: #{basic_block4gem_pallas_nhwc.1} parent=11 // pred_check
        %p293 = pneg %p210
      $region42: #{basic_block4gem_pallas_nhwc.1} parent=11 // pred_check_branch
        %295 = sbr.rel (%p293) target = $region44
      $region43: #{basic_block4gem_pallas_nhwc.1} parent=11 // pred_region
        _
      $region44: #{basic_block4gem_pallas_nhwc.1} parent=11 // pred_fallthru
        _
      // Predicated region
      $region45: #{basic_block4gem_pallas_nhwc.1} parent=11 // pred_check
        %p296 = pneg %p231
      $region46: #{basic_block4gem_pallas_nhwc.1} parent=11 // pred_check_branch
        %298 = sbr.rel (%p296) target = $region48
      $region47: #{basic_block4gem_pallas_nhwc.1} parent=11 // pred_region
        _
      $region48: #{basic_block4gem_pallas_nhwc.1} parent=11 // pred_fallthru
        _
    $region12: #{basic_block4gem_pallas_nhwc.1} parent=5 // pred_fallthru
      _
    %p299 = scmp.lt.s32.totalorder %s16, 2
    // Predicated region
    $region49: #{basic_block4gem_pallas_nhwc.1} parent=5 // pred_check
      %p300 = pneg %p299
    $region50: #{basic_block4gem_pallas_nhwc.1} parent=5 // pred_check_branch
      %302 = sbr.rel (%p300) target = $region52
    $region51: #{basic_block4gem_pallas_nhwc.1} parent=5 // pred_region
      // Predicated region
      $region53: #{basic_block4gem_pallas_nhwc.1} parent=51 // pred_check
        %p303 = pneg %p36
      $region54: #{basic_block4gem_pallas_nhwc.1} parent=51 // pred_check_branch
        %305 = sbr.rel (%p303) target = $region56
      $region55: #{basic_block4gem_pallas_nhwc.1} parent=51 // pred_region
        %p306 = scmp.lt.s32.totalorder %s16, 1
        %s307 = scalar_select %p306, %s16, 1
        %s308 = smul.addr %s307, 54
        %s309 = smul.addr %s308, 4
        %s310 = scalar_lea.vmem %s0, %s309
      $region56: #{basic_block4gem_pallas_nhwc.1} parent=51 // pred_fallthru
        _
    $region52: #{basic_block4gem_pallas_nhwc.1} parent=5 // pred_fallthru
      _
    %p311 = scmp.le.s32.totalorder 1, %s16
    %p312 = scmp.lt.s32.totalorder %s16, 3
    %p313 = pnand %p311, %p312
    %p314 = pneg %p313
    // Predicated region
    $region57: #{basic_block4gem_pallas_nhwc.1} parent=5 // pred_check
      _
    $region58: #{basic_block4gem_pallas_nhwc.1} parent=5 // pred_check_branch
      %316 = sbr.rel (%p313) target = $region60
    $region59: #{basic_block4gem_pallas_nhwc.1} parent=5 // pred_region
      %s317 = ssub.s32 %s16, 1
      %p318 = scmp.lt.s32.totalorder %s21, 1
      %s319 = scalar_select %p318, %s21, 1
      %s320 = smul.addr %s319, 54
      %s321 = smul.addr %s320, 4
      %s322 = scalar_lea.vmem %s0, %s321
      %p323 = pneg %p42
      %p324 = pneg %p39
      %p325 = pneg %p63
      %p326 = pneg %p60
      %p327 = pneg %p84
      %p328 = pneg %p81
      %p329 = pneg %p105
      %p330 = pneg %p102
      %p331 = pneg %p126
      %p332 = pneg %p123
      %p333 = pneg %p147
      %p334 = pneg %p144
      %p335 = pneg %p168
      %p336 = pneg %p165
      %p337 = pneg %p189
      %p338 = pneg %p186
      %p339 = pneg %p210
      %p340 = pneg %p207
      %p341 = pneg %p231
      %p342 = pneg %p228
      %p343 = pneg %p257
      %p344 = pneg %p254
      %p345 = scmp.lt.s32.totalorder %s21, 1
      %s346 = scalar_select %p345, %s21, 1
      %s347 = smul.addr %s346, 32
      %s348 = smul.addr %s347, 8
      %s349 = scalar_lea.vmem %s10, %s348
      %p350 = scmp.lt.s32.totalorder %s21, 1
      %s351 = scalar_select %p350, %s21, 1
      %s352 = smul.addr %s351, 54
      %s353 = smul.addr %s352, 4
      %s354 = scalar_lea.vmem %s0, %s353
      %p355 = scmp.lt.s32.totalorder %s21, 1
      %s356 = scalar_select %p355, %s21, 1
      %s357 = smul.addr %s356, 32
      %s358 = smul.addr %s357, 8
      %s359 = scalar_lea.vmem %s10, %s358
      %v361 = vld [vmem:[%s354] sm:$0xf]
      %v362 = vld [vmem:[%s354 + $0x4] sm:$0xf]
      %v363 = vld [vmem:[%s354 + $0xc] sm:$0xf]
      %v364 = vld [vmem:[%s354 + $0x10] sm:$0xf]
      %v365 = vld [vmem:[%s354 + $0x18] sm:$0xf]
      %v366 = vld [vmem:[%s354 + $0x1c] sm:$0xf]
      %v367 = vld [vmem:[%s354 + $0x24] sm:$0xf]
      %v368 = vld [vmem:[%s354 + $0x28] sm:$0xf]
      %v369 = vld [vmem:[%s354 + $0x30] sm:$0xf]
      %v370 = vld [vmem:[%s354 + $0x34] sm:$0xf]
      %v371 = vld [vmem:[%s354 + $0x3c] sm:$0xf]
      %v372 = vld [vmem:[%s354 + $0x40] sm:$0xf]
      %v373 = vld [vmem:[%s354 + $0x48] sm:$0xf]
      %v374 = vld [vmem:[%s354 + $0x4c] sm:$0xf]
      %v375 = vld [vmem:[%s354 + $0x54] sm:$0xf]
      %v376 = vld [vmem:[%s354 + $0x58] sm:$0xf]
      %v377 = vld [vmem:[%s354 + $0x60] sm:$0xf]
      %v378 = vld [vmem:[%s354 + $0x64] sm:$0xf]
      %v379 = vld [vmem:[%s354 + $0x6c] sm:$0xf]
      %v380 = vld [vmem:[%s354 + $0x70] sm:$0xf]
      %v381 = vld [vmem:[%s354 + $0x78] sm:$0xf]
      %v382 = vld [vmem:[%s354 + $0x7c] sm:$0xf]
      %v383 = vld [vmem:[%s354 + $0x84] sm:$0xf]
      %v384 = vld [vmem:[%s354 + $0x88] sm:$0xf]
      %v385 = vld [vmem:[%s354 + $0x90] sm:$0xf]
      %v386 = vld [vmem:[%s354 + $0x94] sm:$0xf]
      %v387 = vld [vmem:[%s354 + $0x9c] sm:$0xf]
      %v388 = vld [vmem:[%s354 + $0xa0] sm:$0xf]
      %v389 = vld [vmem:[%s354 + $0xa8] sm:$0xf]
      %v390 = vld [vmem:[%s354 + $0xac] sm:$0xf]
      %v391 = vld [vmem:[%s354 + $0xb4] sm:$0xf]
      %v392 = vld [vmem:[%s354 + $0xb8] sm:$0xf]
      %v393 = vld [vmem:[%s1] sm:$0xf]
      %v394 = vld [vmem:[%s1 + $0x4] sm:$0xf]
      %v395 = vld [vmem:[%s1 + $0x8] sm:$0xf]
      %v396 = vld [vmem:[%s1 + $0xc] sm:$0xf]
      %v397 = vld [vmem:[%s1 + $0x10] sm:$0xf]
      %v398 = vld [vmem:[%s1 + $0x14] sm:$0xf]
      %v399 = vld [vmem:[%s1 + $0x18] sm:$0xf]
      %v400 = vld [vmem:[%s1 + $0x1c] sm:$0xf]
      %v401 = vld [vmem:[%s1 + $0x20] sm:$0xf]
      %v402 = vld [vmem:[%s1 + $0x24] sm:$0xf]
      %v403 = vld [vmem:[%s1 + $0x28] sm:$0xf]
      %v404 = vld [vmem:[%s1 + $0x2c] sm:$0xf]
      %v405 = vld [vmem:[%s1 + $0x30] sm:$0xf]
      %v406 = vld [vmem:[%s1 + $0x34] sm:$0xf]
      %v407 = vld [vmem:[%s1 + $0x38] sm:$0xf]
      %v408 = vld [vmem:[%s1 + $0x3c] sm:$0xf]
      %v409 = vld [vmem:[%s354 + $0x8] sm:$0x1]
      %v410 = vld [vmem:[%s354 + $0x14] sm:$0x1]
      %v411 = vld [vmem:[%s354 + $0x20] sm:$0x1]
      %v412 = vld [vmem:[%s354 + $0x2c] sm:$0x1]
      %v413 = vld [vmem:[%s354 + $0x38] sm:$0x1]
      %v414 = vld [vmem:[%s354 + $0x44] sm:$0x1]
      %v415 = vld [vmem:[%s354 + $0x50] sm:$0x1]
      %v416 = vld [vmem:[%s354 + $0x5c] sm:$0x1]
      %v417 = vld [vmem:[%s354 + $0x68] sm:$0x1]
      %v418 = vld [vmem:[%s354 + $0x74] sm:$0x1]
      %v419 = vld [vmem:[%s354 + $0x80] sm:$0x1]
      %v420 = vld [vmem:[%s354 + $0x8c] sm:$0x1]
      %v421 = vld [vmem:[%s354 + $0x98] sm:$0x1]
      %v422 = vld [vmem:[%s354 + $0xa4] sm:$0x1]
      %v423 = vld [vmem:[%s354 + $0xb0] sm:$0x1]
      %v424 = vld [vmem:[%s354 + $0xbc] sm:$0x1]
      %vm425 = vsmask.f32 3328
      %vm426 = vsmask.f32 7440
      %vm427 = vmor %vm425, %vm426
      %v429 = vshrl.u32 %v361, 16
      %v431 = vrot.slane %v429, 4
      %v432 = vshll.u32 %v361, 16
      %v434 = vrot.slane %v432, 5
      %v435 = vor.u32 %v431, %v434
      %v436 = vrot.slane %v435, 4
      %v438 = vshll.u32 %v362, 16
      %v440 = vrot.slane %v438, 5
      %v441 = vsel %vm427, %v436, %v440
      %v442 = vshrl.u32 %v362, 16
      %v444 = vrot.slane %v442, 4
      %v445 = vor.u32 %v444, %v440
      %v446 = vrot.slane %v445, 4
      %v448 = vshll.u32 %v409, 16
      %v450 = vrot.slane %v448, 5
      %v451 = vsel %vm427, %v446, %v450
      %v453 = vshrl.u32 %v363, 16
      %v455 = vrot.slane %v453, 4
      %v456 = vshll.u32 %v363, 16
      %v458 = vrot.slane %v456, 5
      %v459 = vor.u32 %v455, %v458
      %v460 = vrot.slane %v459, 4
      %v462 = vshll.u32 %v364, 16
      %v464 = vrot.slane %v462, 5
      %v465 = vsel %vm427, %v460, %v464
      %v466 = vshrl.u32 %v364, 16
      %v468 = vrot.slane %v466, 4
      %v469 = vor.u32 %v468, %v464
      %v470 = vrot.slane %v469, 4
      %v472 = vshll.u32 %v410, 16
      %v474 = vrot.slane %v472, 5
      %v475 = vsel %vm427, %v470, %v474
      %v477 = vshrl.u32 %v365, 16
      %v479 = vrot.slane %v477, 4
      %v480 = vshll.u32 %v365, 16
      %v482 = vrot.slane %v480, 5
      %v483 = vor.u32 %v479, %v482
      %v484 = vrot.slane %v483, 4
      %v486 = vshll.u32 %v366, 16
      %v488 = vrot.slane %v486, 5
      %v489 = vsel %vm427, %v484, %v488
      %v490 = vshrl.u32 %v366, 16
      %v492 = vrot.slane %v490, 4
      %v493 = vor.u32 %v492, %v488
      %v494 = vrot.slane %v493, 4
      %v496 = vshll.u32 %v411, 16
      %v498 = vrot.slane %v496, 5
      %v499 = vsel %vm427, %v494, %v498
      %v501 = vshrl.u32 %v367, 16
      %v503 = vrot.slane %v501, 4
      %v504 = vshll.u32 %v367, 16
      %v506 = vrot.slane %v504, 5
      %v507 = vor.u32 %v503, %v506
      %v508 = vrot.slane %v507, 4
      %v510 = vshll.u32 %v368, 16
      %v512 = vrot.slane %v510, 5
      %v513 = vsel %vm427, %v508, %v512
      %v514 = vshrl.u32 %v368, 16
      %v516 = vrot.slane %v514, 4
      %v517 = vor.u32 %v516, %v512
      %v518 = vrot.slane %v517, 4
      %v520 = vshll.u32 %v412, 16
      %v522 = vrot.slane %v520, 5
      %v523 = vsel %vm427, %v518, %v522
      %v525 = vshrl.u32 %v369, 16
      %v527 = vrot.slane %v525, 4
      %v528 = vshll.u32 %v369, 16
      %v530 = vrot.slane %v528, 5
      %v531 = vor.u32 %v527, %v530
      %v532 = vrot.slane %v531, 4
      %v534 = vshll.u32 %v370, 16
      %v536 = vrot.slane %v534, 5
      %v537 = vsel %vm427, %v532, %v536
      %v538 = vshrl.u32 %v370, 16
      %v540 = vrot.slane %v538, 4
      %v541 = vor.u32 %v540, %v536
      %v542 = vrot.slane %v541, 4
      %v544 = vshll.u32 %v413, 16
      %v546 = vrot.slane %v544, 5
      %v547 = vsel %vm427, %v542, %v546
      %v549 = vshrl.u32 %v371, 16
      %v551 = vrot.slane %v549, 4
      %v552 = vshll.u32 %v371, 16
      %v554 = vrot.slane %v552, 5
      %v555 = vor.u32 %v551, %v554
      %v556 = vrot.slane %v555, 4
      %v558 = vshll.u32 %v372, 16
      %v560 = vrot.slane %v558, 5
      %v561 = vsel %vm427, %v556, %v560
      %v562 = vshrl.u32 %v372, 16
      %v564 = vrot.slane %v562, 4
      %v565 = vor.u32 %v564, %v560
      %v566 = vrot.slane %v565, 4
      %v568 = vshll.u32 %v414, 16
      %v570 = vrot.slane %v568, 5
      %v571 = vsel %vm427, %v566, %v570
      %v573 = vshrl.u32 %v373, 16
      %v575 = vrot.slane %v573, 4
      %v576 = vshll.u32 %v373, 16
      %v578 = vrot.slane %v576, 5
      %v579 = vor.u32 %v575, %v578
      %v580 = vrot.slane %v579, 4
      %v582 = vshll.u32 %v374, 16
      %v584 = vrot.slane %v582, 5
      %v585 = vsel %vm427, %v580, %v584
      %v586 = vshrl.u32 %v374, 16
      %v588 = vrot.slane %v586, 4
      %v589 = vor.u32 %v588, %v584
      %v590 = vrot.slane %v589, 4
      %v592 = vshll.u32 %v415, 16
      %v594 = vrot.slane %v592, 5
      %v595 = vsel %vm427, %v590, %v594
      %v597 = vshrl.u32 %v375, 16
      %v599 = vrot.slane %v597, 4
      %v600 = vshll.u32 %v375, 16
      %v602 = vrot.slane %v600, 5
      %v603 = vor.u32 %v599, %v602
      %v604 = vrot.slane %v603, 4
      %v606 = vshll.u32 %v376, 16
      %v608 = vrot.slane %v606, 5
      %v609 = vsel %vm427, %v604, %v608
      %v610 = vshrl.u32 %v376, 16
      %v612 = vrot.slane %v610, 4
      %v613 = vor.u32 %v612, %v608
      %v614 = vrot.slane %v613, 4
      %v616 = vshll.u32 %v416, 16
      %v618 = vrot.slane %v616, 5
      %v619 = vsel %vm427, %v614, %v618
      %v621 = vshrl.u32 %v377, 16
      %v623 = vrot.slane %v621, 4
      %v624 = vshll.u32 %v377, 16
      %v626 = vrot.slane %v624, 5
      %v627 = vor.u32 %v623, %v626
      %v628 = vrot.slane %v627, 4
      %v630 = vshll.u32 %v378, 16
      %v632 = vrot.slane %v630, 5
      %v633 = vsel %vm427, %v628, %v632
      %v634 = vshrl.u32 %v378, 16
      %v636 = vrot.slane %v634, 4
      %v637 = vor.u32 %v636, %v632
      %v638 = vrot.slane %v637, 4
      %v640 = vshll.u32 %v417, 16
      %v642 = vrot.slane %v640, 5
      %v643 = vsel %vm427, %v638, %v642
      %v645 = vshrl.u32 %v379, 16
      %v647 = vrot.slane %v645, 4
      %v648 = vshll.u32 %v379, 16
      %v650 = vrot.slane %v648, 5
      %v651 = vor.u32 %v647, %v650
      %v652 = vrot.slane %v651, 4
      %v654 = vshll.u32 %v380, 16
      %v656 = vrot.slane %v654, 5
      %v657 = vsel %vm427, %v652, %v656
      %v658 = vshrl.u32 %v380, 16
      %v660 = vrot.slane %v658, 4
      %v661 = vor.u32 %v660, %v656
      %v662 = vrot.slane %v661, 4
      %v664 = vshll.u32 %v418, 16
      %v666 = vrot.slane %v664, 5
      %v667 = vsel %vm427, %v662, %v666
      %v669 = vshrl.u32 %v381, 16
      %v671 = vrot.slane %v669, 4
      %v672 = vshll.u32 %v381, 16
      %v674 = vrot.slane %v672, 5
      %v675 = vor.u32 %v671, %v674
      %v676 = vrot.slane %v675, 4
      %v678 = vshll.u32 %v382, 16
      %v680 = vrot.slane %v678, 5
      %v681 = vsel %vm427, %v676, %v680
      %v682 = vshrl.u32 %v382, 16
      %v684 = vrot.slane %v682, 4
      %v685 = vor.u32 %v684, %v680
      %v686 = vrot.slane %v685, 4
      %v688 = vshll.u32 %v419, 16
      %v690 = vrot.slane %v688, 5
      %v691 = vsel %vm427, %v686, %v690
      %v693 = vshrl.u32 %v383, 16
      %v695 = vrot.slane %v693, 4
      %v696 = vshll.u32 %v383, 16
      %v698 = vrot.slane %v696, 5
      %v699 = vor.u32 %v695, %v698
      %v700 = vrot.slane %v699, 4
      %v702 = vshll.u32 %v384, 16
      %v704 = vrot.slane %v702, 5
      %v705 = vsel %vm427, %v700, %v704
      %v706 = vshrl.u32 %v384, 16
      %v708 = vrot.slane %v706, 4
      %v709 = vor.u32 %v708, %v704
      %v710 = vrot.slane %v709, 4
      %v712 = vshll.u32 %v420, 16
      %v714 = vrot.slane %v712, 5
      %v715 = vsel %vm427, %v710, %v714
      %v717 = vshrl.u32 %v385, 16
      %v719 = vrot.slane %v717, 4
      %v720 = vshll.u32 %v385, 16
      %v722 = vrot.slane %v720, 5
      %v723 = vor.u32 %v719, %v722
      %v724 = vrot.slane %v723, 4
      %v726 = vshll.u32 %v386, 16
      %v728 = vrot.slane %v726, 5
      %v729 = vsel %vm427, %v724, %v728
      %v730 = vshrl.u32 %v386, 16
      %v732 = vrot.slane %v730, 4
      %v733 = vor.u32 %v732, %v728
      %v734 = vrot.slane %v733, 4
      %v736 = vshll.u32 %v421, 16
      %v738 = vrot.slane %v736, 5
      %v739 = vsel %vm427, %v734, %v738
      %v741 = vshrl.u32 %v387, 16
      %v743 = vrot.slane %v741, 4
      %v744 = vshll.u32 %v387, 16
      %v746 = vrot.slane %v744, 5
      %v747 = vor.u32 %v743, %v746
      %v748 = vrot.slane %v747, 4
      %v750 = vshll.u32 %v388, 16
      %v752 = vrot.slane %v750, 5
      %v753 = vsel %vm427, %v748, %v752
      %v754 = vshrl.u32 %v388, 16
      %v756 = vrot.slane %v754, 4
      %v757 = vor.u32 %v756, %v752
      %v758 = vrot.slane %v757, 4
      %v760 = vshll.u32 %v422, 16
      %v762 = vrot.slane %v760, 5
      %v763 = vsel %vm427, %v758, %v762
      %v765 = vshrl.u32 %v389, 16
      %v767 = vrot.slane %v765, 4
      %v768 = vshll.u32 %v389, 16
      %v770 = vrot.slane %v768, 5
      %v771 = vor.u32 %v767, %v770
      %v772 = vrot.slane %v771, 4
      %v774 = vshll.u32 %v390, 16
      %v776 = vrot.slane %v774, 5
      %v777 = vsel %vm427, %v772, %v776
      %v778 = vshrl.u32 %v390, 16
      %v780 = vrot.slane %v778, 4
      %v781 = vor.u32 %v780, %v776
      %v782 = vrot.slane %v781, 4
      %v784 = vshll.u32 %v423, 16
      %v786 = vrot.slane %v784, 5
      %v787 = vsel %vm427, %v782, %v786
      %v789 = vshrl.u32 %v391, 16
      %v791 = vrot.slane %v789, 4
      %v792 = vshll.u32 %v391, 16
      %v794 = vrot.slane %v792, 5
      %v795 = vor.u32 %v791, %v794
      %v796 = vrot.slane %v795, 4
      %v798 = vshll.u32 %v392, 16
      %v800 = vrot.slane %v798, 5
      %v801 = vsel %vm427, %v796, %v800
      %v802 = vshrl.u32 %v392, 16
      %v804 = vrot.slane %v802, 4
      %v805 = vor.u32 %v804, %v800
      %v806 = vrot.slane %v805, 4
      %v808 = vshll.u32 %v424, 16
      %v810 = vrot.slane %v808, 5
      %v811 = vsel %vm427, %v806, %v810
      %s812 = scalar_lea.vmem %s1, 64
      %v813 = vld [vmem:[%s812] sm:$0xf]
      %v814 = vld [vmem:[%s812 + $0x4] sm:$0xf]
      %v815 = vld [vmem:[%s812 + $0x8] sm:$0xf]
      %v816 = vld [vmem:[%s812 + $0xc] sm:$0xf]
      %v817 = vld [vmem:[%s812 + $0x10] sm:$0xf]
      %v818 = vld [vmem:[%s812 + $0x14] sm:$0xf]
      %v819 = vld [vmem:[%s812 + $0x18] sm:$0xf]
      %v820 = vld [vmem:[%s812 + $0x1c] sm:$0xf]
      %v821 = vld [vmem:[%s812 + $0x20] sm:$0xf]
      %v822 = vld [vmem:[%s812 + $0x24] sm:$0xf]
      %v823 = vld [vmem:[%s812 + $0x28] sm:$0xf]
      %v824 = vld [vmem:[%s812 + $0x2c] sm:$0xf]
      %v825 = vld [vmem:[%s812 + $0x30] sm:$0xf]
      %v826 = vld [vmem:[%s812 + $0x34] sm:$0xf]
      %v827 = vld [vmem:[%s812 + $0x38] sm:$0xf]
      %v828 = vld [vmem:[%s812 + $0x3c] sm:$0xf]
      %v829 = vunpack.c.l.b16 %v441
      %v830 = vunpack.c.l.b16 %v451
      %v831 = vunpack.c.l.b16 %v465
      %v832 = vunpack.c.l.b16 %v475
      %v833 = vunpack.c.l.b16 %v489
      %v834 = vunpack.c.l.b16 %v499
      %v835 = vunpack.c.l.b16 %v513
      %v836 = vunpack.c.l.b16 %v523
      %v837 = vunpack.c.l.b16 %v537
      %v838 = vunpack.c.l.b16 %v547
      %v839 = vunpack.c.l.b16 %v561
      %v840 = vunpack.c.l.b16 %v571
      %v841 = vunpack.c.l.b16 %v585
      %v842 = vunpack.c.l.b16 %v595
      %v843 = vunpack.c.l.b16 %v609
      %v844 = vunpack.c.l.b16 %v619
      %v845 = vunpack.c.l.b16 %v633
      %v846 = vunpack.c.l.b16 %v643
      %v847 = vunpack.c.l.b16 %v657
      %v848 = vunpack.c.l.b16 %v667
      %v849 = vunpack.c.l.b16 %v681
      %v850 = vunpack.c.l.b16 %v691
      %v851 = vunpack.c.l.b16 %v705
      %v852 = vunpack.c.l.b16 %v715
      %v853 = vunpack.c.l.b16 %v729
      %v854 = vunpack.c.l.b16 %v739
      %v855 = vunpack.c.l.b16 %v753
      %v856 = vunpack.c.l.b16 %v763
      %v857 = vunpack.c.l.b16 %v777
      %v858 = vunpack.c.l.b16 %v787
      %v859 = vunpack.c.l.b16 %v801
      %v860 = vunpack.c.l.b16 %v811
      %v861 = vpack.c.b16 %v830, %v829
      %v862 = vpack.c.b16 %v832, %v831
      %v863 = vpack.c.b16 %v834, %v833
      %v864 = vpack.c.b16 %v836, %v835
      %v865 = vpack.c.b16 %v838, %v837
      %v866 = vpack.c.b16 %v840, %v839
      %v867 = vpack.c.b16 %v842, %v841
      %v868 = vpack.c.b16 %v844, %v843
      %v869 = vpack.c.b16 %v846, %v845
      %v870 = vpack.c.b16 %v848, %v847
      %v871 = vpack.c.b16 %v850, %v849
      %v872 = vpack.c.b16 %v852, %v851
      %v873 = vpack.c.b16 %v854, %v853
      %v874 = vpack.c.b16 %v856, %v855
      %v875 = vpack.c.b16 %v858, %v857
      %v876 = vpack.c.b16 %v860, %v859
      %v909 = vunpack.c.l.b16 %v813
      %v910 = vunpack.c.l.b16 %v814
      %v911 = vunpack.c.l.b16 %v815
      %v912 = vunpack.c.l.b16 %v816
      %v913 = vunpack.c.l.b16 %v817
      %v914 = vunpack.c.l.b16 %v818
      %v915 = vunpack.c.l.b16 %v819
      %v916 = vunpack.c.l.b16 %v820
      %v917 = vunpack.c.l.b16 %v821
      %v918 = vunpack.c.l.b16 %v822
      %v919 = vunpack.c.l.b16 %v823
      %v920 = vunpack.c.l.b16 %v824
      %v921 = vunpack.c.l.b16 %v825
      %v922 = vunpack.c.l.b16 %v826
      %v923 = vunpack.c.l.b16 %v827
      %v924 = vunpack.c.l.b16 %v828
      %v925 = vpack.c.b16 %v910, %v909
      %v926 = vpack.c.b16 %v912, %v911
      %v927 = vpack.c.b16 %v914, %v913
      %v928 = vpack.c.b16 %v916, %v915
      %v929 = vpack.c.b16 %v918, %v917
      %v930 = vpack.c.b16 %v920, %v919
      %v931 = vpack.c.b16 %v922, %v921
      %v932 = vpack.c.b16 %v924, %v923
      %941 = vmatprep.subr.bf16.mxu0 0
      %942 = vmatpush1.bf16.msra.mxu0 %v925
      %943 = vmatprep.subr.bf16.mxu0 0
      %944 = vmatpush1.bf16.msra.mxu0 %v926
      %945 = vmatprep.subr.bf16.mxu0 0
      %946 = vmatpush1.bf16.msra.mxu0 %v927
      %947 = vmatprep.subr.bf16.mxu0 0
      %948 = vmatpush1.bf16.msra.mxu0 %v928
      %949 = vmatprep.subr.bf16.mxu0 0
      %950 = vmatpush1.bf16.msra.mxu0 %v929
      %951 = vmatprep.subr.bf16.mxu0 0
      %952 = vmatpush1.bf16.msra.mxu0 %v930
      %953 = vmatprep.subr.bf16.mxu0 0
      %954 = vmatpush1.bf16.msra.mxu0 %v931
      %955 = vmatprep.subr.bf16.mxu0 0
      %956 = vmatpush1.bf16.msra.mxu0 %v932
      %957 = vmatprep.subr.bf16.mxu0 0
      %958 = vmatpush1.bf16.msra.mxu0 0
      %959 = vmatprep.subr.bf16.mxu0 0
      %960 = vmatpush1.bf16.msra.mxu0 0
      %961 = vmatprep.subr.bf16.mxu0 0
      %962 = vmatpush1.bf16.msra.mxu0 0
      %963 = vmatprep.subr.bf16.mxu0 0
      %964 = vmatpush1.bf16.msra.mxu0 0
      %965 = vmatprep.subr.bf16.mxu0 0
      %966 = vmatpush1.bf16.msra.mxu0 0
      %967 = vmatprep.subr.bf16.mxu0 0
      %968 = vmatpush1.bf16.msra.mxu0 0
      %969 = vmatprep.subr.bf16.mxu0 0
      %970 = vmatpush1.bf16.msra.mxu0 0
      %971 = vmatprep.subr.bf16.mxu0 0
      %972 = vmatpush1.bf16.msra.mxu0 0
      %973 = vmatprep.mubr.bf16.mxu0 0
      %974 = vmatmul.mubr.bf16.gmra.mrb[0].mxu0 %v861
      %v975 = vpop.f32.mrb[0].mxu0
      %v976 = vadd.f32 0.0, %v975
      %v977 = vpop.f32.mrb[0].mxu0
      %v978 = vpop.f32.mrb[0].mxu0
      %v979 = vadd.f32 0.0, %v978
      %v980 = vpop.f32.mrb[0].mxu0
      %981 = vmatprep.mubr.bf16.mxu0 0
      %982 = vmatmul.mubr.bf16.gmra.mrb[0].mxu0 %v862
      %v983 = vpop.f32.mrb[0].mxu0
      %v984 = vadd.f32 0.0, %v983
      %v985 = vpop.f32.mrb[0].mxu0
      %v986 = vpop.f32.mrb[0].mxu0
      %v987 = vadd.f32 0.0, %v986
      %v988 = vpop.f32.mrb[0].mxu0
      %989 = vmatprep.mubr.bf16.mxu0 0
      %990 = vmatmul.mubr.bf16.gmra.mrb[0].mxu0 %v863
      %v991 = vpop.f32.mrb[0].mxu0
      %v992 = vadd.f32 0.0, %v991
      %v993 = vpop.f32.mrb[0].mxu0
      %v994 = vpop.f32.mrb[0].mxu0
      %v995 = vadd.f32 0.0, %v994
      %v996 = vpop.f32.mrb[0].mxu0
      %997 = vmatprep.mubr.bf16.mxu0 0
      %998 = vmatmul.mubr.bf16.gmra.mrb[0].mxu0 %v864
      %v999 = vpop.f32.mrb[0].mxu0
      %v1000 = vadd.f32 0.0, %v999
      %v1001 = vpop.f32.mrb[0].mxu0
      %v1002 = vpop.f32.mrb[0].mxu0
      %v1003 = vadd.f32 0.0, %v1002
      %v1004 = vpop.f32.mrb[0].mxu0
      %1005 = vmatprep.mubr.bf16.mxu0 0
      %1006 = vmatmul.mubr.bf16.gmra.mrb[0].mxu0 %v865
      %v1007 = vpop.f32.mrb[0].mxu0
      %v1008 = vadd.f32 0.0, %v1007
      %v1009 = vpop.f32.mrb[0].mxu0
      %v1010 = vpop.f32.mrb[0].mxu0
      %v1011 = vadd.f32 0.0, %v1010
      %v1012 = vpop.f32.mrb[0].mxu0
      %1013 = vmatprep.mubr.bf16.mxu0 0
      %1014 = vmatmul.mubr.bf16.gmra.mrb[0].mxu0 %v866
      %v1015 = vpop.f32.mrb[0].mxu0
      %v1016 = vadd.f32 0.0, %v1015
      %v1017 = vpop.f32.mrb[0].mxu0
      %v1018 = vpop.f32.mrb[0].mxu0
      %v1019 = vadd.f32 0.0, %v1018
      %v1020 = vpop.f32.mrb[0].mxu0
      %1021 = vmatprep.mubr.bf16.mxu0 0
      %1022 = vmatmul.mubr.bf16.gmra.mrb[0].mxu0 %v867
      %v1023 = vpop.f32.mrb[0].mxu0
      %v1024 = vadd.f32 0.0, %v1023
      %v1025 = vpop.f32.mrb[0].mxu0
      %v1026 = vpop.f32.mrb[0].mxu0
      %v1027 = vadd.f32 0.0, %v1026
      %v1028 = vpop.f32.mrb[0].mxu0
      %1029 = vmatprep.mubr.bf16.mxu0 0
      %1030 = vmatmul.mubr.bf16.gmra.mrb[0].mxu0 %v868
      %v1031 = vpop.f32.mrb[0].mxu0
      %v1032 = vadd.f32 0.0, %v1031
      %v1033 = vpop.f32.mrb[0].mxu0
      %v1034 = vpop.f32.mrb[0].mxu0
      %v1035 = vadd.f32 0.0, %v1034
      %v1036 = vpop.f32.mrb[0].mxu0
      %1037 = vmatprep.mubr.bf16.mxu0 0
      %1038 = vmatmul.mubr.bf16.gmra.mrb[0].mxu0 %v869
      %v1039 = vpop.f32.mrb[0].mxu0
      %v1040 = vadd.f32 0.0, %v1039
      %v1041 = vpop.f32.mrb[0].mxu0
      %v1042 = vpop.f32.mrb[0].mxu0
      %v1043 = vadd.f32 0.0, %v1042
      %v1044 = vpop.f32.mrb[0].mxu0
      %1045 = vmatprep.mubr.bf16.mxu0 0
      %1046 = vmatmul.mubr.bf16.gmra.mrb[0].mxu0 %v870
      %v1047 = vpop.f32.mrb[0].mxu0
      %v1048 = vadd.f32 0.0, %v1047
      %v1049 = vpop.f32.mrb[0].mxu0
      %v1050 = vpop.f32.mrb[0].mxu0
      %v1051 = vadd.f32 0.0, %v1050
      %v1052 = vpop.f32.mrb[0].mxu0
      %1053 = vmatprep.mubr.bf16.mxu0 0
      %1054 = vmatmul.mubr.bf16.gmra.mrb[0].mxu0 %v871
      %v1055 = vpop.f32.mrb[0].mxu0
      %v1056 = vadd.f32 0.0, %v1055
      %v1057 = vpop.f32.mrb[0].mxu0
      %v1058 = vpop.f32.mrb[0].mxu0
      %v1059 = vadd.f32 0.0, %v1058
      %v1060 = vpop.f32.mrb[0].mxu0
      %1061 = vmatprep.mubr.bf16.mxu0 0
      %1062 = vmatmul.mubr.bf16.gmra.mrb[0].mxu0 %v872
      %v1063 = vpop.f32.mrb[0].mxu0
      %v1064 = vadd.f32 0.0, %v1063
      %v1065 = vpop.f32.mrb[0].mxu0
      %v1066 = vpop.f32.mrb[0].mxu0
      %v1067 = vadd.f32 0.0, %v1066
      %v1068 = vpop.f32.mrb[0].mxu0
      %1069 = vmatprep.mubr.bf16.mxu0 0
      %1070 = vmatmul.mubr.bf16.gmra.mrb[0].mxu0 %v873
      %v1071 = vpop.f32.mrb[0].mxu0
      %v1072 = vadd.f32 0.0, %v1071
      %v1073 = vpop.f32.mrb[0].mxu0
      %v1074 = vpop.f32.mrb[0].mxu0
      %v1075 = vadd.f32 0.0, %v1074
      %v1076 = vpop.f32.mrb[0].mxu0
      %1077 = vmatprep.mubr.bf16.mxu0 0
      %1078 = vmatmul.mubr.bf16.gmra.mrb[0].mxu0 %v874
      %v1079 = vpop.f32.mrb[0].mxu0
      %v1080 = vadd.f32 0.0, %v1079
      %v1081 = vpop.f32.mrb[0].mxu0
      %v1082 = vpop.f32.mrb[0].mxu0
      %v1083 = vadd.f32 0.0, %v1082
      %v1084 = vpop.f32.mrb[0].mxu0
      %1085 = vmatprep.mubr.bf16.mxu0 0
      %1086 = vmatmul.mubr.bf16.gmra.mrb[0].mxu0 %v875
      %v1087 = vpop.f32.mrb[0].mxu0
      %v1088 = vadd.f32 0.0, %v1087
      %v1089 = vpop.f32.mrb[0].mxu0
      %v1090 = vpop.f32.mrb[0].mxu0
      %v1091 = vadd.f32 0.0, %v1090
      %v1092 = vpop.f32.mrb[0].mxu0
      %1093 = vmatprep.mubr.bf16.mxu0 0
      %1094 = vmatmul.mubr.bf16.gmra.mrb[0].mxu0 %v876
      %v1095 = vpop.f32.mrb[0].mxu0
      %v1096 = vadd.f32 0.0, %v1095
      %v1097 = vpop.f32.mrb[0].mxu0
      %v1098 = vpop.f32.mrb[0].mxu0
      %v1099 = vadd.f32 0.0, %v1098
      %v1100 = vpop.f32.mrb[0].mxu0
      %1101 = vdwg.mxu0
      %v1134 = vunpack.c.l.b16 %v361
      %v1135 = vunpack.c.l.b16 %v362
      %v1136 = vunpack.c.l.b16 %v363
      %v1137 = vunpack.c.l.b16 %v364
      %v1138 = vunpack.c.l.b16 %v365
      %v1139 = vunpack.c.l.b16 %v366
      %v1140 = vunpack.c.l.b16 %v367
      %v1141 = vunpack.c.l.b16 %v368
      %v1142 = vunpack.c.l.b16 %v369
      %v1143 = vunpack.c.l.b16 %v370
      %v1144 = vunpack.c.l.b16 %v371
      %v1145 = vunpack.c.l.b16 %v372
      %v1146 = vunpack.c.l.b16 %v373
      %v1147 = vunpack.c.l.b16 %v374
      %v1148 = vunpack.c.l.b16 %v375
      %v1149 = vunpack.c.l.b16 %v376
      %v1150 = vunpack.c.l.b16 %v377
      %v1151 = vunpack.c.l.b16 %v378
      %v1152 = vunpack.c.l.b16 %v379
      %v1153 = vunpack.c.l.b16 %v380
      %v1154 = vunpack.c.l.b16 %v381
      %v1155 = vunpack.c.l.b16 %v382
      %v1156 = vunpack.c.l.b16 %v383
      %v1157 = vunpack.c.l.b16 %v384
      %v1158 = vunpack.c.l.b16 %v385
      %v1159 = vunpack.c.l.b16 %v386
      %v1160 = vunpack.c.l.b16 %v387
      %v1161 = vunpack.c.l.b16 %v388
      %v1162 = vunpack.c.l.b16 %v389
      %v1163 = vunpack.c.l.b16 %v390
      %v1164 = vunpack.c.l.b16 %v391
      %v1165 = vunpack.c.l.b16 %v392
      %v1166 = vpack.c.b16 %v1135, %v1134
      %v1167 = vpack.c.b16 %v1137, %v1136
      %v1168 = vpack.c.b16 %v1139, %v1138
      %v1169 = vpack.c.b16 %v1141, %v1140
      %v1170 = vpack.c.b16 %v1143, %v1142
      %v1171 = vpack.c.b16 %v1145, %v1144
      %v1172 = vpack.c.b16 %v1147, %v1146
      %v1173 = vpack.c.b16 %v1149, %v1148
      %v1174 = vpack.c.b16 %v1151, %v1150
      %v1175 = vpack.c.b16 %v1153, %v1152
      %v1176 = vpack.c.b16 %v1155, %v1154
      %v1177 = vpack.c.b16 %v1157, %v1156
      %v1178 = vpack.c.b16 %v1159, %v1158
      %v1179 = vpack.c.b16 %v1161, %v1160
      %v1180 = vpack.c.b16 %v1163, %v1162
      %v1181 = vpack.c.b16 %v1165, %v1164
      %v1214 = vunpack.c.l.b16 %v393
      %v1215 = vunpack.c.l.b16 %v394
      %v1216 = vunpack.c.l.b16 %v395
      %v1217 = vunpack.c.l.b16 %v396
      %v1218 = vunpack.c.l.b16 %v397
      %v1219 = vunpack.c.l.b16 %v398
      %v1220 = vunpack.c.l.b16 %v399
      %v1221 = vunpack.c.l.b16 %v400
      %v1222 = vunpack.c.l.b16 %v401
      %v1223 = vunpack.c.l.b16 %v402
      %v1224 = vunpack.c.l.b16 %v403
      %v1225 = vunpack.c.l.b16 %v404
      %v1226 = vunpack.c.l.b16 %v405
      %v1227 = vunpack.c.l.b16 %v406
      %v1228 = vunpack.c.l.b16 %v407
      %v1229 = vunpack.c.l.b16 %v408
      %v1230 = vpack.c.b16 %v1215, %v1214
      %v1231 = vpack.c.b16 %v1217, %v1216
      %v1232 = vpack.c.b16 %v1219, %v1218
      %v1233 = vpack.c.b16 %v1221, %v1220
      %v1234 = vpack.c.b16 %v1223, %v1222
      %v1235 = vpack.c.b16 %v1225, %v1224
      %v1236 = vpack.c.b16 %v1227, %v1226
      %v1237 = vpack.c.b16 %v1229, %v1228
      %1246 = vmatprep.subr.bf16.mxu0 0
      %1247 = vmatpush1.bf16.msra.mxu0 %v1230
      %1248 = vmatprep.subr.bf16.mxu0 0
      %1249 = vmatpush1.bf16.msra.mxu0 %v1231
      %1250 = vmatprep.subr.bf16.mxu0 0
      %1251 = vmatpush1.bf16.msra.mxu0 %v1232
      %1252 = vmatprep.subr.bf16.mxu0 0
      %1253 = vmatpush1.bf16.msra.mxu0 %v1233
      %1254 = vmatprep.subr.bf16.mxu0 0
      %1255 = vmatpush1.bf16.msra.mxu0 %v1234
      %1256 = vmatprep.subr.bf16.mxu0 0
      %1257 = vmatpush1.bf16.msra.mxu0 %v1235
      %1258 = vmatprep.subr.bf16.mxu0 0
      %1259 = vmatpush1.bf16.msra.mxu0 %v1236
      %1260 = vmatprep.subr.bf16.mxu0 0
      %1261 = vmatpush1.bf16.msra.mxu0 %v1237
      %1262 = vmatprep.subr.bf16.mxu0 0
      %1263 = vmatpush1.bf16.msra.mxu0 0
      %1264 = vmatprep.subr.bf16.mxu0 0
      %1265 = vmatpush1.bf16.msra.mxu0 0
      %1266 = vmatprep.subr.bf16.mxu0 0
      %1267 = vmatpush1.bf16.msra.mxu0 0
      %1268 = vmatprep.subr.bf16.mxu0 0
      %1269 = vmatpush1.bf16.msra.mxu0 0
      %1270 = vmatprep.subr.bf16.mxu0 0
      %1271 = vmatpush1.bf16.msra.mxu0 0
      %1272 = vmatprep.subr.bf16.mxu0 0
      %1273 = vmatpush1.bf16.msra.mxu0 0
      %1274 = vmatprep.subr.bf16.mxu0 0
      %1275 = vmatpush1.bf16.msra.mxu0 0
      %1276 = vmatprep.subr.bf16.mxu0 0
      %1277 = vmatpush1.bf16.msra.mxu0 0
      %1278 = vmatprep.mubr.bf16.mxu0 0
      %1279 = vmatmul.mubr.bf16.gmra.mrb[0].mxu0 %v1166
      %v1280 = vpop.f32.mrb[0].mxu0
      %v1281 = vadd.f32 %v976, %v1280
      %v1282 = vpop.f32.mrb[0].mxu0
      %v1283 = vpop.f32.mrb[0].mxu0
      %v1284 = vadd.f32 %v979, %v1283
      %v1285 = vpop.f32.mrb[0].mxu0
      %1286 = vmatprep.mubr.bf16.mxu0 0
      %1287 = vmatmul.mubr.bf16.gmra.mrb[0].mxu0 %v1167
      %v1288 = vpop.f32.mrb[0].mxu0
      %v1289 = vadd.f32 %v984, %v1288
      %v1290 = vpop.f32.mrb[0].mxu0
      %v1291 = vpop.f32.mrb[0].mxu0
      %v1292 = vadd.f32 %v987, %v1291
      %v1293 = vpop.f32.mrb[0].mxu0
      %1294 = vmatprep.mubr.bf16.mxu0 0
      %1295 = vmatmul.mubr.bf16.gmra.mrb[0].mxu0 %v1168
      %v1296 = vpop.f32.mrb[0].mxu0
      %v1297 = vadd.f32 %v992, %v1296
      %v1298 = vpop.f32.mrb[0].mxu0
      %v1299 = vpop.f32.mrb[0].mxu0
      %v1300 = vadd.f32 %v995, %v1299
      %v1301 = vpop.f32.mrb[0].mxu0
      %1302 = vmatprep.mubr.bf16.mxu0 0
      %1303 = vmatmul.mubr.bf16.gmra.mrb[0].mxu0 %v1169
      %v1304 = vpop.f32.mrb[0].mxu0
      %v1305 = vadd.f32 %v1000, %v1304
      %v1306 = vpop.f32.mrb[0].mxu0
      %v1307 = vpop.f32.mrb[0].mxu0
      %v1308 = vadd.f32 %v1003, %v1307
      %v1309 = vpop.f32.mrb[0].mxu0
      %1310 = vmatprep.mubr.bf16.mxu0 0
      %1311 = vmatmul.mubr.bf16.gmra.mrb[0].mxu0 %v1170
      %v1312 = vpop.f32.mrb[0].mxu0
      %v1313 = vadd.f32 %v1008, %v1312
      %v1314 = vpop.f32.mrb[0].mxu0
      %v1315 = vpop.f32.mrb[0].mxu0
      %v1316 = vadd.f32 %v1011, %v1315
      %v1317 = vpop.f32.mrb[0].mxu0
      %1318 = vmatprep.mubr.bf16.mxu0 0
      %1319 = vmatmul.mubr.bf16.gmra.mrb[0].mxu0 %v1171
      %v1320 = vpop.f32.mrb[0].mxu0
      %v1321 = vadd.f32 %v1016, %v1320
      %v1322 = vpop.f32.mrb[0].mxu0
      %v1323 = vpop.f32.mrb[0].mxu0
      %v1324 = vadd.f32 %v1019, %v1323
      %v1325 = vpop.f32.mrb[0].mxu0
      %1326 = vmatprep.mubr.bf16.mxu0 0
      %1327 = vmatmul.mubr.bf16.gmra.mrb[0].mxu0 %v1172
      %v1328 = vpop.f32.mrb[0].mxu0
      %v1329 = vadd.f32 %v1024, %v1328
      %v1330 = vpop.f32.mrb[0].mxu0
      %v1331 = vpop.f32.mrb[0].mxu0
      %v1332 = vadd.f32 %v1027, %v1331
      %v1333 = vpop.f32.mrb[0].mxu0
      %1334 = vmatprep.mubr.bf16.mxu0 0
      %1335 = vmatmul.mubr.bf16.gmra.mrb[0].mxu0 %v1173
      %v1336 = vpop.f32.mrb[0].mxu0
      %v1337 = vadd.f32 %v1032, %v1336
      %v1338 = vpop.f32.mrb[0].mxu0
      %v1339 = vpop.f32.mrb[0].mxu0
      %v1340 = vadd.f32 %v1035, %v1339
      %v1341 = vpop.f32.mrb[0].mxu0
      %1342 = vmatprep.mubr.bf16.mxu0 0
      %1343 = vmatmul.mubr.bf16.gmra.mrb[0].mxu0 %v1174
      %v1344 = vpop.f32.mrb[0].mxu0
      %v1345 = vadd.f32 %v1040, %v1344
      %v1346 = vpop.f32.mrb[0].mxu0
      %v1347 = vpop.f32.mrb[0].mxu0
      %v1348 = vadd.f32 %v1043, %v1347
      %v1349 = vpop.f32.mrb[0].mxu0
      %1350 = vmatprep.mubr.bf16.mxu0 0
      %1351 = vmatmul.mubr.bf16.gmra.mrb[0].mxu0 %v1175
      %v1352 = vpop.f32.mrb[0].mxu0
      %v1353 = vadd.f32 %v1048, %v1352
      %v1354 = vpop.f32.mrb[0].mxu0
      %v1355 = vpop.f32.mrb[0].mxu0
      %v1356 = vadd.f32 %v1051, %v1355
      %v1357 = vpop.f32.mrb[0].mxu0
      %1358 = vmatprep.mubr.bf16.mxu0 0
      %1359 = vmatmul.mubr.bf16.gmra.mrb[0].mxu0 %v1176
      %v1360 = vpop.f32.mrb[0].mxu0
      %v1361 = vadd.f32 %v1056, %v1360
      %v1362 = vpop.f32.mrb[0].mxu0
      %v1363 = vpop.f32.mrb[0].mxu0
      %v1364 = vadd.f32 %v1059, %v1363
      %v1365 = vpop.f32.mrb[0].mxu0
      %1366 = vmatprep.mubr.bf16.mxu0 0
      %1367 = vmatmul.mubr.bf16.gmra.mrb[0].mxu0 %v1177
      %v1368 = vpop.f32.mrb[0].mxu0
      %v1369 = vadd.f32 %v1064, %v1368
      %v1370 = vpop.f32.mrb[0].mxu0
      %v1371 = vpop.f32.mrb[0].mxu0
      %v1372 = vadd.f32 %v1067, %v1371
      %v1373 = vpop.f32.mrb[0].mxu0
      %1374 = vmatprep.mubr.bf16.mxu0 0
      %1375 = vmatmul.mubr.bf16.gmra.mrb[0].mxu0 %v1178
      %v1376 = vpop.f32.mrb[0].mxu0
      %v1377 = vadd.f32 %v1072, %v1376
      %v1378 = vpop.f32.mrb[0].mxu0
      %v1379 = vpop.f32.mrb[0].mxu0
      %v1380 = vadd.f32 %v1075, %v1379
      %v1381 = vpop.f32.mrb[0].mxu0
      %1382 = vmatprep.mubr.bf16.mxu0 0
      %1383 = vmatmul.mubr.bf16.gmra.mrb[0].mxu0 %v1179
      %v1384 = vpop.f32.mrb[0].mxu0
      %v1385 = vadd.f32 %v1080, %v1384
      %v1386 = vpop.f32.mrb[0].mxu0
      %v1387 = vpop.f32.mrb[0].mxu0
      %v1388 = vadd.f32 %v1083, %v1387
      %v1389 = vpop.f32.mrb[0].mxu0
      %1390 = vmatprep.mubr.bf16.mxu0 0
      %1391 = vmatmul.mubr.bf16.gmra.mrb[0].mxu0 %v1180
      %v1392 = vpop.f32.mrb[0].mxu0
      %v1393 = vadd.f32 %v1088, %v1392
      %v1394 = vpop.f32.mrb[0].mxu0
      %v1395 = vpop.f32.mrb[0].mxu0
      %v1396 = vadd.f32 %v1091, %v1395
      %v1397 = vpop.f32.mrb[0].mxu0
      %1398 = vmatprep.mubr.bf16.mxu0 0
      %1399 = vmatmul.mubr.bf16.gmra.mrb[0].mxu0 %v1181
      %v1400 = vpop.f32.mrb[0].mxu0
      %v1401 = vadd.f32 %v1096, %v1400
      %v1402 = vpop.f32.mrb[0].mxu0
      %v1403 = vpop.f32.mrb[0].mxu0
      %v1404 = vadd.f32 %v1099, %v1403
      %v1405 = vpop.f32.mrb[0].mxu0
      %1406 = vdwg.mxu0
      %v1407 = vld [vmem:[%s354] sm:$0xe]
      %v1408 = vld [vmem:[%s354 + $0xc] sm:$0xe]
      %v1409 = vld [vmem:[%s354 + $0x18] sm:$0xe]
      %v1410 = vld [vmem:[%s354 + $0x24] sm:$0xe]
      %v1411 = vld [vmem:[%s354 + $0x30] sm:$0xe]
      %v1412 = vld [vmem:[%s354 + $0x3c] sm:$0xe]
      %v1413 = vld [vmem:[%s354 + $0x48] sm:$0xe]
      %v1414 = vld [vmem:[%s354 + $0x54] sm:$0xe]
      %v1415 = vld [vmem:[%s354 + $0x60] sm:$0xe]
      %v1416 = vld [vmem:[%s354 + $0x6c] sm:$0xe]
      %v1417 = vld [vmem:[%s354 + $0x78] sm:$0xe]
      %v1418 = vld [vmem:[%s354 + $0x84] sm:$0xe]
      %v1419 = vld [vmem:[%s354 + $0x90] sm:$0xe]
      %v1420 = vld [vmem:[%s354 + $0x9c] sm:$0xe]
      %v1421 = vld [vmem:[%s354 + $0xa8] sm:$0xe]
      %v1422 = vld [vmem:[%s354 + $0xb4] sm:$0xe]
      %vm1455 = vcmask 1042432
      %vm1456 = vcmask 1046532
      %vm1457 = vmor %vm1455, %vm1456
      %v1458 = vrot.slane %v1407, 5
      %v1459 = vrot.slane %v1458, 4
      %v1460 = vrot.slane %v362, 5
      %v1461 = vsel %vm1457, %v1459, %v1460
      %v1462 = vrot.slane %v1460, 4
      %v1463 = vrot.slane %v409, 5
      %v1464 = vsel %vm1457, %v1462, %v1463
      %v1465 = vrot.slane %v1408, 5
      %v1466 = vrot.slane %v1465, 4
      %v1467 = vrot.slane %v364, 5
      %v1468 = vsel %vm1457, %v1466, %v1467
      %v1469 = vrot.slane %v1467, 4
      %v1470 = vrot.slane %v410, 5
      %v1471 = vsel %vm1457, %v1469, %v1470
      %v1472 = vrot.slane %v1409, 5
      %v1473 = vrot.slane %v1472, 4
      %v1474 = vrot.slane %v366, 5
      %v1475 = vsel %vm1457, %v1473, %v1474
      %v1476 = vrot.slane %v1474, 4
      %v1477 = vrot.slane %v411, 5
      %v1478 = vsel %vm1457, %v1476, %v1477
      %v1479 = vrot.slane %v1410, 5
      %v1480 = vrot.slane %v1479, 4
      %v1481 = vrot.slane %v368, 5
      %v1482 = vsel %vm1457, %v1480, %v1481
      %v1483 = vrot.slane %v1481, 4
      %v1484 = vrot.slane %v412, 5
      %v1485 = vsel %vm1457, %v1483, %v1484
      %v1486 = vrot.slane %v1411, 5
      %v1487 = vrot.slane %v1486, 4
      %v1488 = vrot.slane %v370, 5
      %v1489 = vsel %vm1457, %v1487, %v1488
      %v1490 = vrot.slane %v1488, 4
      %v1491 = vrot.slane %v413, 5
      %v1492 = vsel %vm1457, %v1490, %v1491
      %v1493 = vrot.slane %v1412, 5
      %v1494 = vrot.slane %v1493, 4
      %v1495 = vrot.slane %v372, 5
      %v1496 = vsel %vm1457, %v1494, %v1495
      %v1497 = vrot.slane %v1495, 4
      %v1498 = vrot.slane %v414, 5
      %v1499 = vsel %vm1457, %v1497, %v1498
      %v1500 = vrot.slane %v1413, 5
      %v1501 = vrot.slane %v1500, 4
      %v1502 = vrot.slane %v374, 5
      %v1503 = vsel %vm1457, %v1501, %v1502
      %v1504 = vrot.slane %v1502, 4
      %v1505 = vrot.slane %v415, 5
      %v1506 = vsel %vm1457, %v1504, %v1505
      %v1507 = vrot.slane %v1414, 5
      %v1508 = vrot.slane %v1507, 4
      %v1509 = vrot.slane %v376, 5
      %v1510 = vsel %vm1457, %v1508, %v1509
      %v1511 = vrot.slane %v1509, 4
      %v1512 = vrot.slane %v416, 5
      %v1513 = vsel %vm1457, %v1511, %v1512
      %v1514 = vrot.slane %v1415, 5
      %v1515 = vrot.slane %v1514, 4
      %v1516 = vrot.slane %v378, 5
      %v1517 = vsel %vm1457, %v1515, %v1516
      %v1518 = vrot.slane %v1516, 4
      %v1519 = vrot.slane %v417, 5
      %v1520 = vsel %vm1457, %v1518, %v1519
      %v1521 = vrot.slane %v1416, 5
      %v1522 = vrot.slane %v1521, 4
      %v1523 = vrot.slane %v380, 5
      %v1524 = vsel %vm1457, %v1522, %v1523
      %v1525 = vrot.slane %v1523, 4
      %v1526 = vrot.slane %v418, 5
      %v1527 = vsel %vm1457, %v1525, %v1526
      %v1528 = vrot.slane %v1417, 5
      %v1529 = vrot.slane %v1528, 4
      %v1530 = vrot.slane %v382, 5
      %v1531 = vsel %vm1457, %v1529, %v1530
      %v1532 = vrot.slane %v1530, 4
      %v1533 = vrot.slane %v419, 5
      %v1534 = vsel %vm1457, %v1532, %v1533
      %v1535 = vrot.slane %v1418, 5
      %v1536 = vrot.slane %v1535, 4
      %v1537 = vrot.slane %v384, 5
      %v1538 = vsel %vm1457, %v1536, %v1537
      %v1539 = vrot.slane %v1537, 4
      %v1540 = vrot.slane %v420, 5
      %v1541 = vsel %vm1457, %v1539, %v1540
      %v1542 = vrot.slane %v1419, 5
      %v1543 = vrot.slane %v1542, 4
      %v1544 = vrot.slane %v386, 5
      %v1545 = vsel %vm1457, %v1543, %v1544
      %v1546 = vrot.slane %v1544, 4
      %v1547 = vrot.slane %v421, 5
      %v1548 = vsel %vm1457, %v1546, %v1547
      %v1549 = vrot.slane %v1420, 5
      %v1550 = vrot.slane %v1549, 4
      %v1551 = vrot.slane %v388, 5
      %v1552 = vsel %vm1457, %v1550, %v1551
      %v1553 = vrot.slane %v1551, 4
      %v1554 = vrot.slane %v422, 5
      %v1555 = vsel %vm1457, %v1553, %v1554
      %v1556 = vrot.slane %v1421, 5
      %v1557 = vrot.slane %v1556, 4
      %v1558 = vrot.slane %v390, 5
      %v1559 = vsel %vm1457, %v1557, %v1558
      %v1560 = vrot.slane %v1558, 4
      %v1561 = vrot.slane %v423, 5
      %v1562 = vsel %vm1457, %v1560, %v1561
      %v1563 = vrot.slane %v1422, 5
      %v1564 = vrot.slane %v1563, 4
      %v1565 = vrot.slane %v392, 5
      %v1566 = vsel %vm1457, %v1564, %v1565
      %v1567 = vrot.slane %v1565, 4
      %v1568 = vrot.slane %v424, 5
      %v1569 = vsel %vm1457, %v1567, %v1568
      %s1570 = scalar_lea.vmem %s1, 128
      %v1571 = vld [vmem:[%s1570] sm:$0xf]
      %v1572 = vld [vmem:[%s1570 + $0x4] sm:$0xf]
      %v1573 = vld [vmem:[%s1570 + $0x8] sm:$0xf]
      %v1574 = vld [vmem:[%s1570 + $0xc] sm:$0xf]
      %v1575 = vld [vmem:[%s1570 + $0x10] sm:$0xf]
      %v1576 = vld [vmem:[%s1570 + $0x14] sm:$0xf]
      %v1577 = vld [vmem:[%s1570 + $0x18] sm:$0xf]
      %v1578 = vld [vmem:[%s1570 + $0x1c] sm:$0xf]
      %v1579 = vld [vmem:[%s1570 + $0x20] sm:$0xf]
      %v1580 = vld [vmem:[%s1570 + $0x24] sm:$0xf]
      %v1581 = vld [vmem:[%s1570 + $0x28] sm:$0xf]
      %v1582 = vld [vmem:[%s1570 + $0x2c] sm:$0xf]
      %v1583 = vld [vmem:[%s1570 + $0x30] sm:$0xf]
      %v1584 = vld [vmem:[%s1570 + $0x34] sm:$0xf]
      %v1585 = vld [vmem:[%s1570 + $0x38] sm:$0xf]
      %v1586 = vld [vmem:[%s1570 + $0x3c] sm:$0xf]
      %v1587 = vunpack.c.l.b16 %v1461
      %v1588 = vunpack.c.l.b16 %v1464
      %v1589 = vunpack.c.l.b16 %v1468
      %v1590 = vunpack.c.l.b16 %v1471
      %v1591 = vunpack.c.l.b16 %v1475
      %v1592 = vunpack.c.l.b16 %v1478
      %v1593 = vunpack.c.l.b16 %v1482
      %v1594 = vunpack.c.l.b16 %v1485
      %v1595 = vunpack.c.l.b16 %v1489
      %v1596 = vunpack.c.l.b16 %v1492
      %v1597 = vunpack.c.l.b16 %v1496
      %v1598 = vunpack.c.l.b16 %v1499
      %v1599 = vunpack.c.l.b16 %v1503
      %v1600 = vunpack.c.l.b16 %v1506
      %v1601 = vunpack.c.l.b16 %v1510
      %v1602 = vunpack.c.l.b16 %v1513
      %v1603 = vunpack.c.l.b16 %v1517
      %v1604 = vunpack.c.l.b16 %v1520
      %v1605 = vunpack.c.l.b16 %v1524
      %v1606 = vunpack.c.l.b16 %v1527
      %v1607 = vunpack.c.l.b16 %v1531
      %v1608 = vunpack.c.l.b16 %v1534
      %v1609 = vunpack.c.l.b16 %v1538
      %v1610 = vunpack.c.l.b16 %v1541
      %v1611 = vunpack.c.l.b16 %v1545
      %v1612 = vunpack.c.l.b16 %v1548
      %v1613 = vunpack.c.l.b16 %v1552
      %v1614 = vunpack.c.l.b16 %v1555
      %v1615 = vunpack.c.l.b16 %v1559
      %v1616 = vunpack.c.l.b16 %v1562
      %v1617 = vunpack.c.l.b16 %v1566
      %v1618 = vunpack.c.l.b16 %v1569
      %v1619 = vpack.c.b16 %v1588, %v1587
      %v1620 = vpack.c.b16 %v1590, %v1589
      %v1621 = vpack.c.b16 %v1592, %v1591
      %v1622 = vpack.c.b16 %v1594, %v1593
      %v1623 = vpack.c.b16 %v1596, %v1595
      %v1624 = vpack.c.b16 %v1598, %v1597
      %v1625 = vpack.c.b16 %v1600, %v1599
      %v1626 = vpack.c.b16 %v1602, %v1601
      %v1627 = vpack.c.b16 %v1604, %v1603
      %v1628 = vpack.c.b16 %v1606, %v1605
      %v1629 = vpack.c.b16 %v1608, %v1607
      %v1630 = vpack.c.b16 %v1610, %v1609
      %v1631 = vpack.c.b16 %v1612, %v1611
      %v1632 = vpack.c.b16 %v1614, %v1613
      %v1633 = vpack.c.b16 %v1616, %v1615
      %v1634 = vpack.c.b16 %v1618, %v1617
      %v1667 = vunpack.c.l.b16 %v1571
      %v1668 = vunpack.c.l.b16 %v1572
      %v1669 = vunpack.c.l.b16 %v1573
      %v1670 = vunpack.c.l.b16 %v1574
      %v1671 = vunpack.c.l.b16 %v1575
      %v1672 = vunpack.c.l.b16 %v1576
      %v1673 = vunpack.c.l.b16 %v1577
      %v1674 = vunpack.c.l.b16 %v1578
      %v1675 = vunpack.c.l.b16 %v1579
      %v1676 = vunpack.c.l.b16 %v1580
      %v1677 = vunpack.c.l.b16 %v1581
      %v1678 = vunpack.c.l.b16 %v1582
      %v1679 = vunpack.c.l.b16 %v1583
      %v1680 = vunpack.c.l.b16 %v1584
      %v1681 = vunpack.c.l.b16 %v1585
      %v1682 = vunpack.c.l.b16 %v1586
      %v1683 = vpack.c.b16 %v1668, %v1667
      %v1684 = vpack.c.b16 %v1670, %v1669
      %v1685 = vpack.c.b16 %v1672, %v1671
      %v1686 = vpack.c.b16 %v1674, %v1673
      %v1687 = vpack.c.b16 %v1676, %v1675
      %v1688 = vpack.c.b16 %v1678, %v1677
      %v1689 = vpack.c.b16 %v1680, %v1679
      %v1690 = vpack.c.b16 %v1682, %v1681
      %1699 = vmatprep.subr.bf16.mxu0 0
      %1700 = vmatpush1.bf16.msra.mxu0 %v1683
      %1701 = vmatprep.subr.bf16.mxu0 0
      %1702 = vmatpush1.bf16.msra.mxu0 %v1684
      %1703 = vmatprep.subr.bf16.mxu0 0
      %1704 = vmatpush1.bf16.msra.mxu0 %v1685
      %1705 = vmatprep.subr.bf16.mxu0 0
      %1706 = vmatpush1.bf16.msra.mxu0 %v1686
      %1707 = vmatprep.subr.bf16.mxu0 0
      %1708 = vmatpush1.bf16.msra.mxu0 %v1687
      %1709 = vmatprep.subr.bf16.mxu0 0
      %1710 = vmatpush1.bf16.msra.mxu0 %v1688
      %1711 = vmatprep.subr.bf16.mxu0 0
      %1712 = vmatpush1.bf16.msra.mxu0 %v1689
      %1713 = vmatprep.subr.bf16.mxu0 0
      %1714 = vmatpush1.bf16.msra.mxu0 %v1690
      %1715 = vmatprep.subr.bf16.mxu0 0
      %1716 = vmatpush1.bf16.msra.mxu0 0
      %1717 = vmatprep.subr.bf16.mxu0 0
      %1718 = vmatpush1.bf16.msra.mxu0 0
      %1719 = vmatprep.subr.bf16.mxu0 0
      %1720 = vmatpush1.bf16.msra.mxu0 0
      %1721 = vmatprep.subr.bf16.mxu0 0
      %1722 = vmatpush1.bf16.msra.mxu0 0
      %1723 = vmatprep.subr.bf16.mxu0 0
      %1724 = vmatpush1.bf16.msra.mxu0 0
      %1725 = vmatprep.subr.bf16.mxu0 0
      %1726 = vmatpush1.bf16.msra.mxu0 0
      %1727 = vmatprep.subr.bf16.mxu0 0
      %1728 = vmatpush1.bf16.msra.mxu0 0
      %1729 = vmatprep.subr.bf16.mxu0 0
      %1730 = vmatpush1.bf16.msra.mxu0 0
      %1731 = vmatprep.mubr.bf16.mxu0 0
      %1732 = vmatmul.mubr.bf16.gmra.mrb[0].mxu0 %v1619
      %v1733 = vpop.f32.mrb[0].mxu0
      %v1734 = vadd.f32 0.0, %v1733
      %v1735 = vpop.f32.mrb[0].mxu0
      %v1736 = vpop.f32.mrb[0].mxu0
      %v1737 = vadd.f32 0.0, %v1736
      %v1738 = vpop.f32.mrb[0].mxu0
      %1739 = vmatprep.mubr.bf16.mxu0 0
      %1740 = vmatmul.mubr.bf16.gmra.mrb[0].mxu0 %v1620
      %v1741 = vpop.f32.mrb[0].mxu0
      %v1742 = vadd.f32 0.0, %v1741
      %v1743 = vpop.f32.mrb[0].mxu0
      %v1744 = vpop.f32.mrb[0].mxu0
      %v1745 = vadd.f32 0.0, %v1744
      %v1746 = vpop.f32.mrb[0].mxu0
      %1747 = vmatprep.mubr.bf16.mxu0 0
      %1748 = vmatmul.mubr.bf16.gmra.mrb[0].mxu0 %v1621
      %v1749 = vpop.f32.mrb[0].mxu0
      %v1750 = vadd.f32 0.0, %v1749
      %v1751 = vpop.f32.mrb[0].mxu0
      %v1752 = vpop.f32.mrb[0].mxu0
      %v1753 = vadd.f32 0.0, %v1752
      %v1754 = vpop.f32.mrb[0].mxu0
      %1755 = vmatprep.mubr.bf16.mxu0 0
      %1756 = vmatmul.mubr.bf16.gmra.mrb[0].mxu0 %v1622
      %v1757 = vpop.f32.mrb[0].mxu0
      %v1758 = vadd.f32 0.0, %v1757
      %v1759 = vpop.f32.mrb[0].mxu0
      %v1760 = vpop.f32.mrb[0].mxu0
      %v1761 = vadd.f32 0.0, %v1760
      %v1762 = vpop.f32.mrb[0].mxu0
      %1763 = vmatprep.mubr.bf16.mxu0 0
      %1764 = vmatmul.mubr.bf16.gmra.mrb[0].mxu0 %v1623
      %v1765 = vpop.f32.mrb[0].mxu0
      %v1766 = vadd.f32 0.0, %v1765
      %v1767 = vpop.f32.mrb[0].mxu0
      %v1768 = vpop.f32.mrb[0].mxu0
      %v1769 = vadd.f32 0.0, %v1768
      %v1770 = vpop.f32.mrb[0].mxu0
      %1771 = vmatprep.mubr.bf16.mxu0 0
      %1772 = vmatmul.mubr.bf16.gmra.mrb[0].mxu0 %v1624
      %v1773 = vpop.f32.mrb[0].mxu0
      %v1774 = vadd.f32 0.0, %v1773
      %v1775 = vpop.f32.mrb[0].mxu0
      %v1776 = vpop.f32.mrb[0].mxu0
      %v1777 = vadd.f32 0.0, %v1776
      %v1778 = vpop.f32.mrb[0].mxu0
      %1779 = vmatprep.mubr.bf16.mxu0 0
      %1780 = vmatmul.mubr.bf16.gmra.mrb[0].mxu0 %v1625
      %v1781 = vpop.f32.mrb[0].mxu0
      %v1782 = vadd.f32 0.0, %v1781
      %v1783 = vpop.f32.mrb[0].mxu0
      %v1784 = vpop.f32.mrb[0].mxu0
      %v1785 = vadd.f32 0.0, %v1784
      %v1786 = vpop.f32.mrb[0].mxu0
      %1787 = vmatprep.mubr.bf16.mxu0 0
      %1788 = vmatmul.mubr.bf16.gmra.mrb[0].mxu0 %v1626
      %v1789 = vpop.f32.mrb[0].mxu0
      %v1790 = vadd.f32 0.0, %v1789
      %v1791 = vpop.f32.mrb[0].mxu0
      %v1792 = vpop.f32.mrb[0].mxu0
      %v1793 = vadd.f32 0.0, %v1792
      %v1794 = vpop.f32.mrb[0].mxu0
      %1795 = vmatprep.mubr.bf16.mxu0 0
      %1796 = vmatmul.mubr.bf16.gmra.mrb[0].mxu0 %v1627
      %v1797 = vpop.f32.mrb[0].mxu0
      %v1798 = vadd.f32 0.0, %v1797
      %v1799 = vpop.f32.mrb[0].mxu0
      %v1800 = vpop.f32.mrb[0].mxu0
      %v1801 = vadd.f32 0.0, %v1800
      %v1802 = vpop.f32.mrb[0].mxu0
      %1803 = vmatprep.mubr.bf16.mxu0 0
      %1804 = vmatmul.mubr.bf16.gmra.mrb[0].mxu0 %v1628
      %v1805 = vpop.f32.mrb[0].mxu0
      %v1806 = vadd.f32 0.0, %v1805
      %v1807 = vpop.f32.mrb[0].mxu0
      %v1808 = vpop.f32.mrb[0].mxu0
      %v1809 = vadd.f32 0.0, %v1808
      %v1810 = vpop.f32.mrb[0].mxu0
      %1811 = vmatprep.mubr.bf16.mxu0 0
      %1812 = vmatmul.mubr.bf16.gmra.mrb[0].mxu0 %v1629
      %v1813 = vpop.f32.mrb[0].mxu0
      %v1814 = vadd.f32 0.0, %v1813
      %v1815 = vpop.f32.mrb[0].mxu0
      %v1816 = vpop.f32.mrb[0].mxu0
      %v1817 = vadd.f32 0.0, %v1816
      %v1818 = vpop.f32.mrb[0].mxu0
      %1819 = vmatprep.mubr.bf16.mxu0 0
      %1820 = vmatmul.mubr.bf16.gmra.mrb[0].mxu0 %v1630
      %v1821 = vpop.f32.mrb[0].mxu0
      %v1822 = vadd.f32 0.0, %v1821
      %v1823 = vpop.f32.mrb[0].mxu0
      %v1824 = vpop.f32.mrb[0].mxu0
      %v1825 = vadd.f32 0.0, %v1824
      %v1826 = vpop.f32.mrb[0].mxu0
      %1827 = vmatprep.mubr.bf16.mxu0 0
      %1828 = vmatmul.mubr.bf16.gmra.mrb[0].mxu0 %v1631
      %v1829 = vpop.f32.mrb[0].mxu0
      %v1830 = vadd.f32 0.0, %v1829
      %v1831 = vpop.f32.mrb[0].mxu0
      %v1832 = vpop.f32.mrb[0].mxu0
      %v1833 = vadd.f32 0.0, %v1832
      %v1834 = vpop.f32.mrb[0].mxu0
      %1835 = vmatprep.mubr.bf16.mxu0 0
      %1836 = vmatmul.mubr.bf16.gmra.mrb[0].mxu0 %v1632
      %v1837 = vpop.f32.mrb[0].mxu0
      %v1838 = vadd.f32 0.0, %v1837
      %v1839 = vpop.f32.mrb[0].mxu0
      %v1840 = vpop.f32.mrb[0].mxu0
      %v1841 = vadd.f32 0.0, %v1840
      %v1842 = vpop.f32.mrb[0].mxu0
      %1843 = vmatprep.mubr.bf16.mxu0 0
      %1844 = vmatmul.mubr.bf16.gmra.mrb[0].mxu0 %v1633
      %v1845 = vpop.f32.mrb[0].mxu0
      %v1846 = vadd.f32 0.0, %v1845
      %v1847 = vpop.f32.mrb[0].mxu0
      %v1848 = vpop.f32.mrb[0].mxu0
      %v1849 = vadd.f32 0.0, %v1848
      %v1850 = vpop.f32.mrb[0].mxu0
      %1851 = vmatprep.mubr.bf16.mxu0 0
      %1852 = vmatmul.mubr.bf16.gmra.mrb[0].mxu0 %v1634
      %v1853 = vpop.f32.mrb[0].mxu0
      %v1854 = vadd.f32 0.0, %v1853
      %v1855 = vpop.f32.mrb[0].mxu0
      %v1856 = vpop.f32.mrb[0].mxu0
      %v1857 = vadd.f32 0.0, %v1856
      %v1858 = vpop.f32.mrb[0].mxu0
      %1859 = vdwg.mxu0
      %v1860 = vadd.f32 %v1281, %v1734
      %v1861 = vadd.f32 %v1284, %v1737
      %v1862 = vadd.f32 %v1289, %v1742
      %v1863 = vadd.f32 %v1292, %v1745
      %v1864 = vadd.f32 %v1297, %v1750
      %v1865 = vadd.f32 %v1300, %v1753
      %v1866 = vadd.f32 %v1305, %v1758
      %v1867 = vadd.f32 %v1308, %v1761
      %v1868 = vadd.f32 %v1313, %v1766
      %v1869 = vadd.f32 %v1316, %v1769
      %v1870 = vadd.f32 %v1321, %v1774
      %v1871 = vadd.f32 %v1324, %v1777
      %v1872 = vadd.f32 %v1329, %v1782
      %v1873 = vadd.f32 %v1332, %v1785
      %v1874 = vadd.f32 %v1337, %v1790
      %v1875 = vadd.f32 %v1340, %v1793
      %v1876 = vadd.f32 %v1345, %v1798
      %v1877 = vadd.f32 %v1348, %v1801
      %v1878 = vadd.f32 %v1353, %v1806
      %v1879 = vadd.f32 %v1356, %v1809
      %v1880 = vadd.f32 %v1361, %v1814
      %v1881 = vadd.f32 %v1364, %v1817
      %v1882 = vadd.f32 %v1369, %v1822
      %v1883 = vadd.f32 %v1372, %v1825
      %v1884 = vadd.f32 %v1377, %v1830
      %v1885 = vadd.f32 %v1380, %v1833
      %v1886 = vadd.f32 %v1385, %v1838
      %v1887 = vadd.f32 %v1388, %v1841
      %v1888 = vadd.f32 %v1393, %v1846
      %v1889 = vadd.f32 %v1396, %v1849
      %v1890 = vadd.f32 %v1401, %v1854
      %v1891 = vadd.f32 %v1404, %v1857
      %s1892 = scalar_lea.vmem %s354, 12
      %v1893 = vld [vmem:[%s1892] sm:$0xf]
      %v1894 = vld [vmem:[%s1892 + $0x4] sm:$0xf]
      %v1895 = vld [vmem:[%s1892 + $0xc] sm:$0xf]
      %v1896 = vld [vmem:[%s1892 + $0x10] sm:$0xf]
      %v1897 = vld [vmem:[%s1892 + $0x18] sm:$0xf]
      %v1898 = vld [vmem:[%s1892 + $0x1c] sm:$0xf]
      %v1899 = vld [vmem:[%s1892 + $0x24] sm:$0xf]
      %v1900 = vld [vmem:[%s1892 + $0x28] sm:$0xf]
      %v1901 = vld [vmem:[%s1892 + $0x30] sm:$0xf]
      %v1902 = vld [vmem:[%s1892 + $0x34] sm:$0xf]
      %v1903 = vld [vmem:[%s1892 + $0x3c] sm:$0xf]
      %v1904 = vld [vmem:[%s1892 + $0x40] sm:$0xf]
      %v1905 = vld [vmem:[%s1892 + $0x48] sm:$0xf]
      %v1906 = vld [vmem:[%s1892 + $0x4c] sm:$0xf]
      %v1907 = vld [vmem:[%s1892 + $0x54] sm:$0xf]
      %v1908 = vld [vmem:[%s1892 + $0x58] sm:$0xf]
      %v1909 = vld [vmem:[%s1892 + $0x60] sm:$0xf]
      %v1910 = vld [vmem:[%s1892 + $0x64] sm:$0xf]
      %v1911 = vld [vmem:[%s1892 + $0x6c] sm:$0xf]
      %v1912 = vld [vmem:[%s1892 + $0x70] sm:$0xf]
      %v1913 = vld [vmem:[%s1892 + $0x78] sm:$0xf]
      %v1914 = vld [vmem:[%s1892 + $0x7c] sm:$0xf]
      %v1915 = vld [vmem:[%s1892 + $0x84] sm:$0xf]
      %v1916 = vld [vmem:[%s1892 + $0x88] sm:$0xf]
      %v1917 = vld [vmem:[%s1892 + $0x90] sm:$0xf]
      %v1918 = vld [vmem:[%s1892 + $0x94] sm:$0xf]
      %v1919 = vld [vmem:[%s1892 + $0x9c] sm:$0xf]
      %v1920 = vld [vmem:[%s1892 + $0xa0] sm:$0xf]
      %v1921 = vld [vmem:[%s1892 + $0xa8] sm:$0xf]
      %v1922 = vld [vmem:[%s1892 + $0xac] sm:$0xf]
      %v1923 = vld [vmem:[%s1892 + $0xb4] sm:$0xf]
      %v1924 = vld [vmem:[%s1892 + $0xb8] sm:$0xf]
      %s1925 = scalar_lea.vmem %s1, 192
      %v1926 = vld [vmem:[%s1925] sm:$0xf]
      %v1927 = vld [vmem:[%s1925 + $0x4] sm:$0xf]
      %v1928 = vld [vmem:[%s1925 + $0x8] sm:$0xf]
      %v1929 = vld [vmem:[%s1925 + $0xc] sm:$0xf]
      %v1930 = vld [vmem:[%s1925 + $0x10] sm:$0xf]
      %v1931 = vld [vmem:[%s1925 + $0x14] sm:$0xf]
      %v1932 = vld [vmem:[%s1925 + $0x18] sm:$0xf]
      %v1933 = vld [vmem:[%s1925 + $0x1c] sm:$0xf]
      %v1934 = vld [vmem:[%s1925 + $0x20] sm:$0xf]
      %v1935 = vld [vmem:[%s1925 + $0x24] sm:$0xf]
      %v1936 = vld [vmem:[%s1925 + $0x28] sm:$0xf]
      %v1937 = vld [vmem:[%s1925 + $0x2c] sm:$0xf]
      %v1938 = vld [vmem:[%s1925 + $0x30] sm:$0xf]
      %v1939 = vld [vmem:[%s1925 + $0x34] sm:$0xf]
      %v1940 = vld [vmem:[%s1925 + $0x38] sm:$0xf]
      %v1941 = vld [vmem:[%s1925 + $0x3c] sm:$0xf]
      %v1974 = vunpack.c.l.b16 %v1893
      %v1975 = vunpack.c.l.b16 %v1894
      %v1976 = vunpack.c.l.b16 %v1895
      %v1977 = vunpack.c.l.b16 %v1896
      %v1978 = vunpack.c.l.b16 %v1897
      %v1979 = vunpack.c.l.b16 %v1898
      %v1980 = vunpack.c.l.b16 %v1899
      %v1981 = vunpack.c.l.b16 %v1900
      %v1982 = vunpack.c.l.b16 %v1901
      %v1983 = vunpack.c.l.b16 %v1902
      %v1984 = vunpack.c.l.b16 %v1903
      %v1985 = vunpack.c.l.b16 %v1904
      %v1986 = vunpack.c.l.b16 %v1905
      %v1987 = vunpack.c.l.b16 %v1906
      %v1988 = vunpack.c.l.b16 %v1907
      %v1989 = vunpack.c.l.b16 %v1908
      %v1990 = vunpack.c.l.b16 %v1909
      %v1991 = vunpack.c.l.b16 %v1910
      %v1992 = vunpack.c.l.b16 %v1911
      %v1993 = vunpack.c.l.b16 %v1912
      %v1994 = vunpack.c.l.b16 %v1913
      %v1995 = vunpack.c.l.b16 %v1914
      %v1996 = vunpack.c.l.b16 %v1915
      %v1997 = vunpack.c.l.b16 %v1916
      %v1998 = vunpack.c.l.b16 %v1917
      %v1999 = vunpack.c.l.b16 %v1918
      %v2000 = vunpack.c.l.b16 %v1919
      %v2001 = vunpack.c.l.b16 %v1920
      %v2002 = vunpack.c.l.b16 %v1921
      %v2003 = vunpack.c.l.b16 %v1922
      %v2004 = vunpack.c.l.b16 %v1923
      %v2005 = vunpack.c.l.b16 %v1924
      %v2006 = vpack.c.b16 %v1975, %v1974
      %v2007 = vpack.c.b16 %v1977, %v1976
      %v2008 = vpack.c.b16 %v1979, %v1978
      %v2009 = vpack.c.b16 %v1981, %v1980
      %v2010 = vpack.c.b16 %v1983, %v1982
      %v2011 = vpack.c.b16 %v1985, %v1984
      %v2012 = vpack.c.b16 %v1987, %v1986
      %v2013 = vpack.c.b16 %v1989, %v1988
      %v2014 = vpack.c.b16 %v1991, %v1990
      %v2015 = vpack.c.b16 %v1993, %v1992
      %v2016 = vpack.c.b16 %v1995, %v1994
      %v2017 = vpack.c.b16 %v1997, %v1996
      %v2018 = vpack.c.b16 %v1999, %v1998
      %v2019 = vpack.c.b16 %v2001, %v2000
      %v2020 = vpack.c.b16 %v2003, %v2002
      %v2021 = vpack.c.b16 %v2005, %v2004
      %v2054 = vunpack.c.l.b16 %v1926
      %v2055 = vunpack.c.l.b16 %v1927
      %v2056 = vunpack.c.l.b16 %v1928
      %v2057 = vunpack.c.l.b16 %v1929
      %v2058 = vunpack.c.l.b16 %v1930
      %v2059 = vunpack.c.l.b16 %v1931
      %v2060 = vunpack.c.l.b16 %v1932
      %v2061 = vunpack.c.l.b16 %v1933
      %v2062 = vunpack.c.l.b16 %v1934
      %v2063 = vunpack.c.l.b16 %v1935
      %v2064 = vunpack.c.l.b16 %v1936
      %v2065 = vunpack.c.l.b16 %v1937
      %v2066 = vunpack.c.l.b16 %v1938
      %v2067 = vunpack.c.l.b16 %v1939
      %v2068 = vunpack.c.l.b16 %v1940
      %v2069 = vunpack.c.l.b16 %v1941
      %v2070 = vpack.c.b16 %v2055, %v2054
      %v2071 = vpack.c.b16 %v2057, %v2056
      %v2072 = vpack.c.b16 %v2059, %v2058
      %v2073 = vpack.c.b16 %v2061, %v2060
      %v2074 = vpack.c.b16 %v2063, %v2062
      %v2075 = vpack.c.b16 %v2065, %v2064
      %v2076 = vpack.c.b16 %v2067, %v2066
      %v2077 = vpack.c.b16 %v2069, %v2068
      %2086 = vmatprep.subr.bf16.mxu0 0
      %2087 = vmatpush1.bf16.msra.mxu0 %v2070
      %2088 = vmatprep.subr.bf16.mxu0 0
      %2089 = vmatpush1.bf16.msra.mxu0 %v2071
      %2090 = vmatprep.subr.bf16.mxu0 0
      %2091 = vmatpush1.bf16.msra.mxu0 %v2072
      %2092 = vmatprep.subr.bf16.mxu0 0
      %2093 = vmatpush1.bf16.msra.mxu0 %v2073
      %2094 = vmatprep.subr.bf16.mxu0 0
      %2095 = vmatpush1.bf16.msra.mxu0 %v2074
      %2096 = vmatprep.subr.bf16.mxu0 0
      %2097 = vmatpush1.bf16.msra.mxu0 %v2075
      %2098 = vmatprep.subr.bf16.mxu0 0
      %2099 = vmatpush1.bf16.msra.mxu0 %v2076
      %2100 = vmatprep.subr.bf16.mxu0 0
      %2101 = vmatpush1.bf16.msra.mxu0 %v2077
      %2102 = vmatprep.subr.bf16.mxu0 0
      %2103 = vmatpush1.bf16.msra.mxu0 0
      %2104 = vmatprep.subr.bf16.mxu0 0
      %2105 = vmatpush1.bf16.msra.mxu0 0
      %2106 = vmatprep.subr.bf16.mxu0 0
      %2107 = vmatpush1.bf16.msra.mxu0 0
      %2108 = vmatprep.subr.bf16.mxu0 0
      %2109 = vmatpush1.bf16.msra.mxu0 0
      %2110 = vmatprep.subr.bf16.mxu0 0
      %2111 = vmatpush1.bf16.msra.mxu0 0
      %2112 = vmatprep.subr.bf16.mxu0 0
      %2113 = vmatpush1.bf16.msra.mxu0 0
      %2114 = vmatprep.subr.bf16.mxu0 0
      %2115 = vmatpush1.bf16.msra.mxu0 0
      %2116 = vmatprep.subr.bf16.mxu0 0
      %2117 = vmatpush1.bf16.msra.mxu0 0
      %2118 = vmatprep.mubr.bf16.mxu0 0
      %2119 = vmatmul.mubr.bf16.gmra.mrb[0].mxu0 %v2006
      %v2120 = vpop.f32.mrb[0].mxu0
      %v2121 = vadd.f32 0.0, %v2120
      %v2122 = vpop.f32.mrb[0].mxu0
      %v2123 = vpop.f32.mrb[0].mxu0
      %v2124 = vadd.f32 0.0, %v2123
      %v2125 = vpop.f32.mrb[0].mxu0
      %2126 = vmatprep.mubr.bf16.mxu0 0
      %2127 = vmatmul.mubr.bf16.gmra.mrb[0].mxu0 %v2007
      %v2128 = vpop.f32.mrb[0].mxu0
      %v2129 = vadd.f32 0.0, %v2128
      %v2130 = vpop.f32.mrb[0].mxu0
      %v2131 = vpop.f32.mrb[0].mxu0
      %v2132 = vadd.f32 0.0, %v2131
      %v2133 = vpop.f32.mrb[0].mxu0
      %2134 = vmatprep.mubr.bf16.mxu0 0
      %2135 = vmatmul.mubr.bf16.gmra.mrb[0].mxu0 %v2008
      %v2136 = vpop.f32.mrb[0].mxu0
      %v2137 = vadd.f32 0.0, %v2136
      %v2138 = vpop.f32.mrb[0].mxu0
      %v2139 = vpop.f32.mrb[0].mxu0
      %v2140 = vadd.f32 0.0, %v2139
      %v2141 = vpop.f32.mrb[0].mxu0
      %2142 = vmatprep.mubr.bf16.mxu0 0
      %2143 = vmatmul.mubr.bf16.gmra.mrb[0].mxu0 %v2009
      %v2144 = vpop.f32.mrb[0].mxu0
      %v2145 = vadd.f32 0.0, %v2144
      %v2146 = vpop.f32.mrb[0].mxu0
      %v2147 = vpop.f32.mrb[0].mxu0
      %v2148 = vadd.f32 0.0, %v2147
      %v2149 = vpop.f32.mrb[0].mxu0
      %2150 = vmatprep.mubr.bf16.mxu0 0
      %2151 = vmatmul.mubr.bf16.gmra.mrb[0].mxu0 %v2010
      %v2152 = vpop.f32.mrb[0].mxu0
      %v2153 = vadd.f32 0.0, %v2152
      %v2154 = vpop.f32.mrb[0].mxu0
      %v2155 = vpop.f32.mrb[0].mxu0
      %v2156 = vadd.f32 0.0, %v2155
      %v2157 = vpop.f32.mrb[0].mxu0
      %2158 = vmatprep.mubr.bf16.mxu0 0
      %2159 = vmatmul.mubr.bf16.gmra.mrb[0].mxu0 %v2011
      %v2160 = vpop.f32.mrb[0].mxu0
      %v2161 = vadd.f32 0.0, %v2160
      %v2162 = vpop.f32.mrb[0].mxu0
      %v2163 = vpop.f32.mrb[0].mxu0
      %v2164 = vadd.f32 0.0, %v2163
      %v2165 = vpop.f32.mrb[0].mxu0
      %2166 = vmatprep.mubr.bf16.mxu0 0
      %2167 = vmatmul.mubr.bf16.gmra.mrb[0].mxu0 %v2012
      %v2168 = vpop.f32.mrb[0].mxu0
      %v2169 = vadd.f32 0.0, %v2168
      %v2170 = vpop.f32.mrb[0].mxu0
      %v2171 = vpop.f32.mrb[0].mxu0
      %v2172 = vadd.f32 0.0, %v2171
      %v2173 = vpop.f32.mrb[0].mxu0
      %2174 = vmatprep.mubr.bf16.mxu0 0
      %2175 = vmatmul.mubr.bf16.gmra.mrb[0].mxu0 %v2013
      %v2176 = vpop.f32.mrb[0].mxu0
      %v2177 = vadd.f32 0.0, %v2176
      %v2178 = vpop.f32.mrb[0].mxu0
      %v2179 = vpop.f32.mrb[0].mxu0
      %v2180 = vadd.f32 0.0, %v2179
      %v2181 = vpop.f32.mrb[0].mxu0
      %2182 = vmatprep.mubr.bf16.mxu0 0
      %2183 = vmatmul.mubr.bf16.gmra.mrb[0].mxu0 %v2014
      %v2184 = vpop.f32.mrb[0].mxu0
      %v2185 = vadd.f32 0.0, %v2184
      %v2186 = vpop.f32.mrb[0].mxu0
      %v2187 = vpop.f32.mrb[0].mxu0
      %v2188 = vadd.f32 0.0, %v2187
      %v2189 = vpop.f32.mrb[0].mxu0
      %2190 = vmatprep.mubr.bf16.mxu0 0
      %2191 = vmatmul.mubr.bf16.gmra.mrb[0].mxu0 %v2015
      %v2192 = vpop.f32.mrb[0].mxu0
      %v2193 = vadd.f32 0.0, %v2192
      %v2194 = vpop.f32.mrb[0].mxu0
      %v2195 = vpop.f32.mrb[0].mxu0
      %v2196 = vadd.f32 0.0, %v2195
      %v2197 = vpop.f32.mrb[0].mxu0
      %2198 = vmatprep.mubr.bf16.mxu0 0
      %2199 = vmatmul.mubr.bf16.gmra.mrb[0].mxu0 %v2016
      %v2200 = vpop.f32.mrb[0].mxu0
      %v2201 = vadd.f32 0.0, %v2200
      %v2202 = vpop.f32.mrb[0].mxu0
      %v2203 = vpop.f32.mrb[0].mxu0
      %v2204 = vadd.f32 0.0, %v2203
      %v2205 = vpop.f32.mrb[0].mxu0
      %2206 = vmatprep.mubr.bf16.mxu0 0
      %2207 = vmatmul.mubr.bf16.gmra.mrb[0].mxu0 %v2017
      %v2208 = vpop.f32.mrb[0].mxu0
      %v2209 = vadd.f32 0.0, %v2208
      %v2210 = vpop.f32.mrb[0].mxu0
      %v2211 = vpop.f32.mrb[0].mxu0
      %v2212 = vadd.f32 0.0, %v2211
      %v2213 = vpop.f32.mrb[0].mxu0
      %2214 = vmatprep.mubr.bf16.mxu0 0
      %2215 = vmatmul.mubr.bf16.gmra.mrb[0].mxu0 %v2018
      %v2216 = vpop.f32.mrb[0].mxu0
      %v2217 = vadd.f32 0.0, %v2216
      %v2218 = vpop.f32.mrb[0].mxu0
      %v2219 = vpop.f32.mrb[0].mxu0
      %v2220 = vadd.f32 0.0, %v2219
      %v2221 = vpop.f32.mrb[0].mxu0
      %2222 = vmatprep.mubr.bf16.mxu0 0
      %2223 = vmatmul.mubr.bf16.gmra.mrb[0].mxu0 %v2019
      %v2224 = vpop.f32.mrb[0].mxu0
      %v2225 = vadd.f32 0.0, %v2224
      %v2226 = vpop.f32.mrb[0].mxu0
      %v2227 = vpop.f32.mrb[0].mxu0
      %v2228 = vadd.f32 0.0, %v2227
      %v2229 = vpop.f32.mrb[0].mxu0
      %2230 = vmatprep.mubr.bf16.mxu0 0
      %2231 = vmatmul.mubr.bf16.gmra.mrb[0].mxu0 %v2020
      %v2232 = vpop.f32.mrb[0].mxu0
      %v2233 = vadd.f32 0.0, %v2232
      %v2234 = vpop.f32.mrb[0].mxu0
      %v2235 = vpop.f32.mrb[0].mxu0
      %v2236 = vadd.f32 0.0, %v2235
      %v2237 = vpop.f32.mrb[0].mxu0
      %2238 = vmatprep.mubr.bf16.mxu0 0
      %2239 = vmatmul.mubr.bf16.gmra.mrb[0].mxu0 %v2021
      %v2240 = vpop.f32.mrb[0].mxu0
      %v2241 = vadd.f32 0.0, %v2240
      %v2242 = vpop.f32.mrb[0].mxu0
      %v2243 = vpop.f32.mrb[0].mxu0
      %v2244 = vadd.f32 0.0, %v2243
      %v2245 = vpop.f32.mrb[0].mxu0
      %2246 = vdwg.mxu0
      %v2247 = vadd.f32 %v1860, %v2121
      %v2248 = vadd.f32 %v1861, %v2124
      %v2249 = vadd.f32 %v1862, %v2129
      %v2250 = vadd.f32 %v1863, %v2132
      %v2251 = vadd.f32 %v1864, %v2137
      %v2252 = vadd.f32 %v1865, %v2140
      %v2253 = vadd.f32 %v1866, %v2145
      %v2254 = vadd.f32 %v1867, %v2148
      %v2255 = vadd.f32 %v1868, %v2153
      %v2256 = vadd.f32 %v1869, %v2156
      %v2257 = vadd.f32 %v1870, %v2161
      %v2258 = vadd.f32 %v1871, %v2164
      %v2259 = vadd.f32 %v1872, %v2169
      %v2260 = vadd.f32 %v1873, %v2172
      %v2261 = vadd.f32 %v1874, %v2177
      %v2262 = vadd.f32 %v1875, %v2180
      %v2263 = vadd.f32 %v1876, %v2185
      %v2264 = vadd.f32 %v1877, %v2188
      %v2265 = vadd.f32 %v1878, %v2193
      %v2266 = vadd.f32 %v1879, %v2196
      %v2267 = vadd.f32 %v1880, %v2201
      %v2268 = vadd.f32 %v1881, %v2204
      %v2269 = vadd.f32 %v1882, %v2209
      %v2270 = vadd.f32 %v1883, %v2212
      %v2271 = vadd.f32 %v1884, %v2217
      %v2272 = vadd.f32 %v1885, %v2220
      %v2273 = vadd.f32 %v1886, %v2225
      %v2274 = vadd.f32 %v1887, %v2228
      %v2275 = vadd.f32 %v1888, %v2233
      %v2276 = vadd.f32 %v1889, %v2236
      %v2277 = vadd.f32 %v1890, %v2241
      %v2278 = vadd.f32 %v1891, %v2244
      %v2279 = vld [vmem:[%s1892] sm:$0xf]
      %v2280 = vld [vmem:[%s1892 + $0x4] sm:$0xf]
      %v2281 = vld [vmem:[%s1892 + $0x8] sm:$0x1]
      %v2282 = vld [vmem:[%s1892 + $0xc] sm:$0xf]
      %v2283 = vld [vmem:[%s1892 + $0x10] sm:$0xf]
      %v2284 = vld [vmem:[%s1892 + $0x14] sm:$0x1]
      %v2285 = vld [vmem:[%s1892 + $0x18] sm:$0xf]
      %v2286 = vld [vmem:[%s1892 + $0x1c] sm:$0xf]
      %v2287 = vld [vmem:[%s1892 + $0x20] sm:$0x1]
      %v2288 = vld [vmem:[%s1892 + $0x24] sm:$0xf]
      %v2289 = vld [vmem:[%s1892 + $0x28] sm:$0xf]
      %v2290 = vld [vmem:[%s1892 + $0x2c] sm:$0x1]
      %v2291 = vld [vmem:[%s1892 + $0x30] sm:$0xf]
      %v2292 = vld [vmem:[%s1892 + $0x34] sm:$0xf]
      %v2293 = vld [vmem:[%s1892 + $0x38] sm:$0x1]
      %v2294 = vld [vmem:[%s1892 + $0x3c] sm:$0xf]
      %v2295 = vld [vmem:[%s1892 + $0x40] sm:$0xf]
      %v2296 = vld [vmem:[%s1892 + $0x44] sm:$0x1]
      %v2297 = vld [vmem:[%s1892 + $0x48] sm:$0xf]
      %v2298 = vld [vmem:[%s1892 + $0x4c] sm:$0xf]
      %v2299 = vld [vmem:[%s1892 + $0x50] sm:$0x1]
      %v2300 = vld [vmem:[%s1892 + $0x54] sm:$0xf]
      %v2301 = vld [vmem:[%s1892 + $0x58] sm:$0xf]
      %v2302 = vld [vmem:[%s1892 + $0x5c] sm:$0x1]
      %v2303 = vld [vmem:[%s1892 + $0x60] sm:$0xf]
      %v2304 = vld [vmem:[%s1892 + $0x64] sm:$0xf]
      %v2305 = vld [vmem:[%s1892 + $0x68] sm:$0x1]
      %v2306 = vld [vmem:[%s1892 + $0x6c] sm:$0xf]
      %v2307 = vld [vmem:[%s1892 + $0x70] sm:$0xf]
      %v2308 = vld [vmem:[%s1892 + $0x74] sm:$0x1]
      %v2309 = vld [vmem:[%s1892 + $0x78] sm:$0xf]
      %v2310 = vld [vmem:[%s1892 + $0x7c] sm:$0xf]
      %v2311 = vld [vmem:[%s1892 + $0x80] sm:$0x1]
      %v2312 = vld [vmem:[%s1892 + $0x84] sm:$0xf]
      %v2313 = vld [vmem:[%s1892 + $0x88] sm:$0xf]
      %v2314 = vld [vmem:[%s1892 + $0x8c] sm:$0x1]
      %v2315 = vld [vmem:[%s1892 + $0x90] sm:$0xf]
      %v2316 = vld [vmem:[%s1892 + $0x94] sm:$0xf]
      %v2317 = vld [vmem:[%s1892 + $0x98] sm:$0x1]
      %v2318 = vld [vmem:[%s1892 + $0x9c] sm:$0xf]
      %v2319 = vld [vmem:[%s1892 + $0xa0] sm:$0xf]
      %v2320 = vld [vmem:[%s1892 + $0xa4] sm:$0x1]
      %v2321 = vld [vmem:[%s1892 + $0xa8] sm:$0xf]
      %v2322 = vld [vmem:[%s1892 + $0xac] sm:$0xf]
      %v2323 = vld [vmem:[%s1892 + $0xb0] sm:$0x1]
      %v2324 = vld [vmem:[%s1892 + $0xb4] sm:$0xf]
      %v2325 = vld [vmem:[%s1892 + $0xb8] sm:$0xf]
      %v2326 = vld [vmem:[%s1892 + $0xbc] sm:$0x1]
      %v2328 = vshrl.u32 %v2279, 16
      %v2330 = vrot.slane %v2328, 4
      %v2331 = vshll.u32 %v2279, 16
      %v2333 = vrot.slane %v2331, 5
      %v2334 = vor.u32 %v2330, %v2333
      %v2335 = vrot.slane %v2334, 4
      %v2337 = vshll.u32 %v2280, 16
      %v2339 = vrot.slane %v2337, 5
      %v2340 = vsel %vm427, %v2335, %v2339
      %v2341 = vshrl.u32 %v2280, 16
      %v2343 = vrot.slane %v2341, 4
      %v2344 = vor.u32 %v2343, %v2339
      %v2345 = vrot.slane %v2344, 4
      %v2347 = vshll.u32 %v2281, 16
      %v2349 = vrot.slane %v2347, 5
      %v2350 = vsel %vm427, %v2345, %v2349
      %v2352 = vshrl.u32 %v2282, 16
      %v2354 = vrot.slane %v2352, 4
      %v2355 = vshll.u32 %v2282, 16
      %v2357 = vrot.slane %v2355, 5
      %v2358 = vor.u32 %v2354, %v2357
      %v2359 = vrot.slane %v2358, 4
      %v2361 = vshll.u32 %v2283, 16
      %v2363 = vrot.slane %v2361, 5
      %v2364 = vsel %vm427, %v2359, %v2363
      %v2365 = vshrl.u32 %v2283, 16
      %v2367 = vrot.slane %v2365, 4
      %v2368 = vor.u32 %v2367, %v2363
      %v2369 = vrot.slane %v2368, 4
      %v2371 = vshll.u32 %v2284, 16
      %v2373 = vrot.slane %v2371, 5
      %v2374 = vsel %vm427, %v2369, %v2373
      %v2376 = vshrl.u32 %v2285, 16
      %v2378 = vrot.slane %v2376, 4
      %v2379 = vshll.u32 %v2285, 16
      %v2381 = vrot.slane %v2379, 5
      %v2382 = vor.u32 %v2378, %v2381
      %v2383 = vrot.slane %v2382, 4
      %v2385 = vshll.u32 %v2286, 16
      %v2387 = vrot.slane %v2385, 5
      %v2388 = vsel %vm427, %v2383, %v2387
      %v2389 = vshrl.u32 %v2286, 16
      %v2391 = vrot.slane %v2389, 4
      %v2392 = vor.u32 %v2391, %v2387
      %v2393 = vrot.slane %v2392, 4
      %v2395 = vshll.u32 %v2287, 16
      %v2397 = vrot.slane %v2395, 5
      %v2398 = vsel %vm427, %v2393, %v2397
      %v2400 = vshrl.u32 %v2288, 16
      %v2402 = vrot.slane %v2400, 4
      %v2403 = vshll.u32 %v2288, 16
      %v2405 = vrot.slane %v2403, 5
      %v2406 = vor.u32 %v2402, %v2405
      %v2407 = vrot.slane %v2406, 4
      %v2409 = vshll.u32 %v2289, 16
      %v2411 = vrot.slane %v2409, 5
      %v2412 = vsel %vm427, %v2407, %v2411
      %v2413 = vshrl.u32 %v2289, 16
      %v2415 = vrot.slane %v2413, 4
      %v2416 = vor.u32 %v2415, %v2411
      %v2417 = vrot.slane %v2416, 4
      %v2419 = vshll.u32 %v2290, 16
      %v2421 = vrot.slane %v2419, 5
      %v2422 = vsel %vm427, %v2417, %v2421
      %v2424 = vshrl.u32 %v2291, 16
      %v2426 = vrot.slane %v2424, 4
      %v2427 = vshll.u32 %v2291, 16
      %v2429 = vrot.slane %v2427, 5
      %v2430 = vor.u32 %v2426, %v2429
      %v2431 = vrot.slane %v2430, 4
      %v2433 = vshll.u32 %v2292, 16
      %v2435 = vrot.slane %v2433, 5
      %v2436 = vsel %vm427, %v2431, %v2435
      %v2437 = vshrl.u32 %v2292, 16
      %v2439 = vrot.slane %v2437, 4
      %v2440 = vor.u32 %v2439, %v2435
      %v2441 = vrot.slane %v2440, 4
      %v2443 = vshll.u32 %v2293, 16
      %v2445 = vrot.slane %v2443, 5
      %v2446 = vsel %vm427, %v2441, %v2445
      %v2448 = vshrl.u32 %v2294, 16
      %v2450 = vrot.slane %v2448, 4
      %v2451 = vshll.u32 %v2294, 16
      %v2453 = vrot.slane %v2451, 5
      %v2454 = vor.u32 %v2450, %v2453
      %v2455 = vrot.slane %v2454, 4
      %v2457 = vshll.u32 %v2295, 16
      %v2459 = vrot.slane %v2457, 5
      %v2460 = vsel %vm427, %v2455, %v2459
      %v2461 = vshrl.u32 %v2295, 16
      %v2463 = vrot.slane %v2461, 4
      %v2464 = vor.u32 %v2463, %v2459
      %v2465 = vrot.slane %v2464, 4
      %v2467 = vshll.u32 %v2296, 16
      %v2469 = vrot.slane %v2467, 5
      %v2470 = vsel %vm427, %v2465, %v2469
      %v2472 = vshrl.u32 %v2297, 16
      %v2474 = vrot.slane %v2472, 4
      %v2475 = vshll.u32 %v2297, 16
      %v2477 = vrot.slane %v2475, 5
      %v2478 = vor.u32 %v2474, %v2477
      %v2479 = vrot.slane %v2478, 4
      %v2481 = vshll.u32 %v2298, 16
      %v2483 = vrot.slane %v2481, 5
      %v2484 = vsel %vm427, %v2479, %v2483
      %v2485 = vshrl.u32 %v2298, 16
      %v2487 = vrot.slane %v2485, 4
      %v2488 = vor.u32 %v2487, %v2483
      %v2489 = vrot.slane %v2488, 4
      %v2491 = vshll.u32 %v2299, 16
      %v2493 = vrot.slane %v2491, 5
      %v2494 = vsel %vm427, %v2489, %v2493
      %v2496 = vshrl.u32 %v2300, 16
      %v2498 = vrot.slane %v2496, 4
      %v2499 = vshll.u32 %v2300, 16
      %v2501 = vrot.slane %v2499, 5
      %v2502 = vor.u32 %v2498, %v2501
      %v2503 = vrot.slane %v2502, 4
      %v2505 = vshll.u32 %v2301, 16
      %v2507 = vrot.slane %v2505, 5
      %v2508 = vsel %vm427, %v2503, %v2507
      %v2509 = vshrl.u32 %v2301, 16
      %v2511 = vrot.slane %v2509, 4
      %v2512 = vor.u32 %v2511, %v2507
      %v2513 = vrot.slane %v2512, 4
      %v2515 = vshll.u32 %v2302, 16
      %v2517 = vrot.slane %v2515, 5
      %v2518 = vsel %vm427, %v2513, %v2517
      %v2520 = vshrl.u32 %v2303, 16
      %v2522 = vrot.slane %v2520, 4
      %v2523 = vshll.u32 %v2303, 16
      %v2525 = vrot.slane %v2523, 5
      %v2526 = vor.u32 %v2522, %v2525
      %v2527 = vrot.slane %v2526, 4
      %v2529 = vshll.u32 %v2304, 16
      %v2531 = vrot.slane %v2529, 5
      %v2532 = vsel %vm427, %v2527, %v2531
      %v2533 = vshrl.u32 %v2304, 16
      %v2535 = vrot.slane %v2533, 4
      %v2536 = vor.u32 %v2535, %v2531
      %v2537 = vrot.slane %v2536, 4
      %v2539 = vshll.u32 %v2305, 16
      %v2541 = vrot.slane %v2539, 5
      %v2542 = vsel %vm427, %v2537, %v2541
      %v2544 = vshrl.u32 %v2306, 16
      %v2546 = vrot.slane %v2544, 4
      %v2547 = vshll.u32 %v2306, 16
      %v2549 = vrot.slane %v2547, 5
      %v2550 = vor.u32 %v2546, %v2549
      %v2551 = vrot.slane %v2550, 4
      %v2553 = vshll.u32 %v2307, 16
      %v2555 = vrot.slane %v2553, 5
      %v2556 = vsel %vm427, %v2551, %v2555
      %v2557 = vshrl.u32 %v2307, 16
      %v2559 = vrot.slane %v2557, 4
      %v2560 = vor.u32 %v2559, %v2555
      %v2561 = vrot.slane %v2560, 4
      %v2563 = vshll.u32 %v2308, 16
      %v2565 = vrot.slane %v2563, 5
      %v2566 = vsel %vm427, %v2561, %v2565
      %v2568 = vshrl.u32 %v2309, 16
      %v2570 = vrot.slane %v2568, 4
      %v2571 = vshll.u32 %v2309, 16
      %v2573 = vrot.slane %v2571, 5
      %v2574 = vor.u32 %v2570, %v2573
      %v2575 = vrot.slane %v2574, 4
      %v2577 = vshll.u32 %v2310, 16
      %v2579 = vrot.slane %v2577, 5
      %v2580 = vsel %vm427, %v2575, %v2579
      %v2581 = vshrl.u32 %v2310, 16
      %v2583 = vrot.slane %v2581, 4
      %v2584 = vor.u32 %v2583, %v2579
      %v2585 = vrot.slane %v2584, 4
      %v2587 = vshll.u32 %v2311, 16
      %v2589 = vrot.slane %v2587, 5
      %v2590 = vsel %vm427, %v2585, %v2589
      %v2592 = vshrl.u32 %v2312, 16
      %v2594 = vrot.slane %v2592, 4
      %v2595 = vshll.u32 %v2312, 16
      %v2597 = vrot.slane %v2595, 5
      %v2598 = vor.u32 %v2594, %v2597
      %v2599 = vrot.slane %v2598, 4
      %v2601 = vshll.u32 %v2313, 16
      %v2603 = vrot.slane %v2601, 5
      %v2604 = vsel %vm427, %v2599, %v2603
      %v2605 = vshrl.u32 %v2313, 16
      %v2607 = vrot.slane %v2605, 4
      %v2608 = vor.u32 %v2607, %v2603
      %v2609 = vrot.slane %v2608, 4
      %v2611 = vshll.u32 %v2314, 16
      %v2613 = vrot.slane %v2611, 5
      %v2614 = vsel %vm427, %v2609, %v2613
      %v2616 = vshrl.u32 %v2315, 16
      %v2618 = vrot.slane %v2616, 4
      %v2619 = vshll.u32 %v2315, 16
      %v2621 = vrot.slane %v2619, 5
      %v2622 = vor.u32 %v2618, %v2621
      %v2623 = vrot.slane %v2622, 4
      %v2625 = vshll.u32 %v2316, 16
      %v2627 = vrot.slane %v2625, 5
      %v2628 = vsel %vm427, %v2623, %v2627
      %v2629 = vshrl.u32 %v2316, 16
      %v2631 = vrot.slane %v2629, 4
      %v2632 = vor.u32 %v2631, %v2627
      %v2633 = vrot.slane %v2632, 4
      %v2635 = vshll.u32 %v2317, 16
      %v2637 = vrot.slane %v2635, 5
      %v2638 = vsel %vm427, %v2633, %v2637
      %v2640 = vshrl.u32 %v2318, 16
      %v2642 = vrot.slane %v2640, 4
      %v2643 = vshll.u32 %v2318, 16
      %v2645 = vrot.slane %v2643, 5
      %v2646 = vor.u32 %v2642, %v2645
      %v2647 = vrot.slane %v2646, 4
      %v2649 = vshll.u32 %v2319, 16
      %v2651 = vrot.slane %v2649, 5
      %v2652 = vsel %vm427, %v2647, %v2651
      %v2653 = vshrl.u32 %v2319, 16
      %v2655 = vrot.slane %v2653, 4
      %v2656 = vor.u32 %v2655, %v2651
      %v2657 = vrot.slane %v2656, 4
      %v2659 = vshll.u32 %v2320, 16
      %v2661 = vrot.slane %v2659, 5
      %v2662 = vsel %vm427, %v2657, %v2661
      %v2664 = vshrl.u32 %v2321, 16
      %v2666 = vrot.slane %v2664, 4
      %v2667 = vshll.u32 %v2321, 16
      %v2669 = vrot.slane %v2667, 5
      %v2670 = vor.u32 %v2666, %v2669
      %v2671 = vrot.slane %v2670, 4
      %v2673 = vshll.u32 %v2322, 16
      %v2675 = vrot.slane %v2673, 5
      %v2676 = vsel %vm427, %v2671, %v2675
      %v2677 = vshrl.u32 %v2322, 16
      %v2679 = vrot.slane %v2677, 4
      %v2680 = vor.u32 %v2679, %v2675
      %v2681 = vrot.slane %v2680, 4
      %v2683 = vshll.u32 %v2323, 16
      %v2685 = vrot.slane %v2683, 5
      %v2686 = vsel %vm427, %v2681, %v2685
      %v2688 = vshrl.u32 %v2324, 16
      %v2690 = vrot.slane %v2688, 4
      %v2691 = vshll.u32 %v2324, 16
      %v2693 = vrot.slane %v2691, 5
      %v2694 = vor.u32 %v2690, %v2693
      %v2695 = vrot.slane %v2694, 4
      %v2697 = vshll.u32 %v2325, 16
      %v2699 = vrot.slane %v2697, 5
      %v2700 = vsel %vm427, %v2695, %v2699
      %v2701 = vshrl.u32 %v2325, 16
      %v2703 = vrot.slane %v2701, 4
      %v2704 = vor.u32 %v2703, %v2699
      %v2705 = vrot.slane %v2704, 4
      %v2707 = vshll.u32 %v2326, 16
      %v2709 = vrot.slane %v2707, 5
      %v2710 = vsel %vm427, %v2705, %v2709
      %s2711 = scalar_lea.vmem %s1, 256
      %v2712 = vld [vmem:[%s2711] sm:$0xf]
      %v2713 = vld [vmem:[%s2711 + $0x4] sm:$0xf]
      %v2714 = vld [vmem:[%s2711 + $0x8] sm:$0xf]
      %v2715 = vld [vmem:[%s2711 + $0xc] sm:$0xf]
      %v2716 = vld [vmem:[%s2711 + $0x10] sm:$0xf]
      %v2717 = vld [vmem:[%s2711 + $0x14] sm:$0xf]
      %v2718 = vld [vmem:[%s2711 + $0x18] sm:$0xf]
      %v2719 = vld [vmem:[%s2711 + $0x1c] sm:$0xf]
      %v2720 = vld [vmem:[%s2711 + $0x20] sm:$0xf]
      %v2721 = vld [vmem:[%s2711 + $0x24] sm:$0xf]
      %v2722 = vld [vmem:[%s2711 + $0x28] sm:$0xf]
      %v2723 = vld [vmem:[%s2711 + $0x2c] sm:$0xf]
      %v2724 = vld [vmem:[%s2711 + $0x30] sm:$0xf]
      %v2725 = vld [vmem:[%s2711 + $0x34] sm:$0xf]
      %v2726 = vld [vmem:[%s2711 + $0x38] sm:$0xf]
      %v2727 = vld [vmem:[%s2711 + $0x3c] sm:$0xf]
      %v2728 = vunpack.c.l.b16 %v2340
      %v2729 = vunpack.c.l.b16 %v2350
      %v2730 = vunpack.c.l.b16 %v2364
      %v2731 = vunpack.c.l.b16 %v2374
      %v2732 = vunpack.c.l.b16 %v2388
      %v2733 = vunpack.c.l.b16 %v2398
      %v2734 = vunpack.c.l.b16 %v2412
      %v2735 = vunpack.c.l.b16 %v2422
      %v2736 = vunpack.c.l.b16 %v2436
      %v2737 = vunpack.c.l.b16 %v2446
      %v2738 = vunpack.c.l.b16 %v2460
      %v2739 = vunpack.c.l.b16 %v2470
      %v2740 = vunpack.c.l.b16 %v2484
      %v2741 = vunpack.c.l.b16 %v2494
      %v2742 = vunpack.c.l.b16 %v2508
      %v2743 = vunpack.c.l.b16 %v2518
      %v2744 = vunpack.c.l.b16 %v2532
      %v2745 = vunpack.c.l.b16 %v2542
      %v2746 = vunpack.c.l.b16 %v2556
      %v2747 = vunpack.c.l.b16 %v2566
      %v2748 = vunpack.c.l.b16 %v2580
      %v2749 = vunpack.c.l.b16 %v2590
      %v2750 = vunpack.c.l.b16 %v2604
      %v2751 = vunpack.c.l.b16 %v2614
      %v2752 = vunpack.c.l.b16 %v2628
      %v2753 = vunpack.c.l.b16 %v2638
      %v2754 = vunpack.c.l.b16 %v2652
      %v2755 = vunpack.c.l.b16 %v2662
      %v2756 = vunpack.c.l.b16 %v2676
      %v2757 = vunpack.c.l.b16 %v2686
      %v2758 = vunpack.c.l.b16 %v2700
      %v2759 = vunpack.c.l.b16 %v2710
      %v2760 = vpack.c.b16 %v2729, %v2728
      %v2761 = vpack.c.b16 %v2731, %v2730
      %v2762 = vpack.c.b16 %v2733, %v2732
      %v2763 = vpack.c.b16 %v2735, %v2734
      %v2764 = vpack.c.b16 %v2737, %v2736
      %v2765 = vpack.c.b16 %v2739, %v2738
      %v2766 = vpack.c.b16 %v2741, %v2740
      %v2767 = vpack.c.b16 %v2743, %v2742
      %v2768 = vpack.c.b16 %v2745, %v2744
      %v2769 = vpack.c.b16 %v2747, %v2746
      %v2770 = vpack.c.b16 %v2749, %v2748
      %v2771 = vpack.c.b16 %v2751, %v2750
      %v2772 = vpack.c.b16 %v2753, %v2752
      %v2773 = vpack.c.b16 %v2755, %v2754
      %v2774 = vpack.c.b16 %v2757, %v2756
      %v2775 = vpack.c.b16 %v2759, %v2758
      %v2808 = vunpack.c.l.b16 %v2712
      %v2809 = vunpack.c.l.b16 %v2713
      %v2810 = vunpack.c.l.b16 %v2714
      %v2811 = vunpack.c.l.b16 %v2715
      %v2812 = vunpack.c.l.b16 %v2716
      %v2813 = vunpack.c.l.b16 %v2717
      %v2814 = vunpack.c.l.b16 %v2718
      %v2815 = vunpack.c.l.b16 %v2719
      %v2816 = vunpack.c.l.b16 %v2720
      %v2817 = vunpack.c.l.b16 %v2721
      %v2818 = vunpack.c.l.b16 %v2722
      %v2819 = vunpack.c.l.b16 %v2723
      %v2820 = vunpack.c.l.b16 %v2724
      %v2821 = vunpack.c.l.b16 %v2725
      %v2822 = vunpack.c.l.b16 %v2726
      %v2823 = vunpack.c.l.b16 %v2727
      %v2824 = vpack.c.b16 %v2809, %v2808
      %v2825 = vpack.c.b16 %v2811, %v2810
      %v2826 = vpack.c.b16 %v2813, %v2812
      %v2827 = vpack.c.b16 %v2815, %v2814
      %v2828 = vpack.c.b16 %v2817, %v2816
      %v2829 = vpack.c.b16 %v2819, %v2818
      %v2830 = vpack.c.b16 %v2821, %v2820
      %v2831 = vpack.c.b16 %v2823, %v2822
      %2840 = vmatprep.subr.bf16.mxu0 0
      %2841 = vmatpush1.bf16.msra.mxu0 %v2824
      %2842 = vmatprep.subr.bf16.mxu0 0
      %2843 = vmatpush1.bf16.msra.mxu0 %v2825
      %2844 = vmatprep.subr.bf16.mxu0 0
      %2845 = vmatpush1.bf16.msra.mxu0 %v2826
      %2846 = vmatprep.subr.bf16.mxu0 0
      %2847 = vmatpush1.bf16.msra.mxu0 %v2827
      %2848 = vmatprep.subr.bf16.mxu0 0
      %2849 = vmatpush1.bf16.msra.mxu0 %v2828
      %2850 = vmatprep.subr.bf16.mxu0 0
      %2851 = vmatpush1.bf16.msra.mxu0 %v2829
      %2852 = vmatprep.subr.bf16.mxu0 0
      %2853 = vmatpush1.bf16.msra.mxu0 %v2830
      %2854 = vmatprep.subr.bf16.mxu0 0
      %2855 = vmatpush1.bf16.msra.mxu0 %v2831
      %2856 = vmatprep.subr.bf16.mxu0 0
      %2857 = vmatpush1.bf16.msra.mxu0 0
      %2858 = vmatprep.subr.bf16.mxu0 0
      %2859 = vmatpush1.bf16.msra.mxu0 0
      %2860 = vmatprep.subr.bf16.mxu0 0
      %2861 = vmatpush1.bf16.msra.mxu0 0
      %2862 = vmatprep.subr.bf16.mxu0 0
      %2863 = vmatpush1.bf16.msra.mxu0 0
      %2864 = vmatprep.subr.bf16.mxu0 0
      %2865 = vmatpush1.bf16.msra.mxu0 0
      %2866 = vmatprep.subr.bf16.mxu0 0
      %2867 = vmatpush1.bf16.msra.mxu0 0
      %2868 = vmatprep.subr.bf16.mxu0 0
      %2869 = vmatpush1.bf16.msra.mxu0 0
      %2870 = vmatprep.subr.bf16.mxu0 0
      %2871 = vmatpush1.bf16.msra.mxu0 0
      %2872 = vmatprep.mubr.bf16.mxu0 0
      %2873 = vmatmul.mubr.bf16.gmra.mrb[0].mxu0 %v2760
      %v2874 = vpop.f32.mrb[0].mxu0
      %v2875 = vadd.f32 0.0, %v2874
      %v2876 = vpop.f32.mrb[0].mxu0
      %v2877 = vpop.f32.mrb[0].mxu0
      %v2878 = vadd.f32 0.0, %v2877
      %v2879 = vpop.f32.mrb[0].mxu0
      %2880 = vmatprep.mubr.bf16.mxu0 0
      %2881 = vmatmul.mubr.bf16.gmra.mrb[0].mxu0 %v2761
      %v2882 = vpop.f32.mrb[0].mxu0
      %v2883 = vadd.f32 0.0, %v2882
      %v2884 = vpop.f32.mrb[0].mxu0
      %v2885 = vpop.f32.mrb[0].mxu0
      %v2886 = vadd.f32 0.0, %v2885
      %v2887 = vpop.f32.mrb[0].mxu0
      %2888 = vmatprep.mubr.bf16.mxu0 0
      %2889 = vmatmul.mubr.bf16.gmra.mrb[0].mxu0 %v2762
      %v2890 = vpop.f32.mrb[0].mxu0
      %v2891 = vadd.f32 0.0, %v2890
      %v2892 = vpop.f32.mrb[0].mxu0
      %v2893 = vpop.f32.mrb[0].mxu0
      %v2894 = vadd.f32 0.0, %v2893
      %v2895 = vpop.f32.mrb[0].mxu0
      %2896 = vmatprep.mubr.bf16.mxu0 0
      %2897 = vmatmul.mubr.bf16.gmra.mrb[0].mxu0 %v2763
      %v2898 = vpop.f32.mrb[0].mxu0
      %v2899 = vadd.f32 0.0, %v2898
      %v2900 = vpop.f32.mrb[0].mxu0
      %v2901 = vpop.f32.mrb[0].mxu0
      %v2902 = vadd.f32 0.0, %v2901
      %v2903 = vpop.f32.mrb[0].mxu0
      %2904 = vmatprep.mubr.bf16.mxu0 0
      %2905 = vmatmul.mubr.bf16.gmra.mrb[0].mxu0 %v2764
      %v2906 = vpop.f32.mrb[0].mxu0
      %v2907 = vadd.f32 0.0, %v2906
      %v2908 = vpop.f32.mrb[0].mxu0
      %v2909 = vpop.f32.mrb[0].mxu0
      %v2910 = vadd.f32 0.0, %v2909
      %v2911 = vpop.f32.mrb[0].mxu0
      %2912 = vmatprep.mubr.bf16.mxu0 0
      %2913 = vmatmul.mubr.bf16.gmra.mrb[0].mxu0 %v2765
      %v2914 = vpop.f32.mrb[0].mxu0
      %v2915 = vadd.f32 0.0, %v2914
      %v2916 = vpop.f32.mrb[0].mxu0
      %v2917 = vpop.f32.mrb[0].mxu0
      %v2918 = vadd.f32 0.0, %v2917
      %v2919 = vpop.f32.mrb[0].mxu0
      %2920 = vmatprep.mubr.bf16.mxu0 0
      %2921 = vmatmul.mubr.bf16.gmra.mrb[0].mxu0 %v2766
      %v2922 = vpop.f32.mrb[0].mxu0
      %v2923 = vadd.f32 0.0, %v2922
      %v2924 = vpop.f32.mrb[0].mxu0
      %v2925 = vpop.f32.mrb[0].mxu0
      %v2926 = vadd.f32 0.0, %v2925
      %v2927 = vpop.f32.mrb[0].mxu0
      %2928 = vmatprep.mubr.bf16.mxu0 0
      %2929 = vmatmul.mubr.bf16.gmra.mrb[0].mxu0 %v2767
      %v2930 = vpop.f32.mrb[0].mxu0
      %v2931 = vadd.f32 0.0, %v2930
      %v2932 = vpop.f32.mrb[0].mxu0
      %v2933 = vpop.f32.mrb[0].mxu0
      %v2934 = vadd.f32 0.0, %v2933
      %v2935 = vpop.f32.mrb[0].mxu0
      %2936 = vmatprep.mubr.bf16.mxu0 0
      %2937 = vmatmul.mubr.bf16.gmra.mrb[0].mxu0 %v2768
      %v2938 = vpop.f32.mrb[0].mxu0
      %v2939 = vadd.f32 0.0, %v2938
      %v2940 = vpop.f32.mrb[0].mxu0
      %v2941 = vpop.f32.mrb[0].mxu0
      %v2942 = vadd.f32 0.0, %v2941
      %v2943 = vpop.f32.mrb[0].mxu0
      %2944 = vmatprep.mubr.bf16.mxu0 0
      %2945 = vmatmul.mubr.bf16.gmra.mrb[0].mxu0 %v2769
      %v2946 = vpop.f32.mrb[0].mxu0
      %v2947 = vadd.f32 0.0, %v2946
      %v2948 = vpop.f32.mrb[0].mxu0
      %v2949 = vpop.f32.mrb[0].mxu0
      %v2950 = vadd.f32 0.0, %v2949
      %v2951 = vpop.f32.mrb[0].mxu0
      %2952 = vmatprep.mubr.bf16.mxu0 0
      %2953 = vmatmul.mubr.bf16.gmra.mrb[0].mxu0 %v2770
      %v2954 = vpop.f32.mrb[0].mxu0
      %v2955 = vadd.f32 0.0, %v2954
      %v2956 = vpop.f32.mrb[0].mxu0
      %v2957 = vpop.f32.mrb[0].mxu0
      %v2958 = vadd.f32 0.0, %v2957
      %v2959 = vpop.f32.mrb[0].mxu0
      %2960 = vmatprep.mubr.bf16.mxu0 0
      %2961 = vmatmul.mubr.bf16.gmra.mrb[0].mxu0 %v2771
      %v2962 = vpop.f32.mrb[0].mxu0
      %v2963 = vadd.f32 0.0, %v2962
      %v2964 = vpop.f32.mrb[0].mxu0
      %v2965 = vpop.f32.mrb[0].mxu0
      %v2966 = vadd.f32 0.0, %v2965
      %v2967 = vpop.f32.mrb[0].mxu0
      %2968 = vmatprep.mubr.bf16.mxu0 0
      %2969 = vmatmul.mubr.bf16.gmra.mrb[0].mxu0 %v2772
      %v2970 = vpop.f32.mrb[0].mxu0
      %v2971 = vadd.f32 0.0, %v2970
      %v2972 = vpop.f32.mrb[0].mxu0
      %v2973 = vpop.f32.mrb[0].mxu0
      %v2974 = vadd.f32 0.0, %v2973
      %v2975 = vpop.f32.mrb[0].mxu0
      %2976 = vmatprep.mubr.bf16.mxu0 0
      %2977 = vmatmul.mubr.bf16.gmra.mrb[0].mxu0 %v2773
      %v2978 = vpop.f32.mrb[0].mxu0
      %v2979 = vadd.f32 0.0, %v2978
      %v2980 = vpop.f32.mrb[0].mxu0
      %v2981 = vpop.f32.mrb[0].mxu0
      %v2982 = vadd.f32 0.0, %v2981
      %v2983 = vpop.f32.mrb[0].mxu0
      %2984 = vmatprep.mubr.bf16.mxu0 0
      %2985 = vmatmul.mubr.bf16.gmra.mrb[0].mxu0 %v2774
      %v2986 = vpop.f32.mrb[0].mxu0
      %v2987 = vadd.f32 0.0, %v2986
      %v2988 = vpop.f32.mrb[0].mxu0
      %v2989 = vpop.f32.mrb[0].mxu0
      %v2990 = vadd.f32 0.0, %v2989
      %v2991 = vpop.f32.mrb[0].mxu0
      %2992 = vmatprep.mubr.bf16.mxu0 0
      %2993 = vmatmul.mubr.bf16.gmra.mrb[0].mxu0 %v2775
      %v2994 = vpop.f32.mrb[0].mxu0
      %v2995 = vadd.f32 0.0, %v2994
      %v2996 = vpop.f32.mrb[0].mxu0
      %v2997 = vpop.f32.mrb[0].mxu0
      %v2998 = vadd.f32 0.0, %v2997
      %v2999 = vpop.f32.mrb[0].mxu0
      %3000 = vdwg.mxu0
      %v3001 = vadd.f32 %v2247, %v2875
      %v3002 = vadd.f32 %v2248, %v2878
      %v3003 = vadd.f32 %v2249, %v2883
      %v3004 = vadd.f32 %v2250, %v2886
      %v3005 = vadd.f32 %v2251, %v2891
      %v3006 = vadd.f32 %v2252, %v2894
      %v3007 = vadd.f32 %v2253, %v2899
      %v3008 = vadd.f32 %v2254, %v2902
      %v3009 = vadd.f32 %v2255, %v2907
      %v3010 = vadd.f32 %v2256, %v2910
      %v3011 = vadd.f32 %v2257, %v2915
      %v3012 = vadd.f32 %v2258, %v2918
      %v3013 = vadd.f32 %v2259, %v2923
      %v3014 = vadd.f32 %v2260, %v2926
      %v3015 = vadd.f32 %v2261, %v2931
      %v3016 = vadd.f32 %v2262, %v2934
      %v3017 = vadd.f32 %v2263, %v2939
      %v3018 = vadd.f32 %v2264, %v2942
      %v3019 = vadd.f32 %v2265, %v2947
      %v3020 = vadd.f32 %v2266, %v2950
      %v3021 = vadd.f32 %v2267, %v2955
      %v3022 = vadd.f32 %v2268, %v2958
      %v3023 = vadd.f32 %v2269, %v2963
      %v3024 = vadd.f32 %v2270, %v2966
      %v3025 = vadd.f32 %v2271, %v2971
      %v3026 = vadd.f32 %v2272, %v2974
      %v3027 = vadd.f32 %v2273, %v2979
      %v3028 = vadd.f32 %v2274, %v2982
      %v3029 = vadd.f32 %v2275, %v2987
      %v3030 = vadd.f32 %v2276, %v2990
      %v3031 = vadd.f32 %v2277, %v2995
      %v3032 = vadd.f32 %v2278, %v2998
      %v3033 = vld [vmem:[%s1892] sm:$0xe]
      %v3034 = vld [vmem:[%s1892 + $0xc] sm:$0xe]
      %v3035 = vld [vmem:[%s1892 + $0x18] sm:$0xe]
      %v3036 = vld [vmem:[%s1892 + $0x24] sm:$0xe]
      %v3037 = vld [vmem:[%s1892 + $0x30] sm:$0xe]
      %v3038 = vld [vmem:[%s1892 + $0x3c] sm:$0xe]
      %v3039 = vld [vmem:[%s1892 + $0x48] sm:$0xe]
      %v3040 = vld [vmem:[%s1892 + $0x54] sm:$0xe]
      %v3041 = vld [vmem:[%s1892 + $0x60] sm:$0xe]
      %v3042 = vld [vmem:[%s1892 + $0x6c] sm:$0xe]
      %v3043 = vld [vmem:[%s1892 + $0x78] sm:$0xe]
      %v3044 = vld [vmem:[%s1892 + $0x84] sm:$0xe]
      %v3045 = vld [vmem:[%s1892 + $0x90] sm:$0xe]
      %v3046 = vld [vmem:[%s1892 + $0x9c] sm:$0xe]
      %v3047 = vld [vmem:[%s1892 + $0xa8] sm:$0xe]
      %v3048 = vld [vmem:[%s1892 + $0xb4] sm:$0xe]
      %v3097 = vrot.slane %v3033, 5
      %v3098 = vrot.slane %v3097, 4
      %v3099 = vrot.slane %v2280, 5
      %v3100 = vsel %vm1457, %v3098, %v3099
      %v3101 = vrot.slane %v3099, 4
      %v3102 = vrot.slane %v2281, 5
      %v3103 = vsel %vm1457, %v3101, %v3102
      %v3104 = vrot.slane %v3034, 5
      %v3105 = vrot.slane %v3104, 4
      %v3106 = vrot.slane %v2283, 5
      %v3107 = vsel %vm1457, %v3105, %v3106
      %v3108 = vrot.slane %v3106, 4
      %v3109 = vrot.slane %v2284, 5
      %v3110 = vsel %vm1457, %v3108, %v3109
      %v3111 = vrot.slane %v3035, 5
      %v3112 = vrot.slane %v3111, 4
      %v3113 = vrot.slane %v2286, 5
      %v3114 = vsel %vm1457, %v3112, %v3113
      %v3115 = vrot.slane %v3113, 4
      %v3116 = vrot.slane %v2287, 5
      %v3117 = vsel %vm1457, %v3115, %v3116
      %v3118 = vrot.slane %v3036, 5
      %v3119 = vrot.slane %v3118, 4
      %v3120 = vrot.slane %v2289, 5
      %v3121 = vsel %vm1457, %v3119, %v3120
      %v3122 = vrot.slane %v3120, 4
      %v3123 = vrot.slane %v2290, 5
      %v3124 = vsel %vm1457, %v3122, %v3123
      %v3125 = vrot.slane %v3037, 5
      %v3126 = vrot.slane %v3125, 4
      %v3127 = vrot.slane %v2292, 5
      %v3128 = vsel %vm1457, %v3126, %v3127
      %v3129 = vrot.slane %v3127, 4
      %v3130 = vrot.slane %v2293, 5
      %v3131 = vsel %vm1457, %v3129, %v3130
      %v3132 = vrot.slane %v3038, 5
      %v3133 = vrot.slane %v3132, 4
      %v3134 = vrot.slane %v2295, 5
      %v3135 = vsel %vm1457, %v3133, %v3134
      %v3136 = vrot.slane %v3134, 4
      %v3137 = vrot.slane %v2296, 5
      %v3138 = vsel %vm1457, %v3136, %v3137
      %v3139 = vrot.slane %v3039, 5
      %v3140 = vrot.slane %v3139, 4
      %v3141 = vrot.slane %v2298, 5
      %v3142 = vsel %vm1457, %v3140, %v3141
      %v3143 = vrot.slane %v3141, 4
      %v3144 = vrot.slane %v2299, 5
      %v3145 = vsel %vm1457, %v3143, %v3144
      %v3146 = vrot.slane %v3040, 5
      %v3147 = vrot.slane %v3146, 4
      %v3148 = vrot.slane %v2301, 5
      %v3149 = vsel %vm1457, %v3147, %v3148
      %v3150 = vrot.slane %v3148, 4
      %v3151 = vrot.slane %v2302, 5
      %v3152 = vsel %vm1457, %v3150, %v3151
      %v3153 = vrot.slane %v3041, 5
      %v3154 = vrot.slane %v3153, 4
      %v3155 = vrot.slane %v2304, 5
      %v3156 = vsel %vm1457, %v3154, %v3155
      %v3157 = vrot.slane %v3155, 4
      %v3158 = vrot.slane %v2305, 5
      %v3159 = vsel %vm1457, %v3157, %v3158
      %v3160 = vrot.slane %v3042, 5
      %v3161 = vrot.slane %v3160, 4
      %v3162 = vrot.slane %v2307, 5
      %v3163 = vsel %vm1457, %v3161, %v3162
      %v3164 = vrot.slane %v3162, 4
      %v3165 = vrot.slane %v2308, 5
      %v3166 = vsel %vm1457, %v3164, %v3165
      %v3167 = vrot.slane %v3043, 5
      %v3168 = vrot.slane %v3167, 4
      %v3169 = vrot.slane %v2310, 5
      %v3170 = vsel %vm1457, %v3168, %v3169
      %v3171 = vrot.slane %v3169, 4
      %v3172 = vrot.slane %v2311, 5
      %v3173 = vsel %vm1457, %v3171, %v3172
      %v3174 = vrot.slane %v3044, 5
      %v3175 = vrot.slane %v3174, 4
      %v3176 = vrot.slane %v2313, 5
      %v3177 = vsel %vm1457, %v3175, %v3176
      %v3178 = vrot.slane %v3176, 4
      %v3179 = vrot.slane %v2314, 5
      %v3180 = vsel %vm1457, %v3178, %v3179
      %v3181 = vrot.slane %v3045, 5
      %v3182 = vrot.slane %v3181, 4
      %v3183 = vrot.slane %v2316, 5
      %v3184 = vsel %vm1457, %v3182, %v3183
      %v3185 = vrot.slane %v3183, 4
      %v3186 = vrot.slane %v2317, 5
      %v3187 = vsel %vm1457, %v3185, %v3186
      %v3188 = vrot.slane %v3046, 5
      %v3189 = vrot.slane %v3188, 4
      %v3190 = vrot.slane %v2319, 5
      %v3191 = vsel %vm1457, %v3189, %v3190
      %v3192 = vrot.slane %v3190, 4
      %v3193 = vrot.slane %v2320, 5
      %v3194 = vsel %vm1457, %v3192, %v3193
      %v3195 = vrot.slane %v3047, 5
      %v3196 = vrot.slane %v3195, 4
      %v3197 = vrot.slane %v2322, 5
      %v3198 = vsel %vm1457, %v3196, %v3197
      %v3199 = vrot.slane %v3197, 4
      %v3200 = vrot.slane %v2323, 5
      %v3201 = vsel %vm1457, %v3199, %v3200
      %v3202 = vrot.slane %v3048, 5
      %v3203 = vrot.slane %v3202, 4
      %v3204 = vrot.slane %v2325, 5
      %v3205 = vsel %vm1457, %v3203, %v3204
      %v3206 = vrot.slane %v3204, 4
      %v3207 = vrot.slane %v2326, 5
      %v3208 = vsel %vm1457, %v3206, %v3207
      %s3209 = scalar_lea.vmem %s1, 320
      %v3210 = vld [vmem:[%s3209] sm:$0xf]
      %v3211 = vld [vmem:[%s3209 + $0x4] sm:$0xf]
      %v3212 = vld [vmem:[%s3209 + $0x8] sm:$0xf]
      %v3213 = vld [vmem:[%s3209 + $0xc] sm:$0xf]
      %v3214 = vld [vmem:[%s3209 + $0x10] sm:$0xf]
      %v3215 = vld [vmem:[%s3209 + $0x14] sm:$0xf]
      %v3216 = vld [vmem:[%s3209 + $0x18] sm:$0xf]
      %v3217 = vld [vmem:[%s3209 + $0x1c] sm:$0xf]
      %v3218 = vld [vmem:[%s3209 + $0x20] sm:$0xf]
      %v3219 = vld [vmem:[%s3209 + $0x24] sm:$0xf]
      %v3220 = vld [vmem:[%s3209 + $0x28] sm:$0xf]
      %v3221 = vld [vmem:[%s3209 + $0x2c] sm:$0xf]
      %v3222 = vld [vmem:[%s3209 + $0x30] sm:$0xf]
      %v3223 = vld [vmem:[%s3209 + $0x34] sm:$0xf]
      %v3224 = vld [vmem:[%s3209 + $0x38] sm:$0xf]
      %v3225 = vld [vmem:[%s3209 + $0x3c] sm:$0xf]
      %v3226 = vunpack.c.l.b16 %v3100
      %v3227 = vunpack.c.l.b16 %v3103
      %v3228 = vunpack.c.l.b16 %v3107
      %v3229 = vunpack.c.l.b16 %v3110
      %v3230 = vunpack.c.l.b16 %v3114
      %v3231 = vunpack.c.l.b16 %v3117
      %v3232 = vunpack.c.l.b16 %v3121
      %v3233 = vunpack.c.l.b16 %v3124
      %v3234 = vunpack.c.l.b16 %v3128
      %v3235 = vunpack.c.l.b16 %v3131
      %v3236 = vunpack.c.l.b16 %v3135
      %v3237 = vunpack.c.l.b16 %v3138
      %v3238 = vunpack.c.l.b16 %v3142
      %v3239 = vunpack.c.l.b16 %v3145
      %v3240 = vunpack.c.l.b16 %v3149
      %v3241 = vunpack.c.l.b16 %v3152
      %v3242 = vunpack.c.l.b16 %v3156
      %v3243 = vunpack.c.l.b16 %v3159
      %v3244 = vunpack.c.l.b16 %v3163
      %v3245 = vunpack.c.l.b16 %v3166
      %v3246 = vunpack.c.l.b16 %v3170
      %v3247 = vunpack.c.l.b16 %v3173
      %v3248 = vunpack.c.l.b16 %v3177
      %v3249 = vunpack.c.l.b16 %v3180
      %v3250 = vunpack.c.l.b16 %v3184
      %v3251 = vunpack.c.l.b16 %v3187
      %v3252 = vunpack.c.l.b16 %v3191
      %v3253 = vunpack.c.l.b16 %v3194
      %v3254 = vunpack.c.l.b16 %v3198
      %v3255 = vunpack.c.l.b16 %v3201
      %v3256 = vunpack.c.l.b16 %v3205
      %v3257 = vunpack.c.l.b16 %v3208
      %v3258 = vpack.c.b16 %v3227, %v3226
      %v3259 = vpack.c.b16 %v3229, %v3228
      %v3260 = vpack.c.b16 %v3231, %v3230
      %v3261 = vpack.c.b16 %v3233, %v3232
      %v3262 = vpack.c.b16 %v3235, %v3234
      %v3263 = vpack.c.b16 %v3237, %v3236
      %v3264 = vpack.c.b16 %v3239, %v3238
      %v3265 = vpack.c.b16 %v3241, %v3240
      %v3266 = vpack.c.b16 %v3243, %v3242
      %v3267 = vpack.c.b16 %v3245, %v3244
      %v3268 = vpack.c.b16 %v3247, %v3246
      %v3269 = vpack.c.b16 %v3249, %v3248
      %v3270 = vpack.c.b16 %v3251, %v3250
      %v3271 = vpack.c.b16 %v3253, %v3252
      %v3272 = vpack.c.b16 %v3255, %v3254
      %v3273 = vpack.c.b16 %v3257, %v3256
      %v3306 = vunpack.c.l.b16 %v3210
      %v3307 = vunpack.c.l.b16 %v3211
      %v3308 = vunpack.c.l.b16 %v3212
      %v3309 = vunpack.c.l.b16 %v3213
      %v3310 = vunpack.c.l.b16 %v3214
      %v3311 = vunpack.c.l.b16 %v3215
      %v3312 = vunpack.c.l.b16 %v3216
      %v3313 = vunpack.c.l.b16 %v3217
      %v3314 = vunpack.c.l.b16 %v3218
      %v3315 = vunpack.c.l.b16 %v3219
      %v3316 = vunpack.c.l.b16 %v3220
      %v3317 = vunpack.c.l.b16 %v3221
      %v3318 = vunpack.c.l.b16 %v3222
      %v3319 = vunpack.c.l.b16 %v3223
      %v3320 = vunpack.c.l.b16 %v3224
      %v3321 = vunpack.c.l.b16 %v3225
      %v3322 = vpack.c.b16 %v3307, %v3306
      %v3323 = vpack.c.b16 %v3309, %v3308
      %v3324 = vpack.c.b16 %v3311, %v3310
      %v3325 = vpack.c.b16 %v3313, %v3312
      %v3326 = vpack.c.b16 %v3315, %v3314
      %v3327 = vpack.c.b16 %v3317, %v3316
      %v3328 = vpack.c.b16 %v3319, %v3318
      %v3329 = vpack.c.b16 %v3321, %v3320
      %3338 = vmatprep.subr.bf16.mxu0 0
      %3339 = vmatpush1.bf16.msra.mxu0 %v3322
      %3340 = vmatprep.subr.bf16.mxu0 0
      %3341 = vmatpush1.bf16.msra.mxu0 %v3323
      %3342 = vmatprep.subr.bf16.mxu0 0
      %3343 = vmatpush1.bf16.msra.mxu0 %v3324
      %3344 = vmatprep.subr.bf16.mxu0 0
      %3345 = vmatpush1.bf16.msra.mxu0 %v3325
      %3346 = vmatprep.subr.bf16.mxu0 0
      %3347 = vmatpush1.bf16.msra.mxu0 %v3326
      %3348 = vmatprep.subr.bf16.mxu0 0
      %3349 = vmatpush1.bf16.msra.mxu0 %v3327
      %3350 = vmatprep.subr.bf16.mxu0 0
      %3351 = vmatpush1.bf16.msra.mxu0 %v3328
      %3352 = vmatprep.subr.bf16.mxu0 0
      %3353 = vmatpush1.bf16.msra.mxu0 %v3329
      %3354 = vmatprep.subr.bf16.mxu0 0
      %3355 = vmatpush1.bf16.msra.mxu0 0
      %3356 = vmatprep.subr.bf16.mxu0 0
      %3357 = vmatpush1.bf16.msra.mxu0 0
      %3358 = vmatprep.subr.bf16.mxu0 0
      %3359 = vmatpush1.bf16.msra.mxu0 0
      %3360 = vmatprep.subr.bf16.mxu0 0
      %3361 = vmatpush1.bf16.msra.mxu0 0
      %3362 = vmatprep.subr.bf16.mxu0 0
      %3363 = vmatpush1.bf16.msra.mxu0 0
      %3364 = vmatprep.subr.bf16.mxu0 0
      %3365 = vmatpush1.bf16.msra.mxu0 0
      %3366 = vmatprep.subr.bf16.mxu0 0
      %3367 = vmatpush1.bf16.msra.mxu0 0
      %3368 = vmatprep.subr.bf16.mxu0 0
      %3369 = vmatpush1.bf16.msra.mxu0 0
      %3370 = vmatprep.mubr.bf16.mxu0 0
      %3371 = vmatmul.mubr.bf16.gmra.mrb[0].mxu0 %v3258
      %v3372 = vpop.f32.mrb[0].mxu0
      %v3373 = vadd.f32 0.0, %v3372
      %v3374 = vpop.f32.mrb[0].mxu0
      %v3375 = vpop.f32.mrb[0].mxu0
      %v3376 = vadd.f32 0.0, %v3375
      %v3377 = vpop.f32.mrb[0].mxu0
      %3378 = vmatprep.mubr.bf16.mxu0 0
      %3379 = vmatmul.mubr.bf16.gmra.mrb[0].mxu0 %v3259
      %v3380 = vpop.f32.mrb[0].mxu0
      %v3381 = vadd.f32 0.0, %v3380
      %v3382 = vpop.f32.mrb[0].mxu0
      %v3383 = vpop.f32.mrb[0].mxu0
      %v3384 = vadd.f32 0.0, %v3383
      %v3385 = vpop.f32.mrb[0].mxu0
      %3386 = vmatprep.mubr.bf16.mxu0 0
      %3387 = vmatmul.mubr.bf16.gmra.mrb[0].mxu0 %v3260
      %v3388 = vpop.f32.mrb[0].mxu0
      %v3389 = vadd.f32 0.0, %v3388
      %v3390 = vpop.f32.mrb[0].mxu0
      %v3391 = vpop.f32.mrb[0].mxu0
      %v3392 = vadd.f32 0.0, %v3391
      %v3393 = vpop.f32.mrb[0].mxu0
      %3394 = vmatprep.mubr.bf16.mxu0 0
      %3395 = vmatmul.mubr.bf16.gmra.mrb[0].mxu0 %v3261
      %v3396 = vpop.f32.mrb[0].mxu0
      %v3397 = vadd.f32 0.0, %v3396
      %v3398 = vpop.f32.mrb[0].mxu0
      %v3399 = vpop.f32.mrb[0].mxu0
      %v3400 = vadd.f32 0.0, %v3399
      %v3401 = vpop.f32.mrb[0].mxu0
      %3402 = vmatprep.mubr.bf16.mxu0 0
      %3403 = vmatmul.mubr.bf16.gmra.mrb[0].mxu0 %v3262
      %v3404 = vpop.f32.mrb[0].mxu0
      %v3405 = vadd.f32 0.0, %v3404
      %v3406 = vpop.f32.mrb[0].mxu0
      %v3407 = vpop.f32.mrb[0].mxu0
      %v3408 = vadd.f32 0.0, %v3407
      %v3409 = vpop.f32.mrb[0].mxu0
      %3410 = vmatprep.mubr.bf16.mxu0 0
      %3411 = vmatmul.mubr.bf16.gmra.mrb[0].mxu0 %v3263
      %v3412 = vpop.f32.mrb[0].mxu0
      %v3413 = vadd.f32 0.0, %v3412
      %v3414 = vpop.f32.mrb[0].mxu0
      %v3415 = vpop.f32.mrb[0].mxu0
      %v3416 = vadd.f32 0.0, %v3415
      %v3417 = vpop.f32.mrb[0].mxu0
      %3418 = vmatprep.mubr.bf16.mxu0 0
      %3419 = vmatmul.mubr.bf16.gmra.mrb[0].mxu0 %v3264
      %v3420 = vpop.f32.mrb[0].mxu0
      %v3421 = vadd.f32 0.0, %v3420
      %v3422 = vpop.f32.mrb[0].mxu0
      %v3423 = vpop.f32.mrb[0].mxu0
      %v3424 = vadd.f32 0.0, %v3423
      %v3425 = vpop.f32.mrb[0].mxu0
      %3426 = vmatprep.mubr.bf16.mxu0 0
      %3427 = vmatmul.mubr.bf16.gmra.mrb[0].mxu0 %v3265
      %v3428 = vpop.f32.mrb[0].mxu0
      %v3429 = vadd.f32 0.0, %v3428
      %v3430 = vpop.f32.mrb[0].mxu0
      %v3431 = vpop.f32.mrb[0].mxu0
      %v3432 = vadd.f32 0.0, %v3431
      %v3433 = vpop.f32.mrb[0].mxu0
      %3434 = vmatprep.mubr.bf16.mxu0 0
      %3435 = vmatmul.mubr.bf16.gmra.mrb[0].mxu0 %v3266
      %v3436 = vpop.f32.mrb[0].mxu0
      %v3437 = vadd.f32 0.0, %v3436
      %v3438 = vpop.f32.mrb[0].mxu0
      %v3439 = vpop.f32.mrb[0].mxu0
      %v3440 = vadd.f32 0.0, %v3439
      %v3441 = vpop.f32.mrb[0].mxu0
      %3442 = vmatprep.mubr.bf16.mxu0 0
      %3443 = vmatmul.mubr.bf16.gmra.mrb[0].mxu0 %v3267
      %v3444 = vpop.f32.mrb[0].mxu0
      %v3445 = vadd.f32 0.0, %v3444
      %v3446 = vpop.f32.mrb[0].mxu0
      %v3447 = vpop.f32.mrb[0].mxu0
      %v3448 = vadd.f32 0.0, %v3447
      %v3449 = vpop.f32.mrb[0].mxu0
      %3450 = vmatprep.mubr.bf16.mxu0 0
      %3451 = vmatmul.mubr.bf16.gmra.mrb[0].mxu0 %v3268
      %v3452 = vpop.f32.mrb[0].mxu0
      %v3453 = vadd.f32 0.0, %v3452
      %v3454 = vpop.f32.mrb[0].mxu0
      %v3455 = vpop.f32.mrb[0].mxu0
      %v3456 = vadd.f32 0.0, %v3455
      %v3457 = vpop.f32.mrb[0].mxu0
      %3458 = vmatprep.mubr.bf16.mxu0 0
      %3459 = vmatmul.mubr.bf16.gmra.mrb[0].mxu0 %v3269
      %v3460 = vpop.f32.mrb[0].mxu0
      %v3461 = vadd.f32 0.0, %v3460
      %v3462 = vpop.f32.mrb[0].mxu0
      %v3463 = vpop.f32.mrb[0].mxu0
      %v3464 = vadd.f32 0.0, %v3463
      %v3465 = vpop.f32.mrb[0].mxu0
      %3466 = vmatprep.mubr.bf16.mxu0 0
      %3467 = vmatmul.mubr.bf16.gmra.mrb[0].mxu0 %v3270
      %v3468 = vpop.f32.mrb[0].mxu0
      %v3469 = vadd.f32 0.0, %v3468
      %v3470 = vpop.f32.mrb[0].mxu0
      %v3471 = vpop.f32.mrb[0].mxu0
      %v3472 = vadd.f32 0.0, %v3471
      %v3473 = vpop.f32.mrb[0].mxu0
      %3474 = vmatprep.mubr.bf16.mxu0 0
      %3475 = vmatmul.mubr.bf16.gmra.mrb[0].mxu0 %v3271
      %v3476 = vpop.f32.mrb[0].mxu0
      %v3477 = vadd.f32 0.0, %v3476
      %v3478 = vpop.f32.mrb[0].mxu0
      %v3479 = vpop.f32.mrb[0].mxu0
      %v3480 = vadd.f32 0.0, %v3479
      %v3481 = vpop.f32.mrb[0].mxu0
      %3482 = vmatprep.mubr.bf16.mxu0 0
      %3483 = vmatmul.mubr.bf16.gmra.mrb[0].mxu0 %v3272
      %v3484 = vpop.f32.mrb[0].mxu0
      %v3485 = vadd.f32 0.0, %v3484
      %v3486 = vpop.f32.mrb[0].mxu0
      %v3487 = vpop.f32.mrb[0].mxu0
      %v3488 = vadd.f32 0.0, %v3487
      %v3489 = vpop.f32.mrb[0].mxu0
      %3490 = vmatprep.mubr.bf16.mxu0 0
      %3491 = vmatmul.mubr.bf16.gmra.mrb[0].mxu0 %v3273
      %v3492 = vpop.f32.mrb[0].mxu0
      %v3493 = vadd.f32 0.0, %v3492
      %v3494 = vpop.f32.mrb[0].mxu0
      %v3495 = vpop.f32.mrb[0].mxu0
      %v3496 = vadd.f32 0.0, %v3495
      %v3497 = vpop.f32.mrb[0].mxu0
      %3498 = vdwg.mxu0
      %v3499 = vadd.f32 %v3001, %v3373
      %v3500 = vadd.f32 %v3002, %v3376
      %v3501 = vadd.f32 %v3003, %v3381
      %v3502 = vadd.f32 %v3004, %v3384
      %v3503 = vadd.f32 %v3005, %v3389
      %v3504 = vadd.f32 %v3006, %v3392
      %v3505 = vadd.f32 %v3007, %v3397
      %v3506 = vadd.f32 %v3008, %v3400
      %v3507 = vadd.f32 %v3009, %v3405
      %v3508 = vadd.f32 %v3010, %v3408
      %v3509 = vadd.f32 %v3011, %v3413
      %v3510 = vadd.f32 %v3012, %v3416
      %v3511 = vadd.f32 %v3013, %v3421
      %v3512 = vadd.f32 %v3014, %v3424
      %v3513 = vadd.f32 %v3015, %v3429
      %v3514 = vadd.f32 %v3016, %v3432
      %v3515 = vadd.f32 %v3017, %v3437
      %v3516 = vadd.f32 %v3018, %v3440
      %v3517 = vadd.f32 %v3019, %v3445
      %v3518 = vadd.f32 %v3020, %v3448
      %v3519 = vadd.f32 %v3021, %v3453
      %v3520 = vadd.f32 %v3022, %v3456
      %v3521 = vadd.f32 %v3023, %v3461
      %v3522 = vadd.f32 %v3024, %v3464
      %v3523 = vadd.f32 %v3025, %v3469
      %v3524 = vadd.f32 %v3026, %v3472
      %v3525 = vadd.f32 %v3027, %v3477
      %v3526 = vadd.f32 %v3028, %v3480
      %v3527 = vadd.f32 %v3029, %v3485
      %v3528 = vadd.f32 %v3030, %v3488
      %v3529 = vadd.f32 %v3031, %v3493
      %v3530 = vadd.f32 %v3032, %v3496
      %s3531 = scalar_lea.vmem %s354, 24
      %v3532 = vld [vmem:[%s3531] sm:$0xf]
      %v3533 = vld [vmem:[%s3531 + $0x4] sm:$0xf]
      %v3534 = vld [vmem:[%s3531 + $0xc] sm:$0xf]
      %v3535 = vld [vmem:[%s3531 + $0x10] sm:$0xf]
      %v3536 = vld [vmem:[%s3531 + $0x18] sm:$0xf]
      %v3537 = vld [vmem:[%s3531 + $0x1c] sm:$0xf]
      %v3538 = vld [vmem:[%s3531 + $0x24] sm:$0xf]
      %v3539 = vld [vmem:[%s3531 + $0x28] sm:$0xf]
      %v3540 = vld [vmem:[%s3531 + $0x30] sm:$0xf]
      %v3541 = vld [vmem:[%s3531 + $0x34] sm:$0xf]
      %v3542 = vld [vmem:[%s3531 + $0x3c] sm:$0xf]
      %v3543 = vld [vmem:[%s3531 + $0x40] sm:$0xf]
      %v3544 = vld [vmem:[%s3531 + $0x48] sm:$0xf]
      %v3545 = vld [vmem:[%s3531 + $0x4c] sm:$0xf]
      %v3546 = vld [vmem:[%s3531 + $0x54] sm:$0xf]
      %v3547 = vld [vmem:[%s3531 + $0x58] sm:$0xf]
      %v3548 = vld [vmem:[%s3531 + $0x60] sm:$0xf]
      %v3549 = vld [vmem:[%s3531 + $0x64] sm:$0xf]
      %v3550 = vld [vmem:[%s3531 + $0x6c] sm:$0xf]
      %v3551 = vld [vmem:[%s3531 + $0x70] sm:$0xf]
      %v3552 = vld [vmem:[%s3531 + $0x78] sm:$0xf]
      %v3553 = vld [vmem:[%s3531 + $0x7c] sm:$0xf]
      %v3554 = vld [vmem:[%s3531 + $0x84] sm:$0xf]
      %v3555 = vld [vmem:[%s3531 + $0x88] sm:$0xf]
      %v3556 = vld [vmem:[%s3531 + $0x90] sm:$0xf]
      %v3557 = vld [vmem:[%s3531 + $0x94] sm:$0xf]
      %v3558 = vld [vmem:[%s3531 + $0x9c] sm:$0xf]
      %v3559 = vld [vmem:[%s3531 + $0xa0] sm:$0xf]
      %v3560 = vld [vmem:[%s3531 + $0xa8] sm:$0xf]
      %v3561 = vld [vmem:[%s3531 + $0xac] sm:$0xf]
      %v3562 = vld [vmem:[%s3531 + $0xb4] sm:$0xf]
      %v3563 = vld [vmem:[%s3531 + $0xb8] sm:$0xf]
      %s3564 = scalar_lea.vmem %s1, 384
      %v3565 = vld [vmem:[%s3564] sm:$0xf]
      %v3566 = vld [vmem:[%s3564 + $0x4] sm:$0xf]
      %v3567 = vld [vmem:[%s3564 + $0x8] sm:$0xf]
      %v3568 = vld [vmem:[%s3564 + $0xc] sm:$0xf]
      %v3569 = vld [vmem:[%s3564 + $0x10] sm:$0xf]
      %v3570 = vld [vmem:[%s3564 + $0x14] sm:$0xf]
      %v3571 = vld [vmem:[%s3564 + $0x18] sm:$0xf]
      %v3572 = vld [vmem:[%s3564 + $0x1c] sm:$0xf]
      %v3573 = vld [vmem:[%s3564 + $0x20] sm:$0xf]
      %v3574 = vld [vmem:[%s3564 + $0x24] sm:$0xf]
      %v3575 = vld [vmem:[%s3564 + $0x28] sm:$0xf]
      %v3576 = vld [vmem:[%s3564 + $0x2c] sm:$0xf]
      %v3577 = vld [vmem:[%s3564 + $0x30] sm:$0xf]
      %v3578 = vld [vmem:[%s3564 + $0x34] sm:$0xf]
      %v3579 = vld [vmem:[%s3564 + $0x38] sm:$0xf]
      %v3580 = vld [vmem:[%s3564 + $0x3c] sm:$0xf]
      %v3613 = vunpack.c.l.b16 %v3532
      %v3614 = vunpack.c.l.b16 %v3533
      %v3615 = vunpack.c.l.b16 %v3534
      %v3616 = vunpack.c.l.b16 %v3535
      %v3617 = vunpack.c.l.b16 %v3536
      %v3618 = vunpack.c.l.b16 %v3537
      %v3619 = vunpack.c.l.b16 %v3538
      %v3620 = vunpack.c.l.b16 %v3539
      %v3621 = vunpack.c.l.b16 %v3540
      %v3622 = vunpack.c.l.b16 %v3541
      %v3623 = vunpack.c.l.b16 %v3542
      %v3624 = vunpack.c.l.b16 %v3543
      %v3625 = vunpack.c.l.b16 %v3544
      %v3626 = vunpack.c.l.b16 %v3545
      %v3627 = vunpack.c.l.b16 %v3546
      %v3628 = vunpack.c.l.b16 %v3547
      %v3629 = vunpack.c.l.b16 %v3548
      %v3630 = vunpack.c.l.b16 %v3549
      %v3631 = vunpack.c.l.b16 %v3550
      %v3632 = vunpack.c.l.b16 %v3551
      %v3633 = vunpack.c.l.b16 %v3552
      %v3634 = vunpack.c.l.b16 %v3553
      %v3635 = vunpack.c.l.b16 %v3554
      %v3636 = vunpack.c.l.b16 %v3555
      %v3637 = vunpack.c.l.b16 %v3556
      %v3638 = vunpack.c.l.b16 %v3557
      %v3639 = vunpack.c.l.b16 %v3558
      %v3640 = vunpack.c.l.b16 %v3559
      %v3641 = vunpack.c.l.b16 %v3560
      %v3642 = vunpack.c.l.b16 %v3561
      %v3643 = vunpack.c.l.b16 %v3562
      %v3644 = vunpack.c.l.b16 %v3563
      %v3645 = vpack.c.b16 %v3614, %v3613
      %v3646 = vpack.c.b16 %v3616, %v3615
      %v3647 = vpack.c.b16 %v3618, %v3617
      %v3648 = vpack.c.b16 %v3620, %v3619
      %v3649 = vpack.c.b16 %v3622, %v3621
      %v3650 = vpack.c.b16 %v3624, %v3623
      %v3651 = vpack.c.b16 %v3626, %v3625
      %v3652 = vpack.c.b16 %v3628, %v3627
      %v3653 = vpack.c.b16 %v3630, %v3629
      %v3654 = vpack.c.b16 %v3632, %v3631
      %v3655 = vpack.c.b16 %v3634, %v3633
      %v3656 = vpack.c.b16 %v3636, %v3635
      %v3657 = vpack.c.b16 %v3638, %v3637
      %v3658 = vpack.c.b16 %v3640, %v3639
      %v3659 = vpack.c.b16 %v3642, %v3641
      %v3660 = vpack.c.b16 %v3644, %v3643
      %v3693 = vunpack.c.l.b16 %v3565
      %v3694 = vunpack.c.l.b16 %v3566
      %v3695 = vunpack.c.l.b16 %v3567
      %v3696 = vunpack.c.l.b16 %v3568
      %v3697 = vunpack.c.l.b16 %v3569
      %v3698 = vunpack.c.l.b16 %v3570
      %v3699 = vunpack.c.l.b16 %v3571
      %v3700 = vunpack.c.l.b16 %v3572
      %v3701 = vunpack.c.l.b16 %v3573
      %v3702 = vunpack.c.l.b16 %v3574
      %v3703 = vunpack.c.l.b16 %v3575
      %v3704 = vunpack.c.l.b16 %v3576
      %v3705 = vunpack.c.l.b16 %v3577
      %v3706 = vunpack.c.l.b16 %v3578
      %v3707 = vunpack.c.l.b16 %v3579
      %v3708 = vunpack.c.l.b16 %v3580
      %v3709 = vpack.c.b16 %v3694, %v3693
      %v3710 = vpack.c.b16 %v3696, %v3695
      %v3711 = vpack.c.b16 %v3698, %v3697
      %v3712 = vpack.c.b16 %v3700, %v3699
      %v3713 = vpack.c.b16 %v3702, %v3701
      %v3714 = vpack.c.b16 %v3704, %v3703
      %v3715 = vpack.c.b16 %v3706, %v3705
      %v3716 = vpack.c.b16 %v3708, %v3707
      %3725 = vmatprep.subr.bf16.mxu0 0
      %3726 = vmatpush1.bf16.msra.mxu0 %v3709
      %3727 = vmatprep.subr.bf16.mxu0 0
      %3728 = vmatpush1.bf16.msra.mxu0 %v3710
      %3729 = vmatprep.subr.bf16.mxu0 0
      %3730 = vmatpush1.bf16.msra.mxu0 %v3711
      %3731 = vmatprep.subr.bf16.mxu0 0
      %3732 = vmatpush1.bf16.msra.mxu0 %v3712
      %3733 = vmatprep.subr.bf16.mxu0 0
      %3734 = vmatpush1.bf16.msra.mxu0 %v3713
      %3735 = vmatprep.subr.bf16.mxu0 0
      %3736 = vmatpush1.bf16.msra.mxu0 %v3714
      %3737 = vmatprep.subr.bf16.mxu0 0
      %3738 = vmatpush1.bf16.msra.mxu0 %v3715
      %3739 = vmatprep.subr.bf16.mxu0 0
      %3740 = vmatpush1.bf16.msra.mxu0 %v3716
      %3741 = vmatprep.subr.bf16.mxu0 0
      %3742 = vmatpush1.bf16.msra.mxu0 0
      %3743 = vmatprep.subr.bf16.mxu0 0
      %3744 = vmatpush1.bf16.msra.mxu0 0
      %3745 = vmatprep.subr.bf16.mxu0 0
      %3746 = vmatpush1.bf16.msra.mxu0 0
      %3747 = vmatprep.subr.bf16.mxu0 0
      %3748 = vmatpush1.bf16.msra.mxu0 0
      %3749 = vmatprep.subr.bf16.mxu0 0
      %3750 = vmatpush1.bf16.msra.mxu0 0
      %3751 = vmatprep.subr.bf16.mxu0 0
      %3752 = vmatpush1.bf16.msra.mxu0 0
      %3753 = vmatprep.subr.bf16.mxu0 0
      %3754 = vmatpush1.bf16.msra.mxu0 0
      %3755 = vmatprep.subr.bf16.mxu0 0
      %3756 = vmatpush1.bf16.msra.mxu0 0
      %3757 = vmatprep.mubr.bf16.mxu0 0
      %3758 = vmatmul.mubr.bf16.gmra.mrb[0].mxu0 %v3645
      %v3759 = vpop.f32.mrb[0].mxu0
      %v3760 = vadd.f32 0.0, %v3759
      %v3761 = vpop.f32.mrb[0].mxu0
      %v3762 = vpop.f32.mrb[0].mxu0
      %v3763 = vadd.f32 0.0, %v3762
      %v3764 = vpop.f32.mrb[0].mxu0
      %3765 = vmatprep.mubr.bf16.mxu0 0
      %3766 = vmatmul.mubr.bf16.gmra.mrb[0].mxu0 %v3646
      %v3767 = vpop.f32.mrb[0].mxu0
      %v3768 = vadd.f32 0.0, %v3767
      %v3769 = vpop.f32.mrb[0].mxu0
      %v3770 = vpop.f32.mrb[0].mxu0
      %v3771 = vadd.f32 0.0, %v3770
      %v3772 = vpop.f32.mrb[0].mxu0
      %3773 = vmatprep.mubr.bf16.mxu0 0
      %3774 = vmatmul.mubr.bf16.gmra.mrb[0].mxu0 %v3647
      %v3775 = vpop.f32.mrb[0].mxu0
      %v3776 = vadd.f32 0.0, %v3775
      %v3777 = vpop.f32.mrb[0].mxu0
      %v3778 = vpop.f32.mrb[0].mxu0
      %v3779 = vadd.f32 0.0, %v3778
      %v3780 = vpop.f32.mrb[0].mxu0
      %3781 = vmatprep.mubr.bf16.mxu0 0
      %3782 = vmatmul.mubr.bf16.gmra.mrb[0].mxu0 %v3648
      %v3783 = vpop.f32.mrb[0].mxu0
      %v3784 = vadd.f32 0.0, %v3783
      %v3785 = vpop.f32.mrb[0].mxu0
      %v3786 = vpop.f32.mrb[0].mxu0
      %v3787 = vadd.f32 0.0, %v3786
      %v3788 = vpop.f32.mrb[0].mxu0
      %3789 = vmatprep.mubr.bf16.mxu0 0
      %3790 = vmatmul.mubr.bf16.gmra.mrb[0].mxu0 %v3649
      %v3791 = vpop.f32.mrb[0].mxu0
      %v3792 = vadd.f32 0.0, %v3791
      %v3793 = vpop.f32.mrb[0].mxu0
      %v3794 = vpop.f32.mrb[0].mxu0
      %v3795 = vadd.f32 0.0, %v3794
      %v3796 = vpop.f32.mrb[0].mxu0
      %3797 = vmatprep.mubr.bf16.mxu0 0
      %3798 = vmatmul.mubr.bf16.gmra.mrb[0].mxu0 %v3650
      %v3799 = vpop.f32.mrb[0].mxu0
      %v3800 = vadd.f32 0.0, %v3799
      %v3801 = vpop.f32.mrb[0].mxu0
      %v3802 = vpop.f32.mrb[0].mxu0
      %v3803 = vadd.f32 0.0, %v3802
      %v3804 = vpop.f32.mrb[0].mxu0
      %3805 = vmatprep.mubr.bf16.mxu0 0
      %3806 = vmatmul.mubr.bf16.gmra.mrb[0].mxu0 %v3651
      %v3807 = vpop.f32.mrb[0].mxu0
      %v3808 = vadd.f32 0.0, %v3807
      %v3809 = vpop.f32.mrb[0].mxu0
      %v3810 = vpop.f32.mrb[0].mxu0
      %v3811 = vadd.f32 0.0, %v3810
      %v3812 = vpop.f32.mrb[0].mxu0
      %3813 = vmatprep.mubr.bf16.mxu0 0
      %3814 = vmatmul.mubr.bf16.gmra.mrb[0].mxu0 %v3652
      %v3815 = vpop.f32.mrb[0].mxu0
      %v3816 = vadd.f32 0.0, %v3815
      %v3817 = vpop.f32.mrb[0].mxu0
      %v3818 = vpop.f32.mrb[0].mxu0
      %v3819 = vadd.f32 0.0, %v3818
      %v3820 = vpop.f32.mrb[0].mxu0
      %3821 = vmatprep.mubr.bf16.mxu0 0
      %3822 = vmatmul.mubr.bf16.gmra.mrb[0].mxu0 %v3653
      %v3823 = vpop.f32.mrb[0].mxu0
      %v3824 = vadd.f32 0.0, %v3823
      %v3825 = vpop.f32.mrb[0].mxu0
      %v3826 = vpop.f32.mrb[0].mxu0
      %v3827 = vadd.f32 0.0, %v3826
      %v3828 = vpop.f32.mrb[0].mxu0
      %3829 = vmatprep.mubr.bf16.mxu0 0
      %3830 = vmatmul.mubr.bf16.gmra.mrb[0].mxu0 %v3654
      %v3831 = vpop.f32.mrb[0].mxu0
      %v3832 = vadd.f32 0.0, %v3831
      %v3833 = vpop.f32.mrb[0].mxu0
      %v3834 = vpop.f32.mrb[0].mxu0
      %v3835 = vadd.f32 0.0, %v3834
      %v3836 = vpop.f32.mrb[0].mxu0
      %3837 = vmatprep.mubr.bf16.mxu0 0
      %3838 = vmatmul.mubr.bf16.gmra.mrb[0].mxu0 %v3655
      %v3839 = vpop.f32.mrb[0].mxu0
      %v3840 = vadd.f32 0.0, %v3839
      %v3841 = vpop.f32.mrb[0].mxu0
      %v3842 = vpop.f32.mrb[0].mxu0
      %v3843 = vadd.f32 0.0, %v3842
      %v3844 = vpop.f32.mrb[0].mxu0
      %3845 = vmatprep.mubr.bf16.mxu0 0
      %3846 = vmatmul.mubr.bf16.gmra.mrb[0].mxu0 %v3656
      %v3847 = vpop.f32.mrb[0].mxu0
      %v3848 = vadd.f32 0.0, %v3847
      %v3849 = vpop.f32.mrb[0].mxu0
      %v3850 = vpop.f32.mrb[0].mxu0
      %v3851 = vadd.f32 0.0, %v3850
      %v3852 = vpop.f32.mrb[0].mxu0
      %3853 = vmatprep.mubr.bf16.mxu0 0
      %3854 = vmatmul.mubr.bf16.gmra.mrb[0].mxu0 %v3657
      %v3855 = vpop.f32.mrb[0].mxu0
      %v3856 = vadd.f32 0.0, %v3855
      %v3857 = vpop.f32.mrb[0].mxu0
      %v3858 = vpop.f32.mrb[0].mxu0
      %v3859 = vadd.f32 0.0, %v3858
      %v3860 = vpop.f32.mrb[0].mxu0
      %3861 = vmatprep.mubr.bf16.mxu0 0
      %3862 = vmatmul.mubr.bf16.gmra.mrb[0].mxu0 %v3658
      %v3863 = vpop.f32.mrb[0].mxu0
      %v3864 = vadd.f32 0.0, %v3863
      %v3865 = vpop.f32.mrb[0].mxu0
      %v3866 = vpop.f32.mrb[0].mxu0
      %v3867 = vadd.f32 0.0, %v3866
      %v3868 = vpop.f32.mrb[0].mxu0
      %3869 = vmatprep.mubr.bf16.mxu0 0
      %3870 = vmatmul.mubr.bf16.gmra.mrb[0].mxu0 %v3659
      %v3871 = vpop.f32.mrb[0].mxu0
      %v3872 = vadd.f32 0.0, %v3871
      %v3873 = vpop.f32.mrb[0].mxu0
      %v3874 = vpop.f32.mrb[0].mxu0
      %v3875 = vadd.f32 0.0, %v3874
      %v3876 = vpop.f32.mrb[0].mxu0
      %3877 = vmatprep.mubr.bf16.mxu0 0
      %3878 = vmatmul.mubr.bf16.gmra.mrb[0].mxu0 %v3660
      %v3879 = vpop.f32.mrb[0].mxu0
      %v3880 = vadd.f32 0.0, %v3879
      %v3881 = vpop.f32.mrb[0].mxu0
      %v3882 = vpop.f32.mrb[0].mxu0
      %v3883 = vadd.f32 0.0, %v3882
      %v3884 = vpop.f32.mrb[0].mxu0
      %3885 = vdwg.mxu0
      %v3886 = vadd.f32 %v3499, %v3760
      %v3887 = vadd.f32 %v3500, %v3763
      %v3888 = vadd.f32 %v3501, %v3768
      %v3889 = vadd.f32 %v3502, %v3771
      %v3890 = vadd.f32 %v3503, %v3776
      %v3891 = vadd.f32 %v3504, %v3779
      %v3892 = vadd.f32 %v3505, %v3784
      %v3893 = vadd.f32 %v3506, %v3787
      %v3894 = vadd.f32 %v3507, %v3792
      %v3895 = vadd.f32 %v3508, %v3795
      %v3896 = vadd.f32 %v3509, %v3800
      %v3897 = vadd.f32 %v3510, %v3803
      %v3898 = vadd.f32 %v3511, %v3808
      %v3899 = vadd.f32 %v3512, %v3811
      %v3900 = vadd.f32 %v3513, %v3816
      %v3901 = vadd.f32 %v3514, %v3819
      %v3902 = vadd.f32 %v3515, %v3824
      %v3903 = vadd.f32 %v3516, %v3827
      %v3904 = vadd.f32 %v3517, %v3832
      %v3905 = vadd.f32 %v3518, %v3835
      %v3906 = vadd.f32 %v3519, %v3840
      %v3907 = vadd.f32 %v3520, %v3843
      %v3908 = vadd.f32 %v3521, %v3848
      %v3909 = vadd.f32 %v3522, %v3851
      %v3910 = vadd.f32 %v3523, %v3856
      %v3911 = vadd.f32 %v3524, %v3859
      %v3912 = vadd.f32 %v3525, %v3864
      %v3913 = vadd.f32 %v3526, %v3867
      %v3914 = vadd.f32 %v3527, %v3872
      %v3915 = vadd.f32 %v3528, %v3875
      %v3916 = vadd.f32 %v3529, %v3880
      %v3917 = vadd.f32 %v3530, %v3883
      %v3918 = vld [vmem:[%s3531] sm:$0xf]
      %v3919 = vld [vmem:[%s3531 + $0x4] sm:$0xf]
      %v3920 = vld [vmem:[%s3531 + $0x8] sm:$0x1]
      %v3921 = vld [vmem:[%s3531 + $0xc] sm:$0xf]
      %v3922 = vld [vmem:[%s3531 + $0x10] sm:$0xf]
      %v3923 = vld [vmem:[%s3531 + $0x14] sm:$0x1]
      %v3924 = vld [vmem:[%s3531 + $0x18] sm:$0xf]
      %v3925 = vld [vmem:[%s3531 + $0x1c] sm:$0xf]
      %v3926 = vld [vmem:[%s3531 + $0x20] sm:$0x1]
      %v3927 = vld [vmem:[%s3531 + $0x24] sm:$0xf]
      %v3928 = vld [vmem:[%s3531 + $0x28] sm:$0xf]
      %v3929 = vld [vmem:[%s3531 + $0x2c] sm:$0x1]
      %v3930 = vld [vmem:[%s3531 + $0x30] sm:$0xf]
      %v3931 = vld [vmem:[%s3531 + $0x34] sm:$0xf]
      %v3932 = vld [vmem:[%s3531 + $0x38] sm:$0x1]
      %v3933 = vld [vmem:[%s3531 + $0x3c] sm:$0xf]
      %v3934 = vld [vmem:[%s3531 + $0x40] sm:$0xf]
      %v3935 = vld [vmem:[%s3531 + $0x44] sm:$0x1]
      %v3936 = vld [vmem:[%s3531 + $0x48] sm:$0xf]
      %v3937 = vld [vmem:[%s3531 + $0x4c] sm:$0xf]
      %v3938 = vld [vmem:[%s3531 + $0x50] sm:$0x1]
      %v3939 = vld [vmem:[%s3531 + $0x54] sm:$0xf]
      %v3940 = vld [vmem:[%s3531 + $0x58] sm:$0xf]
      %v3941 = vld [vmem:[%s3531 + $0x5c] sm:$0x1]
      %v3942 = vld [vmem:[%s3531 + $0x60] sm:$0xf]
      %v3943 = vld [vmem:[%s3531 + $0x64] sm:$0xf]
      %v3944 = vld [vmem:[%s3531 + $0x68] sm:$0x1]
      %v3945 = vld [vmem:[%s3531 + $0x6c] sm:$0xf]
      %v3946 = vld [vmem:[%s3531 + $0x70] sm:$0xf]
      %v3947 = vld [vmem:[%s3531 + $0x74] sm:$0x1]
      %v3948 = vld [vmem:[%s3531 + $0x78] sm:$0xf]
      %v3949 = vld [vmem:[%s3531 + $0x7c] sm:$0xf]
      %v3950 = vld [vmem:[%s3531 + $0x80] sm:$0x1]
      %v3951 = vld [vmem:[%s3531 + $0x84] sm:$0xf]
      %v3952 = vld [vmem:[%s3531 + $0x88] sm:$0xf]
      %v3953 = vld [vmem:[%s3531 + $0x8c] sm:$0x1]
      %v3954 = vld [vmem:[%s3531 + $0x90] sm:$0xf]
      %v3955 = vld [vmem:[%s3531 + $0x94] sm:$0xf]
      %v3956 = vld [vmem:[%s3531 + $0x98] sm:$0x1]
      %v3957 = vld [vmem:[%s3531 + $0x9c] sm:$0xf]
      %v3958 = vld [vmem:[%s3531 + $0xa0] sm:$0xf]
      %v3959 = vld [vmem:[%s3531 + $0xa4] sm:$0x1]
      %v3960 = vld [vmem:[%s3531 + $0xa8] sm:$0xf]
      %v3961 = vld [vmem:[%s3531 + $0xac] sm:$0xf]
      %v3962 = vld [vmem:[%s3531 + $0xb0] sm:$0x1]
      %v3963 = vld [vmem:[%s3531 + $0xb4] sm:$0xf]
      %v3964 = vld [vmem:[%s3531 + $0xb8] sm:$0xf]
      %v3965 = vld [vmem:[%s3531 + $0xbc] sm:$0x1]
      %v3967 = vshrl.u32 %v3918, 16
      %v3969 = vrot.slane %v3967, 4
      %v3970 = vshll.u32 %v3918, 16
      %v3972 = vrot.slane %v3970, 5
      %v3973 = vor.u32 %v3969, %v3972
      %v3974 = vrot.slane %v3973, 4
      %v3976 = vshll.u32 %v3919, 16
      %v3978 = vrot.slane %v3976, 5
      %v3979 = vsel %vm427, %v3974, %v3978
      %v3980 = vshrl.u32 %v3919, 16
      %v3982 = vrot.slane %v3980, 4
      %v3983 = vor.u32 %v3982, %v3978
      %v3984 = vrot.slane %v3983, 4
      %v3986 = vshll.u32 %v3920, 16
      %v3988 = vrot.slane %v3986, 5
      %v3989 = vsel %vm427, %v3984, %v3988
      %v3991 = vshrl.u32 %v3921, 16
      %v3993 = vrot.slane %v3991, 4
      %v3994 = vshll.u32 %v3921, 16
      %v3996 = vrot.slane %v3994, 5
      %v3997 = vor.u32 %v3993, %v3996
      %v3998 = vrot.slane %v3997, 4
      %v4000 = vshll.u32 %v3922, 16
      %v4002 = vrot.slane %v4000, 5
      %v4003 = vsel %vm427, %v3998, %v4002
      %v4004 = vshrl.u32 %v3922, 16
      %v4006 = vrot.slane %v4004, 4
      %v4007 = vor.u32 %v4006, %v4002
      %v4008 = vrot.slane %v4007, 4
      %v4010 = vshll.u32 %v3923, 16
      %v4012 = vrot.slane %v4010, 5
      %v4013 = vsel %vm427, %v4008, %v4012
      %v4015 = vshrl.u32 %v3924, 16
      %v4017 = vrot.slane %v4015, 4
      %v4018 = vshll.u32 %v3924, 16
      %v4020 = vrot.slane %v4018, 5
      %v4021 = vor.u32 %v4017, %v4020
      %v4022 = vrot.slane %v4021, 4
      %v4024 = vshll.u32 %v3925, 16
      %v4026 = vrot.slane %v4024, 5
      %v4027 = vsel %vm427, %v4022, %v4026
      %v4028 = vshrl.u32 %v3925, 16
      %v4030 = vrot.slane %v4028, 4
      %v4031 = vor.u32 %v4030, %v4026
      %v4032 = vrot.slane %v4031, 4
      %v4034 = vshll.u32 %v3926, 16
      %v4036 = vrot.slane %v4034, 5
      %v4037 = vsel %vm427, %v4032, %v4036
      %v4039 = vshrl.u32 %v3927, 16
      %v4041 = vrot.slane %v4039, 4
      %v4042 = vshll.u32 %v3927, 16
      %v4044 = vrot.slane %v4042, 5
      %v4045 = vor.u32 %v4041, %v4044
      %v4046 = vrot.slane %v4045, 4
      %v4048 = vshll.u32 %v3928, 16
      %v4050 = vrot.slane %v4048, 5
      %v4051 = vsel %vm427, %v4046, %v4050
      %v4052 = vshrl.u32 %v3928, 16
      %v4054 = vrot.slane %v4052, 4
      %v4055 = vor.u32 %v4054, %v4050
      %v4056 = vrot.slane %v4055, 4
      %v4058 = vshll.u32 %v3929, 16
      %v4060 = vrot.slane %v4058, 5
      %v4061 = vsel %vm427, %v4056, %v4060
      %v4063 = vshrl.u32 %v3930, 16
      %v4065 = vrot.slane %v4063, 4
      %v4066 = vshll.u32 %v3930, 16
      %v4068 = vrot.slane %v4066, 5
      %v4069 = vor.u32 %v4065, %v4068
      %v4070 = vrot.slane %v4069, 4
      %v4072 = vshll.u32 %v3931, 16
      %v4074 = vrot.slane %v4072, 5
      %v4075 = vsel %vm427, %v4070, %v4074
      %v4076 = vshrl.u32 %v3931, 16
      %v4078 = vrot.slane %v4076, 4
      %v4079 = vor.u32 %v4078, %v4074
      %v4080 = vrot.slane %v4079, 4
      %v4082 = vshll.u32 %v3932, 16
      %v4084 = vrot.slane %v4082, 5
      %v4085 = vsel %vm427, %v4080, %v4084
      %v4087 = vshrl.u32 %v3933, 16
      %v4089 = vrot.slane %v4087, 4
      %v4090 = vshll.u32 %v3933, 16
      %v4092 = vrot.slane %v4090, 5
      %v4093 = vor.u32 %v4089, %v4092
      %v4094 = vrot.slane %v4093, 4
      %v4096 = vshll.u32 %v3934, 16
      %v4098 = vrot.slane %v4096, 5
      %v4099 = vsel %vm427, %v4094, %v4098
      %v4100 = vshrl.u32 %v3934, 16
      %v4102 = vrot.slane %v4100, 4
      %v4103 = vor.u32 %v4102, %v4098
      %v4104 = vrot.slane %v4103, 4
      %v4106 = vshll.u32 %v3935, 16
      %v4108 = vrot.slane %v4106, 5
      %v4109 = vsel %vm427, %v4104, %v4108
      %v4111 = vshrl.u32 %v3936, 16
      %v4113 = vrot.slane %v4111, 4
      %v4114 = vshll.u32 %v3936, 16
      %v4116 = vrot.slane %v4114, 5
      %v4117 = vor.u32 %v4113, %v4116
      %v4118 = vrot.slane %v4117, 4
      %v4120 = vshll.u32 %v3937, 16
      %v4122 = vrot.slane %v4120, 5
      %v4123 = vsel %vm427, %v4118, %v4122
      %v4124 = vshrl.u32 %v3937, 16
      %v4126 = vrot.slane %v4124, 4
      %v4127 = vor.u32 %v4126, %v4122
      %v4128 = vrot.slane %v4127, 4
      %v4130 = vshll.u32 %v3938, 16
      %v4132 = vrot.slane %v4130, 5
      %v4133 = vsel %vm427, %v4128, %v4132
      %v4135 = vshrl.u32 %v3939, 16
      %v4137 = vrot.slane %v4135, 4
      %v4138 = vshll.u32 %v3939, 16
      %v4140 = vrot.slane %v4138, 5
      %v4141 = vor.u32 %v4137, %v4140
      %v4142 = vrot.slane %v4141, 4
      %v4144 = vshll.u32 %v3940, 16
      %v4146 = vrot.slane %v4144, 5
      %v4147 = vsel %vm427, %v4142, %v4146
      %v4148 = vshrl.u32 %v3940, 16
      %v4150 = vrot.slane %v4148, 4
      %v4151 = vor.u32 %v4150, %v4146
      %v4152 = vrot.slane %v4151, 4
      %v4154 = vshll.u32 %v3941, 16
      %v4156 = vrot.slane %v4154, 5
      %v4157 = vsel %vm427, %v4152, %v4156
      %v4159 = vshrl.u32 %v3942, 16
      %v4161 = vrot.slane %v4159, 4
      %v4162 = vshll.u32 %v3942, 16
      %v4164 = vrot.slane %v4162, 5
      %v4165 = vor.u32 %v4161, %v4164
      %v4166 = vrot.slane %v4165, 4
      %v4168 = vshll.u32 %v3943, 16
      %v4170 = vrot.slane %v4168, 5
      %v4171 = vsel %vm427, %v4166, %v4170
      %v4172 = vshrl.u32 %v3943, 16
      %v4174 = vrot.slane %v4172, 4
      %v4175 = vor.u32 %v4174, %v4170
      %v4176 = vrot.slane %v4175, 4
      %v4178 = vshll.u32 %v3944, 16
      %v4180 = vrot.slane %v4178, 5
      %v4181 = vsel %vm427, %v4176, %v4180
      %v4183 = vshrl.u32 %v3945, 16
      %v4185 = vrot.slane %v4183, 4
      %v4186 = vshll.u32 %v3945, 16
      %v4188 = vrot.slane %v4186, 5
      %v4189 = vor.u32 %v4185, %v4188
      %v4190 = vrot.slane %v4189, 4
      %v4192 = vshll.u32 %v3946, 16
      %v4194 = vrot.slane %v4192, 5
      %v4195 = vsel %vm427, %v4190, %v4194
      %v4196 = vshrl.u32 %v3946, 16
      %v4198 = vrot.slane %v4196, 4
      %v4199 = vor.u32 %v4198, %v4194
      %v4200 = vrot.slane %v4199, 4
      %v4202 = vshll.u32 %v3947, 16
      %v4204 = vrot.slane %v4202, 5
      %v4205 = vsel %vm427, %v4200, %v4204
      %v4207 = vshrl.u32 %v3948, 16
      %v4209 = vrot.slane %v4207, 4
      %v4210 = vshll.u32 %v3948, 16
      %v4212 = vrot.slane %v4210, 5
      %v4213 = vor.u32 %v4209, %v4212
      %v4214 = vrot.slane %v4213, 4
      %v4216 = vshll.u32 %v3949, 16
      %v4218 = vrot.slane %v4216, 5
      %v4219 = vsel %vm427, %v4214, %v4218
      %v4220 = vshrl.u32 %v3949, 16
      %v4222 = vrot.slane %v4220, 4
      %v4223 = vor.u32 %v4222, %v4218
      %v4224 = vrot.slane %v4223, 4
      %v4226 = vshll.u32 %v3950, 16
      %v4228 = vrot.slane %v4226, 5
      %v4229 = vsel %vm427, %v4224, %v4228
      %v4231 = vshrl.u32 %v3951, 16
      %v4233 = vrot.slane %v4231, 4
      %v4234 = vshll.u32 %v3951, 16
      %v4236 = vrot.slane %v4234, 5
      %v4237 = vor.u32 %v4233, %v4236
      %v4238 = vrot.slane %v4237, 4
      %v4240 = vshll.u32 %v3952, 16
      %v4242 = vrot.slane %v4240, 5
      %v4243 = vsel %vm427, %v4238, %v4242
      %v4244 = vshrl.u32 %v3952, 16
      %v4246 = vrot.slane %v4244, 4
      %v4247 = vor.u32 %v4246, %v4242
      %v4248 = vrot.slane %v4247, 4
      %v4250 = vshll.u32 %v3953, 16
      %v4252 = vrot.slane %v4250, 5
      %v4253 = vsel %vm427, %v4248, %v4252
      %v4255 = vshrl.u32 %v3954, 16
      %v4257 = vrot.slane %v4255, 4
      %v4258 = vshll.u32 %v3954, 16
      %v4260 = vrot.slane %v4258, 5
      %v4261 = vor.u32 %v4257, %v4260
      %v4262 = vrot.slane %v4261, 4
      %v4264 = vshll.u32 %v3955, 16
      %v4266 = vrot.slane %v4264, 5
      %v4267 = vsel %vm427, %v4262, %v4266
      %v4268 = vshrl.u32 %v3955, 16
      %v4270 = vrot.slane %v4268, 4
      %v4271 = vor.u32 %v4270, %v4266
      %v4272 = vrot.slane %v4271, 4
      %v4274 = vshll.u32 %v3956, 16
      %v4276 = vrot.slane %v4274, 5
      %v4277 = vsel %vm427, %v4272, %v4276
      %v4279 = vshrl.u32 %v3957, 16
      %v4281 = vrot.slane %v4279, 4
      %v4282 = vshll.u32 %v3957, 16
      %v4284 = vrot.slane %v4282, 5
      %v4285 = vor.u32 %v4281, %v4284
      %v4286 = vrot.slane %v4285, 4
      %v4288 = vshll.u32 %v3958, 16
      %v4290 = vrot.slane %v4288, 5
      %v4291 = vsel %vm427, %v4286, %v4290
      %v4292 = vshrl.u32 %v3958, 16
      %v4294 = vrot.slane %v4292, 4
      %v4295 = vor.u32 %v4294, %v4290
      %v4296 = vrot.slane %v4295, 4
      %v4298 = vshll.u32 %v3959, 16
      %v4300 = vrot.slane %v4298, 5
      %v4301 = vsel %vm427, %v4296, %v4300
      %v4303 = vshrl.u32 %v3960, 16
      %v4305 = vrot.slane %v4303, 4
      %v4306 = vshll.u32 %v3960, 16
      %v4308 = vrot.slane %v4306, 5
      %v4309 = vor.u32 %v4305, %v4308
      %v4310 = vrot.slane %v4309, 4
      %v4312 = vshll.u32 %v3961, 16
      %v4314 = vrot.slane %v4312, 5
      %v4315 = vsel %vm427, %v4310, %v4314
      %v4316 = vshrl.u32 %v3961, 16
      %v4318 = vrot.slane %v4316, 4
      %v4319 = vor.u32 %v4318, %v4314
      %v4320 = vrot.slane %v4319, 4
      %v4322 = vshll.u32 %v3962, 16
      %v4324 = vrot.slane %v4322, 5
      %v4325 = vsel %vm427, %v4320, %v4324
      %v4327 = vshrl.u32 %v3963, 16
      %v4329 = vrot.slane %v4327, 4
      %v4330 = vshll.u32 %v3963, 16
      %v4332 = vrot.slane %v4330, 5
      %v4333 = vor.u32 %v4329, %v4332
      %v4334 = vrot.slane %v4333, 4
      %v4336 = vshll.u32 %v3964, 16
      %v4338 = vrot.slane %v4336, 5
      %v4339 = vsel %vm427, %v4334, %v4338
      %v4340 = vshrl.u32 %v3964, 16
      %v4342 = vrot.slane %v4340, 4
      %v4343 = vor.u32 %v4342, %v4338
      %v4344 = vrot.slane %v4343, 4
      %v4346 = vshll.u32 %v3965, 16
      %v4348 = vrot.slane %v4346, 5
      %v4349 = vsel %vm427, %v4344, %v4348
      %s4350 = scalar_lea.vmem %s1, 448
      %v4351 = vld [vmem:[%s4350] sm:$0xf]
      %v4352 = vld [vmem:[%s4350 + $0x4] sm:$0xf]
      %v4353 = vld [vmem:[%s4350 + $0x8] sm:$0xf]
      %v4354 = vld [vmem:[%s4350 + $0xc] sm:$0xf]
      %v4355 = vld [vmem:[%s4350 + $0x10] sm:$0xf]
      %v4356 = vld [vmem:[%s4350 + $0x14] sm:$0xf]
      %v4357 = vld [vmem:[%s4350 + $0x18] sm:$0xf]
      %v4358 = vld [vmem:[%s4350 + $0x1c] sm:$0xf]
      %v4359 = vld [vmem:[%s4350 + $0x20] sm:$0xf]
      %v4360 = vld [vmem:[%s4350 + $0x24] sm:$0xf]
      %v4361 = vld [vmem:[%s4350 + $0x28] sm:$0xf]
      %v4362 = vld [vmem:[%s4350 + $0x2c] sm:$0xf]
      %v4363 = vld [vmem:[%s4350 + $0x30] sm:$0xf]
      %v4364 = vld [vmem:[%s4350 + $0x34] sm:$0xf]
      %v4365 = vld [vmem:[%s4350 + $0x38] sm:$0xf]
      %v4366 = vld [vmem:[%s4350 + $0x3c] sm:$0xf]
      %v4367 = vunpack.c.l.b16 %v3979
      %v4368 = vunpack.c.l.b16 %v3989
      %v4369 = vunpack.c.l.b16 %v4003
      %v4370 = vunpack.c.l.b16 %v4013
      %v4371 = vunpack.c.l.b16 %v4027
      %v4372 = vunpack.c.l.b16 %v4037
      %v4373 = vunpack.c.l.b16 %v4051
      %v4374 = vunpack.c.l.b16 %v4061
      %v4375 = vunpack.c.l.b16 %v4075
      %v4376 = vunpack.c.l.b16 %v4085
      %v4377 = vunpack.c.l.b16 %v4099
      %v4378 = vunpack.c.l.b16 %v4109
      %v4379 = vunpack.c.l.b16 %v4123
      %v4380 = vunpack.c.l.b16 %v4133
      %v4381 = vunpack.c.l.b16 %v4147
      %v4382 = vunpack.c.l.b16 %v4157
      %v4383 = vunpack.c.l.b16 %v4171
      %v4384 = vunpack.c.l.b16 %v4181
      %v4385 = vunpack.c.l.b16 %v4195
      %v4386 = vunpack.c.l.b16 %v4205
      %v4387 = vunpack.c.l.b16 %v4219
      %v4388 = vunpack.c.l.b16 %v4229
      %v4389 = vunpack.c.l.b16 %v4243
      %v4390 = vunpack.c.l.b16 %v4253
      %v4391 = vunpack.c.l.b16 %v4267
      %v4392 = vunpack.c.l.b16 %v4277
      %v4393 = vunpack.c.l.b16 %v4291
      %v4394 = vunpack.c.l.b16 %v4301
      %v4395 = vunpack.c.l.b16 %v4315
      %v4396 = vunpack.c.l.b16 %v4325
      %v4397 = vunpack.c.l.b16 %v4339
      %v4398 = vunpack.c.l.b16 %v4349
      %v4399 = vpack.c.b16 %v4368, %v4367
      %v4400 = vpack.c.b16 %v4370, %v4369
      %v4401 = vpack.c.b16 %v4372, %v4371
      %v4402 = vpack.c.b16 %v4374, %v4373
      %v4403 = vpack.c.b16 %v4376, %v4375
      %v4404 = vpack.c.b16 %v4378, %v4377
      %v4405 = vpack.c.b16 %v4380, %v4379
      %v4406 = vpack.c.b16 %v4382, %v4381
      %v4407 = vpack.c.b16 %v4384, %v4383
      %v4408 = vpack.c.b16 %v4386, %v4385
      %v4409 = vpack.c.b16 %v4388, %v4387
      %v4410 = vpack.c.b16 %v4390, %v4389
      %v4411 = vpack.c.b16 %v4392, %v4391
      %v4412 = vpack.c.b16 %v4394, %v4393
      %v4413 = vpack.c.b16 %v4396, %v4395
      %v4414 = vpack.c.b16 %v4398, %v4397
      %v4447 = vunpack.c.l.b16 %v4351
      %v4448 = vunpack.c.l.b16 %v4352
      %v4449 = vunpack.c.l.b16 %v4353
      %v4450 = vunpack.c.l.b16 %v4354
      %v4451 = vunpack.c.l.b16 %v4355
      %v4452 = vunpack.c.l.b16 %v4356
      %v4453 = vunpack.c.l.b16 %v4357
      %v4454 = vunpack.c.l.b16 %v4358
      %v4455 = vunpack.c.l.b16 %v4359
      %v4456 = vunpack.c.l.b16 %v4360
      %v4457 = vunpack.c.l.b16 %v4361
      %v4458 = vunpack.c.l.b16 %v4362
      %v4459 = vunpack.c.l.b16 %v4363
      %v4460 = vunpack.c.l.b16 %v4364
      %v4461 = vunpack.c.l.b16 %v4365
      %v4462 = vunpack.c.l.b16 %v4366
      %v4463 = vpack.c.b16 %v4448, %v4447
      %v4464 = vpack.c.b16 %v4450, %v4449
      %v4465 = vpack.c.b16 %v4452, %v4451
      %v4466 = vpack.c.b16 %v4454, %v4453
      %v4467 = vpack.c.b16 %v4456, %v4455
      %v4468 = vpack.c.b16 %v4458, %v4457
      %v4469 = vpack.c.b16 %v4460, %v4459
      %v4470 = vpack.c.b16 %v4462, %v4461
      %4479 = vmatprep.subr.bf16.mxu0 0
      %4480 = vmatpush1.bf16.msra.mxu0 %v4463
      %4481 = vmatprep.subr.bf16.mxu0 0
      %4482 = vmatpush1.bf16.msra.mxu0 %v4464
      %4483 = vmatprep.subr.bf16.mxu0 0
      %4484 = vmatpush1.bf16.msra.mxu0 %v4465
      %4485 = vmatprep.subr.bf16.mxu0 0
      %4486 = vmatpush1.bf16.msra.mxu0 %v4466
      %4487 = vmatprep.subr.bf16.mxu0 0
      %4488 = vmatpush1.bf16.msra.mxu0 %v4467
      %4489 = vmatprep.subr.bf16.mxu0 0
      %4490 = vmatpush1.bf16.msra.mxu0 %v4468
      %4491 = vmatprep.subr.bf16.mxu0 0
      %4492 = vmatpush1.bf16.msra.mxu0 %v4469
      %4493 = vmatprep.subr.bf16.mxu0 0
      %4494 = vmatpush1.bf16.msra.mxu0 %v4470
      %4495 = vmatprep.subr.bf16.mxu0 0
      %4496 = vmatpush1.bf16.msra.mxu0 0
      %4497 = vmatprep.subr.bf16.mxu0 0
      %4498 = vmatpush1.bf16.msra.mxu0 0
      %4499 = vmatprep.subr.bf16.mxu0 0
      %4500 = vmatpush1.bf16.msra.mxu0 0
      %4501 = vmatprep.subr.bf16.mxu0 0
      %4502 = vmatpush1.bf16.msra.mxu0 0
      %4503 = vmatprep.subr.bf16.mxu0 0
      %4504 = vmatpush1.bf16.msra.mxu0 0
      %4505 = vmatprep.subr.bf16.mxu0 0
      %4506 = vmatpush1.bf16.msra.mxu0 0
      %4507 = vmatprep.subr.bf16.mxu0 0
      %4508 = vmatpush1.bf16.msra.mxu0 0
      %4509 = vmatprep.subr.bf16.mxu0 0
      %4510 = vmatpush1.bf16.msra.mxu0 0
      %4511 = vmatprep.mubr.bf16.mxu0 0
      %4512 = vmatmul.mubr.bf16.gmra.mrb[0].mxu0 %v4399
      %v4513 = vpop.f32.mrb[0].mxu0
      %v4514 = vadd.f32 0.0, %v4513
      %v4515 = vpop.f32.mrb[0].mxu0
      %v4516 = vpop.f32.mrb[0].mxu0
      %v4517 = vadd.f32 0.0, %v4516
      %v4518 = vpop.f32.mrb[0].mxu0
      %4519 = vmatprep.mubr.bf16.mxu0 0
      %4520 = vmatmul.mubr.bf16.gmra.mrb[0].mxu0 %v4400
      %v4521 = vpop.f32.mrb[0].mxu0
      %v4522 = vadd.f32 0.0, %v4521
      %v4523 = vpop.f32.mrb[0].mxu0
      %v4524 = vpop.f32.mrb[0].mxu0
      %v4525 = vadd.f32 0.0, %v4524
      %v4526 = vpop.f32.mrb[0].mxu0
      %4527 = vmatprep.mubr.bf16.mxu0 0
      %4528 = vmatmul.mubr.bf16.gmra.mrb[0].mxu0 %v4401
      %v4529 = vpop.f32.mrb[0].mxu0
      %v4530 = vadd.f32 0.0, %v4529
      %v4531 = vpop.f32.mrb[0].mxu0
      %v4532 = vpop.f32.mrb[0].mxu0
      %v4533 = vadd.f32 0.0, %v4532
      %v4534 = vpop.f32.mrb[0].mxu0
      %4535 = vmatprep.mubr.bf16.mxu0 0
      %4536 = vmatmul.mubr.bf16.gmra.mrb[0].mxu0 %v4402
      %v4537 = vpop.f32.mrb[0].mxu0
      %v4538 = vadd.f32 0.0, %v4537
      %v4539 = vpop.f32.mrb[0].mxu0
      %v4540 = vpop.f32.mrb[0].mxu0
      %v4541 = vadd.f32 0.0, %v4540
      %v4542 = vpop.f32.mrb[0].mxu0
      %4543 = vmatprep.mubr.bf16.mxu0 0
      %4544 = vmatmul.mubr.bf16.gmra.mrb[0].mxu0 %v4403
      %v4545 = vpop.f32.mrb[0].mxu0
      %v4546 = vadd.f32 0.0, %v4545
      %v4547 = vpop.f32.mrb[0].mxu0
      %v4548 = vpop.f32.mrb[0].mxu0
      %v4549 = vadd.f32 0.0, %v4548
      %v4550 = vpop.f32.mrb[0].mxu0
      %4551 = vmatprep.mubr.bf16.mxu0 0
      %4552 = vmatmul.mubr.bf16.gmra.mrb[0].mxu0 %v4404
      %v4553 = vpop.f32.mrb[0].mxu0
      %v4554 = vadd.f32 0.0, %v4553
      %v4555 = vpop.f32.mrb[0].mxu0
      %v4556 = vpop.f32.mrb[0].mxu0
      %v4557 = vadd.f32 0.0, %v4556
      %v4558 = vpop.f32.mrb[0].mxu0
      %4559 = vmatprep.mubr.bf16.mxu0 0
      %4560 = vmatmul.mubr.bf16.gmra.mrb[0].mxu0 %v4405
      %v4561 = vpop.f32.mrb[0].mxu0
      %v4562 = vadd.f32 0.0, %v4561
      %v4563 = vpop.f32.mrb[0].mxu0
      %v4564 = vpop.f32.mrb[0].mxu0
      %v4565 = vadd.f32 0.0, %v4564
      %v4566 = vpop.f32.mrb[0].mxu0
      %4567 = vmatprep.mubr.bf16.mxu0 0
      %4568 = vmatmul.mubr.bf16.gmra.mrb[0].mxu0 %v4406
      %v4569 = vpop.f32.mrb[0].mxu0
      %v4570 = vadd.f32 0.0, %v4569
      %v4571 = vpop.f32.mrb[0].mxu0
      %v4572 = vpop.f32.mrb[0].mxu0
      %v4573 = vadd.f32 0.0, %v4572
      %v4574 = vpop.f32.mrb[0].mxu0
      %4575 = vmatprep.mubr.bf16.mxu0 0
      %4576 = vmatmul.mubr.bf16.gmra.mrb[0].mxu0 %v4407
      %v4577 = vpop.f32.mrb[0].mxu0
      %v4578 = vadd.f32 0.0, %v4577
      %v4579 = vpop.f32.mrb[0].mxu0
      %v4580 = vpop.f32.mrb[0].mxu0
      %v4581 = vadd.f32 0.0, %v4580
      %v4582 = vpop.f32.mrb[0].mxu0
      %4583 = vmatprep.mubr.bf16.mxu0 0
      %4584 = vmatmul.mubr.bf16.gmra.mrb[0].mxu0 %v4408
      %v4585 = vpop.f32.mrb[0].mxu0
      %v4586 = vadd.f32 0.0, %v4585
      %v4587 = vpop.f32.mrb[0].mxu0
      %v4588 = vpop.f32.mrb[0].mxu0
      %v4589 = vadd.f32 0.0, %v4588
      %v4590 = vpop.f32.mrb[0].mxu0
      %4591 = vmatprep.mubr.bf16.mxu0 0
      %4592 = vmatmul.mubr.bf16.gmra.mrb[0].mxu0 %v4409
      %v4593 = vpop.f32.mrb[0].mxu0
      %v4594 = vadd.f32 0.0, %v4593
      %v4595 = vpop.f32.mrb[0].mxu0
      %v4596 = vpop.f32.mrb[0].mxu0
      %v4597 = vadd.f32 0.0, %v4596
      %v4598 = vpop.f32.mrb[0].mxu0
      %4599 = vmatprep.mubr.bf16.mxu0 0
      %4600 = vmatmul.mubr.bf16.gmra.mrb[0].mxu0 %v4410
      %v4601 = vpop.f32.mrb[0].mxu0
      %v4602 = vadd.f32 0.0, %v4601
      %v4603 = vpop.f32.mrb[0].mxu0
      %v4604 = vpop.f32.mrb[0].mxu0
      %v4605 = vadd.f32 0.0, %v4604
      %v4606 = vpop.f32.mrb[0].mxu0
      %4607 = vmatprep.mubr.bf16.mxu0 0
      %4608 = vmatmul.mubr.bf16.gmra.mrb[0].mxu0 %v4411
      %v4609 = vpop.f32.mrb[0].mxu0
      %v4610 = vadd.f32 0.0, %v4609
      %v4611 = vpop.f32.mrb[0].mxu0
      %v4612 = vpop.f32.mrb[0].mxu0
      %v4613 = vadd.f32 0.0, %v4612
      %v4614 = vpop.f32.mrb[0].mxu0
      %4615 = vmatprep.mubr.bf16.mxu0 0
      %4616 = vmatmul.mubr.bf16.gmra.mrb[0].mxu0 %v4412
      %v4617 = vpop.f32.mrb[0].mxu0
      %v4618 = vadd.f32 0.0, %v4617
      %v4619 = vpop.f32.mrb[0].mxu0
      %v4620 = vpop.f32.mrb[0].mxu0
      %v4621 = vadd.f32 0.0, %v4620
      %v4622 = vpop.f32.mrb[0].mxu0
      %4623 = vmatprep.mubr.bf16.mxu0 0
      %4624 = vmatmul.mubr.bf16.gmra.mrb[0].mxu0 %v4413
      %v4625 = vpop.f32.mrb[0].mxu0
      %v4626 = vadd.f32 0.0, %v4625
      %v4627 = vpop.f32.mrb[0].mxu0
      %v4628 = vpop.f32.mrb[0].mxu0
      %v4629 = vadd.f32 0.0, %v4628
      %v4630 = vpop.f32.mrb[0].mxu0
      %4631 = vmatprep.mubr.bf16.mxu0 0
      %4632 = vmatmul.mubr.bf16.gmra.mrb[0].mxu0 %v4414
      %v4633 = vpop.f32.mrb[0].mxu0
      %v4634 = vadd.f32 0.0, %v4633
      %v4635 = vpop.f32.mrb[0].mxu0
      %v4636 = vpop.f32.mrb[0].mxu0
      %v4637 = vadd.f32 0.0, %v4636
      %v4638 = vpop.f32.mrb[0].mxu0
      %4639 = vdwg.mxu0
      %v4640 = vadd.f32 %v3886, %v4514
      %v4641 = vadd.f32 %v3887, %v4517
      %v4642 = vadd.f32 %v3888, %v4522
      %v4643 = vadd.f32 %v3889, %v4525
      %v4644 = vadd.f32 %v3890, %v4530
      %v4645 = vadd.f32 %v3891, %v4533
      %v4646 = vadd.f32 %v3892, %v4538
      %v4647 = vadd.f32 %v3893, %v4541
      %v4648 = vadd.f32 %v3894, %v4546
      %v4649 = vadd.f32 %v3895, %v4549
      %v4650 = vadd.f32 %v3896, %v4554
      %v4651 = vadd.f32 %v3897, %v4557
      %v4652 = vadd.f32 %v3898, %v4562
      %v4653 = vadd.f32 %v3899, %v4565
      %v4654 = vadd.f32 %v3900, %v4570
      %v4655 = vadd.f32 %v3901, %v4573
      %v4656 = vadd.f32 %v3902, %v4578
      %v4657 = vadd.f32 %v3903, %v4581
      %v4658 = vadd.f32 %v3904, %v4586
      %v4659 = vadd.f32 %v3905, %v4589
      %v4660 = vadd.f32 %v3906, %v4594
      %v4661 = vadd.f32 %v3907, %v4597
      %v4662 = vadd.f32 %v3908, %v4602
      %v4663 = vadd.f32 %v3909, %v4605
      %v4664 = vadd.f32 %v3910, %v4610
      %v4665 = vadd.f32 %v3911, %v4613
      %v4666 = vadd.f32 %v3912, %v4618
      %v4667 = vadd.f32 %v3913, %v4621
      %v4668 = vadd.f32 %v3914, %v4626
      %v4669 = vadd.f32 %v3915, %v4629
      %v4670 = vadd.f32 %v3916, %v4634
      %v4671 = vadd.f32 %v3917, %v4637
      %v4672 = vld [vmem:[%s3531] sm:$0xe]
      %v4673 = vld [vmem:[%s3531 + $0xc] sm:$0xe]
      %v4674 = vld [vmem:[%s3531 + $0x18] sm:$0xe]
      %v4675 = vld [vmem:[%s3531 + $0x24] sm:$0xe]
      %v4676 = vld [vmem:[%s3531 + $0x30] sm:$0xe]
      %v4677 = vld [vmem:[%s3531 + $0x3c] sm:$0xe]
      %v4678 = vld [vmem:[%s3531 + $0x48] sm:$0xe]
      %v4679 = vld [vmem:[%s3531 + $0x54] sm:$0xe]
      %v4680 = vld [vmem:[%s3531 + $0x60] sm:$0xe]
      %v4681 = vld [vmem:[%s3531 + $0x6c] sm:$0xe]
      %v4682 = vld [vmem:[%s3531 + $0x78] sm:$0xe]
      %v4683 = vld [vmem:[%s3531 + $0x84] sm:$0xe]
      %v4684 = vld [vmem:[%s3531 + $0x90] sm:$0xe]
      %v4685 = vld [vmem:[%s3531 + $0x9c] sm:$0xe]
      %v4686 = vld [vmem:[%s3531 + $0xa8] sm:$0xe]
      %v4687 = vld [vmem:[%s3531 + $0xb4] sm:$0xe]
      %v4736 = vrot.slane %v4672, 5
      %v4737 = vrot.slane %v4736, 4
      %v4738 = vrot.slane %v3919, 5
      %v4739 = vsel %vm1457, %v4737, %v4738
      %v4740 = vrot.slane %v4738, 4
      %v4741 = vrot.slane %v3920, 5
      %v4742 = vsel %vm1457, %v4740, %v4741
      %v4743 = vrot.slane %v4673, 5
      %v4744 = vrot.slane %v4743, 4
      %v4745 = vrot.slane %v3922, 5
      %v4746 = vsel %vm1457, %v4744, %v4745
      %v4747 = vrot.slane %v4745, 4
      %v4748 = vrot.slane %v3923, 5
      %v4749 = vsel %vm1457, %v4747, %v4748
      %v4750 = vrot.slane %v4674, 5
      %v4751 = vrot.slane %v4750, 4
      %v4752 = vrot.slane %v3925, 5
      %v4753 = vsel %vm1457, %v4751, %v4752
      %v4754 = vrot.slane %v4752, 4
      %v4755 = vrot.slane %v3926, 5
      %v4756 = vsel %vm1457, %v4754, %v4755
      %v4757 = vrot.slane %v4675, 5
      %v4758 = vrot.slane %v4757, 4
      %v4759 = vrot.slane %v3928, 5
      %v4760 = vsel %vm1457, %v4758, %v4759
      %v4761 = vrot.slane %v4759, 4
      %v4762 = vrot.slane %v3929, 5
      %v4763 = vsel %vm1457, %v4761, %v4762
      %v4764 = vrot.slane %v4676, 5
      %v4765 = vrot.slane %v4764, 4
      %v4766 = vrot.slane %v3931, 5
      %v4767 = vsel %vm1457, %v4765, %v4766
      %v4768 = vrot.slane %v4766, 4
      %v4769 = vrot.slane %v3932, 5
      %v4770 = vsel %vm1457, %v4768, %v4769
      %v4771 = vrot.slane %v4677, 5
      %v4772 = vrot.slane %v4771, 4
      %v4773 = vrot.slane %v3934, 5
      %v4774 = vsel %vm1457, %v4772, %v4773
      %v4775 = vrot.slane %v4773, 4
      %v4776 = vrot.slane %v3935, 5
      %v4777 = vsel %vm1457, %v4775, %v4776
      %v4778 = vrot.slane %v4678, 5
      %v4779 = vrot.slane %v4778, 4
      %v4780 = vrot.slane %v3937, 5
      %v4781 = vsel %vm1457, %v4779, %v4780
      %v4782 = vrot.slane %v4780, 4
      %v4783 = vrot.slane %v3938, 5
      %v4784 = vsel %vm1457, %v4782, %v4783
      %v4785 = vrot.slane %v4679, 5
      %v4786 = vrot.slane %v4785, 4
      %v4787 = vrot.slane %v3940, 5
      %v4788 = vsel %vm1457, %v4786, %v4787
      %v4789 = vrot.slane %v4787, 4
      %v4790 = vrot.slane %v3941, 5
      %v4791 = vsel %vm1457, %v4789, %v4790
      %v4792 = vrot.slane %v4680, 5
      %v4793 = vrot.slane %v4792, 4
      %v4794 = vrot.slane %v3943, 5
      %v4795 = vsel %vm1457, %v4793, %v4794
      %v4796 = vrot.slane %v4794, 4
      %v4797 = vrot.slane %v3944, 5
      %v4798 = vsel %vm1457, %v4796, %v4797
      %v4799 = vrot.slane %v4681, 5
      %v4800 = vrot.slane %v4799, 4
      %v4801 = vrot.slane %v3946, 5
      %v4802 = vsel %vm1457, %v4800, %v4801
      %v4803 = vrot.slane %v4801, 4
      %v4804 = vrot.slane %v3947, 5
      %v4805 = vsel %vm1457, %v4803, %v4804
      %v4806 = vrot.slane %v4682, 5
      %v4807 = vrot.slane %v4806, 4
      %v4808 = vrot.slane %v3949, 5
      %v4809 = vsel %vm1457, %v4807, %v4808
      %v4810 = vrot.slane %v4808, 4
      %v4811 = vrot.slane %v3950, 5
      %v4812 = vsel %vm1457, %v4810, %v4811
      %v4813 = vrot.slane %v4683, 5
      %v4814 = vrot.slane %v4813, 4
      %v4815 = vrot.slane %v3952, 5
      %v4816 = vsel %vm1457, %v4814, %v4815
      %v4817 = vrot.slane %v4815, 4
      %v4818 = vrot.slane %v3953, 5
      %v4819 = vsel %vm1457, %v4817, %v4818
      %v4820 = vrot.slane %v4684, 5
      %v4821 = vrot.slane %v4820, 4
      %v4822 = vrot.slane %v3955, 5
      %v4823 = vsel %vm1457, %v4821, %v4822
      %v4824 = vrot.slane %v4822, 4
      %v4825 = vrot.slane %v3956, 5
      %v4826 = vsel %vm1457, %v4824, %v4825
      %v4827 = vrot.slane %v4685, 5
      %v4828 = vrot.slane %v4827, 4
      %v4829 = vrot.slane %v3958, 5
      %v4830 = vsel %vm1457, %v4828, %v4829
      %v4831 = vrot.slane %v4829, 4
      %v4832 = vrot.slane %v3959, 5
      %v4833 = vsel %vm1457, %v4831, %v4832
      %v4834 = vrot.slane %v4686, 5
      %v4835 = vrot.slane %v4834, 4
      %v4836 = vrot.slane %v3961, 5
      %v4837 = vsel %vm1457, %v4835, %v4836
      %v4838 = vrot.slane %v4836, 4
      %v4839 = vrot.slane %v3962, 5
      %v4840 = vsel %vm1457, %v4838, %v4839
      %v4841 = vrot.slane %v4687, 5
      %v4842 = vrot.slane %v4841, 4
      %v4843 = vrot.slane %v3964, 5
      %v4844 = vsel %vm1457, %v4842, %v4843
      %v4845 = vrot.slane %v4843, 4
      %v4846 = vrot.slane %v3965, 5
      %v4847 = vsel %vm1457, %v4845, %v4846
      %s4848 = scalar_lea.vmem %s1, 512
      %v4849 = vld [vmem:[%s4848] sm:$0xf]
      %v4850 = vld [vmem:[%s4848 + $0x4] sm:$0xf]
      %v4851 = vld [vmem:[%s4848 + $0x8] sm:$0xf]
      %v4852 = vld [vmem:[%s4848 + $0xc] sm:$0xf]
      %v4853 = vld [vmem:[%s4848 + $0x10] sm:$0xf]
      %v4854 = vld [vmem:[%s4848 + $0x14] sm:$0xf]
      %v4855 = vld [vmem:[%s4848 + $0x18] sm:$0xf]
      %v4856 = vld [vmem:[%s4848 + $0x1c] sm:$0xf]
      %v4857 = vld [vmem:[%s4848 + $0x20] sm:$0xf]
      %v4858 = vld [vmem:[%s4848 + $0x24] sm:$0xf]
      %v4859 = vld [vmem:[%s4848 + $0x28] sm:$0xf]
      %v4860 = vld [vmem:[%s4848 + $0x2c] sm:$0xf]
      %v4861 = vld [vmem:[%s4848 + $0x30] sm:$0xf]
      %v4862 = vld [vmem:[%s4848 + $0x34] sm:$0xf]
      %v4863 = vld [vmem:[%s4848 + $0x38] sm:$0xf]
      %v4864 = vld [vmem:[%s4848 + $0x3c] sm:$0xf]
      %v4865 = vunpack.c.l.b16 %v4739
      %v4866 = vunpack.c.l.b16 %v4742
      %v4867 = vunpack.c.l.b16 %v4746
      %v4868 = vunpack.c.l.b16 %v4749
      %v4869 = vunpack.c.l.b16 %v4753
      %v4870 = vunpack.c.l.b16 %v4756
      %v4871 = vunpack.c.l.b16 %v4760
      %v4872 = vunpack.c.l.b16 %v4763
      %v4873 = vunpack.c.l.b16 %v4767
      %v4874 = vunpack.c.l.b16 %v4770
      %v4875 = vunpack.c.l.b16 %v4774
      %v4876 = vunpack.c.l.b16 %v4777
      %v4877 = vunpack.c.l.b16 %v4781
      %v4878 = vunpack.c.l.b16 %v4784
      %v4879 = vunpack.c.l.b16 %v4788
      %v4880 = vunpack.c.l.b16 %v4791
      %v4881 = vunpack.c.l.b16 %v4795
      %v4882 = vunpack.c.l.b16 %v4798
      %v4883 = vunpack.c.l.b16 %v4802
      %v4884 = vunpack.c.l.b16 %v4805
      %v4885 = vunpack.c.l.b16 %v4809
      %v4886 = vunpack.c.l.b16 %v4812
      %v4887 = vunpack.c.l.b16 %v4816
      %v4888 = vunpack.c.l.b16 %v4819
      %v4889 = vunpack.c.l.b16 %v4823
      %v4890 = vunpack.c.l.b16 %v4826
      %v4891 = vunpack.c.l.b16 %v4830
      %v4892 = vunpack.c.l.b16 %v4833
      %v4893 = vunpack.c.l.b16 %v4837
      %v4894 = vunpack.c.l.b16 %v4840
      %v4895 = vunpack.c.l.b16 %v4844
      %v4896 = vunpack.c.l.b16 %v4847
      %v4897 = vpack.c.b16 %v4866, %v4865
      %v4898 = vpack.c.b16 %v4868, %v4867
      %v4899 = vpack.c.b16 %v4870, %v4869
      %v4900 = vpack.c.b16 %v4872, %v4871
      %v4901 = vpack.c.b16 %v4874, %v4873
      %v4902 = vpack.c.b16 %v4876, %v4875
      %v4903 = vpack.c.b16 %v4878, %v4877
      %v4904 = vpack.c.b16 %v4880, %v4879
      %v4905 = vpack.c.b16 %v4882, %v4881
      %v4906 = vpack.c.b16 %v4884, %v4883
      %v4907 = vpack.c.b16 %v4886, %v4885
      %v4908 = vpack.c.b16 %v4888, %v4887
      %v4909 = vpack.c.b16 %v4890, %v4889
      %v4910 = vpack.c.b16 %v4892, %v4891
      %v4911 = vpack.c.b16 %v4894, %v4893
      %v4912 = vpack.c.b16 %v4896, %v4895
      %v4945 = vunpack.c.l.b16 %v4849
      %v4946 = vunpack.c.l.b16 %v4850
      %v4947 = vunpack.c.l.b16 %v4851
      %v4948 = vunpack.c.l.b16 %v4852
      %v4949 = vunpack.c.l.b16 %v4853
      %v4950 = vunpack.c.l.b16 %v4854
      %v4951 = vunpack.c.l.b16 %v4855
      %v4952 = vunpack.c.l.b16 %v4856
      %v4953 = vunpack.c.l.b16 %v4857
      %v4954 = vunpack.c.l.b16 %v4858
      %v4955 = vunpack.c.l.b16 %v4859
      %v4956 = vunpack.c.l.b16 %v4860
      %v4957 = vunpack.c.l.b16 %v4861
      %v4958 = vunpack.c.l.b16 %v4862
      %v4959 = vunpack.c.l.b16 %v4863
      %v4960 = vunpack.c.l.b16 %v4864
      %v4961 = vpack.c.b16 %v4946, %v4945
      %v4962 = vpack.c.b16 %v4948, %v4947
      %v4963 = vpack.c.b16 %v4950, %v4949
      %v4964 = vpack.c.b16 %v4952, %v4951
      %v4965 = vpack.c.b16 %v4954, %v4953
      %v4966 = vpack.c.b16 %v4956, %v4955
      %v4967 = vpack.c.b16 %v4958, %v4957
      %v4968 = vpack.c.b16 %v4960, %v4959
      %4977 = vmatprep.subr.bf16.mxu0 0
      %4978 = vmatpush1.bf16.msra.mxu0 %v4961
      %4979 = vmatprep.subr.bf16.mxu0 0
      %4980 = vmatpush1.bf16.msra.mxu0 %v4962
      %4981 = vmatprep.subr.bf16.mxu0 0
      %4982 = vmatpush1.bf16.msra.mxu0 %v4963
      %4983 = vmatprep.subr.bf16.mxu0 0
      %4984 = vmatpush1.bf16.msra.mxu0 %v4964
      %4985 = vmatprep.subr.bf16.mxu0 0
      %4986 = vmatpush1.bf16.msra.mxu0 %v4965
      %4987 = vmatprep.subr.bf16.mxu0 0
      %4988 = vmatpush1.bf16.msra.mxu0 %v4966
      %4989 = vmatprep.subr.bf16.mxu0 0
      %4990 = vmatpush1.bf16.msra.mxu0 %v4967
      %4991 = vmatprep.subr.bf16.mxu0 0
      %4992 = vmatpush1.bf16.msra.mxu0 %v4968
      %4993 = vmatprep.subr.bf16.mxu0 0
      %4994 = vmatpush1.bf16.msra.mxu0 0
      %4995 = vmatprep.subr.bf16.mxu0 0
      %4996 = vmatpush1.bf16.msra.mxu0 0
      %4997 = vmatprep.subr.bf16.mxu0 0
      %4998 = vmatpush1.bf16.msra.mxu0 0
      %4999 = vmatprep.subr.bf16.mxu0 0
      %5000 = vmatpush1.bf16.msra.mxu0 0
      %5001 = vmatprep.subr.bf16.mxu0 0
      %5002 = vmatpush1.bf16.msra.mxu0 0
      %5003 = vmatprep.subr.bf16.mxu0 0
      %5004 = vmatpush1.bf16.msra.mxu0 0
      %5005 = vmatprep.subr.bf16.mxu0 0
      %5006 = vmatpush1.bf16.msra.mxu0 0
      %5007 = vmatprep.subr.bf16.mxu0 0
      %5008 = vmatpush1.bf16.msra.mxu0 0
      %5009 = vmatprep.mubr.bf16.mxu0 0
      %5010 = vmatmul.mubr.bf16.gmra.mrb[0].mxu0 %v4897
      %v5011 = vpop.f32.mrb[0].mxu0
      %v5012 = vadd.f32 0.0, %v5011
      %v5013 = vpop.f32.mrb[0].mxu0
      %v5014 = vpop.f32.mrb[0].mxu0
      %v5015 = vadd.f32 0.0, %v5014
      %v5016 = vpop.f32.mrb[0].mxu0
      %5017 = vmatprep.mubr.bf16.mxu0 0
      %5018 = vmatmul.mubr.bf16.gmra.mrb[0].mxu0 %v4898
      %v5019 = vpop.f32.mrb[0].mxu0
      %v5020 = vadd.f32 0.0, %v5019
      %v5021 = vpop.f32.mrb[0].mxu0
      %v5022 = vpop.f32.mrb[0].mxu0
      %v5023 = vadd.f32 0.0, %v5022
      %v5024 = vpop.f32.mrb[0].mxu0
      %5025 = vmatprep.mubr.bf16.mxu0 0
      %5026 = vmatmul.mubr.bf16.gmra.mrb[0].mxu0 %v4899
      %v5027 = vpop.f32.mrb[0].mxu0
      %v5028 = vadd.f32 0.0, %v5027
      %v5029 = vpop.f32.mrb[0].mxu0
      %v5030 = vpop.f32.mrb[0].mxu0
      %v5031 = vadd.f32 0.0, %v5030
      %v5032 = vpop.f32.mrb[0].mxu0
      %5033 = vmatprep.mubr.bf16.mxu0 0
      %5034 = vmatmul.mubr.bf16.gmra.mrb[0].mxu0 %v4900
      %v5035 = vpop.f32.mrb[0].mxu0
      %v5036 = vadd.f32 0.0, %v5035
      %v5037 = vpop.f32.mrb[0].mxu0
      %v5038 = vpop.f32.mrb[0].mxu0
      %v5039 = vadd.f32 0.0, %v5038
      %v5040 = vpop.f32.mrb[0].mxu0
      %5041 = vmatprep.mubr.bf16.mxu0 0
      %5042 = vmatmul.mubr.bf16.gmra.mrb[0].mxu0 %v4901
      %v5043 = vpop.f32.mrb[0].mxu0
      %v5044 = vadd.f32 0.0, %v5043
      %v5045 = vpop.f32.mrb[0].mxu0
      %v5046 = vpop.f32.mrb[0].mxu0
      %v5047 = vadd.f32 0.0, %v5046
      %v5048 = vpop.f32.mrb[0].mxu0
      %5049 = vmatprep.mubr.bf16.mxu0 0
      %5050 = vmatmul.mubr.bf16.gmra.mrb[0].mxu0 %v4902
      %v5051 = vpop.f32.mrb[0].mxu0
      %v5052 = vadd.f32 0.0, %v5051
      %v5053 = vpop.f32.mrb[0].mxu0
      %v5054 = vpop.f32.mrb[0].mxu0
      %v5055 = vadd.f32 0.0, %v5054
      %v5056 = vpop.f32.mrb[0].mxu0
      %5057 = vmatprep.mubr.bf16.mxu0 0
      %5058 = vmatmul.mubr.bf16.gmra.mrb[0].mxu0 %v4903
      %v5059 = vpop.f32.mrb[0].mxu0
      %v5060 = vadd.f32 0.0, %v5059
      %v5061 = vpop.f32.mrb[0].mxu0
      %v5062 = vpop.f32.mrb[0].mxu0
      %v5063 = vadd.f32 0.0, %v5062
      %v5064 = vpop.f32.mrb[0].mxu0
      %5065 = vmatprep.mubr.bf16.mxu0 0
      %5066 = vmatmul.mubr.bf16.gmra.mrb[0].mxu0 %v4904
      %v5067 = vpop.f32.mrb[0].mxu0
      %v5068 = vadd.f32 0.0, %v5067
      %v5069 = vpop.f32.mrb[0].mxu0
      %v5070 = vpop.f32.mrb[0].mxu0
      %v5071 = vadd.f32 0.0, %v5070
      %v5072 = vpop.f32.mrb[0].mxu0
      %5073 = vmatprep.mubr.bf16.mxu0 0
      %5074 = vmatmul.mubr.bf16.gmra.mrb[0].mxu0 %v4905
      %v5075 = vpop.f32.mrb[0].mxu0
      %v5076 = vadd.f32 0.0, %v5075
      %v5077 = vpop.f32.mrb[0].mxu0
      %v5078 = vpop.f32.mrb[0].mxu0
      %v5079 = vadd.f32 0.0, %v5078
      %v5080 = vpop.f32.mrb[0].mxu0
      %5081 = vmatprep.mubr.bf16.mxu0 0
      %5082 = vmatmul.mubr.bf16.gmra.mrb[0].mxu0 %v4906
      %v5083 = vpop.f32.mrb[0].mxu0
      %v5084 = vadd.f32 0.0, %v5083
      %v5085 = vpop.f32.mrb[0].mxu0
      %v5086 = vpop.f32.mrb[0].mxu0
      %v5087 = vadd.f32 0.0, %v5086
      %v5088 = vpop.f32.mrb[0].mxu0
      %5089 = vmatprep.mubr.bf16.mxu0 0
      %5090 = vmatmul.mubr.bf16.gmra.mrb[0].mxu0 %v4907
      %v5091 = vpop.f32.mrb[0].mxu0
      %v5092 = vadd.f32 0.0, %v5091
      %v5093 = vpop.f32.mrb[0].mxu0
      %v5094 = vpop.f32.mrb[0].mxu0
      %v5095 = vadd.f32 0.0, %v5094
      %v5096 = vpop.f32.mrb[0].mxu0
      %5097 = vmatprep.mubr.bf16.mxu0 0
      %5098 = vmatmul.mubr.bf16.gmra.mrb[0].mxu0 %v4908
      %v5099 = vpop.f32.mrb[0].mxu0
      %v5100 = vadd.f32 0.0, %v5099
      %v5101 = vpop.f32.mrb[0].mxu0
      %v5102 = vpop.f32.mrb[0].mxu0
      %v5103 = vadd.f32 0.0, %v5102
      %v5104 = vpop.f32.mrb[0].mxu0
      %5105 = vmatprep.mubr.bf16.mxu0 0
      %5106 = vmatmul.mubr.bf16.gmra.mrb[0].mxu0 %v4909
      %v5107 = vpop.f32.mrb[0].mxu0
      %v5108 = vadd.f32 0.0, %v5107
      %v5109 = vpop.f32.mrb[0].mxu0
      %v5110 = vpop.f32.mrb[0].mxu0
      %v5111 = vadd.f32 0.0, %v5110
      %v5112 = vpop.f32.mrb[0].mxu0
      %5113 = vmatprep.mubr.bf16.mxu0 0
      %5114 = vmatmul.mubr.bf16.gmra.mrb[0].mxu0 %v4910
      %v5115 = vpop.f32.mrb[0].mxu0
      %v5116 = vadd.f32 0.0, %v5115
      %v5117 = vpop.f32.mrb[0].mxu0
      %v5118 = vpop.f32.mrb[0].mxu0
      %v5119 = vadd.f32 0.0, %v5118
      %v5120 = vpop.f32.mrb[0].mxu0
      %5121 = vmatprep.mubr.bf16.mxu0 0
      %5122 = vmatmul.mubr.bf16.gmra.mrb[0].mxu0 %v4911
      %v5123 = vpop.f32.mrb[0].mxu0
      %v5124 = vadd.f32 0.0, %v5123
      %v5125 = vpop.f32.mrb[0].mxu0
      %v5126 = vpop.f32.mrb[0].mxu0
      %v5127 = vadd.f32 0.0, %v5126
      %v5128 = vpop.f32.mrb[0].mxu0
      %5129 = vmatprep.mubr.bf16.mxu0 0
      %5130 = vmatmul.mubr.bf16.gmra.mrb[0].mxu0 %v4912
      %v5131 = vpop.f32.mrb[0].mxu0
      %v5132 = vadd.f32 0.0, %v5131
      %v5133 = vpop.f32.mrb[0].mxu0
      %v5134 = vpop.f32.mrb[0].mxu0
      %v5135 = vadd.f32 0.0, %v5134
      %v5136 = vpop.f32.mrb[0].mxu0
      %5137 = vdwg.mxu0
      %v5138 = vadd.f32 %v4640, %v5012
      %v5139 = vadd.f32 %v4641, %v5015
      %v5140 = vadd.f32 %v4642, %v5020
      %v5141 = vadd.f32 %v4643, %v5023
      %v5142 = vadd.f32 %v4644, %v5028
      %v5143 = vadd.f32 %v4645, %v5031
      %v5144 = vadd.f32 %v4646, %v5036
      %v5145 = vadd.f32 %v4647, %v5039
      %v5146 = vadd.f32 %v4648, %v5044
      %v5147 = vadd.f32 %v4649, %v5047
      %v5148 = vadd.f32 %v4650, %v5052
      %v5149 = vadd.f32 %v4651, %v5055
      %v5150 = vadd.f32 %v4652, %v5060
      %v5151 = vadd.f32 %v4653, %v5063
      %v5152 = vadd.f32 %v4654, %v5068
      %v5153 = vadd.f32 %v4655, %v5071
      %v5154 = vadd.f32 %v4656, %v5076
      %v5155 = vadd.f32 %v4657, %v5079
      %v5156 = vadd.f32 %v4658, %v5084
      %v5157 = vadd.f32 %v4659, %v5087
      %v5158 = vadd.f32 %v4660, %v5092
      %v5159 = vadd.f32 %v4661, %v5095
      %v5160 = vadd.f32 %v4662, %v5100
      %v5161 = vadd.f32 %v4663, %v5103
      %v5162 = vadd.f32 %v4664, %v5108
      %v5163 = vadd.f32 %v4665, %v5111
      %v5164 = vadd.f32 %v4666, %v5116
      %v5165 = vadd.f32 %v4667, %v5119
      %v5166 = vadd.f32 %v4668, %v5124
      %v5167 = vadd.f32 %v4669, %v5127
      %v5168 = vadd.f32 %v4670, %v5132
      %v5169 = vadd.f32 %v4671, %v5135
      %v5170 = vld [vmem:[%s2] sm:$0x1]
      %v5172 = vlaneseq
      %v5173 = vshrl.u32 %v5172, 7
      %v5174 = vsub.s32 0, %v5173
      %v5175 = vrot.slane %v5170, %v5174
      %v5177 = vmul.f32 %v5138, %v5175
      %v5178 = vmul.f32 %v5139, %v5175
      %v5179 = vmul.f32 %v5140, %v5175
      %v5180 = vmul.f32 %v5141, %v5175
      %v5181 = vmul.f32 %v5142, %v5175
      %v5182 = vmul.f32 %v5143, %v5175
      %v5183 = vmul.f32 %v5144, %v5175
      %v5184 = vmul.f32 %v5145, %v5175
      %v5185 = vmul.f32 %v5146, %v5175
      %v5186 = vmul.f32 %v5147, %v5175
      %v5187 = vmul.f32 %v5148, %v5175
      %v5188 = vmul.f32 %v5149, %v5175
      %v5189 = vmul.f32 %v5150, %v5175
      %v5190 = vmul.f32 %v5151, %v5175
      %v5191 = vmul.f32 %v5152, %v5175
      %v5192 = vmul.f32 %v5153, %v5175
      %v5193 = vmul.f32 %v5154, %v5175
      %v5194 = vmul.f32 %v5155, %v5175
      %v5195 = vmul.f32 %v5156, %v5175
      %v5196 = vmul.f32 %v5157, %v5175
      %v5197 = vmul.f32 %v5158, %v5175
      %v5198 = vmul.f32 %v5159, %v5175
      %v5199 = vmul.f32 %v5160, %v5175
      %v5200 = vmul.f32 %v5161, %v5175
      %v5201 = vmul.f32 %v5162, %v5175
      %v5202 = vmul.f32 %v5163, %v5175
      %v5203 = vmul.f32 %v5164, %v5175
      %v5204 = vmul.f32 %v5165, %v5175
      %v5205 = vmul.f32 %v5166, %v5175
      %v5206 = vmul.f32 %v5167, %v5175
      %v5207 = vmul.f32 %v5168, %v5175
      %v5208 = vmul.f32 %v5169, %v5175
      %v5209 = vld [vmem:[%s3] sm:$0x1]
      %v5211 = vlaneseq
      %v5212 = vshrl.u32 %v5211, 7
      %v5213 = vsub.s32 0, %v5212
      %v5214 = vrot.slane %v5209, %v5213
      %v5216 = vadd.f32 %v5177, %v5214
      %v5217 = vadd.f32 %v5178, %v5214
      %v5218 = vadd.f32 %v5179, %v5214
      %v5219 = vadd.f32 %v5180, %v5214
      %v5220 = vadd.f32 %v5181, %v5214
      %v5221 = vadd.f32 %v5182, %v5214
      %v5222 = vadd.f32 %v5183, %v5214
      %v5223 = vadd.f32 %v5184, %v5214
      %v5224 = vadd.f32 %v5185, %v5214
      %v5225 = vadd.f32 %v5186, %v5214
      %v5226 = vadd.f32 %v5187, %v5214
      %v5227 = vadd.f32 %v5188, %v5214
      %v5228 = vadd.f32 %v5189, %v5214
      %v5229 = vadd.f32 %v5190, %v5214
      %v5230 = vadd.f32 %v5191, %v5214
      %v5231 = vadd.f32 %v5192, %v5214
      %v5232 = vadd.f32 %v5193, %v5214
      %v5233 = vadd.f32 %v5194, %v5214
      %v5234 = vadd.f32 %v5195, %v5214
      %v5235 = vadd.f32 %v5196, %v5214
      %v5236 = vadd.f32 %v5197, %v5214
      %v5237 = vadd.f32 %v5198, %v5214
      %v5238 = vadd.f32 %v5199, %v5214
      %v5239 = vadd.f32 %v5200, %v5214
      %v5240 = vadd.f32 %v5201, %v5214
      %v5241 = vadd.f32 %v5202, %v5214
      %v5242 = vadd.f32 %v5203, %v5214
      %v5243 = vadd.f32 %v5204, %v5214
      %v5244 = vadd.f32 %v5205, %v5214
      %v5245 = vadd.f32 %v5206, %v5214
      %v5246 = vadd.f32 %v5207, %v5214
      %v5247 = vadd.f32 %v5208, %v5214
      %v5248 = vmax.f32 %v5216, 0.0
      %v5249 = vmax.f32 %v5217, 0.0
      %v5250 = vmax.f32 %v5218, 0.0
      %v5251 = vmax.f32 %v5219, 0.0
      %v5252 = vmax.f32 %v5220, 0.0
      %v5253 = vmax.f32 %v5221, 0.0
      %v5254 = vmax.f32 %v5222, 0.0
      %v5255 = vmax.f32 %v5223, 0.0
      %v5256 = vmax.f32 %v5224, 0.0
      %v5257 = vmax.f32 %v5225, 0.0
      %v5258 = vmax.f32 %v5226, 0.0
      %v5259 = vmax.f32 %v5227, 0.0
      %v5260 = vmax.f32 %v5228, 0.0
      %v5261 = vmax.f32 %v5229, 0.0
      %v5262 = vmax.f32 %v5230, 0.0
      %v5263 = vmax.f32 %v5231, 0.0
      %v5264 = vmax.f32 %v5232, 0.0
      %v5265 = vmax.f32 %v5233, 0.0
      %v5266 = vmax.f32 %v5234, 0.0
      %v5267 = vmax.f32 %v5235, 0.0
      %v5268 = vmax.f32 %v5236, 0.0
      %v5269 = vmax.f32 %v5237, 0.0
      %v5270 = vmax.f32 %v5238, 0.0
      %v5271 = vmax.f32 %v5239, 0.0
      %v5272 = vmax.f32 %v5240, 0.0
      %v5273 = vmax.f32 %v5241, 0.0
      %v5274 = vmax.f32 %v5242, 0.0
      %v5275 = vmax.f32 %v5243, 0.0
      %v5276 = vmax.f32 %v5244, 0.0
      %v5277 = vmax.f32 %v5245, 0.0
      %v5278 = vmax.f32 %v5246, 0.0
      %v5279 = vmax.f32 %v5247, 0.0
      %5280 = vst [vmem:[#allocation2] sm:$0xf] 0
      %5281 = vst [vmem:[#allocation2 + $0x4] sm:$0xf] 0
      %5282 = vst [vmem:[#allocation2 + $0x8] sm:$0x1] 0
      %s5283 = scalar_lea.vmem [#allocation2], 204
      %5284 = vst [vmem:[%s5283] sm:$0xf] 0
      %5285 = vst [vmem:[%s5283 + $0x4] sm:$0xf] 0
      %5286 = vst [vmem:[%s5283 + $0x8] sm:$0x1] 0
      %s5287 = scalar_lea.vmem [#allocation2], 12
      %vm5288 = vcmask 1040384
      %vm5289 = vsmask.f32 256
      %vm5290 = vmand %vm5288, %vm5289
      %v5291 = vld [vmem:[%s5287] sm:$0x1]
      %v5292 = vsel %vm5290, 0, %v5291
      %5293 = vst [vmem:[%s5287] sm:$0x1] %v5292
      %v5294 = vld [vmem:[%s5287 + $0xc] sm:$0x1]
      %v5295 = vsel %vm5290, 0, %v5294
      %5296 = vst [vmem:[%s5287 + $0xc] sm:$0x1] %v5295
      %v5297 = vld [vmem:[%s5287 + $0x18] sm:$0x1]
      %v5298 = vsel %vm5290, 0, %v5297
      %5299 = vst [vmem:[%s5287 + $0x18] sm:$0x1] %v5298
      %v5300 = vld [vmem:[%s5287 + $0x24] sm:$0x1]
      %v5301 = vsel %vm5290, 0, %v5300
      %5302 = vst [vmem:[%s5287 + $0x24] sm:$0x1] %v5301
      %v5303 = vld [vmem:[%s5287 + $0x30] sm:$0x1]
      %v5304 = vsel %vm5290, 0, %v5303
      %5305 = vst [vmem:[%s5287 + $0x30] sm:$0x1] %v5304
      %v5306 = vld [vmem:[%s5287 + $0x3c] sm:$0x1]
      %v5307 = vsel %vm5290, 0, %v5306
      %5308 = vst [vmem:[%s5287 + $0x3c] sm:$0x1] %v5307
      %v5309 = vld [vmem:[%s5287 + $0x48] sm:$0x1]
      %v5310 = vsel %vm5290, 0, %v5309
      %5311 = vst [vmem:[%s5287 + $0x48] sm:$0x1] %v5310
      %v5312 = vld [vmem:[%s5287 + $0x54] sm:$0x1]
      %v5313 = vsel %vm5290, 0, %v5312
      %5314 = vst [vmem:[%s5287 + $0x54] sm:$0x1] %v5313
      %v5315 = vld [vmem:[%s5287 + $0x60] sm:$0x1]
      %v5316 = vsel %vm5290, 0, %v5315
      %5317 = vst [vmem:[%s5287 + $0x60] sm:$0x1] %v5316
      %v5318 = vld [vmem:[%s5287 + $0x6c] sm:$0x1]
      %v5319 = vsel %vm5290, 0, %v5318
      %5320 = vst [vmem:[%s5287 + $0x6c] sm:$0x1] %v5319
      %v5321 = vld [vmem:[%s5287 + $0x78] sm:$0x1]
      %v5322 = vsel %vm5290, 0, %v5321
      %5323 = vst [vmem:[%s5287 + $0x78] sm:$0x1] %v5322
      %v5324 = vld [vmem:[%s5287 + $0x84] sm:$0x1]
      %v5325 = vsel %vm5290, 0, %v5324
      %5326 = vst [vmem:[%s5287 + $0x84] sm:$0x1] %v5325
      %v5327 = vld [vmem:[%s5287 + $0x90] sm:$0x1]
      %v5328 = vsel %vm5290, 0, %v5327
      %5329 = vst [vmem:[%s5287 + $0x90] sm:$0x1] %v5328
      %v5330 = vld [vmem:[%s5287 + $0x9c] sm:$0x1]
      %v5331 = vsel %vm5290, 0, %v5330
      %5332 = vst [vmem:[%s5287 + $0x9c] sm:$0x1] %v5331
      %v5333 = vld [vmem:[%s5287 + $0xa8] sm:$0x1]
      %v5334 = vsel %vm5290, 0, %v5333
      %5335 = vst [vmem:[%s5287 + $0xa8] sm:$0x1] %v5334
      %v5336 = vld [vmem:[%s5287 + $0xb4] sm:$0x1]
      %v5337 = vsel %vm5290, 0, %v5336
      %5338 = vst [vmem:[%s5287 + $0xb4] sm:$0x1] %v5337
      %vm5339 = vsmask.f32 7938
      %vm5340 = vmand %vm5288, %vm5339
      %v5341 = vld [vmem:[%s5287 + $0x8] sm:$0x1]
      %v5342 = vsel %vm5340, 0, %v5341
      %5343 = vst [vmem:[%s5287 + $0x8] sm:$0x1] %v5342
      %v5344 = vld [vmem:[%s5287 + $0x14] sm:$0x1]
      %v5345 = vsel %vm5340, 0, %v5344
      %5346 = vst [vmem:[%s5287 + $0x14] sm:$0x1] %v5345
      %v5347 = vld [vmem:[%s5287 + $0x20] sm:$0x1]
      %v5348 = vsel %vm5340, 0, %v5347
      %5349 = vst [vmem:[%s5287 + $0x20] sm:$0x1] %v5348
      %v5350 = vld [vmem:[%s5287 + $0x2c] sm:$0x1]
      %v5351 = vsel %vm5340, 0, %v5350
      %5352 = vst [vmem:[%s5287 + $0x2c] sm:$0x1] %v5351
      %v5353 = vld [vmem:[%s5287 + $0x38] sm:$0x1]
      %v5354 = vsel %vm5340, 0, %v5353
      %5355 = vst [vmem:[%s5287 + $0x38] sm:$0x1] %v5354
      %v5356 = vld [vmem:[%s5287 + $0x44] sm:$0x1]
      %v5357 = vsel %vm5340, 0, %v5356
      %5358 = vst [vmem:[%s5287 + $0x44] sm:$0x1] %v5357
      %v5359 = vld [vmem:[%s5287 + $0x50] sm:$0x1]
      %v5360 = vsel %vm5340, 0, %v5359
      %5361 = vst [vmem:[%s5287 + $0x50] sm:$0x1] %v5360
      %v5362 = vld [vmem:[%s5287 + $0x5c] sm:$0x1]
      %v5363 = vsel %vm5340, 0, %v5362
      %5364 = vst [vmem:[%s5287 + $0x5c] sm:$0x1] %v5363
      %v5365 = vld [vmem:[%s5287 + $0x68] sm:$0x1]
      %v5366 = vsel %vm5340, 0, %v5365
      %5367 = vst [vmem:[%s5287 + $0x68] sm:$0x1] %v5366
      %v5368 = vld [vmem:[%s5287 + $0x74] sm:$0x1]
      %v5369 = vsel %vm5340, 0, %v5368
      %5370 = vst [vmem:[%s5287 + $0x74] sm:$0x1] %v5369
      %v5371 = vld [vmem:[%s5287 + $0x80] sm:$0x1]
      %v5372 = vsel %vm5340, 0, %v5371
      %5373 = vst [vmem:[%s5287 + $0x80] sm:$0x1] %v5372
      %v5374 = vld [vmem:[%s5287 + $0x8c] sm:$0x1]
      %v5375 = vsel %vm5340, 0, %v5374
      %5376 = vst [vmem:[%s5287 + $0x8c] sm:$0x1] %v5375
      %v5377 = vld [vmem:[%s5287 + $0x98] sm:$0x1]
      %v5378 = vsel %vm5340, 0, %v5377
      %5379 = vst [vmem:[%s5287 + $0x98] sm:$0x1] %v5378
      %v5380 = vld [vmem:[%s5287 + $0xa4] sm:$0x1]
      %v5381 = vsel %vm5340, 0, %v5380
      %5382 = vst [vmem:[%s5287 + $0xa4] sm:$0x1] %v5381
      %v5383 = vld [vmem:[%s5287 + $0xb0] sm:$0x1]
      %v5384 = vsel %vm5340, 0, %v5383
      %5385 = vst [vmem:[%s5287 + $0xb0] sm:$0x1] %v5384
      %v5386 = vld [vmem:[%s5287 + $0xbc] sm:$0x1]
      %v5387 = vsel %vm5340, 0, %v5386
      %5388 = vst [vmem:[%s5287 + $0xbc] sm:$0x1] %v5387
      %v5389 = vpack.c.bf16 %v5249, %v5248
      %v5390 = vpack.c.bf16 %v5251, %v5250
      %v5391 = vpack.c.bf16 %v5253, %v5252
      %v5392 = vpack.c.bf16 %v5255, %v5254
      %v5393 = vpack.c.bf16 %v5257, %v5256
      %v5394 = vpack.c.bf16 %v5259, %v5258
      %v5395 = vpack.c.bf16 %v5261, %v5260
      %v5396 = vpack.c.bf16 %v5263, %v5262
      %v5397 = vpack.c.bf16 %v5265, %v5264
      %v5398 = vpack.c.bf16 %v5267, %v5266
      %v5399 = vpack.c.bf16 %v5269, %v5268
      %v5400 = vpack.c.bf16 %v5271, %v5270
      %v5401 = vpack.c.bf16 %v5273, %v5272
      %v5402 = vpack.c.bf16 %v5275, %v5274
      %v5403 = vpack.c.bf16 %v5277, %v5276
      %v5404 = vpack.c.bf16 %v5279, %v5278
      %v5421 = vunpack.c.l.b16 %v5389
      %v5422 = vunpack.c.h.b16 %v5389
      %v5423 = vunpack.c.l.b16 %v5390
      %v5424 = vunpack.c.h.b16 %v5390
      %v5425 = vunpack.c.l.b16 %v5391
      %v5426 = vunpack.c.h.b16 %v5391
      %v5427 = vunpack.c.l.b16 %v5392
      %v5428 = vunpack.c.h.b16 %v5392
      %v5429 = vunpack.c.l.b16 %v5393
      %v5430 = vunpack.c.h.b16 %v5393
      %v5431 = vunpack.c.l.b16 %v5394
      %v5432 = vunpack.c.h.b16 %v5394
      %v5433 = vunpack.c.l.b16 %v5395
      %v5434 = vunpack.c.h.b16 %v5395
      %v5435 = vunpack.c.l.b16 %v5396
      %v5436 = vunpack.c.h.b16 %v5396
      %v5437 = vunpack.c.l.b16 %v5397
      %v5438 = vunpack.c.h.b16 %v5397
      %v5439 = vunpack.c.l.b16 %v5398
      %v5440 = vunpack.c.h.b16 %v5398
      %v5441 = vunpack.c.l.b16 %v5399
      %v5442 = vunpack.c.h.b16 %v5399
      %v5443 = vunpack.c.l.b16 %v5400
      %v5444 = vunpack.c.h.b16 %v5400
      %v5445 = vunpack.c.l.b16 %v5401
      %v5446 = vunpack.c.h.b16 %v5401
      %v5447 = vunpack.c.l.b16 %v5402
      %v5448 = vunpack.c.h.b16 %v5402
      %v5449 = vunpack.c.l.b16 %v5403
      %v5450 = vunpack.c.h.b16 %v5403
      %v5451 = vunpack.c.l.b16 %v5404
      %v5452 = vunpack.c.h.b16 %v5404
      %v5453 = vpack.c.b16 %v5421, %v5421
      %v5454 = vpack.c.b16 %v5422, %v5422
      %v5455 = vpack.c.b16 %v5423, %v5423
      %v5456 = vpack.c.b16 %v5424, %v5424
      %v5457 = vpack.c.b16 %v5425, %v5425
      %v5458 = vpack.c.b16 %v5426, %v5426
      %v5459 = vpack.c.b16 %v5427, %v5427
      %v5460 = vpack.c.b16 %v5428, %v5428
      %v5461 = vpack.c.b16 %v5429, %v5429
      %v5462 = vpack.c.b16 %v5430, %v5430
      %v5463 = vpack.c.b16 %v5431, %v5431
      %v5464 = vpack.c.b16 %v5432, %v5432
      %v5465 = vpack.c.b16 %v5433, %v5433
      %v5466 = vpack.c.b16 %v5434, %v5434
      %v5467 = vpack.c.b16 %v5435, %v5435
      %v5468 = vpack.c.b16 %v5436, %v5436
      %v5469 = vpack.c.b16 %v5437, %v5437
      %v5470 = vpack.c.b16 %v5438, %v5438
      %v5471 = vpack.c.b16 %v5439, %v5439
      %v5472 = vpack.c.b16 %v5440, %v5440
      %v5473 = vpack.c.b16 %v5441, %v5441
      %v5474 = vpack.c.b16 %v5442, %v5442
      %v5475 = vpack.c.b16 %v5443, %v5443
      %v5476 = vpack.c.b16 %v5444, %v5444
      %v5477 = vpack.c.b16 %v5445, %v5445
      %v5478 = vpack.c.b16 %v5446, %v5446
      %v5479 = vpack.c.b16 %v5447, %v5447
      %v5480 = vpack.c.b16 %v5448, %v5448
      %v5481 = vpack.c.b16 %v5449, %v5449
      %v5482 = vpack.c.b16 %v5450, %v5450
      %v5483 = vpack.c.b16 %v5451, %v5451
      %v5484 = vpack.c.b16 %v5452, %v5452
      %vm5485 = vsmask.f32 4368
      %vm5486 = vmor %vm5289, %vm5485
      %v5488 = vshrl.u32 %v5453, 16
      %v5490 = vrot.slane %v5488, 7
      %v5491 = vshll.u32 %v5453, 16
      %v5493 = vor.u32 %v5490, %v5491
      %v5494 = vrot.slane %v5490, 4
      %v5496 = vshrl.u32 %v5454, 16
      %v5498 = vrot.slane %v5496, 7
      %v5499 = vshll.u32 %v5454, 16
      %v5501 = vor.u32 %v5498, %v5499
      %v5502 = vsel %vm5486, %v5494, %v5501
      %v5503 = vrot.slane %v5498, 4
      %v5505 = vshrl.u32 %v5455, 16
      %v5507 = vrot.slane %v5505, 7
      %v5508 = vshll.u32 %v5455, 16
      %v5510 = vor.u32 %v5507, %v5508
      %v5511 = vrot.slane %v5507, 4
      %v5513 = vshrl.u32 %v5456, 16
      %v5515 = vrot.slane %v5513, 7
      %v5516 = vshll.u32 %v5456, 16
      %v5518 = vor.u32 %v5515, %v5516
      %v5519 = vsel %vm5486, %v5511, %v5518
      %v5520 = vrot.slane %v5515, 4
      %v5522 = vshrl.u32 %v5457, 16
      %v5524 = vrot.slane %v5522, 7
      %v5525 = vshll.u32 %v5457, 16
      %v5527 = vor.u32 %v5524, %v5525
      %v5528 = vrot.slane %v5524, 4
      %v5530 = vshrl.u32 %v5458, 16
      %v5532 = vrot.slane %v5530, 7
      %v5533 = vshll.u32 %v5458, 16
      %v5535 = vor.u32 %v5532, %v5533
      %v5536 = vsel %vm5486, %v5528, %v5535
      %v5537 = vrot.slane %v5532, 4
      %v5539 = vshrl.u32 %v5459, 16
      %v5541 = vrot.slane %v5539, 7
      %v5542 = vshll.u32 %v5459, 16
      %v5544 = vor.u32 %v5541, %v5542
      %v5545 = vrot.slane %v5541, 4
      %v5547 = vshrl.u32 %v5460, 16
      %v5549 = vrot.slane %v5547, 7
      %v5550 = vshll.u32 %v5460, 16
      %v5552 = vor.u32 %v5549, %v5550
      %v5553 = vsel %vm5486, %v5545, %v5552
      %v5554 = vrot.slane %v5549, 4
      %v5556 = vshrl.u32 %v5461, 16
      %v5558 = vrot.slane %v5556, 7
      %v5559 = vshll.u32 %v5461, 16
      %v5561 = vor.u32 %v5558, %v5559
      %v5562 = vrot.slane %v5558, 4
      %v5564 = vshrl.u32 %v5462, 16
      %v5566 = vrot.slane %v5564, 7
      %v5567 = vshll.u32 %v5462, 16
      %v5569 = vor.u32 %v5566, %v5567
      %v5570 = vsel %vm5486, %v5562, %v5569
      %v5571 = vrot.slane %v5566, 4
      %v5573 = vshrl.u32 %v5463, 16
      %v5575 = vrot.slane %v5573, 7
      %v5576 = vshll.u32 %v5463, 16
      %v5578 = vor.u32 %v5575, %v5576
      %v5579 = vrot.slane %v5575, 4
      %v5581 = vshrl.u32 %v5464, 16
      %v5583 = vrot.slane %v5581, 7
      %v5584 = vshll.u32 %v5464, 16
      %v5586 = vor.u32 %v5583, %v5584
      %v5587 = vsel %vm5486, %v5579, %v5586
      %v5588 = vrot.slane %v5583, 4
      %v5590 = vshrl.u32 %v5465, 16
      %v5592 = vrot.slane %v5590, 7
      %v5593 = vshll.u32 %v5465, 16
      %v5595 = vor.u32 %v5592, %v5593
      %v5596 = vrot.slane %v5592, 4
      %v5598 = vshrl.u32 %v5466, 16
      %v5600 = vrot.slane %v5598, 7
      %v5601 = vshll.u32 %v5466, 16
      %v5603 = vor.u32 %v5600, %v5601
      %v5604 = vsel %vm5486, %v5596, %v5603
      %v5605 = vrot.slane %v5600, 4
      %v5607 = vshrl.u32 %v5467, 16
      %v5609 = vrot.slane %v5607, 7
      %v5610 = vshll.u32 %v5467, 16
      %v5612 = vor.u32 %v5609, %v5610
      %v5613 = vrot.slane %v5609, 4
      %v5615 = vshrl.u32 %v5468, 16
      %v5617 = vrot.slane %v5615, 7
      %v5618 = vshll.u32 %v5468, 16
      %v5620 = vor.u32 %v5617, %v5618
      %v5621 = vsel %vm5486, %v5613, %v5620
      %v5622 = vrot.slane %v5617, 4
      %v5624 = vshrl.u32 %v5469, 16
      %v5626 = vrot.slane %v5624, 7
      %v5627 = vshll.u32 %v5469, 16
      %v5629 = vor.u32 %v5626, %v5627
      %v5630 = vrot.slane %v5626, 4
      %v5632 = vshrl.u32 %v5470, 16
      %v5634 = vrot.slane %v5632, 7
      %v5635 = vshll.u32 %v5470, 16
      %v5637 = vor.u32 %v5634, %v5635
      %v5638 = vsel %vm5486, %v5630, %v5637
      %v5639 = vrot.slane %v5634, 4
      %v5641 = vshrl.u32 %v5471, 16
      %v5643 = vrot.slane %v5641, 7
      %v5644 = vshll.u32 %v5471, 16
      %v5646 = vor.u32 %v5643, %v5644
      %v5647 = vrot.slane %v5643, 4
      %v5649 = vshrl.u32 %v5472, 16
      %v5651 = vrot.slane %v5649, 7
      %v5652 = vshll.u32 %v5472, 16
      %v5654 = vor.u32 %v5651, %v5652
      %v5655 = vsel %vm5486, %v5647, %v5654
      %v5656 = vrot.slane %v5651, 4
      %v5658 = vshrl.u32 %v5473, 16
      %v5660 = vrot.slane %v5658, 7
      %v5661 = vshll.u32 %v5473, 16
      %v5663 = vor.u32 %v5660, %v5661
      %v5664 = vrot.slane %v5660, 4
      %v5666 = vshrl.u32 %v5474, 16
      %v5668 = vrot.slane %v5666, 7
      %v5669 = vshll.u32 %v5474, 16
      %v5671 = vor.u32 %v5668, %v5669
      %v5672 = vsel %vm5486, %v5664, %v5671
      %v5673 = vrot.slane %v5668, 4
      %v5675 = vshrl.u32 %v5475, 16
      %v5677 = vrot.slane %v5675, 7
      %v5678 = vshll.u32 %v5475, 16
      %v5680 = vor.u32 %v5677, %v5678
      %v5681 = vrot.slane %v5677, 4
      %v5683 = vshrl.u32 %v5476, 16
      %v5685 = vrot.slane %v5683, 7
      %v5686 = vshll.u32 %v5476, 16
      %v5688 = vor.u32 %v5685, %v5686
      %v5689 = vsel %vm5486, %v5681, %v5688
      %v5690 = vrot.slane %v5685, 4
      %v5692 = vshrl.u32 %v5477, 16
      %v5694 = vrot.slane %v5692, 7
      %v5695 = vshll.u32 %v5477, 16
      %v5697 = vor.u32 %v5694, %v5695
      %v5698 = vrot.slane %v5694, 4
      %v5700 = vshrl.u32 %v5478, 16
      %v5702 = vrot.slane %v5700, 7
      %v5703 = vshll.u32 %v5478, 16
      %v5705 = vor.u32 %v5702, %v5703
      %v5706 = vsel %vm5486, %v5698, %v5705
      %v5707 = vrot.slane %v5702, 4
      %v5709 = vshrl.u32 %v5479, 16
      %v5711 = vrot.slane %v5709, 7
      %v5712 = vshll.u32 %v5479, 16
      %v5714 = vor.u32 %v5711, %v5712
      %v5715 = vrot.slane %v5711, 4
      %v5717 = vshrl.u32 %v5480, 16
      %v5719 = vrot.slane %v5717, 7
      %v5720 = vshll.u32 %v5480, 16
      %v5722 = vor.u32 %v5719, %v5720
      %v5723 = vsel %vm5486, %v5715, %v5722
      %v5724 = vrot.slane %v5719, 4
      %v5726 = vshrl.u32 %v5481, 16
      %v5728 = vrot.slane %v5726, 7
      %v5729 = vshll.u32 %v5481, 16
      %v5731 = vor.u32 %v5728, %v5729
      %v5732 = vrot.slane %v5728, 4
      %v5734 = vshrl.u32 %v5482, 16
      %v5736 = vrot.slane %v5734, 7
      %v5737 = vshll.u32 %v5482, 16
      %v5739 = vor.u32 %v5736, %v5737
      %v5740 = vsel %vm5486, %v5732, %v5739
      %v5741 = vrot.slane %v5736, 4
      %v5743 = vshrl.u32 %v5483, 16
      %v5745 = vrot.slane %v5743, 7
      %v5746 = vshll.u32 %v5483, 16
      %v5748 = vor.u32 %v5745, %v5746
      %v5749 = vrot.slane %v5745, 4
      %v5751 = vshrl.u32 %v5484, 16
      %v5753 = vrot.slane %v5751, 7
      %v5754 = vshll.u32 %v5484, 16
      %v5756 = vor.u32 %v5753, %v5754
      %v5757 = vsel %vm5486, %v5749, %v5756
      %v5758 = vrot.slane %v5753, 4
      %vm5807 = vcmask 1043456
      %vm5808 = vmand %vm5807, %vm5339
      %v5809 = vld [vmem:[%s5287] sm:$0xf]
      %v5810 = vsel %vm5808, %v5493, %v5809
      %5811 = vst [vmem:[%s5287] sm:$0xf] %v5810
      %5812 = vst [vmem:[%s5287 + $0x4] sm:$0xf] %v5502
      %v5813 = vld [vmem:[%s5287 + $0x8] sm:$0x1]
      %v5814 = vsel %vm5290, %v5503, %v5813
      %5815 = vst [vmem:[%s5287 + $0x8] sm:$0x1] %v5814
      %v5816 = vld [vmem:[%s5287 + $0xc] sm:$0xf]
      %v5817 = vsel %vm5808, %v5510, %v5816
      %5818 = vst [vmem:[%s5287 + $0xc] sm:$0xf] %v5817
      %5819 = vst [vmem:[%s5287 + $0x10] sm:$0xf] %v5519
      %v5820 = vld [vmem:[%s5287 + $0x14] sm:$0x1]
      %v5821 = vsel %vm5290, %v5520, %v5820
      %5822 = vst [vmem:[%s5287 + $0x14] sm:$0x1] %v5821
      %v5823 = vld [vmem:[%s5287 + $0x18] sm:$0xf]
      %v5824 = vsel %vm5808, %v5527, %v5823
      %5825 = vst [vmem:[%s5287 + $0x18] sm:$0xf] %v5824
      %5826 = vst [vmem:[%s5287 + $0x1c] sm:$0xf] %v5536
      %v5827 = vld [vmem:[%s5287 + $0x20] sm:$0x1]
      %v5828 = vsel %vm5290, %v5537, %v5827
      %5829 = vst [vmem:[%s5287 + $0x20] sm:$0x1] %v5828
      %v5830 = vld [vmem:[%s5287 + $0x24] sm:$0xf]
      %v5831 = vsel %vm5808, %v5544, %v5830
      %5832 = vst [vmem:[%s5287 + $0x24] sm:$0xf] %v5831
      %5833 = vst [vmem:[%s5287 + $0x28] sm:$0xf] %v5553
      %v5834 = vld [vmem:[%s5287 + $0x2c] sm:$0x1]
      %v5835 = vsel %vm5290, %v5554, %v5834
      %5836 = vst [vmem:[%s5287 + $0x2c] sm:$0x1] %v5835
      %v5837 = vld [vmem:[%s5287 + $0x30] sm:$0xf]
      %v5838 = vsel %vm5808, %v5561, %v5837
      %5839 = vst [vmem:[%s5287 + $0x30] sm:$0xf] %v5838
      %5840 = vst [vmem:[%s5287 + $0x34] sm:$0xf] %v5570
      %v5841 = vld [vmem:[%s5287 + $0x38] sm:$0x1]
      %v5842 = vsel %vm5290, %v5571, %v5841
      %5843 = vst [vmem:[%s5287 + $0x38] sm:$0x1] %v5842
      %v5844 = vld [vmem:[%s5287 + $0x3c] sm:$0xf]
      %v5845 = vsel %vm5808, %v5578, %v5844
      %5846 = vst [vmem:[%s5287 + $0x3c] sm:$0xf] %v5845
      %5847 = vst [vmem:[%s5287 + $0x40] sm:$0xf] %v5587
      %v5848 = vld [vmem:[%s5287 + $0x44] sm:$0x1]
      %v5849 = vsel %vm5290, %v5588, %v5848
      %5850 = vst [vmem:[%s5287 + $0x44] sm:$0x1] %v5849
      %v5851 = vld [vmem:[%s5287 + $0x48] sm:$0xf]
      %v5852 = vsel %vm5808, %v5595, %v5851
      %5853 = vst [vmem:[%s5287 + $0x48] sm:$0xf] %v5852
      %5854 = vst [vmem:[%s5287 + $0x4c] sm:$0xf] %v5604
      %v5855 = vld [vmem:[%s5287 + $0x50] sm:$0x1]
      %v5856 = vsel %vm5290, %v5605, %v5855
      %5857 = vst [vmem:[%s5287 + $0x50] sm:$0x1] %v5856
      %v5858 = vld [vmem:[%s5287 + $0x54] sm:$0xf]
      %v5859 = vsel %vm5808, %v5612, %v5858
      %5860 = vst [vmem:[%s5287 + $0x54] sm:$0xf] %v5859
      %5861 = vst [vmem:[%s5287 + $0x58] sm:$0xf] %v5621
      %v5862 = vld [vmem:[%s5287 + $0x5c] sm:$0x1]
      %v5863 = vsel %vm5290, %v5622, %v5862
      %5864 = vst [vmem:[%s5287 + $0x5c] sm:$0x1] %v5863
      %v5865 = vld [vmem:[%s5287 + $0x60] sm:$0xf]
      %v5866 = vsel %vm5808, %v5629, %v5865
      %5867 = vst [vmem:[%s5287 + $0x60] sm:$0xf] %v5866
      %5868 = vst [vmem:[%s5287 + $0x64] sm:$0xf] %v5638
      %v5869 = vld [vmem:[%s5287 + $0x68] sm:$0x1]
      %v5870 = vsel %vm5290, %v5639, %v5869
      %5871 = vst [vmem:[%s5287 + $0x68] sm:$0x1] %v5870
      %v5872 = vld [vmem:[%s5287 + $0x6c] sm:$0xf]
      %v5873 = vsel %vm5808, %v5646, %v5872
      %5874 = vst [vmem:[%s5287 + $0x6c] sm:$0xf] %v5873
      %5875 = vst [vmem:[%s5287 + $0x70] sm:$0xf] %v5655
      %v5876 = vld [vmem:[%s5287 + $0x74] sm:$0x1]
      %v5877 = vsel %vm5290, %v5656, %v5876
      %5878 = vst [vmem:[%s5287 + $0x74] sm:$0x1] %v5877
      %v5879 = vld [vmem:[%s5287 + $0x78] sm:$0xf]
      %v5880 = vsel %vm5808, %v5663, %v5879
      %5881 = vst [vmem:[%s5287 + $0x78] sm:$0xf] %v5880
      %5882 = vst [vmem:[%s5287 + $0x7c] sm:$0xf] %v5672
      %v5883 = vld [vmem:[%s5287 + $0x80] sm:$0x1]
      %v5884 = vsel %vm5290, %v5673, %v5883
      %5885 = vst [vmem:[%s5287 + $0x80] sm:$0x1] %v5884
      %v5886 = vld [vmem:[%s5287 + $0x84] sm:$0xf]
      %v5887 = vsel %vm5808, %v5680, %v5886
      %5888 = vst [vmem:[%s5287 + $0x84] sm:$0xf] %v5887
      %5889 = vst [vmem:[%s5287 + $0x88] sm:$0xf] %v5689
      %v5890 = vld [vmem:[%s5287 + $0x8c] sm:$0x1]
      %v5891 = vsel %vm5290, %v5690, %v5890
      %5892 = vst [vmem:[%s5287 + $0x8c] sm:$0x1] %v5891
      %v5893 = vld [vmem:[%s5287 + $0x90] sm:$0xf]
      %v5894 = vsel %vm5808, %v5697, %v5893
      %5895 = vst [vmem:[%s5287 + $0x90] sm:$0xf] %v5894
      %5896 = vst [vmem:[%s5287 + $0x94] sm:$0xf] %v5706
      %v5897 = vld [vmem:[%s5287 + $0x98] sm:$0x1]
      %v5898 = vsel %vm5290, %v5707, %v5897
      %5899 = vst [vmem:[%s5287 + $0x98] sm:$0x1] %v5898
      %v5900 = vld [vmem:[%s5287 + $0x9c] sm:$0xf]
      %v5901 = vsel %vm5808, %v5714, %v5900
      %5902 = vst [vmem:[%s5287 + $0x9c] sm:$0xf] %v5901
      %5903 = vst [vmem:[%s5287 + $0xa0] sm:$0xf] %v5723
      %v5904 = vld [vmem:[%s5287 + $0xa4] sm:$0x1]
      %v5905 = vsel %vm5290, %v5724, %v5904
      %5906 = vst [vmem:[%s5287 + $0xa4] sm:$0x1] %v5905
      %v5907 = vld [vmem:[%s5287 + $0xa8] sm:$0xf]
      %v5908 = vsel %vm5808, %v5731, %v5907
      %5909 = vst [vmem:[%s5287 + $0xa8] sm:$0xf] %v5908
      %5910 = vst [vmem:[%s5287 + $0xac] sm:$0xf] %v5740
      %v5911 = vld [vmem:[%s5287 + $0xb0] sm:$0x1]
      %v5912 = vsel %vm5290, %v5741, %v5911
      %5913 = vst [vmem:[%s5287 + $0xb0] sm:$0x1] %v5912
      %v5914 = vld [vmem:[%s5287 + $0xb4] sm:$0xf]
      %v5915 = vsel %vm5808, %v5748, %v5914
      %5916 = vst [vmem:[%s5287 + $0xb4] sm:$0xf] %v5915
      %5917 = vst [vmem:[%s5287 + $0xb8] sm:$0xf] %v5757
      %v5918 = vld [vmem:[%s5287 + $0xbc] sm:$0x1]
      %v5919 = vsel %vm5290, %v5758, %v5918
      %5920 = vst [vmem:[%s5287 + $0xbc] sm:$0x1] %v5919
      %v5921 = vld [vmem:[#allocation2] sm:$0xf]
      %v5922 = vld [vmem:[#allocation2 + $0x4] sm:$0xf]
      %v5923 = vld [vmem:[#allocation2 + $0xc] sm:$0xf]
      %v5924 = vld [vmem:[#allocation2 + $0x10] sm:$0xf]
      %v5925 = vld [vmem:[#allocation2 + $0x18] sm:$0xf]
      %v5926 = vld [vmem:[#allocation2 + $0x1c] sm:$0xf]
      %v5927 = vld [vmem:[#allocation2 + $0x24] sm:$0xf]
      %v5928 = vld [vmem:[#allocation2 + $0x28] sm:$0xf]
      %v5929 = vld [vmem:[#allocation2 + $0x30] sm:$0xf]
      %v5930 = vld [vmem:[#allocation2 + $0x34] sm:$0xf]
      %v5931 = vld [vmem:[#allocation2 + $0x3c] sm:$0xf]
      %v5932 = vld [vmem:[#allocation2 + $0x40] sm:$0xf]
      %v5933 = vld [vmem:[#allocation2 + $0x48] sm:$0xf]
      %v5934 = vld [vmem:[#allocation2 + $0x4c] sm:$0xf]
      %v5935 = vld [vmem:[#allocation2 + $0x54] sm:$0xf]
      %v5936 = vld [vmem:[#allocation2 + $0x58] sm:$0xf]
      %v5937 = vld [vmem:[#allocation2 + $0x60] sm:$0xf]
      %v5938 = vld [vmem:[#allocation2 + $0x64] sm:$0xf]
      %v5939 = vld [vmem:[#allocation2 + $0x6c] sm:$0xf]
      %v5940 = vld [vmem:[#allocation2 + $0x70] sm:$0xf]
      %v5941 = vld [vmem:[#allocation2 + $0x78] sm:$0xf]
      %v5942 = vld [vmem:[#allocation2 + $0x7c] sm:$0xf]
      %v5943 = vld [vmem:[#allocation2 + $0x84] sm:$0xf]
      %v5944 = vld [vmem:[#allocation2 + $0x88] sm:$0xf]
      %v5945 = vld [vmem:[#allocation2 + $0x90] sm:$0xf]
      %v5946 = vld [vmem:[#allocation2 + $0x94] sm:$0xf]
      %v5947 = vld [vmem:[#allocation2 + $0x9c] sm:$0xf]
      %v5948 = vld [vmem:[#allocation2 + $0xa0] sm:$0xf]
      %v5949 = vld [vmem:[#allocation2 + $0xa8] sm:$0xf]
      %v5950 = vld [vmem:[#allocation2 + $0xac] sm:$0xf]
      %v5951 = vld [vmem:[#allocation2 + $0xb4] sm:$0xf]
      %v5952 = vld [vmem:[#allocation2 + $0xb8] sm:$0xf]
      %v5953 = vld [vmem:[%s4] sm:$0xf]
      %v5954 = vld [vmem:[%s4 + $0x4] sm:$0xf]
      %v5955 = vld [vmem:[%s4 + $0x8] sm:$0xf]
      %v5956 = vld [vmem:[%s4 + $0xc] sm:$0xf]
      %v5957 = vld [vmem:[%s4 + $0x10] sm:$0xf]
      %v5958 = vld [vmem:[%s4 + $0x14] sm:$0xf]
      %v5959 = vld [vmem:[%s4 + $0x18] sm:$0xf]
      %v5960 = vld [vmem:[%s4 + $0x1c] sm:$0xf]
      %v5961 = vld [vmem:[%s4 + $0x20] sm:$0xf]
      %v5962 = vld [vmem:[%s4 + $0x24] sm:$0xf]
      %v5963 = vld [vmem:[%s4 + $0x28] sm:$0xf]
      %v5964 = vld [vmem:[%s4 + $0x2c] sm:$0xf]
      %v5965 = vld [vmem:[%s4 + $0x30] sm:$0xf]
      %v5966 = vld [vmem:[%s4 + $0x34] sm:$0xf]
      %v5967 = vld [vmem:[%s4 + $0x38] sm:$0xf]
      %v5968 = vld [vmem:[%s4 + $0x3c] sm:$0xf]
      %v5969 = vld [vmem:[#allocation2 + $0x8] sm:$0x1]
      %v5970 = vld [vmem:[#allocation2 + $0x14] sm:$0x1]
      %v5971 = vld [vmem:[#allocation2 + $0x20] sm:$0x1]
      %v5972 = vld [vmem:[#allocation2 + $0x2c] sm:$0x1]
      %v5973 = vld [vmem:[#allocation2 + $0x38] sm:$0x1]
      %v5974 = vld [vmem:[#allocation2 + $0x44] sm:$0x1]
      %v5975 = vld [vmem:[#allocation2 + $0x50] sm:$0x1]
      %v5976 = vld [vmem:[#allocation2 + $0x5c] sm:$0x1]
      %v5977 = vld [vmem:[#allocation2 + $0x68] sm:$0x1]
      %v5978 = vld [vmem:[#allocation2 + $0x74] sm:$0x1]
      %v5979 = vld [vmem:[#allocation2 + $0x80] sm:$0x1]
      %v5980 = vld [vmem:[#allocation2 + $0x8c] sm:$0x1]
      %v5981 = vld [vmem:[#allocation2 + $0x98] sm:$0x1]
      %v5982 = vld [vmem:[#allocation2 + $0xa4] sm:$0x1]
      %v5983 = vld [vmem:[#allocation2 + $0xb0] sm:$0x1]
      %v5984 = vld [vmem:[#allocation2 + $0xbc] sm:$0x1]
      %v5986 = vshrl.u32 %v5921, 16
      %v5988 = vrot.slane %v5986, 4
      %v5989 = vshll.u32 %v5921, 16
      %v5991 = vrot.slane %v5989, 5
      %v5992 = vor.u32 %v5988, %v5991
      %v5993 = vrot.slane %v5992, 4
      %v5995 = vshll.u32 %v5922, 16
      %v5997 = vrot.slane %v5995, 5
      %v5998 = vsel %vm427, %v5993, %v5997
      %v5999 = vshrl.u32 %v5922, 16
      %v6001 = vrot.slane %v5999, 4
      %v6002 = vor.u32 %v6001, %v5997
      %v6003 = vrot.slane %v6002, 4
      %v6005 = vshll.u32 %v5969, 16
      %v6007 = vrot.slane %v6005, 5
      %v6008 = vsel %vm427, %v6003, %v6007
      %v6010 = vshrl.u32 %v5923, 16
      %v6012 = vrot.slane %v6010, 4
      %v6013 = vshll.u32 %v5923, 16
      %v6015 = vrot.slane %v6013, 5
      %v6016 = vor.u32 %v6012, %v6015
      %v6017 = vrot.slane %v6016, 4
      %v6019 = vshll.u32 %v5924, 16
      %v6021 = vrot.slane %v6019, 5
      %v6022 = vsel %vm427, %v6017, %v6021
      %v6023 = vshrl.u32 %v5924, 16
      %v6025 = vrot.slane %v6023, 4
      %v6026 = vor.u32 %v6025, %v6021
      %v6027 = vrot.slane %v6026, 4
      %v6029 = vshll.u32 %v5970, 16
      %v6031 = vrot.slane %v6029, 5
      %v6032 = vsel %vm427, %v6027, %v6031
      %v6034 = vshrl.u32 %v5925, 16
      %v6036 = vrot.slane %v6034, 4
      %v6037 = vshll.u32 %v5925, 16
      %v6039 = vrot.slane %v6037, 5
      %v6040 = vor.u32 %v6036, %v6039
      %v6041 = vrot.slane %v6040, 4
      %v6043 = vshll.u32 %v5926, 16
      %v6045 = vrot.slane %v6043, 5
      %v6046 = vsel %vm427, %v6041, %v6045
      %v6047 = vshrl.u32 %v5926, 16
      %v6049 = vrot.slane %v6047, 4
      %v6050 = vor.u32 %v6049, %v6045
      %v6051 = vrot.slane %v6050, 4
      %v6053 = vshll.u32 %v5971, 16
      %v6055 = vrot.slane %v6053, 5
      %v6056 = vsel %vm427, %v6051, %v6055
      %v6058 = vshrl.u32 %v5927, 16
      %v6060 = vrot.slane %v6058, 4
      %v6061 = vshll.u32 %v5927, 16
      %v6063 = vrot.slane %v6061, 5
      %v6064 = vor.u32 %v6060, %v6063
      %v6065 = vrot.slane %v6064, 4
      %v6067 = vshll.u32 %v5928, 16
      %v6069 = vrot.slane %v6067, 5
      %v6070 = vsel %vm427, %v6065, %v6069
      %v6071 = vshrl.u32 %v5928, 16
      %v6073 = vrot.slane %v6071, 4
      %v6074 = vor.u32 %v6073, %v6069
      %v6075 = vrot.slane %v6074, 4
      %v6077 = vshll.u32 %v5972, 16
      %v6079 = vrot.slane %v6077, 5
      %v6080 = vsel %vm427, %v6075, %v6079
      %v6082 = vshrl.u32 %v5929, 16
      %v6084 = vrot.slane %v6082, 4
      %v6085 = vshll.u32 %v5929, 16
      %v6087 = vrot.slane %v6085, 5
      %v6088 = vor.u32 %v6084, %v6087
      %v6089 = vrot.slane %v6088, 4
      %v6091 = vshll.u32 %v5930, 16
      %v6093 = vrot.slane %v6091, 5
      %v6094 = vsel %vm427, %v6089, %v6093
      %v6095 = vshrl.u32 %v5930, 16
      %v6097 = vrot.slane %v6095, 4
      %v6098 = vor.u32 %v6097, %v6093
      %v6099 = vrot.slane %v6098, 4
      %v6101 = vshll.u32 %v5973, 16
      %v6103 = vrot.slane %v6101, 5
      %v6104 = vsel %vm427, %v6099, %v6103
      %v6106 = vshrl.u32 %v5931, 16
      %v6108 = vrot.slane %v6106, 4
      %v6109 = vshll.u32 %v5931, 16
      %v6111 = vrot.slane %v6109, 5
      %v6112 = vor.u32 %v6108, %v6111
      %v6113 = vrot.slane %v6112, 4
      %v6115 = vshll.u32 %v5932, 16
      %v6117 = vrot.slane %v6115, 5
      %v6118 = vsel %vm427, %v6113, %v6117
      %v6119 = vshrl.u32 %v5932, 16
      %v6121 = vrot.slane %v6119, 4
      %v6122 = vor.u32 %v6121, %v6117
      %v6123 = vrot.slane %v6122, 4
      %v6125 = vshll.u32 %v5974, 16
      %v6127 = vrot.slane %v6125, 5
      %v6128 = vsel %vm427, %v6123, %v6127
      %v6130 = vshrl.u32 %v5933, 16
      %v6132 = vrot.slane %v6130, 4
      %v6133 = vshll.u32 %v5933, 16
      %v6135 = vrot.slane %v6133, 5
      %v6136 = vor.u32 %v6132, %v6135
      %v6137 = vrot.slane %v6136, 4
      %v6139 = vshll.u32 %v5934, 16
      %v6141 = vrot.slane %v6139, 5
      %v6142 = vsel %vm427, %v6137, %v6141
      %v6143 = vshrl.u32 %v5934, 16
      %v6145 = vrot.slane %v6143, 4
      %v6146 = vor.u32 %v6145, %v6141
      %v6147 = vrot.slane %v6146, 4
      %v6149 = vshll.u32 %v5975, 16
      %v6151 = vrot.slane %v6149, 5
      %v6152 = vsel %vm427, %v6147, %v6151
      %v6154 = vshrl.u32 %v5935, 16
      %v6156 = vrot.slane %v6154, 4
      %v6157 = vshll.u32 %v5935, 16
      %v6159 = vrot.slane %v6157, 5
      %v6160 = vor.u32 %v6156, %v6159
      %v6161 = vrot.slane %v6160, 4
      %v6163 = vshll.u32 %v5936, 16
      %v6165 = vrot.slane %v6163, 5
      %v6166 = vsel %vm427, %v6161, %v6165
      %v6167 = vshrl.u32 %v5936, 16
      %v6169 = vrot.slane %v6167, 4
      %v6170 = vor.u32 %v6169, %v6165
      %v6171 = vrot.slane %v6170, 4
      %v6173 = vshll.u32 %v5976, 16
      %v6175 = vrot.slane %v6173, 5
      %v6176 = vsel %vm427, %v6171, %v6175
      %v6178 = vshrl.u32 %v5937, 16
      %v6180 = vrot.slane %v6178, 4
      %v6181 = vshll.u32 %v5937, 16
      %v6183 = vrot.slane %v6181, 5
      %v6184 = vor.u32 %v6180, %v6183
      %v6185 = vrot.slane %v6184, 4
      %v6187 = vshll.u32 %v5938, 16
      %v6189 = vrot.slane %v6187, 5
      %v6190 = vsel %vm427, %v6185, %v6189
      %v6191 = vshrl.u32 %v5938, 16
      %v6193 = vrot.slane %v6191, 4
      %v6194 = vor.u32 %v6193, %v6189
      %v6195 = vrot.slane %v6194, 4
      %v6197 = vshll.u32 %v5977, 16
      %v6199 = vrot.slane %v6197, 5
      %v6200 = vsel %vm427, %v6195, %v6199
      %v6202 = vshrl.u32 %v5939, 16
      %v6204 = vrot.slane %v6202, 4
      %v6205 = vshll.u32 %v5939, 16
      %v6207 = vrot.slane %v6205, 5
      %v6208 = vor.u32 %v6204, %v6207
      %v6209 = vrot.slane %v6208, 4
      %v6211 = vshll.u32 %v5940, 16
      %v6213 = vrot.slane %v6211, 5
      %v6214 = vsel %vm427, %v6209, %v6213
      %v6215 = vshrl.u32 %v5940, 16
      %v6217 = vrot.slane %v6215, 4
      %v6218 = vor.u32 %v6217, %v6213
      %v6219 = vrot.slane %v6218, 4
      %v6221 = vshll.u32 %v5978, 16
      %v6223 = vrot.slane %v6221, 5
      %v6224 = vsel %vm427, %v6219, %v6223
      %v6226 = vshrl.u32 %v5941, 16
      %v6228 = vrot.slane %v6226, 4
      %v6229 = vshll.u32 %v5941, 16
      %v6231 = vrot.slane %v6229, 5
      %v6232 = vor.u32 %v6228, %v6231
      %v6233 = vrot.slane %v6232, 4
      %v6235 = vshll.u32 %v5942, 16
      %v6237 = vrot.slane %v6235, 5
      %v6238 = vsel %vm427, %v6233, %v6237
      %v6239 = vshrl.u32 %v5942, 16
      %v6241 = vrot.slane %v6239, 4
      %v6242 = vor.u32 %v6241, %v6237
      %v6243 = vrot.slane %v6242, 4
      %v6245 = vshll.u32 %v5979, 16
      %v6247 = vrot.slane %v6245, 5
      %v6248 = vsel %vm427, %v6243, %v6247
      %v6250 = vshrl.u32 %v5943, 16
      %v6252 = vrot.slane %v6250, 4
      %v6253 = vshll.u32 %v5943, 16
      %v6255 = vrot.slane %v6253, 5
      %v6256 = vor.u32 %v6252, %v6255
      %v6257 = vrot.slane %v6256, 4
      %v6259 = vshll.u32 %v5944, 16
      %v6261 = vrot.slane %v6259, 5
      %v6262 = vsel %vm427, %v6257, %v6261
      %v6263 = vshrl.u32 %v5944, 16
      %v6265 = vrot.slane %v6263, 4
      %v6266 = vor.u32 %v6265, %v6261
      %v6267 = vrot.slane %v6266, 4
      %v6269 = vshll.u32 %v5980, 16
      %v6271 = vrot.slane %v6269, 5
      %v6272 = vsel %vm427, %v6267, %v6271
      %v6274 = vshrl.u32 %v5945, 16
      %v6276 = vrot.slane %v6274, 4
      %v6277 = vshll.u32 %v5945, 16
      %v6279 = vrot.slane %v6277, 5
      %v6280 = vor.u32 %v6276, %v6279
      %v6281 = vrot.slane %v6280, 4
      %v6283 = vshll.u32 %v5946, 16
      %v6285 = vrot.slane %v6283, 5
      %v6286 = vsel %vm427, %v6281, %v6285
      %v6287 = vshrl.u32 %v5946, 16
      %v6289 = vrot.slane %v6287, 4
      %v6290 = vor.u32 %v6289, %v6285
      %v6291 = vrot.slane %v6290, 4
      %v6293 = vshll.u32 %v5981, 16
      %v6295 = vrot.slane %v6293, 5
      %v6296 = vsel %vm427, %v6291, %v6295
      %v6298 = vshrl.u32 %v5947, 16
      %v6300 = vrot.slane %v6298, 4
      %v6301 = vshll.u32 %v5947, 16
      %v6303 = vrot.slane %v6301, 5
      %v6304 = vor.u32 %v6300, %v6303
      %v6305 = vrot.slane %v6304, 4
      %v6307 = vshll.u32 %v5948, 16
      %v6309 = vrot.slane %v6307, 5
      %v6310 = vsel %vm427, %v6305, %v6309
      %v6311 = vshrl.u32 %v5948, 16
      %v6313 = vrot.slane %v6311, 4
      %v6314 = vor.u32 %v6313, %v6309
      %v6315 = vrot.slane %v6314, 4
      %v6317 = vshll.u32 %v5982, 16
      %v6319 = vrot.slane %v6317, 5
      %v6320 = vsel %vm427, %v6315, %v6319
      %v6322 = vshrl.u32 %v5949, 16
      %v6324 = vrot.slane %v6322, 4
      %v6325 = vshll.u32 %v5949, 16
      %v6327 = vrot.slane %v6325, 5
      %v6328 = vor.u32 %v6324, %v6327
      %v6329 = vrot.slane %v6328, 4
      %v6331 = vshll.u32 %v5950, 16
      %v6333 = vrot.slane %v6331, 5
      %v6334 = vsel %vm427, %v6329, %v6333
      %v6335 = vshrl.u32 %v5950, 16
      %v6337 = vrot.slane %v6335, 4
      %v6338 = vor.u32 %v6337, %v6333
      %v6339 = vrot.slane %v6338, 4
      %v6341 = vshll.u32 %v5983, 16
      %v6343 = vrot.slane %v6341, 5
      %v6344 = vsel %vm427, %v6339, %v6343
      %v6346 = vshrl.u32 %v5951, 16
      %v6348 = vrot.slane %v6346, 4
      %v6349 = vshll.u32 %v5951, 16
      %v6351 = vrot.slane %v6349, 5
      %v6352 = vor.u32 %v6348, %v6351
      %v6353 = vrot.slane %v6352, 4
      %v6355 = vshll.u32 %v5952, 16
      %v6357 = vrot.slane %v6355, 5
      %v6358 = vsel %vm427, %v6353, %v6357
      %v6359 = vshrl.u32 %v5952, 16
      %v6361 = vrot.slane %v6359, 4
      %v6362 = vor.u32 %v6361, %v6357
      %v6363 = vrot.slane %v6362, 4
      %v6365 = vshll.u32 %v5984, 16
      %v6367 = vrot.slane %v6365, 5
      %v6368 = vsel %vm427, %v6363, %v6367
      %s6369 = scalar_lea.vmem %s4, 64
      %v6370 = vld [vmem:[%s6369] sm:$0xf]
      %v6371 = vld [vmem:[%s6369 + $0x4] sm:$0xf]
      %v6372 = vld [vmem:[%s6369 + $0x8] sm:$0xf]
      %v6373 = vld [vmem:[%s6369 + $0xc] sm:$0xf]
      %v6374 = vld [vmem:[%s6369 + $0x10] sm:$0xf]
      %v6375 = vld [vmem:[%s6369 + $0x14] sm:$0xf]
      %v6376 = vld [vmem:[%s6369 + $0x18] sm:$0xf]
      %v6377 = vld [vmem:[%s6369 + $0x1c] sm:$0xf]
      %v6378 = vld [vmem:[%s6369 + $0x20] sm:$0xf]
      %v6379 = vld [vmem:[%s6369 + $0x24] sm:$0xf]
      %v6380 = vld [vmem:[%s6369 + $0x28] sm:$0xf]
      %v6381 = vld [vmem:[%s6369 + $0x2c] sm:$0xf]
      %v6382 = vld [vmem:[%s6369 + $0x30] sm:$0xf]
      %v6383 = vld [vmem:[%s6369 + $0x34] sm:$0xf]
      %v6384 = vld [vmem:[%s6369 + $0x38] sm:$0xf]
      %v6385 = vld [vmem:[%s6369 + $0x3c] sm:$0xf]
      %v6386 = vunpack.c.l.b16 %v5998
      %v6387 = vunpack.c.l.b16 %v6008
      %v6388 = vunpack.c.l.b16 %v6022
      %v6389 = vunpack.c.l.b16 %v6032
      %v6390 = vunpack.c.l.b16 %v6046
      %v6391 = vunpack.c.l.b16 %v6056
      %v6392 = vunpack.c.l.b16 %v6070
      %v6393 = vunpack.c.l.b16 %v6080
      %v6394 = vunpack.c.l.b16 %v6094
      %v6395 = vunpack.c.l.b16 %v6104
      %v6396 = vunpack.c.l.b16 %v6118
      %v6397 = vunpack.c.l.b16 %v6128
      %v6398 = vunpack.c.l.b16 %v6142
      %v6399 = vunpack.c.l.b16 %v6152
      %v6400 = vunpack.c.l.b16 %v6166
      %v6401 = vunpack.c.l.b16 %v6176
      %v6402 = vunpack.c.l.b16 %v6190
      %v6403 = vunpack.c.l.b16 %v6200
      %v6404 = vunpack.c.l.b16 %v6214
      %v6405 = vunpack.c.l.b16 %v6224
      %v6406 = vunpack.c.l.b16 %v6238
      %v6407 = vunpack.c.l.b16 %v6248
      %v6408 = vunpack.c.l.b16 %v6262
      %v6409 = vunpack.c.l.b16 %v6272
      %v6410 = vunpack.c.l.b16 %v6286
      %v6411 = vunpack.c.l.b16 %v6296
      %v6412 = vunpack.c.l.b16 %v6310
      %v6413 = vunpack.c.l.b16 %v6320
      %v6414 = vunpack.c.l.b16 %v6334
      %v6415 = vunpack.c.l.b16 %v6344
      %v6416 = vunpack.c.l.b16 %v6358
      %v6417 = vunpack.c.l.b16 %v6368
      %v6418 = vpack.c.b16 %v6387, %v6386
      %v6419 = vpack.c.b16 %v6389, %v6388
      %v6420 = vpack.c.b16 %v6391, %v6390
      %v6421 = vpack.c.b16 %v6393, %v6392
      %v6422 = vpack.c.b16 %v6395, %v6394
      %v6423 = vpack.c.b16 %v6397, %v6396
      %v6424 = vpack.c.b16 %v6399, %v6398
      %v6425 = vpack.c.b16 %v6401, %v6400
      %v6426 = vpack.c.b16 %v6403, %v6402
      %v6427 = vpack.c.b16 %v6405, %v6404
      %v6428 = vpack.c.b16 %v6407, %v6406
      %v6429 = vpack.c.b16 %v6409, %v6408
      %v6430 = vpack.c.b16 %v6411, %v6410
      %v6431 = vpack.c.b16 %v6413, %v6412
      %v6432 = vpack.c.b16 %v6415, %v6414
      %v6433 = vpack.c.b16 %v6417, %v6416
      %v6466 = vunpack.c.l.b16 %v6370
      %v6467 = vunpack.c.l.b16 %v6371
      %v6468 = vunpack.c.l.b16 %v6372
      %v6469 = vunpack.c.l.b16 %v6373
      %v6470 = vunpack.c.l.b16 %v6374
      %v6471 = vunpack.c.l.b16 %v6375
      %v6472 = vunpack.c.l.b16 %v6376
      %v6473 = vunpack.c.l.b16 %v6377
      %v6474 = vunpack.c.l.b16 %v6378
      %v6475 = vunpack.c.l.b16 %v6379
      %v6476 = vunpack.c.l.b16 %v6380
      %v6477 = vunpack.c.l.b16 %v6381
      %v6478 = vunpack.c.l.b16 %v6382
      %v6479 = vunpack.c.l.b16 %v6383
      %v6480 = vunpack.c.l.b16 %v6384
      %v6481 = vunpack.c.l.b16 %v6385
      %v6482 = vpack.c.b16 %v6467, %v6466
      %v6483 = vpack.c.b16 %v6469, %v6468
      %v6484 = vpack.c.b16 %v6471, %v6470
      %v6485 = vpack.c.b16 %v6473, %v6472
      %v6486 = vpack.c.b16 %v6475, %v6474
      %v6487 = vpack.c.b16 %v6477, %v6476
      %v6488 = vpack.c.b16 %v6479, %v6478
      %v6489 = vpack.c.b16 %v6481, %v6480
      %6498 = vmatprep.subr.bf16.mxu0 0
      %6499 = vmatpush1.bf16.msra.mxu0 %v6482
      %6500 = vmatprep.subr.bf16.mxu0 0
      %6501 = vmatpush1.bf16.msra.mxu0 %v6483
      %6502 = vmatprep.subr.bf16.mxu0 0
      %6503 = vmatpush1.bf16.msra.mxu0 %v6484
      %6504 = vmatprep.subr.bf16.mxu0 0
      %6505 = vmatpush1.bf16.msra.mxu0 %v6485
      %6506 = vmatprep.subr.bf16.mxu0 0
      %6507 = vmatpush1.bf16.msra.mxu0 %v6486
      %6508 = vmatprep.subr.bf16.mxu0 0
      %6509 = vmatpush1.bf16.msra.mxu0 %v6487
      %6510 = vmatprep.subr.bf16.mxu0 0
      %6511 = vmatpush1.bf16.msra.mxu0 %v6488
      %6512 = vmatprep.subr.bf16.mxu0 0
      %6513 = vmatpush1.bf16.msra.mxu0 %v6489
      %6514 = vmatprep.subr.bf16.mxu0 0
      %6515 = vmatpush1.bf16.msra.mxu0 0
      %6516 = vmatprep.subr.bf16.mxu0 0
      %6517 = vmatpush1.bf16.msra.mxu0 0
      %6518 = vmatprep.subr.bf16.mxu0 0
      %6519 = vmatpush1.bf16.msra.mxu0 0
      %6520 = vmatprep.subr.bf16.mxu0 0
      %6521 = vmatpush1.bf16.msra.mxu0 0
      %6522 = vmatprep.subr.bf16.mxu0 0
      %6523 = vmatpush1.bf16.msra.mxu0 0
      %6524 = vmatprep.subr.bf16.mxu0 0
      %6525 = vmatpush1.bf16.msra.mxu0 0
      %6526 = vmatprep.subr.bf16.mxu0 0
      %6527 = vmatpush1.bf16.msra.mxu0 0
      %6528 = vmatprep.subr.bf16.mxu0 0
      %6529 = vmatpush1.bf16.msra.mxu0 0
      %6530 = vmatprep.mubr.bf16.mxu0 0
      %6531 = vmatmul.mubr.bf16.gmra.mrb[0].mxu0 %v6418
      %v6532 = vpop.f32.mrb[0].mxu0
      %v6533 = vadd.f32 0.0, %v6532
      %v6534 = vpop.f32.mrb[0].mxu0
      %v6535 = vpop.f32.mrb[0].mxu0
      %v6536 = vadd.f32 0.0, %v6535
      %v6537 = vpop.f32.mrb[0].mxu0
      %6538 = vmatprep.mubr.bf16.mxu0 0
      %6539 = vmatmul.mubr.bf16.gmra.mrb[0].mxu0 %v6419
      %v6540 = vpop.f32.mrb[0].mxu0
      %v6541 = vadd.f32 0.0, %v6540
      %v6542 = vpop.f32.mrb[0].mxu0
      %v6543 = vpop.f32.mrb[0].mxu0
      %v6544 = vadd.f32 0.0, %v6543
      %v6545 = vpop.f32.mrb[0].mxu0
      %6546 = vmatprep.mubr.bf16.mxu0 0
      %6547 = vmatmul.mubr.bf16.gmra.mrb[0].mxu0 %v6420
      %v6548 = vpop.f32.mrb[0].mxu0
      %v6549 = vadd.f32 0.0, %v6548
      %v6550 = vpop.f32.mrb[0].mxu0
      %v6551 = vpop.f32.mrb[0].mxu0
      %v6552 = vadd.f32 0.0, %v6551
      %v6553 = vpop.f32.mrb[0].mxu0
      %6554 = vmatprep.mubr.bf16.mxu0 0
      %6555 = vmatmul.mubr.bf16.gmra.mrb[0].mxu0 %v6421
      %v6556 = vpop.f32.mrb[0].mxu0
      %v6557 = vadd.f32 0.0, %v6556
      %v6558 = vpop.f32.mrb[0].mxu0
      %v6559 = vpop.f32.mrb[0].mxu0
      %v6560 = vadd.f32 0.0, %v6559
      %v6561 = vpop.f32.mrb[0].mxu0
      %6562 = vmatprep.mubr.bf16.mxu0 0
      %6563 = vmatmul.mubr.bf16.gmra.mrb[0].mxu0 %v6422
      %v6564 = vpop.f32.mrb[0].mxu0
      %v6565 = vadd.f32 0.0, %v6564
      %v6566 = vpop.f32.mrb[0].mxu0
      %v6567 = vpop.f32.mrb[0].mxu0
      %v6568 = vadd.f32 0.0, %v6567
      %v6569 = vpop.f32.mrb[0].mxu0
      %6570 = vmatprep.mubr.bf16.mxu0 0
      %6571 = vmatmul.mubr.bf16.gmra.mrb[0].mxu0 %v6423
      %v6572 = vpop.f32.mrb[0].mxu0
      %v6573 = vadd.f32 0.0, %v6572
      %v6574 = vpop.f32.mrb[0].mxu0
      %v6575 = vpop.f32.mrb[0].mxu0
      %v6576 = vadd.f32 0.0, %v6575
      %v6577 = vpop.f32.mrb[0].mxu0
      %6578 = vmatprep.mubr.bf16.mxu0 0
      %6579 = vmatmul.mubr.bf16.gmra.mrb[0].mxu0 %v6424
      %v6580 = vpop.f32.mrb[0].mxu0
      %v6581 = vadd.f32 0.0, %v6580
      %v6582 = vpop.f32.mrb[0].mxu0
      %v6583 = vpop.f32.mrb[0].mxu0
      %v6584 = vadd.f32 0.0, %v6583
      %v6585 = vpop.f32.mrb[0].mxu0
      %6586 = vmatprep.mubr.bf16.mxu0 0
      %6587 = vmatmul.mubr.bf16.gmra.mrb[0].mxu0 %v6425
      %v6588 = vpop.f32.mrb[0].mxu0
      %v6589 = vadd.f32 0.0, %v6588
      %v6590 = vpop.f32.mrb[0].mxu0
      %v6591 = vpop.f32.mrb[0].mxu0
      %v6592 = vadd.f32 0.0, %v6591
      %v6593 = vpop.f32.mrb[0].mxu0
      %6594 = vmatprep.mubr.bf16.mxu0 0
      %6595 = vmatmul.mubr.bf16.gmra.mrb[0].mxu0 %v6426
      %v6596 = vpop.f32.mrb[0].mxu0
      %v6597 = vadd.f32 0.0, %v6596
      %v6598 = vpop.f32.mrb[0].mxu0
      %v6599 = vpop.f32.mrb[0].mxu0
      %v6600 = vadd.f32 0.0, %v6599
      %v6601 = vpop.f32.mrb[0].mxu0
      %6602 = vmatprep.mubr.bf16.mxu0 0
      %6603 = vmatmul.mubr.bf16.gmra.mrb[0].mxu0 %v6427
      %v6604 = vpop.f32.mrb[0].mxu0
      %v6605 = vadd.f32 0.0, %v6604
      %v6606 = vpop.f32.mrb[0].mxu0
      %v6607 = vpop.f32.mrb[0].mxu0
      %v6608 = vadd.f32 0.0, %v6607
      %v6609 = vpop.f32.mrb[0].mxu0
      %6610 = vmatprep.mubr.bf16.mxu0 0
      %6611 = vmatmul.mubr.bf16.gmra.mrb[0].mxu0 %v6428
      %v6612 = vpop.f32.mrb[0].mxu0
      %v6613 = vadd.f32 0.0, %v6612
      %v6614 = vpop.f32.mrb[0].mxu0
      %v6615 = vpop.f32.mrb[0].mxu0
      %v6616 = vadd.f32 0.0, %v6615
      %v6617 = vpop.f32.mrb[0].mxu0
      %6618 = vmatprep.mubr.bf16.mxu0 0
      %6619 = vmatmul.mubr.bf16.gmra.mrb[0].mxu0 %v6429
      %v6620 = vpop.f32.mrb[0].mxu0
      %v6621 = vadd.f32 0.0, %v6620
      %v6622 = vpop.f32.mrb[0].mxu0
      %v6623 = vpop.f32.mrb[0].mxu0
      %v6624 = vadd.f32 0.0, %v6623
      %v6625 = vpop.f32.mrb[0].mxu0
      %6626 = vmatprep.mubr.bf16.mxu0 0
      %6627 = vmatmul.mubr.bf16.gmra.mrb[0].mxu0 %v6430
      %v6628 = vpop.f32.mrb[0].mxu0
      %v6629 = vadd.f32 0.0, %v6628
      %v6630 = vpop.f32.mrb[0].mxu0
      %v6631 = vpop.f32.mrb[0].mxu0
      %v6632 = vadd.f32 0.0, %v6631
      %v6633 = vpop.f32.mrb[0].mxu0
      %6634 = vmatprep.mubr.bf16.mxu0 0
      %6635 = vmatmul.mubr.bf16.gmra.mrb[0].mxu0 %v6431
      %v6636 = vpop.f32.mrb[0].mxu0
      %v6637 = vadd.f32 0.0, %v6636
      %v6638 = vpop.f32.mrb[0].mxu0
      %v6639 = vpop.f32.mrb[0].mxu0
      %v6640 = vadd.f32 0.0, %v6639
      %v6641 = vpop.f32.mrb[0].mxu0
      %6642 = vmatprep.mubr.bf16.mxu0 0
      %6643 = vmatmul.mubr.bf16.gmra.mrb[0].mxu0 %v6432
      %v6644 = vpop.f32.mrb[0].mxu0
      %v6645 = vadd.f32 0.0, %v6644
      %v6646 = vpop.f32.mrb[0].mxu0
      %v6647 = vpop.f32.mrb[0].mxu0
      %v6648 = vadd.f32 0.0, %v6647
      %v6649 = vpop.f32.mrb[0].mxu0
      %6650 = vmatprep.mubr.bf16.mxu0 0
      %6651 = vmatmul.mubr.bf16.gmra.mrb[0].mxu0 %v6433
      %v6652 = vpop.f32.mrb[0].mxu0
      %v6653 = vadd.f32 0.0, %v6652
      %v6654 = vpop.f32.mrb[0].mxu0
      %v6655 = vpop.f32.mrb[0].mxu0
      %v6656 = vadd.f32 0.0, %v6655
      %v6657 = vpop.f32.mrb[0].mxu0
      %6658 = vdwg.mxu0
      %v6691 = vunpack.c.l.b16 %v5921
      %v6692 = vunpack.c.l.b16 %v5922
      %v6693 = vunpack.c.l.b16 %v5923
      %v6694 = vunpack.c.l.b16 %v5924
      %v6695 = vunpack.c.l.b16 %v5925
      %v6696 = vunpack.c.l.b16 %v5926
      %v6697 = vunpack.c.l.b16 %v5927
      %v6698 = vunpack.c.l.b16 %v5928
      %v6699 = vunpack.c.l.b16 %v5929
      %v6700 = vunpack.c.l.b16 %v5930
      %v6701 = vunpack.c.l.b16 %v5931
      %v6702 = vunpack.c.l.b16 %v5932
      %v6703 = vunpack.c.l.b16 %v5933
      %v6704 = vunpack.c.l.b16 %v5934
      %v6705 = vunpack.c.l.b16 %v5935
      %v6706 = vunpack.c.l.b16 %v5936
      %v6707 = vunpack.c.l.b16 %v5937
      %v6708 = vunpack.c.l.b16 %v5938
      %v6709 = vunpack.c.l.b16 %v5939
      %v6710 = vunpack.c.l.b16 %v5940
      %v6711 = vunpack.c.l.b16 %v5941
      %v6712 = vunpack.c.l.b16 %v5942
      %v6713 = vunpack.c.l.b16 %v5943
      %v6714 = vunpack.c.l.b16 %v5944
      %v6715 = vunpack.c.l.b16 %v5945
      %v6716 = vunpack.c.l.b16 %v5946
      %v6717 = vunpack.c.l.b16 %v5947
      %v6718 = vunpack.c.l.b16 %v5948
      %v6719 = vunpack.c.l.b16 %v5949
      %v6720 = vunpack.c.l.b16 %v5950
      %v6721 = vunpack.c.l.b16 %v5951
      %v6722 = vunpack.c.l.b16 %v5952
      %v6723 = vpack.c.b16 %v6692, %v6691
      %v6724 = vpack.c.b16 %v6694, %v6693
      %v6725 = vpack.c.b16 %v6696, %v6695
      %v6726 = vpack.c.b16 %v6698, %v6697
      %v6727 = vpack.c.b16 %v6700, %v6699
      %v6728 = vpack.c.b16 %v6702, %v6701
      %v6729 = vpack.c.b16 %v6704, %v6703
      %v6730 = vpack.c.b16 %v6706, %v6705
      %v6731 = vpack.c.b16 %v6708, %v6707
      %v6732 = vpack.c.b16 %v6710, %v6709
      %v6733 = vpack.c.b16 %v6712, %v6711
      %v6734 = vpack.c.b16 %v6714, %v6713
      %v6735 = vpack.c.b16 %v6716, %v6715
      %v6736 = vpack.c.b16 %v6718, %v6717
      %v6737 = vpack.c.b16 %v6720, %v6719
      %v6738 = vpack.c.b16 %v6722, %v6721
      %v6771 = vunpack.c.l.b16 %v5953
      %v6772 = vunpack.c.l.b16 %v5954
      %v6773 = vunpack.c.l.b16 %v5955
      %v6774 = vunpack.c.l.b16 %v5956
      %v6775 = vunpack.c.l.b16 %v5957
      %v6776 = vunpack.c.l.b16 %v5958
      %v6777 = vunpack.c.l.b16 %v5959
      %v6778 = vunpack.c.l.b16 %v5960
      %v6779 = vunpack.c.l.b16 %v5961
      %v6780 = vunpack.c.l.b16 %v5962
      %v6781 = vunpack.c.l.b16 %v5963
      %v6782 = vunpack.c.l.b16 %v5964
      %v6783 = vunpack.c.l.b16 %v5965
      %v6784 = vunpack.c.l.b16 %v5966
      %v6785 = vunpack.c.l.b16 %v5967
      %v6786 = vunpack.c.l.b16 %v5968
      %v6787 = vpack.c.b16 %v6772, %v6771
      %v6788 = vpack.c.b16 %v6774, %v6773
      %v6789 = vpack.c.b16 %v6776, %v6775
      %v6790 = vpack.c.b16 %v6778, %v6777
      %v6791 = vpack.c.b16 %v6780, %v6779
      %v6792 = vpack.c.b16 %v6782, %v6781
      %v6793 = vpack.c.b16 %v6784, %v6783
      %v6794 = vpack.c.b16 %v6786, %v6785
      %6803 = vmatprep.subr.bf16.mxu0 0
      %6804 = vmatpush1.bf16.msra.mxu0 %v6787
      %6805 = vmatprep.subr.bf16.mxu0 0
      %6806 = vmatpush1.bf16.msra.mxu0 %v6788
      %6807 = vmatprep.subr.bf16.mxu0 0
      %6808 = vmatpush1.bf16.msra.mxu0 %v6789
      %6809 = vmatprep.subr.bf16.mxu0 0
      %6810 = vmatpush1.bf16.msra.mxu0 %v6790
      %6811 = vmatprep.subr.bf16.mxu0 0
      %6812 = vmatpush1.bf16.msra.mxu0 %v6791
      %6813 = vmatprep.subr.bf16.mxu0 0
      %6814 = vmatpush1.bf16.msra.mxu0 %v6792
      %6815 = vmatprep.subr.bf16.mxu0 0
      %6816 = vmatpush1.bf16.msra.mxu0 %v6793
      %6817 = vmatprep.subr.bf16.mxu0 0
      %6818 = vmatpush1.bf16.msra.mxu0 %v6794
      %6819 = vmatprep.subr.bf16.mxu0 0
      %6820 = vmatpush1.bf16.msra.mxu0 0
      %6821 = vmatprep.subr.bf16.mxu0 0
      %6822 = vmatpush1.bf16.msra.mxu0 0
      %6823 = vmatprep.subr.bf16.mxu0 0
      %6824 = vmatpush1.bf16.msra.mxu0 0
      %6825 = vmatprep.subr.bf16.mxu0 0
      %6826 = vmatpush1.bf16.msra.mxu0 0
      %6827 = vmatprep.subr.bf16.mxu0 0
      %6828 = vmatpush1.bf16.msra.mxu0 0
      %6829 = vmatprep.subr.bf16.mxu0 0
      %6830 = vmatpush1.bf16.msra.mxu0 0
      %6831 = vmatprep.subr.bf16.mxu0 0
      %6832 = vmatpush1.bf16.msra.mxu0 0
      %6833 = vmatprep.subr.bf16.mxu0 0
      %6834 = vmatpush1.bf16.msra.mxu0 0
      %6835 = vmatprep.mubr.bf16.mxu0 0
      %6836 = vmatmul.mubr.bf16.gmra.mrb[0].mxu0 %v6723
      %v6837 = vpop.f32.mrb[0].mxu0
      %v6838 = vadd.f32 %v6533, %v6837
      %v6839 = vpop.f32.mrb[0].mxu0
      %v6840 = vpop.f32.mrb[0].mxu0
      %v6841 = vadd.f32 %v6536, %v6840
      %v6842 = vpop.f32.mrb[0].mxu0
      %6843 = vmatprep.mubr.bf16.mxu0 0
      %6844 = vmatmul.mubr.bf16.gmra.mrb[0].mxu0 %v6724
      %v6845 = vpop.f32.mrb[0].mxu0
      %v6846 = vadd.f32 %v6541, %v6845
      %v6847 = vpop.f32.mrb[0].mxu0
      %v6848 = vpop.f32.mrb[0].mxu0
      %v6849 = vadd.f32 %v6544, %v6848
      %v6850 = vpop.f32.mrb[0].mxu0
      %6851 = vmatprep.mubr.bf16.mxu0 0
      %6852 = vmatmul.mubr.bf16.gmra.mrb[0].mxu0 %v6725
      %v6853 = vpop.f32.mrb[0].mxu0
      %v6854 = vadd.f32 %v6549, %v6853
      %v6855 = vpop.f32.mrb[0].mxu0
      %v6856 = vpop.f32.mrb[0].mxu0
      %v6857 = vadd.f32 %v6552, %v6856
      %v6858 = vpop.f32.mrb[0].mxu0
      %6859 = vmatprep.mubr.bf16.mxu0 0
      %6860 = vmatmul.mubr.bf16.gmra.mrb[0].mxu0 %v6726
      %v6861 = vpop.f32.mrb[0].mxu0
      %v6862 = vadd.f32 %v6557, %v6861
      %v6863 = vpop.f32.mrb[0].mxu0
      %v6864 = vpop.f32.mrb[0].mxu0
      %v6865 = vadd.f32 %v6560, %v6864
      %v6866 = vpop.f32.mrb[0].mxu0
      %6867 = vmatprep.mubr.bf16.mxu0 0
      %6868 = vmatmul.mubr.bf16.gmra.mrb[0].mxu0 %v6727
      %v6869 = vpop.f32.mrb[0].mxu0
      %v6870 = vadd.f32 %v6565, %v6869
      %v6871 = vpop.f32.mrb[0].mxu0
      %v6872 = vpop.f32.mrb[0].mxu0
      %v6873 = vadd.f32 %v6568, %v6872
      %v6874 = vpop.f32.mrb[0].mxu0
      %6875 = vmatprep.mubr.bf16.mxu0 0
      %6876 = vmatmul.mubr.bf16.gmra.mrb[0].mxu0 %v6728
      %v6877 = vpop.f32.mrb[0].mxu0
      %v6878 = vadd.f32 %v6573, %v6877
      %v6879 = vpop.f32.mrb[0].mxu0
      %v6880 = vpop.f32.mrb[0].mxu0
      %v6881 = vadd.f32 %v6576, %v6880
      %v6882 = vpop.f32.mrb[0].mxu0
      %6883 = vmatprep.mubr.bf16.mxu0 0
      %6884 = vmatmul.mubr.bf16.gmra.mrb[0].mxu0 %v6729
      %v6885 = vpop.f32.mrb[0].mxu0
      %v6886 = vadd.f32 %v6581, %v6885
      %v6887 = vpop.f32.mrb[0].mxu0
      %v6888 = vpop.f32.mrb[0].mxu0
      %v6889 = vadd.f32 %v6584, %v6888
      %v6890 = vpop.f32.mrb[0].mxu0
      %6891 = vmatprep.mubr.bf16.mxu0 0
      %6892 = vmatmul.mubr.bf16.gmra.mrb[0].mxu0 %v6730
      %v6893 = vpop.f32.mrb[0].mxu0
      %v6894 = vadd.f32 %v6589, %v6893
      %v6895 = vpop.f32.mrb[0].mxu0
      %v6896 = vpop.f32.mrb[0].mxu0
      %v6897 = vadd.f32 %v6592, %v6896
      %v6898 = vpop.f32.mrb[0].mxu0
      %6899 = vmatprep.mubr.bf16.mxu0 0
      %6900 = vmatmul.mubr.bf16.gmra.mrb[0].mxu0 %v6731
      %v6901 = vpop.f32.mrb[0].mxu0
      %v6902 = vadd.f32 %v6597, %v6901
      %v6903 = vpop.f32.mrb[0].mxu0
      %v6904 = vpop.f32.mrb[0].mxu0
      %v6905 = vadd.f32 %v6600, %v6904
      %v6906 = vpop.f32.mrb[0].mxu0
      %6907 = vmatprep.mubr.bf16.mxu0 0
      %6908 = vmatmul.mubr.bf16.gmra.mrb[0].mxu0 %v6732
      %v6909 = vpop.f32.mrb[0].mxu0
      %v6910 = vadd.f32 %v6605, %v6909
      %v6911 = vpop.f32.mrb[0].mxu0
      %v6912 = vpop.f32.mrb[0].mxu0
      %v6913 = vadd.f32 %v6608, %v6912
      %v6914 = vpop.f32.mrb[0].mxu0
      %6915 = vmatprep.mubr.bf16.mxu0 0
      %6916 = vmatmul.mubr.bf16.gmra.mrb[0].mxu0 %v6733
      %v6917 = vpop.f32.mrb[0].mxu0
      %v6918 = vadd.f32 %v6613, %v6917
      %v6919 = vpop.f32.mrb[0].mxu0
      %v6920 = vpop.f32.mrb[0].mxu0
      %v6921 = vadd.f32 %v6616, %v6920
      %v6922 = vpop.f32.mrb[0].mxu0
      %6923 = vmatprep.mubr.bf16.mxu0 0
      %6924 = vmatmul.mubr.bf16.gmra.mrb[0].mxu0 %v6734
      %v6925 = vpop.f32.mrb[0].mxu0
      %v6926 = vadd.f32 %v6621, %v6925
      %v6927 = vpop.f32.mrb[0].mxu0
      %v6928 = vpop.f32.mrb[0].mxu0
      %v6929 = vadd.f32 %v6624, %v6928
      %v6930 = vpop.f32.mrb[0].mxu0
      %6931 = vmatprep.mubr.bf16.mxu0 0
      %6932 = vmatmul.mubr.bf16.gmra.mrb[0].mxu0 %v6735
      %v6933 = vpop.f32.mrb[0].mxu0
      %v6934 = vadd.f32 %v6629, %v6933
      %v6935 = vpop.f32.mrb[0].mxu0
      %v6936 = vpop.f32.mrb[0].mxu0
      %v6937 = vadd.f32 %v6632, %v6936
      %v6938 = vpop.f32.mrb[0].mxu0
      %6939 = vmatprep.mubr.bf16.mxu0 0
      %6940 = vmatmul.mubr.bf16.gmra.mrb[0].mxu0 %v6736
      %v6941 = vpop.f32.mrb[0].mxu0
      %v6942 = vadd.f32 %v6637, %v6941
      %v6943 = vpop.f32.mrb[0].mxu0
      %v6944 = vpop.f32.mrb[0].mxu0
      %v6945 = vadd.f32 %v6640, %v6944
      %v6946 = vpop.f32.mrb[0].mxu0
      %6947 = vmatprep.mubr.bf16.mxu0 0
      %6948 = vmatmul.mubr.bf16.gmra.mrb[0].mxu0 %v6737
      %v6949 = vpop.f32.mrb[0].mxu0
      %v6950 = vadd.f32 %v6645, %v6949
      %v6951 = vpop.f32.mrb[0].mxu0
      %v6952 = vpop.f32.mrb[0].mxu0
      %v6953 = vadd.f32 %v6648, %v6952
      %v6954 = vpop.f32.mrb[0].mxu0
      %6955 = vmatprep.mubr.bf16.mxu0 0
      %6956 = vmatmul.mubr.bf16.gmra.mrb[0].mxu0 %v6738
      %v6957 = vpop.f32.mrb[0].mxu0
      %v6958 = vadd.f32 %v6653, %v6957
      %v6959 = vpop.f32.mrb[0].mxu0
      %v6960 = vpop.f32.mrb[0].mxu0
      %v6961 = vadd.f32 %v6656, %v6960
      %v6962 = vpop.f32.mrb[0].mxu0
      %6963 = vdwg.mxu0
      %v6964 = vld [vmem:[#allocation2] sm:$0xe]
      %v6965 = vld [vmem:[#allocation2 + $0xc] sm:$0xe]
      %v6966 = vld [vmem:[#allocation2 + $0x18] sm:$0xe]
      %v6967 = vld [vmem:[#allocation2 + $0x24] sm:$0xe]
      %v6968 = vld [vmem:[#allocation2 + $0x30] sm:$0xe]
      %v6969 = vld [vmem:[#allocation2 + $0x3c] sm:$0xe]
      %v6970 = vld [vmem:[#allocation2 + $0x48] sm:$0xe]
      %v6971 = vld [vmem:[#allocation2 + $0x54] sm:$0xe]
      %v6972 = vld [vmem:[#allocation2 + $0x60] sm:$0xe]
      %v6973 = vld [vmem:[#allocation2 + $0x6c] sm:$0xe]
      %v6974 = vld [vmem:[#allocation2 + $0x78] sm:$0xe]
      %v6975 = vld [vmem:[#allocation2 + $0x84] sm:$0xe]
      %v6976 = vld [vmem:[#allocation2 + $0x90] sm:$0xe]
      %v6977 = vld [vmem:[#allocation2 + $0x9c] sm:$0xe]
      %v6978 = vld [vmem:[#allocation2 + $0xa8] sm:$0xe]
      %v6979 = vld [vmem:[#allocation2 + $0xb4] sm:$0xe]
      %v7012 = vrot.slane %v6964, 5
      %v7013 = vrot.slane %v7012, 4
      %v7014 = vrot.slane %v5922, 5
      %v7015 = vsel %vm1457, %v7013, %v7014
      %v7016 = vrot.slane %v7014, 4
      %v7017 = vrot.slane %v5969, 5
      %v7018 = vsel %vm1457, %v7016, %v7017
      %v7019 = vrot.slane %v6965, 5
      %v7020 = vrot.slane %v7019, 4
      %v7021 = vrot.slane %v5924, 5
      %v7022 = vsel %vm1457, %v7020, %v7021
      %v7023 = vrot.slane %v7021, 4
      %v7024 = vrot.slane %v5970, 5
      %v7025 = vsel %vm1457, %v7023, %v7024
      %v7026 = vrot.slane %v6966, 5
      %v7027 = vrot.slane %v7026, 4
      %v7028 = vrot.slane %v5926, 5
      %v7029 = vsel %vm1457, %v7027, %v7028
      %v7030 = vrot.slane %v7028, 4
      %v7031 = vrot.slane %v5971, 5
      %v7032 = vsel %vm1457, %v7030, %v7031
      %v7033 = vrot.slane %v6967, 5
      %v7034 = vrot.slane %v7033, 4
      %v7035 = vrot.slane %v5928, 5
      %v7036 = vsel %vm1457, %v7034, %v7035
      %v7037 = vrot.slane %v7035, 4
      %v7038 = vrot.slane %v5972, 5
      %v7039 = vsel %vm1457, %v7037, %v7038
      %v7040 = vrot.slane %v6968, 5
      %v7041 = vrot.slane %v7040, 4
      %v7042 = vrot.slane %v5930, 5
      %v7043 = vsel %vm1457, %v7041, %v7042
      %v7044 = vrot.slane %v7042, 4
      %v7045 = vrot.slane %v5973, 5
      %v7046 = vsel %vm1457, %v7044, %v7045
      %v7047 = vrot.slane %v6969, 5
      %v7048 = vrot.slane %v7047, 4
      %v7049 = vrot.slane %v5932, 5
      %v7050 = vsel %vm1457, %v7048, %v7049
      %v7051 = vrot.slane %v7049, 4
      %v7052 = vrot.slane %v5974, 5
      %v7053 = vsel %vm1457, %v7051, %v7052
      %v7054 = vrot.slane %v6970, 5
      %v7055 = vrot.slane %v7054, 4
      %v7056 = vrot.slane %v5934, 5
      %v7057 = vsel %vm1457, %v7055, %v7056
      %v7058 = vrot.slane %v7056, 4
      %v7059 = vrot.slane %v5975, 5
      %v7060 = vsel %vm1457, %v7058, %v7059
      %v7061 = vrot.slane %v6971, 5
      %v7062 = vrot.slane %v7061, 4
      %v7063 = vrot.slane %v5936, 5
      %v7064 = vsel %vm1457, %v7062, %v7063
      %v7065 = vrot.slane %v7063, 4
      %v7066 = vrot.slane %v5976, 5
      %v7067 = vsel %vm1457, %v7065, %v7066
      %v7068 = vrot.slane %v6972, 5
      %v7069 = vrot.slane %v7068, 4
      %v7070 = vrot.slane %v5938, 5
      %v7071 = vsel %vm1457, %v7069, %v7070
      %v7072 = vrot.slane %v7070, 4
      %v7073 = vrot.slane %v5977, 5
      %v7074 = vsel %vm1457, %v7072, %v7073
      %v7075 = vrot.slane %v6973, 5
      %v7076 = vrot.slane %v7075, 4
      %v7077 = vrot.slane %v5940, 5
      %v7078 = vsel %vm1457, %v7076, %v7077
      %v7079 = vrot.slane %v7077, 4
      %v7080 = vrot.slane %v5978, 5
      %v7081 = vsel %vm1457, %v7079, %v7080
      %v7082 = vrot.slane %v6974, 5
      %v7083 = vrot.slane %v7082, 4
      %v7084 = vrot.slane %v5942, 5
      %v7085 = vsel %vm1457, %v7083, %v7084
      %v7086 = vrot.slane %v7084, 4
      %v7087 = vrot.slane %v5979, 5
      %v7088 = vsel %vm1457, %v7086, %v7087
      %v7089 = vrot.slane %v6975, 5
      %v7090 = vrot.slane %v7089, 4
      %v7091 = vrot.slane %v5944, 5
      %v7092 = vsel %vm1457, %v7090, %v7091
      %v7093 = vrot.slane %v7091, 4
      %v7094 = vrot.slane %v5980, 5
      %v7095 = vsel %vm1457, %v7093, %v7094
      %v7096 = vrot.slane %v6976, 5
      %v7097 = vrot.slane %v7096, 4
      %v7098 = vrot.slane %v5946, 5
      %v7099 = vsel %vm1457, %v7097, %v7098
      %v7100 = vrot.slane %v7098, 4
      %v7101 = vrot.slane %v5981, 5
      %v7102 = vsel %vm1457, %v7100, %v7101
      %v7103 = vrot.slane %v6977, 5
      %v7104 = vrot.slane %v7103, 4
      %v7105 = vrot.slane %v5948, 5
      %v7106 = vsel %vm1457, %v7104, %v7105
      %v7107 = vrot.slane %v7105, 4
      %v7108 = vrot.slane %v5982, 5
      %v7109 = vsel %vm1457, %v7107, %v7108
      %v7110 = vrot.slane %v6978, 5
      %v7111 = vrot.slane %v7110, 4
      %v7112 = vrot.slane %v5950, 5
      %v7113 = vsel %vm1457, %v7111, %v7112
      %v7114 = vrot.slane %v7112, 4
      %v7115 = vrot.slane %v5983, 5
      %v7116 = vsel %vm1457, %v7114, %v7115
      %v7117 = vrot.slane %v6979, 5
      %v7118 = vrot.slane %v7117, 4
      %v7119 = vrot.slane %v5952, 5
      %v7120 = vsel %vm1457, %v7118, %v7119
      %v7121 = vrot.slane %v7119, 4
      %v7122 = vrot.slane %v5984, 5
      %v7123 = vsel %vm1457, %v7121, %v7122
      %s7124 = scalar_lea.vmem %s4, 128
      %v7125 = vld [vmem:[%s7124] sm:$0xf]
      %v7126 = vld [vmem:[%s7124 + $0x4] sm:$0xf]
      %v7127 = vld [vmem:[%s7124 + $0x8] sm:$0xf]
      %v7128 = vld [vmem:[%s7124 + $0xc] sm:$0xf]
      %v7129 = vld [vmem:[%s7124 + $0x10] sm:$0xf]
      %v7130 = vld [vmem:[%s7124 + $0x14] sm:$0xf]
      %v7131 = vld [vmem:[%s7124 + $0x18] sm:$0xf]
      %v7132 = vld [vmem:[%s7124 + $0x1c] sm:$0xf]
      %v7133 = vld [vmem:[%s7124 + $0x20] sm:$0xf]
      %v7134 = vld [vmem:[%s7124 + $0x24] sm:$0xf]
      %v7135 = vld [vmem:[%s7124 + $0x28] sm:$0xf]
      %v7136 = vld [vmem:[%s7124 + $0x2c] sm:$0xf]
      %v7137 = vld [vmem:[%s7124 + $0x30] sm:$0xf]
      %v7138 = vld [vmem:[%s7124 + $0x34] sm:$0xf]
      %v7139 = vld [vmem:[%s7124 + $0x38] sm:$0xf]
      %v7140 = vld [vmem:[%s7124 + $0x3c] sm:$0xf]
      %v7141 = vunpack.c.l.b16 %v7015
      %v7142 = vunpack.c.l.b16 %v7018
      %v7143 = vunpack.c.l.b16 %v7022
      %v7144 = vunpack.c.l.b16 %v7025
      %v7145 = vunpack.c.l.b16 %v7029
      %v7146 = vunpack.c.l.b16 %v7032
      %v7147 = vunpack.c.l.b16 %v7036
      %v7148 = vunpack.c.l.b16 %v7039
      %v7149 = vunpack.c.l.b16 %v7043
      %v7150 = vunpack.c.l.b16 %v7046
      %v7151 = vunpack.c.l.b16 %v7050
      %v7152 = vunpack.c.l.b16 %v7053
      %v7153 = vunpack.c.l.b16 %v7057
      %v7154 = vunpack.c.l.b16 %v7060
      %v7155 = vunpack.c.l.b16 %v7064
      %v7156 = vunpack.c.l.b16 %v7067
      %v7157 = vunpack.c.l.b16 %v7071
      %v7158 = vunpack.c.l.b16 %v7074
      %v7159 = vunpack.c.l.b16 %v7078
      %v7160 = vunpack.c.l.b16 %v7081
      %v7161 = vunpack.c.l.b16 %v7085
      %v7162 = vunpack.c.l.b16 %v7088
      %v7163 = vunpack.c.l.b16 %v7092
      %v7164 = vunpack.c.l.b16 %v7095
      %v7165 = vunpack.c.l.b16 %v7099
      %v7166 = vunpack.c.l.b16 %v7102
      %v7167 = vunpack.c.l.b16 %v7106
      %v7168 = vunpack.c.l.b16 %v7109
      %v7169 = vunpack.c.l.b16 %v7113
      %v7170 = vunpack.c.l.b16 %v7116
      %v7171 = vunpack.c.l.b16 %v7120
      %v7172 = vunpack.c.l.b16 %v7123
      %v7173 = vpack.c.b16 %v7142, %v7141
      %v7174 = vpack.c.b16 %v7144, %v7143
      %v7175 = vpack.c.b16 %v7146, %v7145
      %v7176 = vpack.c.b16 %v7148, %v7147
      %v7177 = vpack.c.b16 %v7150, %v7149
      %v7178 = vpack.c.b16 %v7152, %v7151
      %v7179 = vpack.c.b16 %v7154, %v7153
      %v7180 = vpack.c.b16 %v7156, %v7155
      %v7181 = vpack.c.b16 %v7158, %v7157
      %v7182 = vpack.c.b16 %v7160, %v7159
      %v7183 = vpack.c.b16 %v7162, %v7161
      %v7184 = vpack.c.b16 %v7164, %v7163
      %v7185 = vpack.c.b16 %v7166, %v7165
      %v7186 = vpack.c.b16 %v7168, %v7167
      %v7187 = vpack.c.b16 %v7170, %v7169
      %v7188 = vpack.c.b16 %v7172, %v7171
      %v7221 = vunpack.c.l.b16 %v7125
      %v7222 = vunpack.c.l.b16 %v7126
      %v7223 = vunpack.c.l.b16 %v7127
      %v7224 = vunpack.c.l.b16 %v7128
      %v7225 = vunpack.c.l.b16 %v7129
      %v7226 = vunpack.c.l.b16 %v7130
      %v7227 = vunpack.c.l.b16 %v7131
      %v7228 = vunpack.c.l.b16 %v7132
      %v7229 = vunpack.c.l.b16 %v7133
      %v7230 = vunpack.c.l.b16 %v7134
      %v7231 = vunpack.c.l.b16 %v7135
      %v7232 = vunpack.c.l.b16 %v7136
      %v7233 = vunpack.c.l.b16 %v7137
      %v7234 = vunpack.c.l.b16 %v7138
      %v7235 = vunpack.c.l.b16 %v7139
      %v7236 = vunpack.c.l.b16 %v7140
      %v7237 = vpack.c.b16 %v7222, %v7221
      %v7238 = vpack.c.b16 %v7224, %v7223
      %v7239 = vpack.c.b16 %v7226, %v7225
      %v7240 = vpack.c.b16 %v7228, %v7227
      %v7241 = vpack.c.b16 %v7230, %v7229
      %v7242 = vpack.c.b16 %v7232, %v7231
      %v7243 = vpack.c.b16 %v7234, %v7233
      %v7244 = vpack.c.b16 %v7236, %v7235
      %7253 = vmatprep.subr.bf16.mxu0 0
      %7254 = vmatpush1.bf16.msra.mxu0 %v7237
      %7255 = vmatprep.subr.bf16.mxu0 0
      %7256 = vmatpush1.bf16.msra.mxu0 %v7238
      %7257 = vmatprep.subr.bf16.mxu0 0
      %7258 = vmatpush1.bf16.msra.mxu0 %v7239
      %7259 = vmatprep.subr.bf16.mxu0 0
      %7260 = vmatpush1.bf16.msra.mxu0 %v7240
      %7261 = vmatprep.subr.bf16.mxu0 0
      %7262 = vmatpush1.bf16.msra.mxu0 %v7241
      %7263 = vmatprep.subr.bf16.mxu0 0
      %7264 = vmatpush1.bf16.msra.mxu0 %v7242
      %7265 = vmatprep.subr.bf16.mxu0 0
      %7266 = vmatpush1.bf16.msra.mxu0 %v7243
      %7267 = vmatprep.subr.bf16.mxu0 0
      %7268 = vmatpush1.bf16.msra.mxu0 %v7244
      %7269 = vmatprep.subr.bf16.mxu0 0
      %7270 = vmatpush1.bf16.msra.mxu0 0
      %7271 = vmatprep.subr.bf16.mxu0 0
      %7272 = vmatpush1.bf16.msra.mxu0 0
      %7273 = vmatprep.subr.bf16.mxu0 0
      %7274 = vmatpush1.bf16.msra.mxu0 0
      %7275 = vmatprep.subr.bf16.mxu0 0
      %7276 = vmatpush1.bf16.msra.mxu0 0
      %7277 = vmatprep.subr.bf16.mxu0 0
      %7278 = vmatpush1.bf16.msra.mxu0 0
      %7279 = vmatprep.subr.bf16.mxu0 0
      %7280 = vmatpush1.bf16.msra.mxu0 0
      %7281 = vmatprep.subr.bf16.mxu0 0
      %7282 = vmatpush1.bf16.msra.mxu0 0
      %7283 = vmatprep.subr.bf16.mxu0 0
      %7284 = vmatpush1.bf16.msra.mxu0 0
      %7285 = vmatprep.mubr.bf16.mxu0 0
      %7286 = vmatmul.mubr.bf16.gmra.mrb[0].mxu0 %v7173
      %v7287 = vpop.f32.mrb[0].mxu0
      %v7288 = vadd.f32 0.0, %v7287
      %v7289 = vpop.f32.mrb[0].mxu0
      %v7290 = vpop.f32.mrb[0].mxu0
      %v7291 = vadd.f32 0.0, %v7290
      %v7292 = vpop.f32.mrb[0].mxu0
      %7293 = vmatprep.mubr.bf16.mxu0 0
      %7294 = vmatmul.mubr.bf16.gmra.mrb[0].mxu0 %v7174
      %v7295 = vpop.f32.mrb[0].mxu0
      %v7296 = vadd.f32 0.0, %v7295
      %v7297 = vpop.f32.mrb[0].mxu0
      %v7298 = vpop.f32.mrb[0].mxu0
      %v7299 = vadd.f32 0.0, %v7298
      %v7300 = vpop.f32.mrb[0].mxu0
      %7301 = vmatprep.mubr.bf16.mxu0 0
      %7302 = vmatmul.mubr.bf16.gmra.mrb[0].mxu0 %v7175
      %v7303 = vpop.f32.mrb[0].mxu0
      %v7304 = vadd.f32 0.0, %v7303
      %v7305 = vpop.f32.mrb[0].mxu0
      %v7306 = vpop.f32.mrb[0].mxu0
      %v7307 = vadd.f32 0.0, %v7306
      %v7308 = vpop.f32.mrb[0].mxu0
      %7309 = vmatprep.mubr.bf16.mxu0 0
      %7310 = vmatmul.mubr.bf16.gmra.mrb[0].mxu0 %v7176
      %v7311 = vpop.f32.mrb[0].mxu0
      %v7312 = vadd.f32 0.0, %v7311
      %v7313 = vpop.f32.mrb[0].mxu0
      %v7314 = vpop.f32.mrb[0].mxu0
      %v7315 = vadd.f32 0.0, %v7314
      %v7316 = vpop.f32.mrb[0].mxu0
      %7317 = vmatprep.mubr.bf16.mxu0 0
      %7318 = vmatmul.mubr.bf16.gmra.mrb[0].mxu0 %v7177
      %v7319 = vpop.f32.mrb[0].mxu0
      %v7320 = vadd.f32 0.0, %v7319
      %v7321 = vpop.f32.mrb[0].mxu0
      %v7322 = vpop.f32.mrb[0].mxu0
      %v7323 = vadd.f32 0.0, %v7322
      %v7324 = vpop.f32.mrb[0].mxu0
      %7325 = vmatprep.mubr.bf16.mxu0 0
      %7326 = vmatmul.mubr.bf16.gmra.mrb[0].mxu0 %v7178
      %v7327 = vpop.f32.mrb[0].mxu0
      %v7328 = vadd.f32 0.0, %v7327
      %v7329 = vpop.f32.mrb[0].mxu0
      %v7330 = vpop.f32.mrb[0].mxu0
      %v7331 = vadd.f32 0.0, %v7330
      %v7332 = vpop.f32.mrb[0].mxu0
      %7333 = vmatprep.mubr.bf16.mxu0 0
      %7334 = vmatmul.mubr.bf16.gmra.mrb[0].mxu0 %v7179
      %v7335 = vpop.f32.mrb[0].mxu0
      %v7336 = vadd.f32 0.0, %v7335
      %v7337 = vpop.f32.mrb[0].mxu0
      %v7338 = vpop.f32.mrb[0].mxu0
      %v7339 = vadd.f32 0.0, %v7338
      %v7340 = vpop.f32.mrb[0].mxu0
      %7341 = vmatprep.mubr.bf16.mxu0 0
      %7342 = vmatmul.mubr.bf16.gmra.mrb[0].mxu0 %v7180
      %v7343 = vpop.f32.mrb[0].mxu0
      %v7344 = vadd.f32 0.0, %v7343
      %v7345 = vpop.f32.mrb[0].mxu0
      %v7346 = vpop.f32.mrb[0].mxu0
      %v7347 = vadd.f32 0.0, %v7346
      %v7348 = vpop.f32.mrb[0].mxu0
      %7349 = vmatprep.mubr.bf16.mxu0 0
      %7350 = vmatmul.mubr.bf16.gmra.mrb[0].mxu0 %v7181
      %v7351 = vpop.f32.mrb[0].mxu0
      %v7352 = vadd.f32 0.0, %v7351
      %v7353 = vpop.f32.mrb[0].mxu0
      %v7354 = vpop.f32.mrb[0].mxu0
      %v7355 = vadd.f32 0.0, %v7354
      %v7356 = vpop.f32.mrb[0].mxu0
      %7357 = vmatprep.mubr.bf16.mxu0 0
      %7358 = vmatmul.mubr.bf16.gmra.mrb[0].mxu0 %v7182
      %v7359 = vpop.f32.mrb[0].mxu0
      %v7360 = vadd.f32 0.0, %v7359
      %v7361 = vpop.f32.mrb[0].mxu0
      %v7362 = vpop.f32.mrb[0].mxu0
      %v7363 = vadd.f32 0.0, %v7362
      %v7364 = vpop.f32.mrb[0].mxu0
      %7365 = vmatprep.mubr.bf16.mxu0 0
      %7366 = vmatmul.mubr.bf16.gmra.mrb[0].mxu0 %v7183
      %v7367 = vpop.f32.mrb[0].mxu0
      %v7368 = vadd.f32 0.0, %v7367
      %v7369 = vpop.f32.mrb[0].mxu0
      %v7370 = vpop.f32.mrb[0].mxu0
      %v7371 = vadd.f32 0.0, %v7370
      %v7372 = vpop.f32.mrb[0].mxu0
      %7373 = vmatprep.mubr.bf16.mxu0 0
      %7374 = vmatmul.mubr.bf16.gmra.mrb[0].mxu0 %v7184
      %v7375 = vpop.f32.mrb[0].mxu0
      %v7376 = vadd.f32 0.0, %v7375
      %v7377 = vpop.f32.mrb[0].mxu0
      %v7378 = vpop.f32.mrb[0].mxu0
      %v7379 = vadd.f32 0.0, %v7378
      %v7380 = vpop.f32.mrb[0].mxu0
      %7381 = vmatprep.mubr.bf16.mxu0 0
      %7382 = vmatmul.mubr.bf16.gmra.mrb[0].mxu0 %v7185
      %v7383 = vpop.f32.mrb[0].mxu0
      %v7384 = vadd.f32 0.0, %v7383
      %v7385 = vpop.f32.mrb[0].mxu0
      %v7386 = vpop.f32.mrb[0].mxu0
      %v7387 = vadd.f32 0.0, %v7386
      %v7388 = vpop.f32.mrb[0].mxu0
      %7389 = vmatprep.mubr.bf16.mxu0 0
      %7390 = vmatmul.mubr.bf16.gmra.mrb[0].mxu0 %v7186
      %v7391 = vpop.f32.mrb[0].mxu0
      %v7392 = vadd.f32 0.0, %v7391
      %v7393 = vpop.f32.mrb[0].mxu0
      %v7394 = vpop.f32.mrb[0].mxu0
      %v7395 = vadd.f32 0.0, %v7394
      %v7396 = vpop.f32.mrb[0].mxu0
      %7397 = vmatprep.mubr.bf16.mxu0 0
      %7398 = vmatmul.mubr.bf16.gmra.mrb[0].mxu0 %v7187
      %v7399 = vpop.f32.mrb[0].mxu0
      %v7400 = vadd.f32 0.0, %v7399
      %v7401 = vpop.f32.mrb[0].mxu0
      %v7402 = vpop.f32.mrb[0].mxu0
      %v7403 = vadd.f32 0.0, %v7402
      %v7404 = vpop.f32.mrb[0].mxu0
      %7405 = vmatprep.mubr.bf16.mxu0 0
      %7406 = vmatmul.mubr.bf16.gmra.mrb[0].mxu0 %v7188
      %v7407 = vpop.f32.mrb[0].mxu0
      %v7408 = vadd.f32 0.0, %v7407
      %v7409 = vpop.f32.mrb[0].mxu0
      %v7410 = vpop.f32.mrb[0].mxu0
      %v7411 = vadd.f32 0.0, %v7410
      %v7412 = vpop.f32.mrb[0].mxu0
      %7413 = vdwg.mxu0
      %v7414 = vadd.f32 %v6838, %v7288
      %v7415 = vadd.f32 %v6841, %v7291
      %v7416 = vadd.f32 %v6846, %v7296
      %v7417 = vadd.f32 %v6849, %v7299
      %v7418 = vadd.f32 %v6854, %v7304
      %v7419 = vadd.f32 %v6857, %v7307
      %v7420 = vadd.f32 %v6862, %v7312
      %v7421 = vadd.f32 %v6865, %v7315
      %v7422 = vadd.f32 %v6870, %v7320
      %v7423 = vadd.f32 %v6873, %v7323
      %v7424 = vadd.f32 %v6878, %v7328
      %v7425 = vadd.f32 %v6881, %v7331
      %v7426 = vadd.f32 %v6886, %v7336
      %v7427 = vadd.f32 %v6889, %v7339
      %v7428 = vadd.f32 %v6894, %v7344
      %v7429 = vadd.f32 %v6897, %v7347
      %v7430 = vadd.f32 %v6902, %v7352
      %v7431 = vadd.f32 %v6905, %v7355
      %v7432 = vadd.f32 %v6910, %v7360
      %v7433 = vadd.f32 %v6913, %v7363
      %v7434 = vadd.f32 %v6918, %v7368
      %v7435 = vadd.f32 %v6921, %v7371
      %v7436 = vadd.f32 %v6926, %v7376
      %v7437 = vadd.f32 %v6929, %v7379
      %v7438 = vadd.f32 %v6934, %v7384
      %v7439 = vadd.f32 %v6937, %v7387
      %v7440 = vadd.f32 %v6942, %v7392
      %v7441 = vadd.f32 %v6945, %v7395
      %v7442 = vadd.f32 %v6950, %v7400
      %v7443 = vadd.f32 %v6953, %v7403
      %v7444 = vadd.f32 %v6958, %v7408
      %v7445 = vadd.f32 %v6961, %v7411
      %v7446 = vld [vmem:[%s5287] sm:$0xf]
      %v7447 = vld [vmem:[%s5287 + $0x4] sm:$0xf]
      %v7448 = vld [vmem:[%s5287 + $0xc] sm:$0xf]
      %v7449 = vld [vmem:[%s5287 + $0x10] sm:$0xf]
      %v7450 = vld [vmem:[%s5287 + $0x18] sm:$0xf]
      %v7451 = vld [vmem:[%s5287 + $0x1c] sm:$0xf]
      %v7452 = vld [vmem:[%s5287 + $0x24] sm:$0xf]
      %v7453 = vld [vmem:[%s5287 + $0x28] sm:$0xf]
      %v7454 = vld [vmem:[%s5287 + $0x30] sm:$0xf]
      %v7455 = vld [vmem:[%s5287 + $0x34] sm:$0xf]
      %v7456 = vld [vmem:[%s5287 + $0x3c] sm:$0xf]
      %v7457 = vld [vmem:[%s5287 + $0x40] sm:$0xf]
      %v7458 = vld [vmem:[%s5287 + $0x48] sm:$0xf]
      %v7459 = vld [vmem:[%s5287 + $0x4c] sm:$0xf]
      %v7460 = vld [vmem:[%s5287 + $0x54] sm:$0xf]
      %v7461 = vld [vmem:[%s5287 + $0x58] sm:$0xf]
      %v7462 = vld [vmem:[%s5287 + $0x60] sm:$0xf]
      %v7463 = vld [vmem:[%s5287 + $0x64] sm:$0xf]
      %v7464 = vld [vmem:[%s5287 + $0x6c] sm:$0xf]
      %v7465 = vld [vmem:[%s5287 + $0x70] sm:$0xf]
      %v7466 = vld [vmem:[%s5287 + $0x78] sm:$0xf]
      %v7467 = vld [vmem:[%s5287 + $0x7c] sm:$0xf]
      %v7468 = vld [vmem:[%s5287 + $0x84] sm:$0xf]
      %v7469 = vld [vmem:[%s5287 + $0x88] sm:$0xf]
      %v7470 = vld [vmem:[%s5287 + $0x90] sm:$0xf]
      %v7471 = vld [vmem:[%s5287 + $0x94] sm:$0xf]
      %v7472 = vld [vmem:[%s5287 + $0x9c] sm:$0xf]
      %v7473 = vld [vmem:[%s5287 + $0xa0] sm:$0xf]
      %v7474 = vld [vmem:[%s5287 + $0xa8] sm:$0xf]
      %v7475 = vld [vmem:[%s5287 + $0xac] sm:$0xf]
      %v7476 = vld [vmem:[%s5287 + $0xb4] sm:$0xf]
      %v7477 = vld [vmem:[%s5287 + $0xb8] sm:$0xf]
      %s7478 = scalar_lea.vmem %s4, 192
      %v7479 = vld [vmem:[%s7478] sm:$0xf]
      %v7480 = vld [vmem:[%s7478 + $0x4] sm:$0xf]
      %v7481 = vld [vmem:[%s7478 + $0x8] sm:$0xf]
      %v7482 = vld [vmem:[%s7478 + $0xc] sm:$0xf]
      %v7483 = vld [vmem:[%s7478 + $0x10] sm:$0xf]
      %v7484 = vld [vmem:[%s7478 + $0x14] sm:$0xf]
      %v7485 = vld [vmem:[%s7478 + $0x18] sm:$0xf]
      %v7486 = vld [vmem:[%s7478 + $0x1c] sm:$0xf]
      %v7487 = vld [vmem:[%s7478 + $0x20] sm:$0xf]
      %v7488 = vld [vmem:[%s7478 + $0x24] sm:$0xf]
      %v7489 = vld [vmem:[%s7478 + $0x28] sm:$0xf]
      %v7490 = vld [vmem:[%s7478 + $0x2c] sm:$0xf]
      %v7491 = vld [vmem:[%s7478 + $0x30] sm:$0xf]
      %v7492 = vld [vmem:[%s7478 + $0x34] sm:$0xf]
      %v7493 = vld [vmem:[%s7478 + $0x38] sm:$0xf]
      %v7494 = vld [vmem:[%s7478 + $0x3c] sm:$0xf]
      %v7527 = vunpack.c.l.b16 %v7446
      %v7528 = vunpack.c.l.b16 %v7447
      %v7529 = vunpack.c.l.b16 %v7448
      %v7530 = vunpack.c.l.b16 %v7449
      %v7531 = vunpack.c.l.b16 %v7450
      %v7532 = vunpack.c.l.b16 %v7451
      %v7533 = vunpack.c.l.b16 %v7452
      %v7534 = vunpack.c.l.b16 %v7453
      %v7535 = vunpack.c.l.b16 %v7454
      %v7536 = vunpack.c.l.b16 %v7455
      %v7537 = vunpack.c.l.b16 %v7456
      %v7538 = vunpack.c.l.b16 %v7457
      %v7539 = vunpack.c.l.b16 %v7458
      %v7540 = vunpack.c.l.b16 %v7459
      %v7541 = vunpack.c.l.b16 %v7460
      %v7542 = vunpack.c.l.b16 %v7461
      %v7543 = vunpack.c.l.b16 %v7462
      %v7544 = vunpack.c.l.b16 %v7463
      %v7545 = vunpack.c.l.b16 %v7464
      %v7546 = vunpack.c.l.b16 %v7465
      %v7547 = vunpack.c.l.b16 %v7466
      %v7548 = vunpack.c.l.b16 %v7467
      %v7549 = vunpack.c.l.b16 %v7468
      %v7550 = vunpack.c.l.b16 %v7469
      %v7551 = vunpack.c.l.b16 %v7470
      %v7552 = vunpack.c.l.b16 %v7471
      %v7553 = vunpack.c.l.b16 %v7472
      %v7554 = vunpack.c.l.b16 %v7473
      %v7555 = vunpack.c.l.b16 %v7474
      %v7556 = vunpack.c.l.b16 %v7475
      %v7557 = vunpack.c.l.b16 %v7476
      %v7558 = vunpack.c.l.b16 %v7477
      %v7559 = vpack.c.b16 %v7528, %v7527
      %v7560 = vpack.c.b16 %v7530, %v7529
      %v7561 = vpack.c.b16 %v7532, %v7531
      %v7562 = vpack.c.b16 %v7534, %v7533
      %v7563 = vpack.c.b16 %v7536, %v7535
      %v7564 = vpack.c.b16 %v7538, %v7537
      %v7565 = vpack.c.b16 %v7540, %v7539
      %v7566 = vpack.c.b16 %v7542, %v7541
      %v7567 = vpack.c.b16 %v7544, %v7543
      %v7568 = vpack.c.b16 %v7546, %v7545
      %v7569 = vpack.c.b16 %v7548, %v7547
      %v7570 = vpack.c.b16 %v7550, %v7549
      %v7571 = vpack.c.b16 %v7552, %v7551
      %v7572 = vpack.c.b16 %v7554, %v7553
      %v7573 = vpack.c.b16 %v7556, %v7555
      %v7574 = vpack.c.b16 %v7558, %v7557
      %v7607 = vunpack.c.l.b16 %v7479
      %v7608 = vunpack.c.l.b16 %v7480
      %v7609 = vunpack.c.l.b16 %v7481
      %v7610 = vunpack.c.l.b16 %v7482
      %v7611 = vunpack.c.l.b16 %v7483
      %v7612 = vunpack.c.l.b16 %v7484
      %v7613 = vunpack.c.l.b16 %v7485
      %v7614 = vunpack.c.l.b16 %v7486
      %v7615 = vunpack.c.l.b16 %v7487
      %v7616 = vunpack.c.l.b16 %v7488
      %v7617 = vunpack.c.l.b16 %v7489
      %v7618 = vunpack.c.l.b16 %v7490
      %v7619 = vunpack.c.l.b16 %v7491
      %v7620 = vunpack.c.l.b16 %v7492
      %v7621 = vunpack.c.l.b16 %v7493
      %v7622 = vunpack.c.l.b16 %v7494
      %v7623 = vpack.c.b16 %v7608, %v7607
      %v7624 = vpack.c.b16 %v7610, %v7609
      %v7625 = vpack.c.b16 %v7612, %v7611
      %v7626 = vpack.c.b16 %v7614, %v7613
      %v7627 = vpack.c.b16 %v7616, %v7615
      %v7628 = vpack.c.b16 %v7618, %v7617
      %v7629 = vpack.c.b16 %v7620, %v7619
      %v7630 = vpack.c.b16 %v7622, %v7621
      %7639 = vmatprep.subr.bf16.mxu0 0
      %7640 = vmatpush1.bf16.msra.mxu0 %v7623
      %7641 = vmatprep.subr.bf16.mxu0 0
      %7642 = vmatpush1.bf16.msra.mxu0 %v7624
      %7643 = vmatprep.subr.bf16.mxu0 0
      %7644 = vmatpush1.bf16.msra.mxu0 %v7625
      %7645 = vmatprep.subr.bf16.mxu0 0
      %7646 = vmatpush1.bf16.msra.mxu0 %v7626
      %7647 = vmatprep.subr.bf16.mxu0 0
      %7648 = vmatpush1.bf16.msra.mxu0 %v7627
      %7649 = vmatprep.subr.bf16.mxu0 0
      %7650 = vmatpush1.bf16.msra.mxu0 %v7628
      %7651 = vmatprep.subr.bf16.mxu0 0
      %7652 = vmatpush1.bf16.msra.mxu0 %v7629
      %7653 = vmatprep.subr.bf16.mxu0 0
      %7654 = vmatpush1.bf16.msra.mxu0 %v7630
      %7655 = vmatprep.subr.bf16.mxu0 0
      %7656 = vmatpush1.bf16.msra.mxu0 0
      %7657 = vmatprep.subr.bf16.mxu0 0
      %7658 = vmatpush1.bf16.msra.mxu0 0
      %7659 = vmatprep.subr.bf16.mxu0 0
      %7660 = vmatpush1.bf16.msra.mxu0 0
      %7661 = vmatprep.subr.bf16.mxu0 0
      %7662 = vmatpush1.bf16.msra.mxu0 0
      %7663 = vmatprep.subr.bf16.mxu0 0
      %7664 = vmatpush1.bf16.msra.mxu0 0
      %7665 = vmatprep.subr.bf16.mxu0 0
      %7666 = vmatpush1.bf16.msra.mxu0 0
      %7667 = vmatprep.subr.bf16.mxu0 0
      %7668 = vmatpush1.bf16.msra.mxu0 0
      %7669 = vmatprep.subr.bf16.mxu0 0
      %7670 = vmatpush1.bf16.msra.mxu0 0
      %7671 = vmatprep.mubr.bf16.mxu0 0
      %7672 = vmatmul.mubr.bf16.gmra.mrb[0].mxu0 %v7559
      %v7673 = vpop.f32.mrb[0].mxu0
      %v7674 = vadd.f32 0.0, %v7673
      %v7675 = vpop.f32.mrb[0].mxu0
      %v7676 = vpop.f32.mrb[0].mxu0
      %v7677 = vadd.f32 0.0, %v7676
      %v7678 = vpop.f32.mrb[0].mxu0
      %7679 = vmatprep.mubr.bf16.mxu0 0
      %7680 = vmatmul.mubr.bf16.gmra.mrb[0].mxu0 %v7560
      %v7681 = vpop.f32.mrb[0].mxu0
      %v7682 = vadd.f32 0.0, %v7681
      %v7683 = vpop.f32.mrb[0].mxu0
      %v7684 = vpop.f32.mrb[0].mxu0
      %v7685 = vadd.f32 0.0, %v7684
      %v7686 = vpop.f32.mrb[0].mxu0
      %7687 = vmatprep.mubr.bf16.mxu0 0
      %7688 = vmatmul.mubr.bf16.gmra.mrb[0].mxu0 %v7561
      %v7689 = vpop.f32.mrb[0].mxu0
      %v7690 = vadd.f32 0.0, %v7689
      %v7691 = vpop.f32.mrb[0].mxu0
      %v7692 = vpop.f32.mrb[0].mxu0
      %v7693 = vadd.f32 0.0, %v7692
      %v7694 = vpop.f32.mrb[0].mxu0
      %7695 = vmatprep.mubr.bf16.mxu0 0
      %7696 = vmatmul.mubr.bf16.gmra.mrb[0].mxu0 %v7562
      %v7697 = vpop.f32.mrb[0].mxu0
      %v7698 = vadd.f32 0.0, %v7697
      %v7699 = vpop.f32.mrb[0].mxu0
      %v7700 = vpop.f32.mrb[0].mxu0
      %v7701 = vadd.f32 0.0, %v7700
      %v7702 = vpop.f32.mrb[0].mxu0
      %7703 = vmatprep.mubr.bf16.mxu0 0
      %7704 = vmatmul.mubr.bf16.gmra.mrb[0].mxu0 %v7563
      %v7705 = vpop.f32.mrb[0].mxu0
      %v7706 = vadd.f32 0.0, %v7705
      %v7707 = vpop.f32.mrb[0].mxu0
      %v7708 = vpop.f32.mrb[0].mxu0
      %v7709 = vadd.f32 0.0, %v7708
      %v7710 = vpop.f32.mrb[0].mxu0
      %7711 = vmatprep.mubr.bf16.mxu0 0
      %7712 = vmatmul.mubr.bf16.gmra.mrb[0].mxu0 %v7564
      %v7713 = vpop.f32.mrb[0].mxu0
      %v7714 = vadd.f32 0.0, %v7713
      %v7715 = vpop.f32.mrb[0].mxu0
      %v7716 = vpop.f32.mrb[0].mxu0
      %v7717 = vadd.f32 0.0, %v7716
      %v7718 = vpop.f32.mrb[0].mxu0
      %7719 = vmatprep.mubr.bf16.mxu0 0
      %7720 = vmatmul.mubr.bf16.gmra.mrb[0].mxu0 %v7565
      %v7721 = vpop.f32.mrb[0].mxu0
      %v7722 = vadd.f32 0.0, %v7721
      %v7723 = vpop.f32.mrb[0].mxu0
      %v7724 = vpop.f32.mrb[0].mxu0
      %v7725 = vadd.f32 0.0, %v7724
      %v7726 = vpop.f32.mrb[0].mxu0
      %7727 = vmatprep.mubr.bf16.mxu0 0
      %7728 = vmatmul.mubr.bf16.gmra.mrb[0].mxu0 %v7566
      %v7729 = vpop.f32.mrb[0].mxu0
      %v7730 = vadd.f32 0.0, %v7729
      %v7731 = vpop.f32.mrb[0].mxu0
      %v7732 = vpop.f32.mrb[0].mxu0
      %v7733 = vadd.f32 0.0, %v7732
      %v7734 = vpop.f32.mrb[0].mxu0
      %7735 = vmatprep.mubr.bf16.mxu0 0
      %7736 = vmatmul.mubr.bf16.gmra.mrb[0].mxu0 %v7567
      %v7737 = vpop.f32.mrb[0].mxu0
      %v7738 = vadd.f32 0.0, %v7737
      %v7739 = vpop.f32.mrb[0].mxu0
      %v7740 = vpop.f32.mrb[0].mxu0
      %v7741 = vadd.f32 0.0, %v7740
      %v7742 = vpop.f32.mrb[0].mxu0
      %7743 = vmatprep.mubr.bf16.mxu0 0
      %7744 = vmatmul.mubr.bf16.gmra.mrb[0].mxu0 %v7568
      %v7745 = vpop.f32.mrb[0].mxu0
      %v7746 = vadd.f32 0.0, %v7745
      %v7747 = vpop.f32.mrb[0].mxu0
      %v7748 = vpop.f32.mrb[0].mxu0
      %v7749 = vadd.f32 0.0, %v7748
      %v7750 = vpop.f32.mrb[0].mxu0
      %7751 = vmatprep.mubr.bf16.mxu0 0
      %7752 = vmatmul.mubr.bf16.gmra.mrb[0].mxu0 %v7569
      %v7753 = vpop.f32.mrb[0].mxu0
      %v7754 = vadd.f32 0.0, %v7753
      %v7755 = vpop.f32.mrb[0].mxu0
      %v7756 = vpop.f32.mrb[0].mxu0
      %v7757 = vadd.f32 0.0, %v7756
      %v7758 = vpop.f32.mrb[0].mxu0
      %7759 = vmatprep.mubr.bf16.mxu0 0
      %7760 = vmatmul.mubr.bf16.gmra.mrb[0].mxu0 %v7570
      %v7761 = vpop.f32.mrb[0].mxu0
      %v7762 = vadd.f32 0.0, %v7761
      %v7763 = vpop.f32.mrb[0].mxu0
      %v7764 = vpop.f32.mrb[0].mxu0
      %v7765 = vadd.f32 0.0, %v7764
      %v7766 = vpop.f32.mrb[0].mxu0
      %7767 = vmatprep.mubr.bf16.mxu0 0
      %7768 = vmatmul.mubr.bf16.gmra.mrb[0].mxu0 %v7571
      %v7769 = vpop.f32.mrb[0].mxu0
      %v7770 = vadd.f32 0.0, %v7769
      %v7771 = vpop.f32.mrb[0].mxu0
      %v7772 = vpop.f32.mrb[0].mxu0
      %v7773 = vadd.f32 0.0, %v7772
      %v7774 = vpop.f32.mrb[0].mxu0
      %7775 = vmatprep.mubr.bf16.mxu0 0
      %7776 = vmatmul.mubr.bf16.gmra.mrb[0].mxu0 %v7572
      %v7777 = vpop.f32.mrb[0].mxu0
      %v7778 = vadd.f32 0.0, %v7777
      %v7779 = vpop.f32.mrb[0].mxu0
      %v7780 = vpop.f32.mrb[0].mxu0
      %v7781 = vadd.f32 0.0, %v7780
      %v7782 = vpop.f32.mrb[0].mxu0
      %7783 = vmatprep.mubr.bf16.mxu0 0
      %7784 = vmatmul.mubr.bf16.gmra.mrb[0].mxu0 %v7573
      %v7785 = vpop.f32.mrb[0].mxu0
      %v7786 = vadd.f32 0.0, %v7785
      %v7787 = vpop.f32.mrb[0].mxu0
      %v7788 = vpop.f32.mrb[0].mxu0
      %v7789 = vadd.f32 0.0, %v7788
      %v7790 = vpop.f32.mrb[0].mxu0
      %7791 = vmatprep.mubr.bf16.mxu0 0
      %7792 = vmatmul.mubr.bf16.gmra.mrb[0].mxu0 %v7574
      %v7793 = vpop.f32.mrb[0].mxu0
      %v7794 = vadd.f32 0.0, %v7793
      %v7795 = vpop.f32.mrb[0].mxu0
      %v7796 = vpop.f32.mrb[0].mxu0
      %v7797 = vadd.f32 0.0, %v7796
      %v7798 = vpop.f32.mrb[0].mxu0
      %7799 = vdwg.mxu0
      %v7800 = vadd.f32 %v7414, %v7674
      %v7801 = vadd.f32 %v7415, %v7677
      %v7802 = vadd.f32 %v7416, %v7682
      %v7803 = vadd.f32 %v7417, %v7685
      %v7804 = vadd.f32 %v7418, %v7690
      %v7805 = vadd.f32 %v7419, %v7693
      %v7806 = vadd.f32 %v7420, %v7698
      %v7807 = vadd.f32 %v7421, %v7701
      %v7808 = vadd.f32 %v7422, %v7706
      %v7809 = vadd.f32 %v7423, %v7709
      %v7810 = vadd.f32 %v7424, %v7714
      %v7811 = vadd.f32 %v7425, %v7717
      %v7812 = vadd.f32 %v7426, %v7722
      %v7813 = vadd.f32 %v7427, %v7725
      %v7814 = vadd.f32 %v7428, %v7730
      %v7815 = vadd.f32 %v7429, %v7733
      %v7816 = vadd.f32 %v7430, %v7738
      %v7817 = vadd.f32 %v7431, %v7741
      %v7818 = vadd.f32 %v7432, %v7746
      %v7819 = vadd.f32 %v7433, %v7749
      %v7820 = vadd.f32 %v7434, %v7754
      %v7821 = vadd.f32 %v7435, %v7757
      %v7822 = vadd.f32 %v7436, %v7762
      %v7823 = vadd.f32 %v7437, %v7765
      %v7824 = vadd.f32 %v7438, %v7770
      %v7825 = vadd.f32 %v7439, %v7773
      %v7826 = vadd.f32 %v7440, %v7778
      %v7827 = vadd.f32 %v7441, %v7781
      %v7828 = vadd.f32 %v7442, %v7786
      %v7829 = vadd.f32 %v7443, %v7789
      %v7830 = vadd.f32 %v7444, %v7794
      %v7831 = vadd.f32 %v7445, %v7797
      %v7832 = vld [vmem:[%s5287] sm:$0xf]
      %v7833 = vld [vmem:[%s5287 + $0x4] sm:$0xf]
      %v7834 = vld [vmem:[%s5287 + $0x8] sm:$0x1]
      %v7835 = vld [vmem:[%s5287 + $0xc] sm:$0xf]
      %v7836 = vld [vmem:[%s5287 + $0x10] sm:$0xf]
      %v7837 = vld [vmem:[%s5287 + $0x14] sm:$0x1]
      %v7838 = vld [vmem:[%s5287 + $0x18] sm:$0xf]
      %v7839 = vld [vmem:[%s5287 + $0x1c] sm:$0xf]
      %v7840 = vld [vmem:[%s5287 + $0x20] sm:$0x1]
      %v7841 = vld [vmem:[%s5287 + $0x24] sm:$0xf]
      %v7842 = vld [vmem:[%s5287 + $0x28] sm:$0xf]
      %v7843 = vld [vmem:[%s5287 + $0x2c] sm:$0x1]
      %v7844 = vld [vmem:[%s5287 + $0x30] sm:$0xf]
      %v7845 = vld [vmem:[%s5287 + $0x34] sm:$0xf]
      %v7846 = vld [vmem:[%s5287 + $0x38] sm:$0x1]
      %v7847 = vld [vmem:[%s5287 + $0x3c] sm:$0xf]
      %v7848 = vld [vmem:[%s5287 + $0x40] sm:$0xf]
      %v7849 = vld [vmem:[%s5287 + $0x44] sm:$0x1]
      %v7850 = vld [vmem:[%s5287 + $0x48] sm:$0xf]
      %v7851 = vld [vmem:[%s5287 + $0x4c] sm:$0xf]
      %v7852 = vld [vmem:[%s5287 + $0x50] sm:$0x1]
      %v7853 = vld [vmem:[%s5287 + $0x54] sm:$0xf]
      %v7854 = vld [vmem:[%s5287 + $0x58] sm:$0xf]
      %v7855 = vld [vmem:[%s5287 + $0x5c] sm:$0x1]
      %v7856 = vld [vmem:[%s5287 + $0x60] sm:$0xf]
      %v7857 = vld [vmem:[%s5287 + $0x64] sm:$0xf]
      %v7858 = vld [vmem:[%s5287 + $0x68] sm:$0x1]
      %v7859 = vld [vmem:[%s5287 + $0x6c] sm:$0xf]
      %v7860 = vld [vmem:[%s5287 + $0x70] sm:$0xf]
      %v7861 = vld [vmem:[%s5287 + $0x74] sm:$0x1]
      %v7862 = vld [vmem:[%s5287 + $0x78] sm:$0xf]
      %v7863 = vld [vmem:[%s5287 + $0x7c] sm:$0xf]
      %v7864 = vld [vmem:[%s5287 + $0x80] sm:$0x1]
      %v7865 = vld [vmem:[%s5287 + $0x84] sm:$0xf]
      %v7866 = vld [vmem:[%s5287 + $0x88] sm:$0xf]
      %v7867 = vld [vmem:[%s5287 + $0x8c] sm:$0x1]
      %v7868 = vld [vmem:[%s5287 + $0x90] sm:$0xf]
      %v7869 = vld [vmem:[%s5287 + $0x94] sm:$0xf]
      %v7870 = vld [vmem:[%s5287 + $0x98] sm:$0x1]
      %v7871 = vld [vmem:[%s5287 + $0x9c] sm:$0xf]
      %v7872 = vld [vmem:[%s5287 + $0xa0] sm:$0xf]
      %v7873 = vld [vmem:[%s5287 + $0xa4] sm:$0x1]
      %v7874 = vld [vmem:[%s5287 + $0xa8] sm:$0xf]
      %v7875 = vld [vmem:[%s5287 + $0xac] sm:$0xf]
      %v7876 = vld [vmem:[%s5287 + $0xb0] sm:$0x1]
      %v7877 = vld [vmem:[%s5287 + $0xb4] sm:$0xf]
      %v7878 = vld [vmem:[%s5287 + $0xb8] sm:$0xf]
      %v7879 = vld [vmem:[%s5287 + $0xbc] sm:$0x1]
      %v7881 = vshrl.u32 %v7832, 16
      %v7883 = vrot.slane %v7881, 4
      %v7884 = vshll.u32 %v7832, 16
      %v7886 = vrot.slane %v7884, 5
      %v7887 = vor.u32 %v7883, %v7886
      %v7888 = vrot.slane %v7887, 4
      %v7890 = vshll.u32 %v7833, 16
      %v7892 = vrot.slane %v7890, 5
      %v7893 = vsel %vm427, %v7888, %v7892
      %v7894 = vshrl.u32 %v7833, 16
      %v7896 = vrot.slane %v7894, 4
      %v7897 = vor.u32 %v7896, %v7892
      %v7898 = vrot.slane %v7897, 4
      %v7900 = vshll.u32 %v7834, 16
      %v7902 = vrot.slane %v7900, 5
      %v7903 = vsel %vm427, %v7898, %v7902
      %v7905 = vshrl.u32 %v7835, 16
      %v7907 = vrot.slane %v7905, 4
      %v7908 = vshll.u32 %v7835, 16
      %v7910 = vrot.slane %v7908, 5
      %v7911 = vor.u32 %v7907, %v7910
      %v7912 = vrot.slane %v7911, 4
      %v7914 = vshll.u32 %v7836, 16
      %v7916 = vrot.slane %v7914, 5
      %v7917 = vsel %vm427, %v7912, %v7916
      %v7918 = vshrl.u32 %v7836, 16
      %v7920 = vrot.slane %v7918, 4
      %v7921 = vor.u32 %v7920, %v7916
      %v7922 = vrot.slane %v7921, 4
      %v7924 = vshll.u32 %v7837, 16
      %v7926 = vrot.slane %v7924, 5
      %v7927 = vsel %vm427, %v7922, %v7926
      %v7929 = vshrl.u32 %v7838, 16
      %v7931 = vrot.slane %v7929, 4
      %v7932 = vshll.u32 %v7838, 16
      %v7934 = vrot.slane %v7932, 5
      %v7935 = vor.u32 %v7931, %v7934
      %v7936 = vrot.slane %v7935, 4
      %v7938 = vshll.u32 %v7839, 16
      %v7940 = vrot.slane %v7938, 5
      %v7941 = vsel %vm427, %v7936, %v7940
      %v7942 = vshrl.u32 %v7839, 16
      %v7944 = vrot.slane %v7942, 4
      %v7945 = vor.u32 %v7944, %v7940
      %v7946 = vrot.slane %v7945, 4
      %v7948 = vshll.u32 %v7840, 16
      %v7950 = vrot.slane %v7948, 5
      %v7951 = vsel %vm427, %v7946, %v7950
      %v7953 = vshrl.u32 %v7841, 16
      %v7955 = vrot.slane %v7953, 4
      %v7956 = vshll.u32 %v7841, 16
      %v7958 = vrot.slane %v7956, 5
      %v7959 = vor.u32 %v7955, %v7958
      %v7960 = vrot.slane %v7959, 4
      %v7962 = vshll.u32 %v7842, 16
      %v7964 = vrot.slane %v7962, 5
      %v7965 = vsel %vm427, %v7960, %v7964
      %v7966 = vshrl.u32 %v7842, 16
      %v7968 = vrot.slane %v7966, 4
      %v7969 = vor.u32 %v7968, %v7964
      %v7970 = vrot.slane %v7969, 4
      %v7972 = vshll.u32 %v7843, 16
      %v7974 = vrot.slane %v7972, 5
      %v7975 = vsel %vm427, %v7970, %v7974
      %v7977 = vshrl.u32 %v7844, 16
      %v7979 = vrot.slane %v7977, 4
      %v7980 = vshll.u32 %v7844, 16
      %v7982 = vrot.slane %v7980, 5
      %v7983 = vor.u32 %v7979, %v7982
      %v7984 = vrot.slane %v7983, 4
      %v7986 = vshll.u32 %v7845, 16
      %v7988 = vrot.slane %v7986, 5
      %v7989 = vsel %vm427, %v7984, %v7988
      %v7990 = vshrl.u32 %v7845, 16
      %v7992 = vrot.slane %v7990, 4
      %v7993 = vor.u32 %v7992, %v7988
      %v7994 = vrot.slane %v7993, 4
      %v7996 = vshll.u32 %v7846, 16
      %v7998 = vrot.slane %v7996, 5
      %v7999 = vsel %vm427, %v7994, %v7998
      %v8001 = vshrl.u32 %v7847, 16
      %v8003 = vrot.slane %v8001, 4
      %v8004 = vshll.u32 %v7847, 16
      %v8006 = vrot.slane %v8004, 5
      %v8007 = vor.u32 %v8003, %v8006
      %v8008 = vrot.slane %v8007, 4
      %v8010 = vshll.u32 %v7848, 16
      %v8012 = vrot.slane %v8010, 5
      %v8013 = vsel %vm427, %v8008, %v8012
      %v8014 = vshrl.u32 %v7848, 16
      %v8016 = vrot.slane %v8014, 4
      %v8017 = vor.u32 %v8016, %v8012
      %v8018 = vrot.slane %v8017, 4
      %v8020 = vshll.u32 %v7849, 16
      %v8022 = vrot.slane %v8020, 5
      %v8023 = vsel %vm427, %v8018, %v8022
      %v8025 = vshrl.u32 %v7850, 16
      %v8027 = vrot.slane %v8025, 4
      %v8028 = vshll.u32 %v7850, 16
      %v8030 = vrot.slane %v8028, 5
      %v8031 = vor.u32 %v8027, %v8030
      %v8032 = vrot.slane %v8031, 4
      %v8034 = vshll.u32 %v7851, 16
      %v8036 = vrot.slane %v8034, 5
      %v8037 = vsel %vm427, %v8032, %v8036
      %v8038 = vshrl.u32 %v7851, 16
      %v8040 = vrot.slane %v8038, 4
      %v8041 = vor.u32 %v8040, %v8036
      %v8042 = vrot.slane %v8041, 4
      %v8044 = vshll.u32 %v7852, 16
      %v8046 = vrot.slane %v8044, 5
      %v8047 = vsel %vm427, %v8042, %v8046
      %v8049 = vshrl.u32 %v7853, 16
      %v8051 = vrot.slane %v8049, 4
      %v8052 = vshll.u32 %v7853, 16
      %v8054 = vrot.slane %v8052, 5
      %v8055 = vor.u32 %v8051, %v8054
      %v8056 = vrot.slane %v8055, 4
      %v8058 = vshll.u32 %v7854, 16
      %v8060 = vrot.slane %v8058, 5
      %v8061 = vsel %vm427, %v8056, %v8060
      %v8062 = vshrl.u32 %v7854, 16
      %v8064 = vrot.slane %v8062, 4
      %v8065 = vor.u32 %v8064, %v8060
      %v8066 = vrot.slane %v8065, 4
      %v8068 = vshll.u32 %v7855, 16
      %v8070 = vrot.slane %v8068, 5
      %v8071 = vsel %vm427, %v8066, %v8070
      %v8073 = vshrl.u32 %v7856, 16
      %v8075 = vrot.slane %v8073, 4
      %v8076 = vshll.u32 %v7856, 16
      %v8078 = vrot.slane %v8076, 5
      %v8079 = vor.u32 %v8075, %v8078
      %v8080 = vrot.slane %v8079, 4
      %v8082 = vshll.u32 %v7857, 16
      %v8084 = vrot.slane %v8082, 5
      %v8085 = vsel %vm427, %v8080, %v8084
      %v8086 = vshrl.u32 %v7857, 16
      %v8088 = vrot.slane %v8086, 4
      %v8089 = vor.u32 %v8088, %v8084
      %v8090 = vrot.slane %v8089, 4
      %v8092 = vshll.u32 %v7858, 16
      %v8094 = vrot.slane %v8092, 5
      %v8095 = vsel %vm427, %v8090, %v8094
      %v8097 = vshrl.u32 %v7859, 16
      %v8099 = vrot.slane %v8097, 4
      %v8100 = vshll.u32 %v7859, 16
      %v8102 = vrot.slane %v8100, 5
      %v8103 = vor.u32 %v8099, %v8102
      %v8104 = vrot.slane %v8103, 4
      %v8106 = vshll.u32 %v7860, 16
      %v8108 = vrot.slane %v8106, 5
      %v8109 = vsel %vm427, %v8104, %v8108
      %v8110 = vshrl.u32 %v7860, 16
      %v8112 = vrot.slane %v8110, 4
      %v8113 = vor.u32 %v8112, %v8108
      %v8114 = vrot.slane %v8113, 4
      %v8116 = vshll.u32 %v7861, 16
      %v8118 = vrot.slane %v8116, 5
      %v8119 = vsel %vm427, %v8114, %v8118
      %v8121 = vshrl.u32 %v7862, 16
      %v8123 = vrot.slane %v8121, 4
      %v8124 = vshll.u32 %v7862, 16
      %v8126 = vrot.slane %v8124, 5
      %v8127 = vor.u32 %v8123, %v8126
      %v8128 = vrot.slane %v8127, 4
      %v8130 = vshll.u32 %v7863, 16
      %v8132 = vrot.slane %v8130, 5
      %v8133 = vsel %vm427, %v8128, %v8132
      %v8134 = vshrl.u32 %v7863, 16
      %v8136 = vrot.slane %v8134, 4
      %v8137 = vor.u32 %v8136, %v8132
      %v8138 = vrot.slane %v8137, 4
      %v8140 = vshll.u32 %v7864, 16
      %v8142 = vrot.slane %v8140, 5
      %v8143 = vsel %vm427, %v8138, %v8142
      %v8145 = vshrl.u32 %v7865, 16
      %v8147 = vrot.slane %v8145, 4
      %v8148 = vshll.u32 %v7865, 16
      %v8150 = vrot.slane %v8148, 5
      %v8151 = vor.u32 %v8147, %v8150
      %v8152 = vrot.slane %v8151, 4
      %v8154 = vshll.u32 %v7866, 16
      %v8156 = vrot.slane %v8154, 5
      %v8157 = vsel %vm427, %v8152, %v8156
      %v8158 = vshrl.u32 %v7866, 16
      %v8160 = vrot.slane %v8158, 4
      %v8161 = vor.u32 %v8160, %v8156
      %v8162 = vrot.slane %v8161, 4
      %v8164 = vshll.u32 %v7867, 16
      %v8166 = vrot.slane %v8164, 5
      %v8167 = vsel %vm427, %v8162, %v8166
      %v8169 = vshrl.u32 %v7868, 16
      %v8171 = vrot.slane %v8169, 4
      %v8172 = vshll.u32 %v7868, 16
      %v8174 = vrot.slane %v8172, 5
      %v8175 = vor.u32 %v8171, %v8174
      %v8176 = vrot.slane %v8175, 4
      %v8178 = vshll.u32 %v7869, 16
      %v8180 = vrot.slane %v8178, 5
      %v8181 = vsel %vm427, %v8176, %v8180
      %v8182 = vshrl.u32 %v7869, 16
      %v8184 = vrot.slane %v8182, 4
      %v8185 = vor.u32 %v8184, %v8180
      %v8186 = vrot.slane %v8185, 4
      %v8188 = vshll.u32 %v7870, 16
      %v8190 = vrot.slane %v8188, 5
      %v8191 = vsel %vm427, %v8186, %v8190
      %v8193 = vshrl.u32 %v7871, 16
      %v8195 = vrot.slane %v8193, 4
      %v8196 = vshll.u32 %v7871, 16
      %v8198 = vrot.slane %v8196, 5
      %v8199 = vor.u32 %v8195, %v8198
      %v8200 = vrot.slane %v8199, 4
      %v8202 = vshll.u32 %v7872, 16
      %v8204 = vrot.slane %v8202, 5
      %v8205 = vsel %vm427, %v8200, %v8204
      %v8206 = vshrl.u32 %v7872, 16
      %v8208 = vrot.slane %v8206, 4
      %v8209 = vor.u32 %v8208, %v8204
      %v8210 = vrot.slane %v8209, 4
      %v8212 = vshll.u32 %v7873, 16
      %v8214 = vrot.slane %v8212, 5
      %v8215 = vsel %vm427, %v8210, %v8214
      %v8217 = vshrl.u32 %v7874, 16
      %v8219 = vrot.slane %v8217, 4
      %v8220 = vshll.u32 %v7874, 16
      %v8222 = vrot.slane %v8220, 5
      %v8223 = vor.u32 %v8219, %v8222
      %v8224 = vrot.slane %v8223, 4
      %v8226 = vshll.u32 %v7875, 16
      %v8228 = vrot.slane %v8226, 5
      %v8229 = vsel %vm427, %v8224, %v8228
      %v8230 = vshrl.u32 %v7875, 16
      %v8232 = vrot.slane %v8230, 4
      %v8233 = vor.u32 %v8232, %v8228
      %v8234 = vrot.slane %v8233, 4
      %v8236 = vshll.u32 %v7876, 16
      %v8238 = vrot.slane %v8236, 5
      %v8239 = vsel %vm427, %v8234, %v8238
      %v8241 = vshrl.u32 %v7877, 16
      %v8243 = vrot.slane %v8241, 4
      %v8244 = vshll.u32 %v7877, 16
      %v8246 = vrot.slane %v8244, 5
      %v8247 = vor.u32 %v8243, %v8246
      %v8248 = vrot.slane %v8247, 4
      %v8250 = vshll.u32 %v7878, 16
      %v8252 = vrot.slane %v8250, 5
      %v8253 = vsel %vm427, %v8248, %v8252
      %v8254 = vshrl.u32 %v7878, 16
      %v8256 = vrot.slane %v8254, 4
      %v8257 = vor.u32 %v8256, %v8252
      %v8258 = vrot.slane %v8257, 4
      %v8260 = vshll.u32 %v7879, 16
      %v8262 = vrot.slane %v8260, 5
      %v8263 = vsel %vm427, %v8258, %v8262
      %s8264 = scalar_lea.vmem %s4, 256
      %v8265 = vld [vmem:[%s8264] sm:$0xf]
      %v8266 = vld [vmem:[%s8264 + $0x4] sm:$0xf]
      %v8267 = vld [vmem:[%s8264 + $0x8] sm:$0xf]
      %v8268 = vld [vmem:[%s8264 + $0xc] sm:$0xf]
      %v8269 = vld [vmem:[%s8264 + $0x10] sm:$0xf]
      %v8270 = vld [vmem:[%s8264 + $0x14] sm:$0xf]
      %v8271 = vld [vmem:[%s8264 + $0x18] sm:$0xf]
      %v8272 = vld [vmem:[%s8264 + $0x1c] sm:$0xf]
      %v8273 = vld [vmem:[%s8264 + $0x20] sm:$0xf]
      %v8274 = vld [vmem:[%s8264 + $0x24] sm:$0xf]
      %v8275 = vld [vmem:[%s8264 + $0x28] sm:$0xf]
      %v8276 = vld [vmem:[%s8264 + $0x2c] sm:$0xf]
      %v8277 = vld [vmem:[%s8264 + $0x30] sm:$0xf]
      %v8278 = vld [vmem:[%s8264 + $0x34] sm:$0xf]
      %v8279 = vld [vmem:[%s8264 + $0x38] sm:$0xf]
      %v8280 = vld [vmem:[%s8264 + $0x3c] sm:$0xf]
      %v8281 = vunpack.c.l.b16 %v7893
      %v8282 = vunpack.c.l.b16 %v7903
      %v8283 = vunpack.c.l.b16 %v7917
      %v8284 = vunpack.c.l.b16 %v7927
      %v8285 = vunpack.c.l.b16 %v7941
      %v8286 = vunpack.c.l.b16 %v7951
      %v8287 = vunpack.c.l.b16 %v7965
      %v8288 = vunpack.c.l.b16 %v7975
      %v8289 = vunpack.c.l.b16 %v7989
      %v8290 = vunpack.c.l.b16 %v7999
      %v8291 = vunpack.c.l.b16 %v8013
      %v8292 = vunpack.c.l.b16 %v8023
      %v8293 = vunpack.c.l.b16 %v8037
      %v8294 = vunpack.c.l.b16 %v8047
      %v8295 = vunpack.c.l.b16 %v8061
      %v8296 = vunpack.c.l.b16 %v8071
      %v8297 = vunpack.c.l.b16 %v8085
      %v8298 = vunpack.c.l.b16 %v8095
      %v8299 = vunpack.c.l.b16 %v8109
      %v8300 = vunpack.c.l.b16 %v8119
      %v8301 = vunpack.c.l.b16 %v8133
      %v8302 = vunpack.c.l.b16 %v8143
      %v8303 = vunpack.c.l.b16 %v8157
      %v8304 = vunpack.c.l.b16 %v8167
      %v8305 = vunpack.c.l.b16 %v8181
      %v8306 = vunpack.c.l.b16 %v8191
      %v8307 = vunpack.c.l.b16 %v8205
      %v8308 = vunpack.c.l.b16 %v8215
      %v8309 = vunpack.c.l.b16 %v8229
      %v8310 = vunpack.c.l.b16 %v8239
      %v8311 = vunpack.c.l.b16 %v8253
      %v8312 = vunpack.c.l.b16 %v8263
      %v8313 = vpack.c.b16 %v8282, %v8281
      %v8314 = vpack.c.b16 %v8284, %v8283
      %v8315 = vpack.c.b16 %v8286, %v8285
      %v8316 = vpack.c.b16 %v8288, %v8287
      %v8317 = vpack.c.b16 %v8290, %v8289
      %v8318 = vpack.c.b16 %v8292, %v8291
      %v8319 = vpack.c.b16 %v8294, %v8293
      %v8320 = vpack.c.b16 %v8296, %v8295
      %v8321 = vpack.c.b16 %v8298, %v8297
      %v8322 = vpack.c.b16 %v8300, %v8299
      %v8323 = vpack.c.b16 %v8302, %v8301
      %v8324 = vpack.c.b16 %v8304, %v8303
      %v8325 = vpack.c.b16 %v8306, %v8305
      %v8326 = vpack.c.b16 %v8308, %v8307
      %v8327 = vpack.c.b16 %v8310, %v8309
      %v8328 = vpack.c.b16 %v8312, %v8311
      %v8361 = vunpack.c.l.b16 %v8265
      %v8362 = vunpack.c.l.b16 %v8266
      %v8363 = vunpack.c.l.b16 %v8267
      %v8364 = vunpack.c.l.b16 %v8268
      %v8365 = vunpack.c.l.b16 %v8269
      %v8366 = vunpack.c.l.b16 %v8270
      %v8367 = vunpack.c.l.b16 %v8271
      %v8368 = vunpack.c.l.b16 %v8272
      %v8369 = vunpack.c.l.b16 %v8273
      %v8370 = vunpack.c.l.b16 %v8274
      %v8371 = vunpack.c.l.b16 %v8275
      %v8372 = vunpack.c.l.b16 %v8276
      %v8373 = vunpack.c.l.b16 %v8277
      %v8374 = vunpack.c.l.b16 %v8278
      %v8375 = vunpack.c.l.b16 %v8279
      %v8376 = vunpack.c.l.b16 %v8280
      %v8377 = vpack.c.b16 %v8362, %v8361
      %v8378 = vpack.c.b16 %v8364, %v8363
      %v8379 = vpack.c.b16 %v8366, %v8365
      %v8380 = vpack.c.b16 %v8368, %v8367
      %v8381 = vpack.c.b16 %v8370, %v8369
      %v8382 = vpack.c.b16 %v8372, %v8371
      %v8383 = vpack.c.b16 %v8374, %v8373
      %v8384 = vpack.c.b16 %v8376, %v8375
      %8393 = vmatprep.subr.bf16.mxu0 0
      %8394 = vmatpush1.bf16.msra.mxu0 %v8377
      %8395 = vmatprep.subr.bf16.mxu0 0
      %8396 = vmatpush1.bf16.msra.mxu0 %v8378
      %8397 = vmatprep.subr.bf16.mxu0 0
      %8398 = vmatpush1.bf16.msra.mxu0 %v8379
      %8399 = vmatprep.subr.bf16.mxu0 0
      %8400 = vmatpush1.bf16.msra.mxu0 %v8380
      %8401 = vmatprep.subr.bf16.mxu0 0
      %8402 = vmatpush1.bf16.msra.mxu0 %v8381
      %8403 = vmatprep.subr.bf16.mxu0 0
      %8404 = vmatpush1.bf16.msra.mxu0 %v8382
      %8405 = vmatprep.subr.bf16.mxu0 0
      %8406 = vmatpush1.bf16.msra.mxu0 %v8383
      %8407 = vmatprep.subr.bf16.mxu0 0
      %8408 = vmatpush1.bf16.msra.mxu0 %v8384
      %8409 = vmatprep.subr.bf16.mxu0 0
      %8410 = vmatpush1.bf16.msra.mxu0 0
      %8411 = vmatprep.subr.bf16.mxu0 0
      %8412 = vmatpush1.bf16.msra.mxu0 0
      %8413 = vmatprep.subr.bf16.mxu0 0
      %8414 = vmatpush1.bf16.msra.mxu0 0
      %8415 = vmatprep.subr.bf16.mxu0 0
      %8416 = vmatpush1.bf16.msra.mxu0 0
      %8417 = vmatprep.subr.bf16.mxu0 0
      %8418 = vmatpush1.bf16.msra.mxu0 0
      %8419 = vmatprep.subr.bf16.mxu0 0
      %8420 = vmatpush1.bf16.msra.mxu0 0
      %8421 = vmatprep.subr.bf16.mxu0 0
      %8422 = vmatpush1.bf16.msra.mxu0 0
      %8423 = vmatprep.subr.bf16.mxu0 0
      %8424 = vmatpush1.bf16.msra.mxu0 0
      %8425 = vmatprep.mubr.bf16.mxu0 0
      %8426 = vmatmul.mubr.bf16.gmra.mrb[0].mxu0 %v8313
      %v8427 = vpop.f32.mrb[0].mxu0
      %v8428 = vadd.f32 0.0, %v8427
      %v8429 = vpop.f32.mrb[0].mxu0
      %v8430 = vpop.f32.mrb[0].mxu0
      %v8431 = vadd.f32 0.0, %v8430
      %v8432 = vpop.f32.mrb[0].mxu0
      %8433 = vmatprep.mubr.bf16.mxu0 0
      %8434 = vmatmul.mubr.bf16.gmra.mrb[0].mxu0 %v8314
      %v8435 = vpop.f32.mrb[0].mxu0
      %v8436 = vadd.f32 0.0, %v8435
      %v8437 = vpop.f32.mrb[0].mxu0
      %v8438 = vpop.f32.mrb[0].mxu0
      %v8439 = vadd.f32 0.0, %v8438
      %v8440 = vpop.f32.mrb[0].mxu0
      %8441 = vmatprep.mubr.bf16.mxu0 0
      %8442 = vmatmul.mubr.bf16.gmra.mrb[0].mxu0 %v8315
      %v8443 = vpop.f32.mrb[0].mxu0
      %v8444 = vadd.f32 0.0, %v8443
      %v8445 = vpop.f32.mrb[0].mxu0
      %v8446 = vpop.f32.mrb[0].mxu0
      %v8447 = vadd.f32 0.0, %v8446
      %v8448 = vpop.f32.mrb[0].mxu0
      %8449 = vmatprep.mubr.bf16.mxu0 0
      %8450 = vmatmul.mubr.bf16.gmra.mrb[0].mxu0 %v8316
      %v8451 = vpop.f32.mrb[0].mxu0
      %v8452 = vadd.f32 0.0, %v8451
      %v8453 = vpop.f32.mrb[0].mxu0
      %v8454 = vpop.f32.mrb[0].mxu0
      %v8455 = vadd.f32 0.0, %v8454
      %v8456 = vpop.f32.mrb[0].mxu0
      %8457 = vmatprep.mubr.bf16.mxu0 0
      %8458 = vmatmul.mubr.bf16.gmra.mrb[0].mxu0 %v8317
      %v8459 = vpop.f32.mrb[0].mxu0
      %v8460 = vadd.f32 0.0, %v8459
      %v8461 = vpop.f32.mrb[0].mxu0
      %v8462 = vpop.f32.mrb[0].mxu0
      %v8463 = vadd.f32 0.0, %v8462
      %v8464 = vpop.f32.mrb[0].mxu0
      %8465 = vmatprep.mubr.bf16.mxu0 0
      %8466 = vmatmul.mubr.bf16.gmra.mrb[0].mxu0 %v8318
      %v8467 = vpop.f32.mrb[0].mxu0
      %v8468 = vadd.f32 0.0, %v8467
      %v8469 = vpop.f32.mrb[0].mxu0
      %v8470 = vpop.f32.mrb[0].mxu0
      %v8471 = vadd.f32 0.0, %v8470
      %v8472 = vpop.f32.mrb[0].mxu0
      %8473 = vmatprep.mubr.bf16.mxu0 0
      %8474 = vmatmul.mubr.bf16.gmra.mrb[0].mxu0 %v8319
      %v8475 = vpop.f32.mrb[0].mxu0
      %v8476 = vadd.f32 0.0, %v8475
      %v8477 = vpop.f32.mrb[0].mxu0
      %v8478 = vpop.f32.mrb[0].mxu0
      %v8479 = vadd.f32 0.0, %v8478
      %v8480 = vpop.f32.mrb[0].mxu0
      %8481 = vmatprep.mubr.bf16.mxu0 0
      %8482 = vmatmul.mubr.bf16.gmra.mrb[0].mxu0 %v8320
      %v8483 = vpop.f32.mrb[0].mxu0
      %v8484 = vadd.f32 0.0, %v8483
      %v8485 = vpop.f32.mrb[0].mxu0
      %v8486 = vpop.f32.mrb[0].mxu0
      %v8487 = vadd.f32 0.0, %v8486
      %v8488 = vpop.f32.mrb[0].mxu0
      %8489 = vmatprep.mubr.bf16.mxu0 0
      %8490 = vmatmul.mubr.bf16.gmra.mrb[0].mxu0 %v8321
      %v8491 = vpop.f32.mrb[0].mxu0
      %v8492 = vadd.f32 0.0, %v8491
      %v8493 = vpop.f32.mrb[0].mxu0
      %v8494 = vpop.f32.mrb[0].mxu0
      %v8495 = vadd.f32 0.0, %v8494
      %v8496 = vpop.f32.mrb[0].mxu0
      %8497 = vmatprep.mubr.bf16.mxu0 0
      %8498 = vmatmul.mubr.bf16.gmra.mrb[0].mxu0 %v8322
      %v8499 = vpop.f32.mrb[0].mxu0
      %v8500 = vadd.f32 0.0, %v8499
      %v8501 = vpop.f32.mrb[0].mxu0
      %v8502 = vpop.f32.mrb[0].mxu0
      %v8503 = vadd.f32 0.0, %v8502
      %v8504 = vpop.f32.mrb[0].mxu0
      %8505 = vmatprep.mubr.bf16.mxu0 0
      %8506 = vmatmul.mubr.bf16.gmra.mrb[0].mxu0 %v8323
      %v8507 = vpop.f32.mrb[0].mxu0
      %v8508 = vadd.f32 0.0, %v8507
      %v8509 = vpop.f32.mrb[0].mxu0
      %v8510 = vpop.f32.mrb[0].mxu0
      %v8511 = vadd.f32 0.0, %v8510
      %v8512 = vpop.f32.mrb[0].mxu0
      %8513 = vmatprep.mubr.bf16.mxu0 0
      %8514 = vmatmul.mubr.bf16.gmra.mrb[0].mxu0 %v8324
      %v8515 = vpop.f32.mrb[0].mxu0
      %v8516 = vadd.f32 0.0, %v8515
      %v8517 = vpop.f32.mrb[0].mxu0
      %v8518 = vpop.f32.mrb[0].mxu0
      %v8519 = vadd.f32 0.0, %v8518
      %v8520 = vpop.f32.mrb[0].mxu0
      %8521 = vmatprep.mubr.bf16.mxu0 0
      %8522 = vmatmul.mubr.bf16.gmra.mrb[0].mxu0 %v8325
      %v8523 = vpop.f32.mrb[0].mxu0
      %v8524 = vadd.f32 0.0, %v8523
      %v8525 = vpop.f32.mrb[0].mxu0
      %v8526 = vpop.f32.mrb[0].mxu0
      %v8527 = vadd.f32 0.0, %v8526
      %v8528 = vpop.f32.mrb[0].mxu0
      %8529 = vmatprep.mubr.bf16.mxu0 0
      %8530 = vmatmul.mubr.bf16.gmra.mrb[0].mxu0 %v8326
      %v8531 = vpop.f32.mrb[0].mxu0
      %v8532 = vadd.f32 0.0, %v8531
      %v8533 = vpop.f32.mrb[0].mxu0
      %v8534 = vpop.f32.mrb[0].mxu0
      %v8535 = vadd.f32 0.0, %v8534
      %v8536 = vpop.f32.mrb[0].mxu0
      %8537 = vmatprep.mubr.bf16.mxu0 0
      %8538 = vmatmul.mubr.bf16.gmra.mrb[0].mxu0 %v8327
      %v8539 = vpop.f32.mrb[0].mxu0
      %v8540 = vadd.f32 0.0, %v8539
      %v8541 = vpop.f32.mrb[0].mxu0
      %v8542 = vpop.f32.mrb[0].mxu0
      %v8543 = vadd.f32 0.0, %v8542
      %v8544 = vpop.f32.mrb[0].mxu0
      %8545 = vmatprep.mubr.bf16.mxu0 0
      %8546 = vmatmul.mubr.bf16.gmra.mrb[0].mxu0 %v8328
      %v8547 = vpop.f32.mrb[0].mxu0
      %v8548 = vadd.f32 0.0, %v8547
      %v8549 = vpop.f32.mrb[0].mxu0
      %v8550 = vpop.f32.mrb[0].mxu0
      %v8551 = vadd.f32 0.0, %v8550
      %v8552 = vpop.f32.mrb[0].mxu0
      %8553 = vdwg.mxu0
      %v8554 = vadd.f32 %v7800, %v8428
      %v8555 = vadd.f32 %v7801, %v8431
      %v8556 = vadd.f32 %v7802, %v8436
      %v8557 = vadd.f32 %v7803, %v8439
      %v8558 = vadd.f32 %v7804, %v8444
      %v8559 = vadd.f32 %v7805, %v8447
      %v8560 = vadd.f32 %v7806, %v8452
      %v8561 = vadd.f32 %v7807, %v8455
      %v8562 = vadd.f32 %v7808, %v8460
      %v8563 = vadd.f32 %v7809, %v8463
      %v8564 = vadd.f32 %v7810, %v8468
      %v8565 = vadd.f32 %v7811, %v8471
      %v8566 = vadd.f32 %v7812, %v8476
      %v8567 = vadd.f32 %v7813, %v8479
      %v8568 = vadd.f32 %v7814, %v8484
      %v8569 = vadd.f32 %v7815, %v8487
      %v8570 = vadd.f32 %v7816, %v8492
      %v8571 = vadd.f32 %v7817, %v8495
      %v8572 = vadd.f32 %v7818, %v8500
      %v8573 = vadd.f32 %v7819, %v8503
      %v8574 = vadd.f32 %v7820, %v8508
      %v8575 = vadd.f32 %v7821, %v8511
      %v8576 = vadd.f32 %v7822, %v8516
      %v8577 = vadd.f32 %v7823, %v8519
      %v8578 = vadd.f32 %v7824, %v8524
      %v8579 = vadd.f32 %v7825, %v8527
      %v8580 = vadd.f32 %v7826, %v8532
      %v8581 = vadd.f32 %v7827, %v8535
      %v8582 = vadd.f32 %v7828, %v8540
      %v8583 = vadd.f32 %v7829, %v8543
      %v8584 = vadd.f32 %v7830, %v8548
      %v8585 = vadd.f32 %v7831, %v8551
      %v8586 = vld [vmem:[%s5287] sm:$0xe]
      %v8587 = vld [vmem:[%s5287 + $0xc] sm:$0xe]
      %v8588 = vld [vmem:[%s5287 + $0x18] sm:$0xe]
      %v8589 = vld [vmem:[%s5287 + $0x24] sm:$0xe]
      %v8590 = vld [vmem:[%s5287 + $0x30] sm:$0xe]
      %v8591 = vld [vmem:[%s5287 + $0x3c] sm:$0xe]
      %v8592 = vld [vmem:[%s5287 + $0x48] sm:$0xe]
      %v8593 = vld [vmem:[%s5287 + $0x54] sm:$0xe]
      %v8594 = vld [vmem:[%s5287 + $0x60] sm:$0xe]
      %v8595 = vld [vmem:[%s5287 + $0x6c] sm:$0xe]
      %v8596 = vld [vmem:[%s5287 + $0x78] sm:$0xe]
      %v8597 = vld [vmem:[%s5287 + $0x84] sm:$0xe]
      %v8598 = vld [vmem:[%s5287 + $0x90] sm:$0xe]
      %v8599 = vld [vmem:[%s5287 + $0x9c] sm:$0xe]
      %v8600 = vld [vmem:[%s5287 + $0xa8] sm:$0xe]
      %v8601 = vld [vmem:[%s5287 + $0xb4] sm:$0xe]
      %v8650 = vrot.slane %v8586, 5
      %v8651 = vrot.slane %v8650, 4
      %v8652 = vrot.slane %v7833, 5
      %v8653 = vsel %vm1457, %v8651, %v8652
      %v8654 = vrot.slane %v8652, 4
      %v8655 = vrot.slane %v7834, 5
      %v8656 = vsel %vm1457, %v8654, %v8655
      %v8657 = vrot.slane %v8587, 5
      %v8658 = vrot.slane %v8657, 4
      %v8659 = vrot.slane %v7836, 5
      %v8660 = vsel %vm1457, %v8658, %v8659
      %v8661 = vrot.slane %v8659, 4
      %v8662 = vrot.slane %v7837, 5
      %v8663 = vsel %vm1457, %v8661, %v8662
      %v8664 = vrot.slane %v8588, 5
      %v8665 = vrot.slane %v8664, 4
      %v8666 = vrot.slane %v7839, 5
      %v8667 = vsel %vm1457, %v8665, %v8666
      %v8668 = vrot.slane %v8666, 4
      %v8669 = vrot.slane %v7840, 5
      %v8670 = vsel %vm1457, %v8668, %v8669
      %v8671 = vrot.slane %v8589, 5
      %v8672 = vrot.slane %v8671, 4
      %v8673 = vrot.slane %v7842, 5
      %v8674 = vsel %vm1457, %v8672, %v8673
      %v8675 = vrot.slane %v8673, 4
      %v8676 = vrot.slane %v7843, 5
      %v8677 = vsel %vm1457, %v8675, %v8676
      %v8678 = vrot.slane %v8590, 5
      %v8679 = vrot.slane %v8678, 4
      %v8680 = vrot.slane %v7845, 5
      %v8681 = vsel %vm1457, %v8679, %v8680
      %v8682 = vrot.slane %v8680, 4
      %v8683 = vrot.slane %v7846, 5
      %v8684 = vsel %vm1457, %v8682, %v8683
      %v8685 = vrot.slane %v8591, 5
      %v8686 = vrot.slane %v8685, 4
      %v8687 = vrot.slane %v7848, 5
      %v8688 = vsel %vm1457, %v8686, %v8687
      %v8689 = vrot.slane %v8687, 4
      %v8690 = vrot.slane %v7849, 5
      %v8691 = vsel %vm1457, %v8689, %v8690
      %v8692 = vrot.slane %v8592, 5
      %v8693 = vrot.slane %v8692, 4
      %v8694 = vrot.slane %v7851, 5
      %v8695 = vsel %vm1457, %v8693, %v8694
      %v8696 = vrot.slane %v8694, 4
      %v8697 = vrot.slane %v7852, 5
      %v8698 = vsel %vm1457, %v8696, %v8697
      %v8699 = vrot.slane %v8593, 5
      %v8700 = vrot.slane %v8699, 4
      %v8701 = vrot.slane %v7854, 5
      %v8702 = vsel %vm1457, %v8700, %v8701
      %v8703 = vrot.slane %v8701, 4
      %v8704 = vrot.slane %v7855, 5
      %v8705 = vsel %vm1457, %v8703, %v8704
      %v8706 = vrot.slane %v8594, 5
      %v8707 = vrot.slane %v8706, 4
      %v8708 = vrot.slane %v7857, 5
      %v8709 = vsel %vm1457, %v8707, %v8708
      %v8710 = vrot.slane %v8708, 4
      %v8711 = vrot.slane %v7858, 5
      %v8712 = vsel %vm1457, %v8710, %v8711
      %v8713 = vrot.slane %v8595, 5
      %v8714 = vrot.slane %v8713, 4
      %v8715 = vrot.slane %v7860, 5
      %v8716 = vsel %vm1457, %v8714, %v8715
      %v8717 = vrot.slane %v8715, 4
      %v8718 = vrot.slane %v7861, 5
      %v8719 = vsel %vm1457, %v8717, %v8718
      %v8720 = vrot.slane %v8596, 5
      %v8721 = vrot.slane %v8720, 4
      %v8722 = vrot.slane %v7863, 5
      %v8723 = vsel %vm1457, %v8721, %v8722
      %v8724 = vrot.slane %v8722, 4
      %v8725 = vrot.slane %v7864, 5
      %v8726 = vsel %vm1457, %v8724, %v8725
      %v8727 = vrot.slane %v8597, 5
      %v8728 = vrot.slane %v8727, 4
      %v8729 = vrot.slane %v7866, 5
      %v8730 = vsel %vm1457, %v8728, %v8729
      %v8731 = vrot.slane %v8729, 4
      %v8732 = vrot.slane %v7867, 5
      %v8733 = vsel %vm1457, %v8731, %v8732
      %v8734 = vrot.slane %v8598, 5
      %v8735 = vrot.slane %v8734, 4
      %v8736 = vrot.slane %v7869, 5
      %v8737 = vsel %vm1457, %v8735, %v8736
      %v8738 = vrot.slane %v8736, 4
      %v8739 = vrot.slane %v7870, 5
      %v8740 = vsel %vm1457, %v8738, %v8739
      %v8741 = vrot.slane %v8599, 5
      %v8742 = vrot.slane %v8741, 4
      %v8743 = vrot.slane %v7872, 5
      %v8744 = vsel %vm1457, %v8742, %v8743
      %v8745 = vrot.slane %v8743, 4
      %v8746 = vrot.slane %v7873, 5
      %v8747 = vsel %vm1457, %v8745, %v8746
      %v8748 = vrot.slane %v8600, 5
      %v8749 = vrot.slane %v8748, 4
      %v8750 = vrot.slane %v7875, 5
      %v8751 = vsel %vm1457, %v8749, %v8750
      %v8752 = vrot.slane %v8750, 4
      %v8753 = vrot.slane %v7876, 5
      %v8754 = vsel %vm1457, %v8752, %v8753
      %v8755 = vrot.slane %v8601, 5
      %v8756 = vrot.slane %v8755, 4
      %v8757 = vrot.slane %v7878, 5
      %v8758 = vsel %vm1457, %v8756, %v8757
      %v8759 = vrot.slane %v8757, 4
      %v8760 = vrot.slane %v7879, 5
      %v8761 = vsel %vm1457, %v8759, %v8760
      %s8762 = scalar_lea.vmem %s4, 320
      %v8763 = vld [vmem:[%s8762] sm:$0xf]
      %v8764 = vld [vmem:[%s8762 + $0x4] sm:$0xf]
      %v8765 = vld [vmem:[%s8762 + $0x8] sm:$0xf]
      %v8766 = vld [vmem:[%s8762 + $0xc] sm:$0xf]
      %v8767 = vld [vmem:[%s8762 + $0x10] sm:$0xf]
      %v8768 = vld [vmem:[%s8762 + $0x14] sm:$0xf]
      %v8769 = vld [vmem:[%s8762 + $0x18] sm:$0xf]
      %v8770 = vld [vmem:[%s8762 + $0x1c] sm:$0xf]
      %v8771 = vld [vmem:[%s8762 + $0x20] sm:$0xf]
      %v8772 = vld [vmem:[%s8762 + $0x24] sm:$0xf]
      %v8773 = vld [vmem:[%s8762 + $0x28] sm:$0xf]
      %v8774 = vld [vmem:[%s8762 + $0x2c] sm:$0xf]
      %v8775 = vld [vmem:[%s8762 + $0x30] sm:$0xf]
      %v8776 = vld [vmem:[%s8762 + $0x34] sm:$0xf]
      %v8777 = vld [vmem:[%s8762 + $0x38] sm:$0xf]
      %v8778 = vld [vmem:[%s8762 + $0x3c] sm:$0xf]
      %v8779 = vunpack.c.l.b16 %v8653
      %v8780 = vunpack.c.l.b16 %v8656
      %v8781 = vunpack.c.l.b16 %v8660
      %v8782 = vunpack.c.l.b16 %v8663
      %v8783 = vunpack.c.l.b16 %v8667
      %v8784 = vunpack.c.l.b16 %v8670
      %v8785 = vunpack.c.l.b16 %v8674
      %v8786 = vunpack.c.l.b16 %v8677
      %v8787 = vunpack.c.l.b16 %v8681
      %v8788 = vunpack.c.l.b16 %v8684
      %v8789 = vunpack.c.l.b16 %v8688
      %v8790 = vunpack.c.l.b16 %v8691
      %v8791 = vunpack.c.l.b16 %v8695
      %v8792 = vunpack.c.l.b16 %v8698
      %v8793 = vunpack.c.l.b16 %v8702
      %v8794 = vunpack.c.l.b16 %v8705
      %v8795 = vunpack.c.l.b16 %v8709
      %v8796 = vunpack.c.l.b16 %v8712
      %v8797 = vunpack.c.l.b16 %v8716
      %v8798 = vunpack.c.l.b16 %v8719
      %v8799 = vunpack.c.l.b16 %v8723
      %v8800 = vunpack.c.l.b16 %v8726
      %v8801 = vunpack.c.l.b16 %v8730
      %v8802 = vunpack.c.l.b16 %v8733
      %v8803 = vunpack.c.l.b16 %v8737
      %v8804 = vunpack.c.l.b16 %v8740
      %v8805 = vunpack.c.l.b16 %v8744
      %v8806 = vunpack.c.l.b16 %v8747
      %v8807 = vunpack.c.l.b16 %v8751
      %v8808 = vunpack.c.l.b16 %v8754
      %v8809 = vunpack.c.l.b16 %v8758
      %v8810 = vunpack.c.l.b16 %v8761
      %v8811 = vpack.c.b16 %v8780, %v8779
      %v8812 = vpack.c.b16 %v8782, %v8781
      %v8813 = vpack.c.b16 %v8784, %v8783
      %v8814 = vpack.c.b16 %v8786, %v8785
      %v8815 = vpack.c.b16 %v8788, %v8787
      %v8816 = vpack.c.b16 %v8790, %v8789
      %v8817 = vpack.c.b16 %v8792, %v8791
      %v8818 = vpack.c.b16 %v8794, %v8793
      %v8819 = vpack.c.b16 %v8796, %v8795
      %v8820 = vpack.c.b16 %v8798, %v8797
      %v8821 = vpack.c.b16 %v8800, %v8799
      %v8822 = vpack.c.b16 %v8802, %v8801
      %v8823 = vpack.c.b16 %v8804, %v8803
      %v8824 = vpack.c.b16 %v8806, %v8805
      %v8825 = vpack.c.b16 %v8808, %v8807
      %v8826 = vpack.c.b16 %v8810, %v8809
      %v8859 = vunpack.c.l.b16 %v8763
      %v8860 = vunpack.c.l.b16 %v8764
      %v8861 = vunpack.c.l.b16 %v8765
      %v8862 = vunpack.c.l.b16 %v8766
      %v8863 = vunpack.c.l.b16 %v8767
      %v8864 = vunpack.c.l.b16 %v8768
      %v8865 = vunpack.c.l.b16 %v8769
      %v8866 = vunpack.c.l.b16 %v8770
      %v8867 = vunpack.c.l.b16 %v8771
      %v8868 = vunpack.c.l.b16 %v8772
      %v8869 = vunpack.c.l.b16 %v8773
      %v8870 = vunpack.c.l.b16 %v8774
      %v8871 = vunpack.c.l.b16 %v8775
      %v8872 = vunpack.c.l.b16 %v8776
      %v8873 = vunpack.c.l.b16 %v8777
      %v8874 = vunpack.c.l.b16 %v8778
      %v8875 = vpack.c.b16 %v8860, %v8859
      %v8876 = vpack.c.b16 %v8862, %v8861
      %v8877 = vpack.c.b16 %v8864, %v8863
      %v8878 = vpack.c.b16 %v8866, %v8865
      %v8879 = vpack.c.b16 %v8868, %v8867
      %v8880 = vpack.c.b16 %v8870, %v8869
      %v8881 = vpack.c.b16 %v8872, %v8871
      %v8882 = vpack.c.b16 %v8874, %v8873
      %8891 = vmatprep.subr.bf16.mxu0 0
      %8892 = vmatpush1.bf16.msra.mxu0 %v8875
      %8893 = vmatprep.subr.bf16.mxu0 0
      %8894 = vmatpush1.bf16.msra.mxu0 %v8876
      %8895 = vmatprep.subr.bf16.mxu0 0
      %8896 = vmatpush1.bf16.msra.mxu0 %v8877
      %8897 = vmatprep.subr.bf16.mxu0 0
      %8898 = vmatpush1.bf16.msra.mxu0 %v8878
      %8899 = vmatprep.subr.bf16.mxu0 0
      %8900 = vmatpush1.bf16.msra.mxu0 %v8879
      %8901 = vmatprep.subr.bf16.mxu0 0
      %8902 = vmatpush1.bf16.msra.mxu0 %v8880
      %8903 = vmatprep.subr.bf16.mxu0 0
      %8904 = vmatpush1.bf16.msra.mxu0 %v8881
      %8905 = vmatprep.subr.bf16.mxu0 0
      %8906 = vmatpush1.bf16.msra.mxu0 %v8882
      %8907 = vmatprep.subr.bf16.mxu0 0
      %8908 = vmatpush1.bf16.msra.mxu0 0
      %8909 = vmatprep.subr.bf16.mxu0 0
      %8910 = vmatpush1.bf16.msra.mxu0 0
      %8911 = vmatprep.subr.bf16.mxu0 0
      %8912 = vmatpush1.bf16.msra.mxu0 0
      %8913 = vmatprep.subr.bf16.mxu0 0
      %8914 = vmatpush1.bf16.msra.mxu0 0
      %8915 = vmatprep.subr.bf16.mxu0 0
      %8916 = vmatpush1.bf16.msra.mxu0 0
      %8917 = vmatprep.subr.bf16.mxu0 0
      %8918 = vmatpush1.bf16.msra.mxu0 0
      %8919 = vmatprep.subr.bf16.mxu0 0
      %8920 = vmatpush1.bf16.msra.mxu0 0
      %8921 = vmatprep.subr.bf16.mxu0 0
      %8922 = vmatpush1.bf16.msra.mxu0 0
      %8923 = vmatprep.mubr.bf16.mxu0 0
      %8924 = vmatmul.mubr.bf16.gmra.mrb[0].mxu0 %v8811
      %v8925 = vpop.f32.mrb[0].mxu0
      %v8926 = vadd.f32 0.0, %v8925
      %v8927 = vpop.f32.mrb[0].mxu0
      %v8928 = vpop.f32.mrb[0].mxu0
      %v8929 = vadd.f32 0.0, %v8928
      %v8930 = vpop.f32.mrb[0].mxu0
      %8931 = vmatprep.mubr.bf16.mxu0 0
      %8932 = vmatmul.mubr.bf16.gmra.mrb[0].mxu0 %v8812
      %v8933 = vpop.f32.mrb[0].mxu0
      %v8934 = vadd.f32 0.0, %v8933
      %v8935 = vpop.f32.mrb[0].mxu0
      %v8936 = vpop.f32.mrb[0].mxu0
      %v8937 = vadd.f32 0.0, %v8936
      %v8938 = vpop.f32.mrb[0].mxu0
      %8939 = vmatprep.mubr.bf16.mxu0 0
      %8940 = vmatmul.mubr.bf16.gmra.mrb[0].mxu0 %v8813
      %v8941 = vpop.f32.mrb[0].mxu0
      %v8942 = vadd.f32 0.0, %v8941
      %v8943 = vpop.f32.mrb[0].mxu0
      %v8944 = vpop.f32.mrb[0].mxu0
      %v8945 = vadd.f32 0.0, %v8944
      %v8946 = vpop.f32.mrb[0].mxu0
      %8947 = vmatprep.mubr.bf16.mxu0 0
      %8948 = vmatmul.mubr.bf16.gmra.mrb[0].mxu0 %v8814
      %v8949 = vpop.f32.mrb[0].mxu0
      %v8950 = vadd.f32 0.0, %v8949
      %v8951 = vpop.f32.mrb[0].mxu0
      %v8952 = vpop.f32.mrb[0].mxu0
      %v8953 = vadd.f32 0.0, %v8952
      %v8954 = vpop.f32.mrb[0].mxu0
      %8955 = vmatprep.mubr.bf16.mxu0 0
      %8956 = vmatmul.mubr.bf16.gmra.mrb[0].mxu0 %v8815
      %v8957 = vpop.f32.mrb[0].mxu0
      %v8958 = vadd.f32 0.0, %v8957
      %v8959 = vpop.f32.mrb[0].mxu0
      %v8960 = vpop.f32.mrb[0].mxu0
      %v8961 = vadd.f32 0.0, %v8960
      %v8962 = vpop.f32.mrb[0].mxu0
      %8963 = vmatprep.mubr.bf16.mxu0 0
      %8964 = vmatmul.mubr.bf16.gmra.mrb[0].mxu0 %v8816
      %v8965 = vpop.f32.mrb[0].mxu0
      %v8966 = vadd.f32 0.0, %v8965
      %v8967 = vpop.f32.mrb[0].mxu0
      %v8968 = vpop.f32.mrb[0].mxu0
      %v8969 = vadd.f32 0.0, %v8968
      %v8970 = vpop.f32.mrb[0].mxu0
      %8971 = vmatprep.mubr.bf16.mxu0 0
      %8972 = vmatmul.mubr.bf16.gmra.mrb[0].mxu0 %v8817
      %v8973 = vpop.f32.mrb[0].mxu0
      %v8974 = vadd.f32 0.0, %v8973
      %v8975 = vpop.f32.mrb[0].mxu0
      %v8976 = vpop.f32.mrb[0].mxu0
      %v8977 = vadd.f32 0.0, %v8976
      %v8978 = vpop.f32.mrb[0].mxu0
      %8979 = vmatprep.mubr.bf16.mxu0 0
      %8980 = vmatmul.mubr.bf16.gmra.mrb[0].mxu0 %v8818
      %v8981 = vpop.f32.mrb[0].mxu0
      %v8982 = vadd.f32 0.0, %v8981
      %v8983 = vpop.f32.mrb[0].mxu0
      %v8984 = vpop.f32.mrb[0].mxu0
      %v8985 = vadd.f32 0.0, %v8984
      %v8986 = vpop.f32.mrb[0].mxu0
      %8987 = vmatprep.mubr.bf16.mxu0 0
      %8988 = vmatmul.mubr.bf16.gmra.mrb[0].mxu0 %v8819
      %v8989 = vpop.f32.mrb[0].mxu0
      %v8990 = vadd.f32 0.0, %v8989
      %v8991 = vpop.f32.mrb[0].mxu0
      %v8992 = vpop.f32.mrb[0].mxu0
      %v8993 = vadd.f32 0.0, %v8992
      %v8994 = vpop.f32.mrb[0].mxu0
      %8995 = vmatprep.mubr.bf16.mxu0 0
      %8996 = vmatmul.mubr.bf16.gmra.mrb[0].mxu0 %v8820
      %v8997 = vpop.f32.mrb[0].mxu0
      %v8998 = vadd.f32 0.0, %v8997
      %v8999 = vpop.f32.mrb[0].mxu0
      %v9000 = vpop.f32.mrb[0].mxu0
      %v9001 = vadd.f32 0.0, %v9000
      %v9002 = vpop.f32.mrb[0].mxu0
      %9003 = vmatprep.mubr.bf16.mxu0 0
      %9004 = vmatmul.mubr.bf16.gmra.mrb[0].mxu0 %v8821
      %v9005 = vpop.f32.mrb[0].mxu0
      %v9006 = vadd.f32 0.0, %v9005
      %v9007 = vpop.f32.mrb[0].mxu0
      %v9008 = vpop.f32.mrb[0].mxu0
      %v9009 = vadd.f32 0.0, %v9008
      %v9010 = vpop.f32.mrb[0].mxu0
      %9011 = vmatprep.mubr.bf16.mxu0 0
      %9012 = vmatmul.mubr.bf16.gmra.mrb[0].mxu0 %v8822
      %v9013 = vpop.f32.mrb[0].mxu0
      %v9014 = vadd.f32 0.0, %v9013
      %v9015 = vpop.f32.mrb[0].mxu0
      %v9016 = vpop.f32.mrb[0].mxu0
      %v9017 = vadd.f32 0.0, %v9016
      %v9018 = vpop.f32.mrb[0].mxu0
      %9019 = vmatprep.mubr.bf16.mxu0 0
      %9020 = vmatmul.mubr.bf16.gmra.mrb[0].mxu0 %v8823
      %v9021 = vpop.f32.mrb[0].mxu0
      %v9022 = vadd.f32 0.0, %v9021
      %v9023 = vpop.f32.mrb[0].mxu0
      %v9024 = vpop.f32.mrb[0].mxu0
      %v9025 = vadd.f32 0.0, %v9024
      %v9026 = vpop.f32.mrb[0].mxu0
      %9027 = vmatprep.mubr.bf16.mxu0 0
      %9028 = vmatmul.mubr.bf16.gmra.mrb[0].mxu0 %v8824
      %v9029 = vpop.f32.mrb[0].mxu0
      %v9030 = vadd.f32 0.0, %v9029
      %v9031 = vpop.f32.mrb[0].mxu0
      %v9032 = vpop.f32.mrb[0].mxu0
      %v9033 = vadd.f32 0.0, %v9032
      %v9034 = vpop.f32.mrb[0].mxu0
      %9035 = vmatprep.mubr.bf16.mxu0 0
      %9036 = vmatmul.mubr.bf16.gmra.mrb[0].mxu0 %v8825
      %v9037 = vpop.f32.mrb[0].mxu0
      %v9038 = vadd.f32 0.0, %v9037
      %v9039 = vpop.f32.mrb[0].mxu0
      %v9040 = vpop.f32.mrb[0].mxu0
      %v9041 = vadd.f32 0.0, %v9040
      %v9042 = vpop.f32.mrb[0].mxu0
      %9043 = vmatprep.mubr.bf16.mxu0 0
      %9044 = vmatmul.mubr.bf16.gmra.mrb[0].mxu0 %v8826
      %v9045 = vpop.f32.mrb[0].mxu0
      %v9046 = vadd.f32 0.0, %v9045
      %v9047 = vpop.f32.mrb[0].mxu0
      %v9048 = vpop.f32.mrb[0].mxu0
      %v9049 = vadd.f32 0.0, %v9048
      %v9050 = vpop.f32.mrb[0].mxu0
      %9051 = vdwg.mxu0
      %v9052 = vadd.f32 %v8554, %v8926
      %v9053 = vadd.f32 %v8555, %v8929
      %v9054 = vadd.f32 %v8556, %v8934
      %v9055 = vadd.f32 %v8557, %v8937
      %v9056 = vadd.f32 %v8558, %v8942
      %v9057 = vadd.f32 %v8559, %v8945
      %v9058 = vadd.f32 %v8560, %v8950
      %v9059 = vadd.f32 %v8561, %v8953
      %v9060 = vadd.f32 %v8562, %v8958
      %v9061 = vadd.f32 %v8563, %v8961
      %v9062 = vadd.f32 %v8564, %v8966
      %v9063 = vadd.f32 %v8565, %v8969
      %v9064 = vadd.f32 %v8566, %v8974
      %v9065 = vadd.f32 %v8567, %v8977
      %v9066 = vadd.f32 %v8568, %v8982
      %v9067 = vadd.f32 %v8569, %v8985
      %v9068 = vadd.f32 %v8570, %v8990
      %v9069 = vadd.f32 %v8571, %v8993
      %v9070 = vadd.f32 %v8572, %v8998
      %v9071 = vadd.f32 %v8573, %v9001
      %v9072 = vadd.f32 %v8574, %v9006
      %v9073 = vadd.f32 %v8575, %v9009
      %v9074 = vadd.f32 %v8576, %v9014
      %v9075 = vadd.f32 %v8577, %v9017
      %v9076 = vadd.f32 %v8578, %v9022
      %v9077 = vadd.f32 %v8579, %v9025
      %v9078 = vadd.f32 %v8580, %v9030
      %v9079 = vadd.f32 %v8581, %v9033
      %v9080 = vadd.f32 %v8582, %v9038
      %v9081 = vadd.f32 %v8583, %v9041
      %v9082 = vadd.f32 %v8584, %v9046
      %v9083 = vadd.f32 %v8585, %v9049
      %s9084 = scalar_lea.vmem [#allocation2], 24
      %v9085 = vld [vmem:[%s9084] sm:$0xf]
      %v9086 = vld [vmem:[%s9084 + $0x4] sm:$0xf]
      %v9087 = vld [vmem:[%s9084 + $0xc] sm:$0xf]
      %v9088 = vld [vmem:[%s9084 + $0x10] sm:$0xf]
      %v9089 = vld [vmem:[%s9084 + $0x18] sm:$0xf]
      %v9090 = vld [vmem:[%s9084 + $0x1c] sm:$0xf]
      %v9091 = vld [vmem:[%s9084 + $0x24] sm:$0xf]
      %v9092 = vld [vmem:[%s9084 + $0x28] sm:$0xf]
      %v9093 = vld [vmem:[%s9084 + $0x30] sm:$0xf]
      %v9094 = vld [vmem:[%s9084 + $0x34] sm:$0xf]
      %v9095 = vld [vmem:[%s9084 + $0x3c] sm:$0xf]
      %v9096 = vld [vmem:[%s9084 + $0x40] sm:$0xf]
      %v9097 = vld [vmem:[%s9084 + $0x48] sm:$0xf]
      %v9098 = vld [vmem:[%s9084 + $0x4c] sm:$0xf]
      %v9099 = vld [vmem:[%s9084 + $0x54] sm:$0xf]
      %v9100 = vld [vmem:[%s9084 + $0x58] sm:$0xf]
      %v9101 = vld [vmem:[%s9084 + $0x60] sm:$0xf]
      %v9102 = vld [vmem:[%s9084 + $0x64] sm:$0xf]
      %v9103 = vld [vmem:[%s9084 + $0x6c] sm:$0xf]
      %v9104 = vld [vmem:[%s9084 + $0x70] sm:$0xf]
      %v9105 = vld [vmem:[%s9084 + $0x78] sm:$0xf]
      %v9106 = vld [vmem:[%s9084 + $0x7c] sm:$0xf]
      %v9107 = vld [vmem:[%s9084 + $0x84] sm:$0xf]
      %v9108 = vld [vmem:[%s9084 + $0x88] sm:$0xf]
      %v9109 = vld [vmem:[%s9084 + $0x90] sm:$0xf]
      %v9110 = vld [vmem:[%s9084 + $0x94] sm:$0xf]
      %v9111 = vld [vmem:[%s9084 + $0x9c] sm:$0xf]
      %v9112 = vld [vmem:[%s9084 + $0xa0] sm:$0xf]
      %v9113 = vld [vmem:[%s9084 + $0xa8] sm:$0xf]
      %v9114 = vld [vmem:[%s9084 + $0xac] sm:$0xf]
      %v9115 = vld [vmem:[%s9084 + $0xb4] sm:$0xf]
      %v9116 = vld [vmem:[%s9084 + $0xb8] sm:$0xf]
      %s9117 = scalar_lea.vmem %s4, 384
      %v9118 = vld [vmem:[%s9117] sm:$0xf]
      %v9119 = vld [vmem:[%s9117 + $0x4] sm:$0xf]
      %v9120 = vld [vmem:[%s9117 + $0x8] sm:$0xf]
      %v9121 = vld [vmem:[%s9117 + $0xc] sm:$0xf]
      %v9122 = vld [vmem:[%s9117 + $0x10] sm:$0xf]
      %v9123 = vld [vmem:[%s9117 + $0x14] sm:$0xf]
      %v9124 = vld [vmem:[%s9117 + $0x18] sm:$0xf]
      %v9125 = vld [vmem:[%s9117 + $0x1c] sm:$0xf]
      %v9126 = vld [vmem:[%s9117 + $0x20] sm:$0xf]
      %v9127 = vld [vmem:[%s9117 + $0x24] sm:$0xf]
      %v9128 = vld [vmem:[%s9117 + $0x28] sm:$0xf]
      %v9129 = vld [vmem:[%s9117 + $0x2c] sm:$0xf]
      %v9130 = vld [vmem:[%s9117 + $0x30] sm:$0xf]
      %v9131 = vld [vmem:[%s9117 + $0x34] sm:$0xf]
      %v9132 = vld [vmem:[%s9117 + $0x38] sm:$0xf]
      %v9133 = vld [vmem:[%s9117 + $0x3c] sm:$0xf]
      %v9166 = vunpack.c.l.b16 %v9085
      %v9167 = vunpack.c.l.b16 %v9086
      %v9168 = vunpack.c.l.b16 %v9087
      %v9169 = vunpack.c.l.b16 %v9088
      %v9170 = vunpack.c.l.b16 %v9089
      %v9171 = vunpack.c.l.b16 %v9090
      %v9172 = vunpack.c.l.b16 %v9091
      %v9173 = vunpack.c.l.b16 %v9092
      %v9174 = vunpack.c.l.b16 %v9093
      %v9175 = vunpack.c.l.b16 %v9094
      %v9176 = vunpack.c.l.b16 %v9095
      %v9177 = vunpack.c.l.b16 %v9096
      %v9178 = vunpack.c.l.b16 %v9097
      %v9179 = vunpack.c.l.b16 %v9098
      %v9180 = vunpack.c.l.b16 %v9099
      %v9181 = vunpack.c.l.b16 %v9100
      %v9182 = vunpack.c.l.b16 %v9101
      %v9183 = vunpack.c.l.b16 %v9102
      %v9184 = vunpack.c.l.b16 %v9103
      %v9185 = vunpack.c.l.b16 %v9104
      %v9186 = vunpack.c.l.b16 %v9105
      %v9187 = vunpack.c.l.b16 %v9106
      %v9188 = vunpack.c.l.b16 %v9107
      %v9189 = vunpack.c.l.b16 %v9108
      %v9190 = vunpack.c.l.b16 %v9109
      %v9191 = vunpack.c.l.b16 %v9110
      %v9192 = vunpack.c.l.b16 %v9111
      %v9193 = vunpack.c.l.b16 %v9112
      %v9194 = vunpack.c.l.b16 %v9113
      %v9195 = vunpack.c.l.b16 %v9114
      %v9196 = vunpack.c.l.b16 %v9115
      %v9197 = vunpack.c.l.b16 %v9116
      %v9198 = vpack.c.b16 %v9167, %v9166
      %v9199 = vpack.c.b16 %v9169, %v9168
      %v9200 = vpack.c.b16 %v9171, %v9170
      %v9201 = vpack.c.b16 %v9173, %v9172
      %v9202 = vpack.c.b16 %v9175, %v9174
      %v9203 = vpack.c.b16 %v9177, %v9176
      %v9204 = vpack.c.b16 %v9179, %v9178
      %v9205 = vpack.c.b16 %v9181, %v9180
      %v9206 = vpack.c.b16 %v9183, %v9182
      %v9207 = vpack.c.b16 %v9185, %v9184
      %v9208 = vpack.c.b16 %v9187, %v9186
      %v9209 = vpack.c.b16 %v9189, %v9188
      %v9210 = vpack.c.b16 %v9191, %v9190
      %v9211 = vpack.c.b16 %v9193, %v9192
      %v9212 = vpack.c.b16 %v9195, %v9194
      %v9213 = vpack.c.b16 %v9197, %v9196
      %v9246 = vunpack.c.l.b16 %v9118
      %v9247 = vunpack.c.l.b16 %v9119
      %v9248 = vunpack.c.l.b16 %v9120
      %v9249 = vunpack.c.l.b16 %v9121
      %v9250 = vunpack.c.l.b16 %v9122
      %v9251 = vunpack.c.l.b16 %v9123
      %v9252 = vunpack.c.l.b16 %v9124
      %v9253 = vunpack.c.l.b16 %v9125
      %v9254 = vunpack.c.l.b16 %v9126
      %v9255 = vunpack.c.l.b16 %v9127
      %v9256 = vunpack.c.l.b16 %v9128
      %v9257 = vunpack.c.l.b16 %v9129
      %v9258 = vunpack.c.l.b16 %v9130
      %v9259 = vunpack.c.l.b16 %v9131
      %v9260 = vunpack.c.l.b16 %v9132
      %v9261 = vunpack.c.l.b16 %v9133
      %v9262 = vpack.c.b16 %v9247, %v9246
      %v9263 = vpack.c.b16 %v9249, %v9248
      %v9264 = vpack.c.b16 %v9251, %v9250
      %v9265 = vpack.c.b16 %v9253, %v9252
      %v9266 = vpack.c.b16 %v9255, %v9254
      %v9267 = vpack.c.b16 %v9257, %v9256
      %v9268 = vpack.c.b16 %v9259, %v9258
      %v9269 = vpack.c.b16 %v9261, %v9260
      %9278 = vmatprep.subr.bf16.mxu0 0
      %9279 = vmatpush1.bf16.msra.mxu0 %v9262
      %9280 = vmatprep.subr.bf16.mxu0 0
      %9281 = vmatpush1.bf16.msra.mxu0 %v9263
      %9282 = vmatprep.subr.bf16.mxu0 0
      %9283 = vmatpush1.bf16.msra.mxu0 %v9264
      %9284 = vmatprep.subr.bf16.mxu0 0
      %9285 = vmatpush1.bf16.msra.mxu0 %v9265
      %9286 = vmatprep.subr.bf16.mxu0 0
      %9287 = vmatpush1.bf16.msra.mxu0 %v9266
      %9288 = vmatprep.subr.bf16.mxu0 0
      %9289 = vmatpush1.bf16.msra.mxu0 %v9267
      %9290 = vmatprep.subr.bf16.mxu0 0
      %9291 = vmatpush1.bf16.msra.mxu0 %v9268
      %9292 = vmatprep.subr.bf16.mxu0 0
      %9293 = vmatpush1.bf16.msra.mxu0 %v9269
      %9294 = vmatprep.subr.bf16.mxu0 0
      %9295 = vmatpush1.bf16.msra.mxu0 0
      %9296 = vmatprep.subr.bf16.mxu0 0
      %9297 = vmatpush1.bf16.msra.mxu0 0
      %9298 = vmatprep.subr.bf16.mxu0 0
      %9299 = vmatpush1.bf16.msra.mxu0 0
      %9300 = vmatprep.subr.bf16.mxu0 0
      %9301 = vmatpush1.bf16.msra.mxu0 0
      %9302 = vmatprep.subr.bf16.mxu0 0
      %9303 = vmatpush1.bf16.msra.mxu0 0
      %9304 = vmatprep.subr.bf16.mxu0 0
      %9305 = vmatpush1.bf16.msra.mxu0 0
      %9306 = vmatprep.subr.bf16.mxu0 0
      %9307 = vmatpush1.bf16.msra.mxu0 0
      %9308 = vmatprep.subr.bf16.mxu0 0
      %9309 = vmatpush1.bf16.msra.mxu0 0
      %9310 = vmatprep.mubr.bf16.mxu0 0
      %9311 = vmatmul.mubr.bf16.gmra.mrb[0].mxu0 %v9198
      %v9312 = vpop.f32.mrb[0].mxu0
      %v9313 = vadd.f32 0.0, %v9312
      %v9314 = vpop.f32.mrb[0].mxu0
      %v9315 = vpop.f32.mrb[0].mxu0
      %v9316 = vadd.f32 0.0, %v9315
      %v9317 = vpop.f32.mrb[0].mxu0
      %9318 = vmatprep.mubr.bf16.mxu0 0
      %9319 = vmatmul.mubr.bf16.gmra.mrb[0].mxu0 %v9199
      %v9320 = vpop.f32.mrb[0].mxu0
      %v9321 = vadd.f32 0.0, %v9320
      %v9322 = vpop.f32.mrb[0].mxu0
      %v9323 = vpop.f32.mrb[0].mxu0
      %v9324 = vadd.f32 0.0, %v9323
      %v9325 = vpop.f32.mrb[0].mxu0
      %9326 = vmatprep.mubr.bf16.mxu0 0
      %9327 = vmatmul.mubr.bf16.gmra.mrb[0].mxu0 %v9200
      %v9328 = vpop.f32.mrb[0].mxu0
      %v9329 = vadd.f32 0.0, %v9328
      %v9330 = vpop.f32.mrb[0].mxu0
      %v9331 = vpop.f32.mrb[0].mxu0
      %v9332 = vadd.f32 0.0, %v9331
      %v9333 = vpop.f32.mrb[0].mxu0
      %9334 = vmatprep.mubr.bf16.mxu0 0
      %9335 = vmatmul.mubr.bf16.gmra.mrb[0].mxu0 %v9201
      %v9336 = vpop.f32.mrb[0].mxu0
      %v9337 = vadd.f32 0.0, %v9336
      %v9338 = vpop.f32.mrb[0].mxu0
      %v9339 = vpop.f32.mrb[0].mxu0
      %v9340 = vadd.f32 0.0, %v9339
      %v9341 = vpop.f32.mrb[0].mxu0
      %9342 = vmatprep.mubr.bf16.mxu0 0
      %9343 = vmatmul.mubr.bf16.gmra.mrb[0].mxu0 %v9202
      %v9344 = vpop.f32.mrb[0].mxu0
      %v9345 = vadd.f32 0.0, %v9344
      %v9346 = vpop.f32.mrb[0].mxu0
      %v9347 = vpop.f32.mrb[0].mxu0
      %v9348 = vadd.f32 0.0, %v9347
      %v9349 = vpop.f32.mrb[0].mxu0
      %9350 = vmatprep.mubr.bf16.mxu0 0
      %9351 = vmatmul.mubr.bf16.gmra.mrb[0].mxu0 %v9203
      %v9352 = vpop.f32.mrb[0].mxu0
      %v9353 = vadd.f32 0.0, %v9352
      %v9354 = vpop.f32.mrb[0].mxu0
      %v9355 = vpop.f32.mrb[0].mxu0
      %v9356 = vadd.f32 0.0, %v9355
      %v9357 = vpop.f32.mrb[0].mxu0
      %9358 = vmatprep.mubr.bf16.mxu0 0
      %9359 = vmatmul.mubr.bf16.gmra.mrb[0].mxu0 %v9204
      %v9360 = vpop.f32.mrb[0].mxu0
      %v9361 = vadd.f32 0.0, %v9360
      %v9362 = vpop.f32.mrb[0].mxu0
      %v9363 = vpop.f32.mrb[0].mxu0
      %v9364 = vadd.f32 0.0, %v9363
      %v9365 = vpop.f32.mrb[0].mxu0
      %9366 = vmatprep.mubr.bf16.mxu0 0
      %9367 = vmatmul.mubr.bf16.gmra.mrb[0].mxu0 %v9205
      %v9368 = vpop.f32.mrb[0].mxu0
      %v9369 = vadd.f32 0.0, %v9368
      %v9370 = vpop.f32.mrb[0].mxu0
      %v9371 = vpop.f32.mrb[0].mxu0
      %v9372 = vadd.f32 0.0, %v9371
      %v9373 = vpop.f32.mrb[0].mxu0
      %9374 = vmatprep.mubr.bf16.mxu0 0
      %9375 = vmatmul.mubr.bf16.gmra.mrb[0].mxu0 %v9206
      %v9376 = vpop.f32.mrb[0].mxu0
      %v9377 = vadd.f32 0.0, %v9376
      %v9378 = vpop.f32.mrb[0].mxu0
      %v9379 = vpop.f32.mrb[0].mxu0
      %v9380 = vadd.f32 0.0, %v9379
      %v9381 = vpop.f32.mrb[0].mxu0
      %9382 = vmatprep.mubr.bf16.mxu0 0
      %9383 = vmatmul.mubr.bf16.gmra.mrb[0].mxu0 %v9207
      %v9384 = vpop.f32.mrb[0].mxu0
      %v9385 = vadd.f32 0.0, %v9384
      %v9386 = vpop.f32.mrb[0].mxu0
      %v9387 = vpop.f32.mrb[0].mxu0
      %v9388 = vadd.f32 0.0, %v9387
      %v9389 = vpop.f32.mrb[0].mxu0
      %9390 = vmatprep.mubr.bf16.mxu0 0
      %9391 = vmatmul.mubr.bf16.gmra.mrb[0].mxu0 %v9208
      %v9392 = vpop.f32.mrb[0].mxu0
      %v9393 = vadd.f32 0.0, %v9392
      %v9394 = vpop.f32.mrb[0].mxu0
      %v9395 = vpop.f32.mrb[0].mxu0
      %v9396 = vadd.f32 0.0, %v9395
      %v9397 = vpop.f32.mrb[0].mxu0
      %9398 = vmatprep.mubr.bf16.mxu0 0
      %9399 = vmatmul.mubr.bf16.gmra.mrb[0].mxu0 %v9209
      %v9400 = vpop.f32.mrb[0].mxu0
      %v9401 = vadd.f32 0.0, %v9400
      %v9402 = vpop.f32.mrb[0].mxu0
      %v9403 = vpop.f32.mrb[0].mxu0
      %v9404 = vadd.f32 0.0, %v9403
      %v9405 = vpop.f32.mrb[0].mxu0
      %9406 = vmatprep.mubr.bf16.mxu0 0
      %9407 = vmatmul.mubr.bf16.gmra.mrb[0].mxu0 %v9210
      %v9408 = vpop.f32.mrb[0].mxu0
      %v9409 = vadd.f32 0.0, %v9408
      %v9410 = vpop.f32.mrb[0].mxu0
      %v9411 = vpop.f32.mrb[0].mxu0
      %v9412 = vadd.f32 0.0, %v9411
      %v9413 = vpop.f32.mrb[0].mxu0
      %9414 = vmatprep.mubr.bf16.mxu0 0
      %9415 = vmatmul.mubr.bf16.gmra.mrb[0].mxu0 %v9211
      %v9416 = vpop.f32.mrb[0].mxu0
      %v9417 = vadd.f32 0.0, %v9416
      %v9418 = vpop.f32.mrb[0].mxu0
      %v9419 = vpop.f32.mrb[0].mxu0
      %v9420 = vadd.f32 0.0, %v9419
      %v9421 = vpop.f32.mrb[0].mxu0
      %9422 = vmatprep.mubr.bf16.mxu0 0
      %9423 = vmatmul.mubr.bf16.gmra.mrb[0].mxu0 %v9212
      %v9424 = vpop.f32.mrb[0].mxu0
      %v9425 = vadd.f32 0.0, %v9424
      %v9426 = vpop.f32.mrb[0].mxu0
      %v9427 = vpop.f32.mrb[0].mxu0
      %v9428 = vadd.f32 0.0, %v9427
      %v9429 = vpop.f32.mrb[0].mxu0
      %9430 = vmatprep.mubr.bf16.mxu0 0
      %9431 = vmatmul.mubr.bf16.gmra.mrb[0].mxu0 %v9213
      %v9432 = vpop.f32.mrb[0].mxu0
      %v9433 = vadd.f32 0.0, %v9432
      %v9434 = vpop.f32.mrb[0].mxu0
      %v9435 = vpop.f32.mrb[0].mxu0
      %v9436 = vadd.f32 0.0, %v9435
      %v9437 = vpop.f32.mrb[0].mxu0
      %9438 = vdwg.mxu0
      %v9439 = vadd.f32 %v9052, %v9313
      %v9440 = vadd.f32 %v9053, %v9316
      %v9441 = vadd.f32 %v9054, %v9321
      %v9442 = vadd.f32 %v9055, %v9324
      %v9443 = vadd.f32 %v9056, %v9329
      %v9444 = vadd.f32 %v9057, %v9332
      %v9445 = vadd.f32 %v9058, %v9337
      %v9446 = vadd.f32 %v9059, %v9340
      %v9447 = vadd.f32 %v9060, %v9345
      %v9448 = vadd.f32 %v9061, %v9348
      %v9449 = vadd.f32 %v9062, %v9353
      %v9450 = vadd.f32 %v9063, %v9356
      %v9451 = vadd.f32 %v9064, %v9361
      %v9452 = vadd.f32 %v9065, %v9364
      %v9453 = vadd.f32 %v9066, %v9369
      %v9454 = vadd.f32 %v9067, %v9372
      %v9455 = vadd.f32 %v9068, %v9377
      %v9456 = vadd.f32 %v9069, %v9380
      %v9457 = vadd.f32 %v9070, %v9385
      %v9458 = vadd.f32 %v9071, %v9388
      %v9459 = vadd.f32 %v9072, %v9393
      %v9460 = vadd.f32 %v9073, %v9396
      %v9461 = vadd.f32 %v9074, %v9401
      %v9462 = vadd.f32 %v9075, %v9404
      %v9463 = vadd.f32 %v9076, %v9409
      %v9464 = vadd.f32 %v9077, %v9412
      %v9465 = vadd.f32 %v9078, %v9417
      %v9466 = vadd.f32 %v9079, %v9420
      %v9467 = vadd.f32 %v9080, %v9425
      %v9468 = vadd.f32 %v9081, %v9428
      %v9469 = vadd.f32 %v9082, %v9433
      %v9470 = vadd.f32 %v9083, %v9436
      %v9471 = vld [vmem:[%s9084] sm:$0xf]
      %v9472 = vld [vmem:[%s9084 + $0x4] sm:$0xf]
      %v9473 = vld [vmem:[%s9084 + $0x8] sm:$0x1]
      %v9474 = vld [vmem:[%s9084 + $0xc] sm:$0xf]
      %v9475 = vld [vmem:[%s9084 + $0x10] sm:$0xf]
      %v9476 = vld [vmem:[%s9084 + $0x14] sm:$0x1]
      %v9477 = vld [vmem:[%s9084 + $0x18] sm:$0xf]
      %v9478 = vld [vmem:[%s9084 + $0x1c] sm:$0xf]
      %v9479 = vld [vmem:[%s9084 + $0x20] sm:$0x1]
      %v9480 = vld [vmem:[%s9084 + $0x24] sm:$0xf]
      %v9481 = vld [vmem:[%s9084 + $0x28] sm:$0xf]
      %v9482 = vld [vmem:[%s9084 + $0x2c] sm:$0x1]
      %v9483 = vld [vmem:[%s9084 + $0x30] sm:$0xf]
      %v9484 = vld [vmem:[%s9084 + $0x34] sm:$0xf]
      %v9485 = vld [vmem:[%s9084 + $0x38] sm:$0x1]
      %v9486 = vld [vmem:[%s9084 + $0x3c] sm:$0xf]
      %v9487 = vld [vmem:[%s9084 + $0x40] sm:$0xf]
      %v9488 = vld [vmem:[%s9084 + $0x44] sm:$0x1]
      %v9489 = vld [vmem:[%s9084 + $0x48] sm:$0xf]
      %v9490 = vld [vmem:[%s9084 + $0x4c] sm:$0xf]
      %v9491 = vld [vmem:[%s9084 + $0x50] sm:$0x1]
      %v9492 = vld [vmem:[%s9084 + $0x54] sm:$0xf]
      %v9493 = vld [vmem:[%s9084 + $0x58] sm:$0xf]
      %v9494 = vld [vmem:[%s9084 + $0x5c] sm:$0x1]
      %v9495 = vld [vmem:[%s9084 + $0x60] sm:$0xf]
      %v9496 = vld [vmem:[%s9084 + $0x64] sm:$0xf]
      %v9497 = vld [vmem:[%s9084 + $0x68] sm:$0x1]
      %v9498 = vld [vmem:[%s9084 + $0x6c] sm:$0xf]
      %v9499 = vld [vmem:[%s9084 + $0x70] sm:$0xf]
      %v9500 = vld [vmem:[%s9084 + $0x74] sm:$0x1]
      %v9501 = vld [vmem:[%s9084 + $0x78] sm:$0xf]
      %v9502 = vld [vmem:[%s9084 + $0x7c] sm:$0xf]
      %v9503 = vld [vmem:[%s9084 + $0x80] sm:$0x1]
      %v9504 = vld [vmem:[%s9084 + $0x84] sm:$0xf]
      %v9505 = vld [vmem:[%s9084 + $0x88] sm:$0xf]
      %v9506 = vld [vmem:[%s9084 + $0x8c] sm:$0x1]
      %v9507 = vld [vmem:[%s9084 + $0x90] sm:$0xf]
      %v9508 = vld [vmem:[%s9084 + $0x94] sm:$0xf]
      %v9509 = vld [vmem:[%s9084 + $0x98] sm:$0x1]
      %v9510 = vld [vmem:[%s9084 + $0x9c] sm:$0xf]
      %v9511 = vld [vmem:[%s9084 + $0xa0] sm:$0xf]
      %v9512 = vld [vmem:[%s9084 + $0xa4] sm:$0x1]
      %v9513 = vld [vmem:[%s9084 + $0xa8] sm:$0xf]
      %v9514 = vld [vmem:[%s9084 + $0xac] sm:$0xf]
      %v9515 = vld [vmem:[%s9084 + $0xb0] sm:$0x1]
      %v9516 = vld [vmem:[%s9084 + $0xb4] sm:$0xf]
      %v9517 = vld [vmem:[%s9084 + $0xb8] sm:$0xf]
      %v9518 = vld [vmem:[%s9084 + $0xbc] sm:$0x1]
      %v9520 = vshrl.u32 %v9471, 16
      %v9522 = vrot.slane %v9520, 4
      %v9523 = vshll.u32 %v9471, 16
      %v9525 = vrot.slane %v9523, 5
      %v9526 = vor.u32 %v9522, %v9525
      %v9527 = vrot.slane %v9526, 4
      %v9529 = vshll.u32 %v9472, 16
      %v9531 = vrot.slane %v9529, 5
      %v9532 = vsel %vm427, %v9527, %v9531
      %v9533 = vshrl.u32 %v9472, 16
      %v9535 = vrot.slane %v9533, 4
      %v9536 = vor.u32 %v9535, %v9531
      %v9537 = vrot.slane %v9536, 4
      %v9539 = vshll.u32 %v9473, 16
      %v9541 = vrot.slane %v9539, 5
      %v9542 = vsel %vm427, %v9537, %v9541
      %v9544 = vshrl.u32 %v9474, 16
      %v9546 = vrot.slane %v9544, 4
      %v9547 = vshll.u32 %v9474, 16
      %v9549 = vrot.slane %v9547, 5
      %v9550 = vor.u32 %v9546, %v9549
      %v9551 = vrot.slane %v9550, 4
      %v9553 = vshll.u32 %v9475, 16
      %v9555 = vrot.slane %v9553, 5
      %v9556 = vsel %vm427, %v9551, %v9555
      %v9557 = vshrl.u32 %v9475, 16
      %v9559 = vrot.slane %v9557, 4
      %v9560 = vor.u32 %v9559, %v9555
      %v9561 = vrot.slane %v9560, 4
      %v9563 = vshll.u32 %v9476, 16
      %v9565 = vrot.slane %v9563, 5
      %v9566 = vsel %vm427, %v9561, %v9565
      %v9568 = vshrl.u32 %v9477, 16
      %v9570 = vrot.slane %v9568, 4
      %v9571 = vshll.u32 %v9477, 16
      %v9573 = vrot.slane %v9571, 5
      %v9574 = vor.u32 %v9570, %v9573
      %v9575 = vrot.slane %v9574, 4
      %v9577 = vshll.u32 %v9478, 16
      %v9579 = vrot.slane %v9577, 5
      %v9580 = vsel %vm427, %v9575, %v9579
      %v9581 = vshrl.u32 %v9478, 16
      %v9583 = vrot.slane %v9581, 4
      %v9584 = vor.u32 %v9583, %v9579
      %v9585 = vrot.slane %v9584, 4
      %v9587 = vshll.u32 %v9479, 16
      %v9589 = vrot.slane %v9587, 5
      %v9590 = vsel %vm427, %v9585, %v9589
      %v9592 = vshrl.u32 %v9480, 16
      %v9594 = vrot.slane %v9592, 4
      %v9595 = vshll.u32 %v9480, 16
      %v9597 = vrot.slane %v9595, 5
      %v9598 = vor.u32 %v9594, %v9597
      %v9599 = vrot.slane %v9598, 4
      %v9601 = vshll.u32 %v9481, 16
      %v9603 = vrot.slane %v9601, 5
      %v9604 = vsel %vm427, %v9599, %v9603
      %v9605 = vshrl.u32 %v9481, 16
      %v9607 = vrot.slane %v9605, 4
      %v9608 = vor.u32 %v9607, %v9603
      %v9609 = vrot.slane %v9608, 4
      %v9611 = vshll.u32 %v9482, 16
      %v9613 = vrot.slane %v9611, 5
      %v9614 = vsel %vm427, %v9609, %v9613
      %v9616 = vshrl.u32 %v9483, 16
      %v9618 = vrot.slane %v9616, 4
      %v9619 = vshll.u32 %v9483, 16
      %v9621 = vrot.slane %v9619, 5
      %v9622 = vor.u32 %v9618, %v9621
      %v9623 = vrot.slane %v9622, 4
      %v9625 = vshll.u32 %v9484, 16
      %v9627 = vrot.slane %v9625, 5
      %v9628 = vsel %vm427, %v9623, %v9627
      %v9629 = vshrl.u32 %v9484, 16
      %v9631 = vrot.slane %v9629, 4
      %v9632 = vor.u32 %v9631, %v9627
      %v9633 = vrot.slane %v9632, 4
      %v9635 = vshll.u32 %v9485, 16
      %v9637 = vrot.slane %v9635, 5
      %v9638 = vsel %vm427, %v9633, %v9637
      %v9640 = vshrl.u32 %v9486, 16
      %v9642 = vrot.slane %v9640, 4
      %v9643 = vshll.u32 %v9486, 16
      %v9645 = vrot.slane %v9643, 5
      %v9646 = vor.u32 %v9642, %v9645
      %v9647 = vrot.slane %v9646, 4
      %v9649 = vshll.u32 %v9487, 16
      %v9651 = vrot.slane %v9649, 5
      %v9652 = vsel %vm427, %v9647, %v9651
      %v9653 = vshrl.u32 %v9487, 16
      %v9655 = vrot.slane %v9653, 4
      %v9656 = vor.u32 %v9655, %v9651
      %v9657 = vrot.slane %v9656, 4
      %v9659 = vshll.u32 %v9488, 16
      %v9661 = vrot.slane %v9659, 5
      %v9662 = vsel %vm427, %v9657, %v9661
      %v9664 = vshrl.u32 %v9489, 16
      %v9666 = vrot.slane %v9664, 4
      %v9667 = vshll.u32 %v9489, 16
      %v9669 = vrot.slane %v9667, 5
      %v9670 = vor.u32 %v9666, %v9669
      %v9671 = vrot.slane %v9670, 4
      %v9673 = vshll.u32 %v9490, 16
      %v9675 = vrot.slane %v9673, 5
      %v9676 = vsel %vm427, %v9671, %v9675
      %v9677 = vshrl.u32 %v9490, 16
      %v9679 = vrot.slane %v9677, 4
      %v9680 = vor.u32 %v9679, %v9675
      %v9681 = vrot.slane %v9680, 4
      %v9683 = vshll.u32 %v9491, 16
      %v9685 = vrot.slane %v9683, 5
      %v9686 = vsel %vm427, %v9681, %v9685
      %v9688 = vshrl.u32 %v9492, 16
      %v9690 = vrot.slane %v9688, 4
      %v9691 = vshll.u32 %v9492, 16
      %v9693 = vrot.slane %v9691, 5
      %v9694 = vor.u32 %v9690, %v9693
      %v9695 = vrot.slane %v9694, 4
      %v9697 = vshll.u32 %v9493, 16
      %v9699 = vrot.slane %v9697, 5
      %v9700 = vsel %vm427, %v9695, %v9699
      %v9701 = vshrl.u32 %v9493, 16
      %v9703 = vrot.slane %v9701, 4
      %v9704 = vor.u32 %v9703, %v9699
      %v9705 = vrot.slane %v9704, 4
      %v9707 = vshll.u32 %v9494, 16
      %v9709 = vrot.slane %v9707, 5
      %v9710 = vsel %vm427, %v9705, %v9709
      %v9712 = vshrl.u32 %v9495, 16
      %v9714 = vrot.slane %v9712, 4
      %v9715 = vshll.u32 %v9495, 16
      %v9717 = vrot.slane %v9715, 5
      %v9718 = vor.u32 %v9714, %v9717
      %v9719 = vrot.slane %v9718, 4
      %v9721 = vshll.u32 %v9496, 16
      %v9723 = vrot.slane %v9721, 5
      %v9724 = vsel %vm427, %v9719, %v9723
      %v9725 = vshrl.u32 %v9496, 16
      %v9727 = vrot.slane %v9725, 4
      %v9728 = vor.u32 %v9727, %v9723
      %v9729 = vrot.slane %v9728, 4
      %v9731 = vshll.u32 %v9497, 16
      %v9733 = vrot.slane %v9731, 5
      %v9734 = vsel %vm427, %v9729, %v9733
      %v9736 = vshrl.u32 %v9498, 16
      %v9738 = vrot.slane %v9736, 4
      %v9739 = vshll.u32 %v9498, 16
      %v9741 = vrot.slane %v9739, 5
      %v9742 = vor.u32 %v9738, %v9741
      %v9743 = vrot.slane %v9742, 4
      %v9745 = vshll.u32 %v9499, 16
      %v9747 = vrot.slane %v9745, 5
      %v9748 = vsel %vm427, %v9743, %v9747
      %v9749 = vshrl.u32 %v9499, 16
      %v9751 = vrot.slane %v9749, 4
      %v9752 = vor.u32 %v9751, %v9747
      %v9753 = vrot.slane %v9752, 4
      %v9755 = vshll.u32 %v9500, 16
      %v9757 = vrot.slane %v9755, 5
      %v9758 = vsel %vm427, %v9753, %v9757
      %v9760 = vshrl.u32 %v9501, 16
      %v9762 = vrot.slane %v9760, 4
      %v9763 = vshll.u32 %v9501, 16
      %v9765 = vrot.slane %v9763, 5
      %v9766 = vor.u32 %v9762, %v9765
      %v9767 = vrot.slane %v9766, 4
      %v9769 = vshll.u32 %v9502, 16
      %v9771 = vrot.slane %v9769, 5
      %v9772 = vsel %vm427, %v9767, %v9771
      %v9773 = vshrl.u32 %v9502, 16
      %v9775 = vrot.slane %v9773, 4
      %v9776 = vor.u32 %v9775, %v9771
      %v9777 = vrot.slane %v9776, 4
      %v9779 = vshll.u32 %v9503, 16
      %v9781 = vrot.slane %v9779, 5
      %v9782 = vsel %vm427, %v9777, %v9781
      %v9784 = vshrl.u32 %v9504, 16
      %v9786 = vrot.slane %v9784, 4
      %v9787 = vshll.u32 %v9504, 16
      %v9789 = vrot.slane %v9787, 5
      %v9790 = vor.u32 %v9786, %v9789
      %v9791 = vrot.slane %v9790, 4
      %v9793 = vshll.u32 %v9505, 16
      %v9795 = vrot.slane %v9793, 5
      %v9796 = vsel %vm427, %v9791, %v9795
      %v9797 = vshrl.u32 %v9505, 16
      %v9799 = vrot.slane %v9797, 4
      %v9800 = vor.u32 %v9799, %v9795
      %v9801 = vrot.slane %v9800, 4
      %v9803 = vshll.u32 %v9506, 16
      %v9805 = vrot.slane %v9803, 5
      %v9806 = vsel %vm427, %v9801, %v9805
      %v9808 = vshrl.u32 %v9507, 16
      %v9810 = vrot.slane %v9808, 4
      %v9811 = vshll.u32 %v9507, 16
      %v9813 = vrot.slane %v9811, 5
      %v9814 = vor.u32 %v9810, %v9813
      %v9815 = vrot.slane %v9814, 4
      %v9817 = vshll.u32 %v9508, 16
      %v9819 = vrot.slane %v9817, 5
      %v9820 = vsel %vm427, %v9815, %v9819
      %v9821 = vshrl.u32 %v9508, 16
      %v9823 = vrot.slane %v9821, 4
      %v9824 = vor.u32 %v9823, %v9819
      %v9825 = vrot.slane %v9824, 4
      %v9827 = vshll.u32 %v9509, 16
      %v9829 = vrot.slane %v9827, 5
      %v9830 = vsel %vm427, %v9825, %v9829
      %v9832 = vshrl.u32 %v9510, 16
      %v9834 = vrot.slane %v9832, 4
      %v9835 = vshll.u32 %v9510, 16
      %v9837 = vrot.slane %v9835, 5
      %v9838 = vor.u32 %v9834, %v9837
      %v9839 = vrot.slane %v9838, 4
      %v9841 = vshll.u32 %v9511, 16
      %v9843 = vrot.slane %v9841, 5
      %v9844 = vsel %vm427, %v9839, %v9843
      %v9845 = vshrl.u32 %v9511, 16
      %v9847 = vrot.slane %v9845, 4
      %v9848 = vor.u32 %v9847, %v9843
      %v9849 = vrot.slane %v9848, 4
      %v9851 = vshll.u32 %v9512, 16
      %v9853 = vrot.slane %v9851, 5
      %v9854 = vsel %vm427, %v9849, %v9853
      %v9856 = vshrl.u32 %v9513, 16
      %v9858 = vrot.slane %v9856, 4
      %v9859 = vshll.u32 %v9513, 16
      %v9861 = vrot.slane %v9859, 5
      %v9862 = vor.u32 %v9858, %v9861
      %v9863 = vrot.slane %v9862, 4
      %v9865 = vshll.u32 %v9514, 16
      %v9867 = vrot.slane %v9865, 5
      %v9868 = vsel %vm427, %v9863, %v9867
      %v9869 = vshrl.u32 %v9514, 16
      %v9871 = vrot.slane %v9869, 4
      %v9872 = vor.u32 %v9871, %v9867
      %v9873 = vrot.slane %v9872, 4
      %v9875 = vshll.u32 %v9515, 16
      %v9877 = vrot.slane %v9875, 5
      %v9878 = vsel %vm427, %v9873, %v9877
      %v9880 = vshrl.u32 %v9516, 16
      %v9882 = vrot.slane %v9880, 4
      %v9883 = vshll.u32 %v9516, 16
      %v9885 = vrot.slane %v9883, 5
      %v9886 = vor.u32 %v9882, %v9885
      %v9887 = vrot.slane %v9886, 4
      %v9889 = vshll.u32 %v9517, 16
      %v9891 = vrot.slane %v9889, 5
      %v9892 = vsel %vm427, %v9887, %v9891
      %v9893 = vshrl.u32 %v9517, 16
      %v9895 = vrot.slane %v9893, 4
      %v9896 = vor.u32 %v9895, %v9891
      %v9897 = vrot.slane %v9896, 4
      %v9899 = vshll.u32 %v9518, 16
      %v9901 = vrot.slane %v9899, 5
      %v9902 = vsel %vm427, %v9897, %v9901
      %s9903 = scalar_lea.vmem %s4, 448
      %v9904 = vld [vmem:[%s9903] sm:$0xf]
      %v9905 = vld [vmem:[%s9903 + $0x4] sm:$0xf]
      %v9906 = vld [vmem:[%s9903 + $0x8] sm:$0xf]
      %v9907 = vld [vmem:[%s9903 + $0xc] sm:$0xf]
      %v9908 = vld [vmem:[%s9903 + $0x10] sm:$0xf]
      %v9909 = vld [vmem:[%s9903 + $0x14] sm:$0xf]
      %v9910 = vld [vmem:[%s9903 + $0x18] sm:$0xf]
      %v9911 = vld [vmem:[%s9903 + $0x1c] sm:$0xf]
      %v9912 = vld [vmem:[%s9903 + $0x20] sm:$0xf]
      %v9913 = vld [vmem:[%s9903 + $0x24] sm:$0xf]
      %v9914 = vld [vmem:[%s9903 + $0x28] sm:$0xf]
      %v9915 = vld [vmem:[%s9903 + $0x2c] sm:$0xf]
      %v9916 = vld [vmem:[%s9903 + $0x30] sm:$0xf]
      %v9917 = vld [vmem:[%s9903 + $0x34] sm:$0xf]
      %v9918 = vld [vmem:[%s9903 + $0x38] sm:$0xf]
      %v9919 = vld [vmem:[%s9903 + $0x3c] sm:$0xf]
      %v9920 = vunpack.c.l.b16 %v9532
      %v9921 = vunpack.c.l.b16 %v9542
      %v9922 = vunpack.c.l.b16 %v9556
      %v9923 = vunpack.c.l.b16 %v9566
      %v9924 = vunpack.c.l.b16 %v9580
      %v9925 = vunpack.c.l.b16 %v9590
      %v9926 = vunpack.c.l.b16 %v9604
      %v9927 = vunpack.c.l.b16 %v9614
      %v9928 = vunpack.c.l.b16 %v9628
      %v9929 = vunpack.c.l.b16 %v9638
      %v9930 = vunpack.c.l.b16 %v9652
      %v9931 = vunpack.c.l.b16 %v9662
      %v9932 = vunpack.c.l.b16 %v9676
      %v9933 = vunpack.c.l.b16 %v9686
      %v9934 = vunpack.c.l.b16 %v9700
      %v9935 = vunpack.c.l.b16 %v9710
      %v9936 = vunpack.c.l.b16 %v9724
      %v9937 = vunpack.c.l.b16 %v9734
      %v9938 = vunpack.c.l.b16 %v9748
      %v9939 = vunpack.c.l.b16 %v9758
      %v9940 = vunpack.c.l.b16 %v9772
      %v9941 = vunpack.c.l.b16 %v9782
      %v9942 = vunpack.c.l.b16 %v9796
      %v9943 = vunpack.c.l.b16 %v9806
      %v9944 = vunpack.c.l.b16 %v9820
      %v9945 = vunpack.c.l.b16 %v9830
      %v9946 = vunpack.c.l.b16 %v9844
      %v9947 = vunpack.c.l.b16 %v9854
      %v9948 = vunpack.c.l.b16 %v9868
      %v9949 = vunpack.c.l.b16 %v9878
      %v9950 = vunpack.c.l.b16 %v9892
      %v9951 = vunpack.c.l.b16 %v9902
      %v9952 = vpack.c.b16 %v9921, %v9920
      %v9953 = vpack.c.b16 %v9923, %v9922
      %v9954 = vpack.c.b16 %v9925, %v9924
      %v9955 = vpack.c.b16 %v9927, %v9926
      %v9956 = vpack.c.b16 %v9929, %v9928
      %v9957 = vpack.c.b16 %v9931, %v9930
      %v9958 = vpack.c.b16 %v9933, %v9932
      %v9959 = vpack.c.b16 %v9935, %v9934
      %v9960 = vpack.c.b16 %v9937, %v9936
      %v9961 = vpack.c.b16 %v9939, %v9938
      %v9962 = vpack.c.b16 %v9941, %v9940
      %v9963 = vpack.c.b16 %v9943, %v9942
      %v9964 = vpack.c.b16 %v9945, %v9944
      %v9965 = vpack.c.b16 %v9947, %v9946
      %v9966 = vpack.c.b16 %v9949, %v9948
      %v9967 = vpack.c.b16 %v9951, %v9950
      %v10000 = vunpack.c.l.b16 %v9904
      %v10001 = vunpack.c.l.b16 %v9905
      %v10002 = vunpack.c.l.b16 %v9906
      %v10003 = vunpack.c.l.b16 %v9907
      %v10004 = vunpack.c.l.b16 %v9908
      %v10005 = vunpack.c.l.b16 %v9909
      %v10006 = vunpack.c.l.b16 %v9910
      %v10007 = vunpack.c.l.b16 %v9911
      %v10008 = vunpack.c.l.b16 %v9912
      %v10009 = vunpack.c.l.b16 %v9913
      %v10010 = vunpack.c.l.b16 %v9914
      %v10011 = vunpack.c.l.b16 %v9915
      %v10012 = vunpack.c.l.b16 %v9916
      %v10013 = vunpack.c.l.b16 %v9917
      %v10014 = vunpack.c.l.b16 %v9918
      %v10015 = vunpack.c.l.b16 %v9919
      %v10016 = vpack.c.b16 %v10001, %v10000
      %v10017 = vpack.c.b16 %v10003, %v10002
      %v10018 = vpack.c.b16 %v10005, %v10004
      %v10019 = vpack.c.b16 %v10007, %v10006
      %v10020 = vpack.c.b16 %v10009, %v10008
      %v10021 = vpack.c.b16 %v10011, %v10010
      %v10022 = vpack.c.b16 %v10013, %v10012
      %v10023 = vpack.c.b16 %v10015, %v10014
      %10032 = vmatprep.subr.bf16.mxu0 0
      %10033 = vmatpush1.bf16.msra.mxu0 %v10016
      %10034 = vmatprep.subr.bf16.mxu0 0
      %10035 = vmatpush1.bf16.msra.mxu0 %v10017
      %10036 = vmatprep.subr.bf16.mxu0 0
      %10037 = vmatpush1.bf16.msra.mxu0 %v10018
      %10038 = vmatprep.subr.bf16.mxu0 0
      %10039 = vmatpush1.bf16.msra.mxu0 %v10019
      %10040 = vmatprep.subr.bf16.mxu0 0
      %10041 = vmatpush1.bf16.msra.mxu0 %v10020
      %10042 = vmatprep.subr.bf16.mxu0 0
      %10043 = vmatpush1.bf16.msra.mxu0 %v10021
      %10044 = vmatprep.subr.bf16.mxu0 0
      %10045 = vmatpush1.bf16.msra.mxu0 %v10022
      %10046 = vmatprep.subr.bf16.mxu0 0
      %10047 = vmatpush1.bf16.msra.mxu0 %v10023
      %10048 = vmatprep.subr.bf16.mxu0 0
      %10049 = vmatpush1.bf16.msra.mxu0 0
      %10050 = vmatprep.subr.bf16.mxu0 0
      %10051 = vmatpush1.bf16.msra.mxu0 0
      %10052 = vmatprep.subr.bf16.mxu0 0
      %10053 = vmatpush1.bf16.msra.mxu0 0
      %10054 = vmatprep.subr.bf16.mxu0 0
      %10055 = vmatpush1.bf16.msra.mxu0 0
      %10056 = vmatprep.subr.bf16.mxu0 0
      %10057 = vmatpush1.bf16.msra.mxu0 0
      %10058 = vmatprep.subr.bf16.mxu0 0
      %10059 = vmatpush1.bf16.msra.mxu0 0
      %10060 = vmatprep.subr.bf16.mxu0 0
      %10061 = vmatpush1.bf16.msra.mxu0 0
      %10062 = vmatprep.subr.bf16.mxu0 0
      %10063 = vmatpush1.bf16.msra.mxu0 0
      %10064 = vmatprep.mubr.bf16.mxu0 0
      %10065 = vmatmul.mubr.bf16.gmra.mrb[0].mxu0 %v9952
      %v10066 = vpop.f32.mrb[0].mxu0
      %v10067 = vadd.f32 0.0, %v10066
      %v10068 = vpop.f32.mrb[0].mxu0
      %v10069 = vpop.f32.mrb[0].mxu0
      %v10070 = vadd.f32 0.0, %v10069
      %v10071 = vpop.f32.mrb[0].mxu0
      %10072 = vmatprep.mubr.bf16.mxu0 0
      %10073 = vmatmul.mubr.bf16.gmra.mrb[0].mxu0 %v9953
      %v10074 = vpop.f32.mrb[0].mxu0
      %v10075 = vadd.f32 0.0, %v10074
      %v10076 = vpop.f32.mrb[0].mxu0
      %v10077 = vpop.f32.mrb[0].mxu0
      %v10078 = vadd.f32 0.0, %v10077
      %v10079 = vpop.f32.mrb[0].mxu0
      %10080 = vmatprep.mubr.bf16.mxu0 0
      %10081 = vmatmul.mubr.bf16.gmra.mrb[0].mxu0 %v9954
      %v10082 = vpop.f32.mrb[0].mxu0
      %v10083 = vadd.f32 0.0, %v10082
      %v10084 = vpop.f32.mrb[0].mxu0
      %v10085 = vpop.f32.mrb[0].mxu0
      %v10086 = vadd.f32 0.0, %v10085
      %v10087 = vpop.f32.mrb[0].mxu0
      %10088 = vmatprep.mubr.bf16.mxu0 0
      %10089 = vmatmul.mubr.bf16.gmra.mrb[0].mxu0 %v9955
      %v10090 = vpop.f32.mrb[0].mxu0
      %v10091 = vadd.f32 0.0, %v10090
      %v10092 = vpop.f32.mrb[0].mxu0
      %v10093 = vpop.f32.mrb[0].mxu0
      %v10094 = vadd.f32 0.0, %v10093
      %v10095 = vpop.f32.mrb[0].mxu0
      %10096 = vmatprep.mubr.bf16.mxu0 0
      %10097 = vmatmul.mubr.bf16.gmra.mrb[0].mxu0 %v9956
      %v10098 = vpop.f32.mrb[0].mxu0
      %v10099 = vadd.f32 0.0, %v10098
      %v10100 = vpop.f32.mrb[0].mxu0
      %v10101 = vpop.f32.mrb[0].mxu0
      %v10102 = vadd.f32 0.0, %v10101
      %v10103 = vpop.f32.mrb[0].mxu0
      %10104 = vmatprep.mubr.bf16.mxu0 0
      %10105 = vmatmul.mubr.bf16.gmra.mrb[0].mxu0 %v9957
      %v10106 = vpop.f32.mrb[0].mxu0
      %v10107 = vadd.f32 0.0, %v10106
      %v10108 = vpop.f32.mrb[0].mxu0
      %v10109 = vpop.f32.mrb[0].mxu0
      %v10110 = vadd.f32 0.0, %v10109
      %v10111 = vpop.f32.mrb[0].mxu0
      %10112 = vmatprep.mubr.bf16.mxu0 0
      %10113 = vmatmul.mubr.bf16.gmra.mrb[0].mxu0 %v9958
      %v10114 = vpop.f32.mrb[0].mxu0
      %v10115 = vadd.f32 0.0, %v10114
      %v10116 = vpop.f32.mrb[0].mxu0
      %v10117 = vpop.f32.mrb[0].mxu0
      %v10118 = vadd.f32 0.0, %v10117
      %v10119 = vpop.f32.mrb[0].mxu0
      %10120 = vmatprep.mubr.bf16.mxu0 0
      %10121 = vmatmul.mubr.bf16.gmra.mrb[0].mxu0 %v9959
      %v10122 = vpop.f32.mrb[0].mxu0
      %v10123 = vadd.f32 0.0, %v10122
      %v10124 = vpop.f32.mrb[0].mxu0
      %v10125 = vpop.f32.mrb[0].mxu0
      %v10126 = vadd.f32 0.0, %v10125
      %v10127 = vpop.f32.mrb[0].mxu0
      %10128 = vmatprep.mubr.bf16.mxu0 0
      %10129 = vmatmul.mubr.bf16.gmra.mrb[0].mxu0 %v9960
      %v10130 = vpop.f32.mrb[0].mxu0
      %v10131 = vadd.f32 0.0, %v10130
      %v10132 = vpop.f32.mrb[0].mxu0
      %v10133 = vpop.f32.mrb[0].mxu0
      %v10134 = vadd.f32 0.0, %v10133
      %v10135 = vpop.f32.mrb[0].mxu0
      %10136 = vmatprep.mubr.bf16.mxu0 0
      %10137 = vmatmul.mubr.bf16.gmra.mrb[0].mxu0 %v9961
      %v10138 = vpop.f32.mrb[0].mxu0
      %v10139 = vadd.f32 0.0, %v10138
      %v10140 = vpop.f32.mrb[0].mxu0
      %v10141 = vpop.f32.mrb[0].mxu0
      %v10142 = vadd.f32 0.0, %v10141
      %v10143 = vpop.f32.mrb[0].mxu0
      %10144 = vmatprep.mubr.bf16.mxu0 0
      %10145 = vmatmul.mubr.bf16.gmra.mrb[0].mxu0 %v9962
      %v10146 = vpop.f32.mrb[0].mxu0
      %v10147 = vadd.f32 0.0, %v10146
      %v10148 = vpop.f32.mrb[0].mxu0
      %v10149 = vpop.f32.mrb[0].mxu0
      %v10150 = vadd.f32 0.0, %v10149
      %v10151 = vpop.f32.mrb[0].mxu0
      %10152 = vmatprep.mubr.bf16.mxu0 0
      %10153 = vmatmul.mubr.bf16.gmra.mrb[0].mxu0 %v9963
      %v10154 = vpop.f32.mrb[0].mxu0
      %v10155 = vadd.f32 0.0, %v10154
      %v10156 = vpop.f32.mrb[0].mxu0
      %v10157 = vpop.f32.mrb[0].mxu0
      %v10158 = vadd.f32 0.0, %v10157
      %v10159 = vpop.f32.mrb[0].mxu0
      %10160 = vmatprep.mubr.bf16.mxu0 0
      %10161 = vmatmul.mubr.bf16.gmra.mrb[0].mxu0 %v9964
      %v10162 = vpop.f32.mrb[0].mxu0
      %v10163 = vadd.f32 0.0, %v10162
      %v10164 = vpop.f32.mrb[0].mxu0
      %v10165 = vpop.f32.mrb[0].mxu0
      %v10166 = vadd.f32 0.0, %v10165
      %v10167 = vpop.f32.mrb[0].mxu0
      %10168 = vmatprep.mubr.bf16.mxu0 0
      %10169 = vmatmul.mubr.bf16.gmra.mrb[0].mxu0 %v9965
      %v10170 = vpop.f32.mrb[0].mxu0
      %v10171 = vadd.f32 0.0, %v10170
      %v10172 = vpop.f32.mrb[0].mxu0
      %v10173 = vpop.f32.mrb[0].mxu0
      %v10174 = vadd.f32 0.0, %v10173
      %v10175 = vpop.f32.mrb[0].mxu0
      %10176 = vmatprep.mubr.bf16.mxu0 0
      %10177 = vmatmul.mubr.bf16.gmra.mrb[0].mxu0 %v9966
      %v10178 = vpop.f32.mrb[0].mxu0
      %v10179 = vadd.f32 0.0, %v10178
      %v10180 = vpop.f32.mrb[0].mxu0
      %v10181 = vpop.f32.mrb[0].mxu0
      %v10182 = vadd.f32 0.0, %v10181
      %v10183 = vpop.f32.mrb[0].mxu0
      %10184 = vmatprep.mubr.bf16.mxu0 0
      %10185 = vmatmul.mubr.bf16.gmra.mrb[0].mxu0 %v9967
      %v10186 = vpop.f32.mrb[0].mxu0
      %v10187 = vadd.f32 0.0, %v10186
      %v10188 = vpop.f32.mrb[0].mxu0
      %v10189 = vpop.f32.mrb[0].mxu0
      %v10190 = vadd.f32 0.0, %v10189
      %v10191 = vpop.f32.mrb[0].mxu0
      %10192 = vdwg.mxu0
      %v10193 = vadd.f32 %v9439, %v10067
      %v10194 = vadd.f32 %v9440, %v10070
      %v10195 = vadd.f32 %v9441, %v10075
      %v10196 = vadd.f32 %v9442, %v10078
      %v10197 = vadd.f32 %v9443, %v10083
      %v10198 = vadd.f32 %v9444, %v10086
      %v10199 = vadd.f32 %v9445, %v10091
      %v10200 = vadd.f32 %v9446, %v10094
      %v10201 = vadd.f32 %v9447, %v10099
      %v10202 = vadd.f32 %v9448, %v10102
      %v10203 = vadd.f32 %v9449, %v10107
      %v10204 = vadd.f32 %v9450, %v10110
      %v10205 = vadd.f32 %v9451, %v10115
      %v10206 = vadd.f32 %v9452, %v10118
      %v10207 = vadd.f32 %v9453, %v10123
      %v10208 = vadd.f32 %v9454, %v10126
      %v10209 = vadd.f32 %v9455, %v10131
      %v10210 = vadd.f32 %v9456, %v10134
      %v10211 = vadd.f32 %v9457, %v10139
      %v10212 = vadd.f32 %v9458, %v10142
      %v10213 = vadd.f32 %v9459, %v10147
      %v10214 = vadd.f32 %v9460, %v10150
      %v10215 = vadd.f32 %v9461, %v10155
      %v10216 = vadd.f32 %v9462, %v10158
      %v10217 = vadd.f32 %v9463, %v10163
      %v10218 = vadd.f32 %v9464, %v10166
      %v10219 = vadd.f32 %v9465, %v10171
      %v10220 = vadd.f32 %v9466, %v10174
      %v10221 = vadd.f32 %v9467, %v10179
      %v10222 = vadd.f32 %v9468, %v10182
      %v10223 = vadd.f32 %v9469, %v10187
      %v10224 = vadd.f32 %v9470, %v10190
      %v10225 = vld [vmem:[%s9084] sm:$0xe]
      %v10226 = vld [vmem:[%s9084 + $0xc] sm:$0xe]
      %v10227 = vld [vmem:[%s9084 + $0x18] sm:$0xe]
      %v10228 = vld [vmem:[%s9084 + $0x24] sm:$0xe]
      %v10229 = vld [vmem:[%s9084 + $0x30] sm:$0xe]
      %v10230 = vld [vmem:[%s9084 + $0x3c] sm:$0xe]
      %v10231 = vld [vmem:[%s9084 + $0x48] sm:$0xe]
      %v10232 = vld [vmem:[%s9084 + $0x54] sm:$0xe]
      %v10233 = vld [vmem:[%s9084 + $0x60] sm:$0xe]
      %v10234 = vld [vmem:[%s9084 + $0x6c] sm:$0xe]
      %v10235 = vld [vmem:[%s9084 + $0x78] sm:$0xe]
      %v10236 = vld [vmem:[%s9084 + $0x84] sm:$0xe]
      %v10237 = vld [vmem:[%s9084 + $0x90] sm:$0xe]
      %v10238 = vld [vmem:[%s9084 + $0x9c] sm:$0xe]
      %v10239 = vld [vmem:[%s9084 + $0xa8] sm:$0xe]
      %v10240 = vld [vmem:[%s9084 + $0xb4] sm:$0xe]
      %v10289 = vrot.slane %v10225, 5
      %v10290 = vrot.slane %v10289, 4
      %v10291 = vrot.slane %v9472, 5
      %v10292 = vsel %vm1457, %v10290, %v10291
      %v10293 = vrot.slane %v10291, 4
      %v10294 = vrot.slane %v9473, 5
      %v10295 = vsel %vm1457, %v10293, %v10294
      %v10296 = vrot.slane %v10226, 5
      %v10297 = vrot.slane %v10296, 4
      %v10298 = vrot.slane %v9475, 5
      %v10299 = vsel %vm1457, %v10297, %v10298
      %v10300 = vrot.slane %v10298, 4
      %v10301 = vrot.slane %v9476, 5
      %v10302 = vsel %vm1457, %v10300, %v10301
      %v10303 = vrot.slane %v10227, 5
      %v10304 = vrot.slane %v10303, 4
      %v10305 = vrot.slane %v9478, 5
      %v10306 = vsel %vm1457, %v10304, %v10305
      %v10307 = vrot.slane %v10305, 4
      %v10308 = vrot.slane %v9479, 5
      %v10309 = vsel %vm1457, %v10307, %v10308
      %v10310 = vrot.slane %v10228, 5
      %v10311 = vrot.slane %v10310, 4
      %v10312 = vrot.slane %v9481, 5
      %v10313 = vsel %vm1457, %v10311, %v10312
      %v10314 = vrot.slane %v10312, 4
      %v10315 = vrot.slane %v9482, 5
      %v10316 = vsel %vm1457, %v10314, %v10315
      %v10317 = vrot.slane %v10229, 5
      %v10318 = vrot.slane %v10317, 4
      %v10319 = vrot.slane %v9484, 5
      %v10320 = vsel %vm1457, %v10318, %v10319
      %v10321 = vrot.slane %v10319, 4
      %v10322 = vrot.slane %v9485, 5
      %v10323 = vsel %vm1457, %v10321, %v10322
      %v10324 = vrot.slane %v10230, 5
      %v10325 = vrot.slane %v10324, 4
      %v10326 = vrot.slane %v9487, 5
      %v10327 = vsel %vm1457, %v10325, %v10326
      %v10328 = vrot.slane %v10326, 4
      %v10329 = vrot.slane %v9488, 5
      %v10330 = vsel %vm1457, %v10328, %v10329
      %v10331 = vrot.slane %v10231, 5
      %v10332 = vrot.slane %v10331, 4
      %v10333 = vrot.slane %v9490, 5
      %v10334 = vsel %vm1457, %v10332, %v10333
      %v10335 = vrot.slane %v10333, 4
      %v10336 = vrot.slane %v9491, 5
      %v10337 = vsel %vm1457, %v10335, %v10336
      %v10338 = vrot.slane %v10232, 5
      %v10339 = vrot.slane %v10338, 4
      %v10340 = vrot.slane %v9493, 5
      %v10341 = vsel %vm1457, %v10339, %v10340
      %v10342 = vrot.slane %v10340, 4
      %v10343 = vrot.slane %v9494, 5
      %v10344 = vsel %vm1457, %v10342, %v10343
      %v10345 = vrot.slane %v10233, 5
      %v10346 = vrot.slane %v10345, 4
      %v10347 = vrot.slane %v9496, 5
      %v10348 = vsel %vm1457, %v10346, %v10347
      %v10349 = vrot.slane %v10347, 4
      %v10350 = vrot.slane %v9497, 5
      %v10351 = vsel %vm1457, %v10349, %v10350
      %v10352 = vrot.slane %v10234, 5
      %v10353 = vrot.slane %v10352, 4
      %v10354 = vrot.slane %v9499, 5
      %v10355 = vsel %vm1457, %v10353, %v10354
      %v10356 = vrot.slane %v10354, 4
      %v10357 = vrot.slane %v9500, 5
      %v10358 = vsel %vm1457, %v10356, %v10357
      %v10359 = vrot.slane %v10235, 5
      %v10360 = vrot.slane %v10359, 4
      %v10361 = vrot.slane %v9502, 5
      %v10362 = vsel %vm1457, %v10360, %v10361
      %v10363 = vrot.slane %v10361, 4
      %v10364 = vrot.slane %v9503, 5
      %v10365 = vsel %vm1457, %v10363, %v10364
      %v10366 = vrot.slane %v10236, 5
      %v10367 = vrot.slane %v10366, 4
      %v10368 = vrot.slane %v9505, 5
      %v10369 = vsel %vm1457, %v10367, %v10368
      %v10370 = vrot.slane %v10368, 4
      %v10371 = vrot.slane %v9506, 5
      %v10372 = vsel %vm1457, %v10370, %v10371
      %v10373 = vrot.slane %v10237, 5
      %v10374 = vrot.slane %v10373, 4
      %v10375 = vrot.slane %v9508, 5
      %v10376 = vsel %vm1457, %v10374, %v10375
      %v10377 = vrot.slane %v10375, 4
      %v10378 = vrot.slane %v9509, 5
      %v10379 = vsel %vm1457, %v10377, %v10378
      %v10380 = vrot.slane %v10238, 5
      %v10381 = vrot.slane %v10380, 4
      %v10382 = vrot.slane %v9511, 5
      %v10383 = vsel %vm1457, %v10381, %v10382
      %v10384 = vrot.slane %v10382, 4
      %v10385 = vrot.slane %v9512, 5
      %v10386 = vsel %vm1457, %v10384, %v10385
      %v10387 = vrot.slane %v10239, 5
      %v10388 = vrot.slane %v10387, 4
      %v10389 = vrot.slane %v9514, 5
      %v10390 = vsel %vm1457, %v10388, %v10389
      %v10391 = vrot.slane %v10389, 4
      %v10392 = vrot.slane %v9515, 5
      %v10393 = vsel %vm1457, %v10391, %v10392
      %v10394 = vrot.slane %v10240, 5
      %v10395 = vrot.slane %v10394, 4
      %v10396 = vrot.slane %v9517, 5
      %v10397 = vsel %vm1457, %v10395, %v10396
      %v10398 = vrot.slane %v10396, 4
      %v10399 = vrot.slane %v9518, 5
      %v10400 = vsel %vm1457, %v10398, %v10399
      %s10401 = scalar_lea.vmem %s4, 512
      %v10402 = vld [vmem:[%s10401] sm:$0xf]
      %v10403 = vld [vmem:[%s10401 + $0x4] sm:$0xf]
      %v10404 = vld [vmem:[%s10401 + $0x8] sm:$0xf]
      %v10405 = vld [vmem:[%s10401 + $0xc] sm:$0xf]
      %v10406 = vld [vmem:[%s10401 + $0x10] sm:$0xf]
      %v10407 = vld [vmem:[%s10401 + $0x14] sm:$0xf]
      %v10408 = vld [vmem:[%s10401 + $0x18] sm:$0xf]
      %v10409 = vld [vmem:[%s10401 + $0x1c] sm:$0xf]
      %v10410 = vld [vmem:[%s10401 + $0x20] sm:$0xf]
      %v10411 = vld [vmem:[%s10401 + $0x24] sm:$0xf]
      %v10412 = vld [vmem:[%s10401 + $0x28] sm:$0xf]
      %v10413 = vld [vmem:[%s10401 + $0x2c] sm:$0xf]
      %v10414 = vld [vmem:[%s10401 + $0x30] sm:$0xf]
      %v10415 = vld [vmem:[%s10401 + $0x34] sm:$0xf]
      %v10416 = vld [vmem:[%s10401 + $0x38] sm:$0xf]
      %v10417 = vld [vmem:[%s10401 + $0x3c] sm:$0xf]
      %v10418 = vunpack.c.l.b16 %v10292
      %v10419 = vunpack.c.l.b16 %v10295
      %v10420 = vunpack.c.l.b16 %v10299
      %v10421 = vunpack.c.l.b16 %v10302
      %v10422 = vunpack.c.l.b16 %v10306
      %v10423 = vunpack.c.l.b16 %v10309
      %v10424 = vunpack.c.l.b16 %v10313
      %v10425 = vunpack.c.l.b16 %v10316
      %v10426 = vunpack.c.l.b16 %v10320
      %v10427 = vunpack.c.l.b16 %v10323
      %v10428 = vunpack.c.l.b16 %v10327
      %v10429 = vunpack.c.l.b16 %v10330
      %v10430 = vunpack.c.l.b16 %v10334
      %v10431 = vunpack.c.l.b16 %v10337
      %v10432 = vunpack.c.l.b16 %v10341
      %v10433 = vunpack.c.l.b16 %v10344
      %v10434 = vunpack.c.l.b16 %v10348
      %v10435 = vunpack.c.l.b16 %v10351
      %v10436 = vunpack.c.l.b16 %v10355
      %v10437 = vunpack.c.l.b16 %v10358
      %v10438 = vunpack.c.l.b16 %v10362
      %v10439 = vunpack.c.l.b16 %v10365
      %v10440 = vunpack.c.l.b16 %v10369
      %v10441 = vunpack.c.l.b16 %v10372
      %v10442 = vunpack.c.l.b16 %v10376
      %v10443 = vunpack.c.l.b16 %v10379
      %v10444 = vunpack.c.l.b16 %v10383
      %v10445 = vunpack.c.l.b16 %v10386
      %v10446 = vunpack.c.l.b16 %v10390
      %v10447 = vunpack.c.l.b16 %v10393
      %v10448 = vunpack.c.l.b16 %v10397
      %v10449 = vunpack.c.l.b16 %v10400
      %v10450 = vpack.c.b16 %v10419, %v10418
      %v10451 = vpack.c.b16 %v10421, %v10420
      %v10452 = vpack.c.b16 %v10423, %v10422
      %v10453 = vpack.c.b16 %v10425, %v10424
      %v10454 = vpack.c.b16 %v10427, %v10426
      %v10455 = vpack.c.b16 %v10429, %v10428
      %v10456 = vpack.c.b16 %v10431, %v10430
      %v10457 = vpack.c.b16 %v10433, %v10432
      %v10458 = vpack.c.b16 %v10435, %v10434
      %v10459 = vpack.c.b16 %v10437, %v10436
      %v10460 = vpack.c.b16 %v10439, %v10438
      %v10461 = vpack.c.b16 %v10441, %v10440
      %v10462 = vpack.c.b16 %v10443, %v10442
      %v10463 = vpack.c.b16 %v10445, %v10444
      %v10464 = vpack.c.b16 %v10447, %v10446
      %v10465 = vpack.c.b16 %v10449, %v10448
      %v10498 = vunpack.c.l.b16 %v10402
      %v10499 = vunpack.c.l.b16 %v10403
      %v10500 = vunpack.c.l.b16 %v10404
      %v10501 = vunpack.c.l.b16 %v10405
      %v10502 = vunpack.c.l.b16 %v10406
      %v10503 = vunpack.c.l.b16 %v10407
      %v10504 = vunpack.c.l.b16 %v10408
      %v10505 = vunpack.c.l.b16 %v10409
      %v10506 = vunpack.c.l.b16 %v10410
      %v10507 = vunpack.c.l.b16 %v10411
      %v10508 = vunpack.c.l.b16 %v10412
      %v10509 = vunpack.c.l.b16 %v10413
      %v10510 = vunpack.c.l.b16 %v10414
      %v10511 = vunpack.c.l.b16 %v10415
      %v10512 = vunpack.c.l.b16 %v10416
      %v10513 = vunpack.c.l.b16 %v10417
      %v10514 = vpack.c.b16 %v10499, %v10498
      %v10515 = vpack.c.b16 %v10501, %v10500
      %v10516 = vpack.c.b16 %v10503, %v10502
      %v10517 = vpack.c.b16 %v10505, %v10504
      %v10518 = vpack.c.b16 %v10507, %v10506
      %v10519 = vpack.c.b16 %v10509, %v10508
      %v10520 = vpack.c.b16 %v10511, %v10510
      %v10521 = vpack.c.b16 %v10513, %v10512
      %10530 = vmatprep.subr.bf16.mxu0 0
      %10531 = vmatpush1.bf16.msra.mxu0 %v10514
      %10532 = vmatprep.subr.bf16.mxu0 0
      %10533 = vmatpush1.bf16.msra.mxu0 %v10515
      %10534 = vmatprep.subr.bf16.mxu0 0
      %10535 = vmatpush1.bf16.msra.mxu0 %v10516
      %10536 = vmatprep.subr.bf16.mxu0 0
      %10537 = vmatpush1.bf16.msra.mxu0 %v10517
      %10538 = vmatprep.subr.bf16.mxu0 0
      %10539 = vmatpush1.bf16.msra.mxu0 %v10518
      %10540 = vmatprep.subr.bf16.mxu0 0
      %10541 = vmatpush1.bf16.msra.mxu0 %v10519
      %10542 = vmatprep.subr.bf16.mxu0 0
      %10543 = vmatpush1.bf16.msra.mxu0 %v10520
      %10544 = vmatprep.subr.bf16.mxu0 0
      %10545 = vmatpush1.bf16.msra.mxu0 %v10521
      %10546 = vmatprep.subr.bf16.mxu0 0
      %10547 = vmatpush1.bf16.msra.mxu0 0
      %10548 = vmatprep.subr.bf16.mxu0 0
      %10549 = vmatpush1.bf16.msra.mxu0 0
      %10550 = vmatprep.subr.bf16.mxu0 0
      %10551 = vmatpush1.bf16.msra.mxu0 0
      %10552 = vmatprep.subr.bf16.mxu0 0
      %10553 = vmatpush1.bf16.msra.mxu0 0
      %10554 = vmatprep.subr.bf16.mxu0 0
      %10555 = vmatpush1.bf16.msra.mxu0 0
      %10556 = vmatprep.subr.bf16.mxu0 0
      %10557 = vmatpush1.bf16.msra.mxu0 0
      %10558 = vmatprep.subr.bf16.mxu0 0
      %10559 = vmatpush1.bf16.msra.mxu0 0
      %10560 = vmatprep.subr.bf16.mxu0 0
      %10561 = vmatpush1.bf16.msra.mxu0 0
      %10562 = vmatprep.mubr.bf16.mxu0 0
      %10563 = vmatmul.mubr.bf16.gmra.mrb[0].mxu0 %v10450
      %v10564 = vpop.f32.mrb[0].mxu0
      %v10565 = vadd.f32 0.0, %v10564
      %v10566 = vpop.f32.mrb[0].mxu0
      %v10567 = vpop.f32.mrb[0].mxu0
      %v10568 = vadd.f32 0.0, %v10567
      %v10569 = vpop.f32.mrb[0].mxu0
      %10570 = vmatprep.mubr.bf16.mxu0 0
      %10571 = vmatmul.mubr.bf16.gmra.mrb[0].mxu0 %v10451
      %v10572 = vpop.f32.mrb[0].mxu0
      %v10573 = vadd.f32 0.0, %v10572
      %v10574 = vpop.f32.mrb[0].mxu0
      %v10575 = vpop.f32.mrb[0].mxu0
      %v10576 = vadd.f32 0.0, %v10575
      %v10577 = vpop.f32.mrb[0].mxu0
      %10578 = vmatprep.mubr.bf16.mxu0 0
      %10579 = vmatmul.mubr.bf16.gmra.mrb[0].mxu0 %v10452
      %v10580 = vpop.f32.mrb[0].mxu0
      %v10581 = vadd.f32 0.0, %v10580
      %v10582 = vpop.f32.mrb[0].mxu0
      %v10583 = vpop.f32.mrb[0].mxu0
      %v10584 = vadd.f32 0.0, %v10583
      %v10585 = vpop.f32.mrb[0].mxu0
      %10586 = vmatprep.mubr.bf16.mxu0 0
      %10587 = vmatmul.mubr.bf16.gmra.mrb[0].mxu0 %v10453
      %v10588 = vpop.f32.mrb[0].mxu0
      %v10589 = vadd.f32 0.0, %v10588
      %v10590 = vpop.f32.mrb[0].mxu0
      %v10591 = vpop.f32.mrb[0].mxu0
      %v10592 = vadd.f32 0.0, %v10591
      %v10593 = vpop.f32.mrb[0].mxu0
      %10594 = vmatprep.mubr.bf16.mxu0 0
      %10595 = vmatmul.mubr.bf16.gmra.mrb[0].mxu0 %v10454
      %v10596 = vpop.f32.mrb[0].mxu0
      %v10597 = vadd.f32 0.0, %v10596
      %v10598 = vpop.f32.mrb[0].mxu0
      %v10599 = vpop.f32.mrb[0].mxu0
      %v10600 = vadd.f32 0.0, %v10599
      %v10601 = vpop.f32.mrb[0].mxu0
      %10602 = vmatprep.mubr.bf16.mxu0 0
      %10603 = vmatmul.mubr.bf16.gmra.mrb[0].mxu0 %v10455
      %v10604 = vpop.f32.mrb[0].mxu0
      %v10605 = vadd.f32 0.0, %v10604
      %v10606 = vpop.f32.mrb[0].mxu0
      %v10607 = vpop.f32.mrb[0].mxu0
      %v10608 = vadd.f32 0.0, %v10607
      %v10609 = vpop.f32.mrb[0].mxu0
      %10610 = vmatprep.mubr.bf16.mxu0 0
      %10611 = vmatmul.mubr.bf16.gmra.mrb[0].mxu0 %v10456
      %v10612 = vpop.f32.mrb[0].mxu0
      %v10613 = vadd.f32 0.0, %v10612
      %v10614 = vpop.f32.mrb[0].mxu0
      %v10615 = vpop.f32.mrb[0].mxu0
      %v10616 = vadd.f32 0.0, %v10615
      %v10617 = vpop.f32.mrb[0].mxu0
      %10618 = vmatprep.mubr.bf16.mxu0 0
      %10619 = vmatmul.mubr.bf16.gmra.mrb[0].mxu0 %v10457
      %v10620 = vpop.f32.mrb[0].mxu0
      %v10621 = vadd.f32 0.0, %v10620
      %v10622 = vpop.f32.mrb[0].mxu0
      %v10623 = vpop.f32.mrb[0].mxu0
      %v10624 = vadd.f32 0.0, %v10623
      %v10625 = vpop.f32.mrb[0].mxu0
      %10626 = vmatprep.mubr.bf16.mxu0 0
      %10627 = vmatmul.mubr.bf16.gmra.mrb[0].mxu0 %v10458
      %v10628 = vpop.f32.mrb[0].mxu0
      %v10629 = vadd.f32 0.0, %v10628
      %v10630 = vpop.f32.mrb[0].mxu0
      %v10631 = vpop.f32.mrb[0].mxu0
      %v10632 = vadd.f32 0.0, %v10631
      %v10633 = vpop.f32.mrb[0].mxu0
      %10634 = vmatprep.mubr.bf16.mxu0 0
      %10635 = vmatmul.mubr.bf16.gmra.mrb[0].mxu0 %v10459
      %v10636 = vpop.f32.mrb[0].mxu0
      %v10637 = vadd.f32 0.0, %v10636
      %v10638 = vpop.f32.mrb[0].mxu0
      %v10639 = vpop.f32.mrb[0].mxu0
      %v10640 = vadd.f32 0.0, %v10639
      %v10641 = vpop.f32.mrb[0].mxu0
      %10642 = vmatprep.mubr.bf16.mxu0 0
      %10643 = vmatmul.mubr.bf16.gmra.mrb[0].mxu0 %v10460
      %v10644 = vpop.f32.mrb[0].mxu0
      %v10645 = vadd.f32 0.0, %v10644
      %v10646 = vpop.f32.mrb[0].mxu0
      %v10647 = vpop.f32.mrb[0].mxu0
      %v10648 = vadd.f32 0.0, %v10647
      %v10649 = vpop.f32.mrb[0].mxu0
      %10650 = vmatprep.mubr.bf16.mxu0 0
      %10651 = vmatmul.mubr.bf16.gmra.mrb[0].mxu0 %v10461
      %v10652 = vpop.f32.mrb[0].mxu0
      %v10653 = vadd.f32 0.0, %v10652
      %v10654 = vpop.f32.mrb[0].mxu0
      %v10655 = vpop.f32.mrb[0].mxu0
      %v10656 = vadd.f32 0.0, %v10655
      %v10657 = vpop.f32.mrb[0].mxu0
      %10658 = vmatprep.mubr.bf16.mxu0 0
      %10659 = vmatmul.mubr.bf16.gmra.mrb[0].mxu0 %v10462
      %v10660 = vpop.f32.mrb[0].mxu0
      %v10661 = vadd.f32 0.0, %v10660
      %v10662 = vpop.f32.mrb[0].mxu0
      %v10663 = vpop.f32.mrb[0].mxu0
      %v10664 = vadd.f32 0.0, %v10663
      %v10665 = vpop.f32.mrb[0].mxu0
      %10666 = vmatprep.mubr.bf16.mxu0 0
      %10667 = vmatmul.mubr.bf16.gmra.mrb[0].mxu0 %v10463
      %v10668 = vpop.f32.mrb[0].mxu0
      %v10669 = vadd.f32 0.0, %v10668
      %v10670 = vpop.f32.mrb[0].mxu0
      %v10671 = vpop.f32.mrb[0].mxu0
      %v10672 = vadd.f32 0.0, %v10671
      %v10673 = vpop.f32.mrb[0].mxu0
      %10674 = vmatprep.mubr.bf16.mxu0 0
      %10675 = vmatmul.mubr.bf16.gmra.mrb[0].mxu0 %v10464
      %v10676 = vpop.f32.mrb[0].mxu0
      %v10677 = vadd.f32 0.0, %v10676
      %v10678 = vpop.f32.mrb[0].mxu0
      %v10679 = vpop.f32.mrb[0].mxu0
      %v10680 = vadd.f32 0.0, %v10679
      %v10681 = vpop.f32.mrb[0].mxu0
      %10682 = vmatprep.mubr.bf16.mxu0 0
      %10683 = vmatmul.mubr.bf16.gmra.mrb[0].mxu0 %v10465
      %v10684 = vpop.f32.mrb[0].mxu0
      %v10685 = vadd.f32 0.0, %v10684
      %v10686 = vpop.f32.mrb[0].mxu0
      %v10687 = vpop.f32.mrb[0].mxu0
      %v10688 = vadd.f32 0.0, %v10687
      %v10689 = vpop.f32.mrb[0].mxu0
      %10690 = vdwg.mxu0
      %v10691 = vadd.f32 %v10193, %v10565
      %v10692 = vadd.f32 %v10194, %v10568
      %v10693 = vadd.f32 %v10195, %v10573
      %v10694 = vadd.f32 %v10196, %v10576
      %v10695 = vadd.f32 %v10197, %v10581
      %v10696 = vadd.f32 %v10198, %v10584
      %v10697 = vadd.f32 %v10199, %v10589
      %v10698 = vadd.f32 %v10200, %v10592
      %v10699 = vadd.f32 %v10201, %v10597
      %v10700 = vadd.f32 %v10202, %v10600
      %v10701 = vadd.f32 %v10203, %v10605
      %v10702 = vadd.f32 %v10204, %v10608
      %v10703 = vadd.f32 %v10205, %v10613
      %v10704 = vadd.f32 %v10206, %v10616
      %v10705 = vadd.f32 %v10207, %v10621
      %v10706 = vadd.f32 %v10208, %v10624
      %v10707 = vadd.f32 %v10209, %v10629
      %v10708 = vadd.f32 %v10210, %v10632
      %v10709 = vadd.f32 %v10211, %v10637
      %v10710 = vadd.f32 %v10212, %v10640
      %v10711 = vadd.f32 %v10213, %v10645
      %v10712 = vadd.f32 %v10214, %v10648
      %v10713 = vadd.f32 %v10215, %v10653
      %v10714 = vadd.f32 %v10216, %v10656
      %v10715 = vadd.f32 %v10217, %v10661
      %v10716 = vadd.f32 %v10218, %v10664
      %v10717 = vadd.f32 %v10219, %v10669
      %v10718 = vadd.f32 %v10220, %v10672
      %v10719 = vadd.f32 %v10221, %v10677
      %v10720 = vadd.f32 %v10222, %v10680
      %v10721 = vadd.f32 %v10223, %v10685
      %v10722 = vadd.f32 %v10224, %v10688
      %v10723 = vld [vmem:[%s5] sm:$0x1]
      %v10725 = vlaneseq
      %v10726 = vshrl.u32 %v10725, 7
      %v10727 = vsub.s32 0, %v10726
      %v10728 = vrot.slane %v10723, %v10727
      %v10730 = vmul.f32 %v10691, %v10728
      %v10731 = vmul.f32 %v10692, %v10728
      %v10732 = vmul.f32 %v10693, %v10728
      %v10733 = vmul.f32 %v10694, %v10728
      %v10734 = vmul.f32 %v10695, %v10728
      %v10735 = vmul.f32 %v10696, %v10728
      %v10736 = vmul.f32 %v10697, %v10728
      %v10737 = vmul.f32 %v10698, %v10728
      %v10738 = vmul.f32 %v10699, %v10728
      %v10739 = vmul.f32 %v10700, %v10728
      %v10740 = vmul.f32 %v10701, %v10728
      %v10741 = vmul.f32 %v10702, %v10728
      %v10742 = vmul.f32 %v10703, %v10728
      %v10743 = vmul.f32 %v10704, %v10728
      %v10744 = vmul.f32 %v10705, %v10728
      %v10745 = vmul.f32 %v10706, %v10728
      %v10746 = vmul.f32 %v10707, %v10728
      %v10747 = vmul.f32 %v10708, %v10728
      %v10748 = vmul.f32 %v10709, %v10728
      %v10749 = vmul.f32 %v10710, %v10728
      %v10750 = vmul.f32 %v10711, %v10728
      %v10751 = vmul.f32 %v10712, %v10728
      %v10752 = vmul.f32 %v10713, %v10728
      %v10753 = vmul.f32 %v10714, %v10728
      %v10754 = vmul.f32 %v10715, %v10728
      %v10755 = vmul.f32 %v10716, %v10728
      %v10756 = vmul.f32 %v10717, %v10728
      %v10757 = vmul.f32 %v10718, %v10728
      %v10758 = vmul.f32 %v10719, %v10728
      %v10759 = vmul.f32 %v10720, %v10728
      %v10760 = vmul.f32 %v10721, %v10728
      %v10761 = vmul.f32 %v10722, %v10728
      %v10762 = vld [vmem:[%s6] sm:$0x1]
      %v10764 = vlaneseq
      %v10765 = vshrl.u32 %v10764, 7
      %v10766 = vsub.s32 0, %v10765
      %v10767 = vrot.slane %v10762, %v10766
      %v10769 = vadd.f32 %v10730, %v10767
      %v10770 = vadd.f32 %v10731, %v10767
      %v10771 = vadd.f32 %v10732, %v10767
      %v10772 = vadd.f32 %v10733, %v10767
      %v10773 = vadd.f32 %v10734, %v10767
      %v10774 = vadd.f32 %v10735, %v10767
      %v10775 = vadd.f32 %v10736, %v10767
      %v10776 = vadd.f32 %v10737, %v10767
      %v10777 = vadd.f32 %v10738, %v10767
      %v10778 = vadd.f32 %v10739, %v10767
      %v10779 = vadd.f32 %v10740, %v10767
      %v10780 = vadd.f32 %v10741, %v10767
      %v10781 = vadd.f32 %v10742, %v10767
      %v10782 = vadd.f32 %v10743, %v10767
      %v10783 = vadd.f32 %v10744, %v10767
      %v10784 = vadd.f32 %v10745, %v10767
      %v10785 = vadd.f32 %v10746, %v10767
      %v10786 = vadd.f32 %v10747, %v10767
      %v10787 = vadd.f32 %v10748, %v10767
      %v10788 = vadd.f32 %v10749, %v10767
      %v10789 = vadd.f32 %v10750, %v10767
      %v10790 = vadd.f32 %v10751, %v10767
      %v10791 = vadd.f32 %v10752, %v10767
      %v10792 = vadd.f32 %v10753, %v10767
      %v10793 = vadd.f32 %v10754, %v10767
      %v10794 = vadd.f32 %v10755, %v10767
      %v10795 = vadd.f32 %v10756, %v10767
      %v10796 = vadd.f32 %v10757, %v10767
      %v10797 = vadd.f32 %v10758, %v10767
      %v10798 = vadd.f32 %v10759, %v10767
      %v10799 = vadd.f32 %v10760, %v10767
      %v10800 = vadd.f32 %v10761, %v10767
      %v10801 = vld [vmem:[%s7] sm:$0xf]
      %v10802 = vld [vmem:[%s7 + $0x4] sm:$0xf]
      %v10803 = vld [vmem:[%s7 + $0x8] sm:$0xf]
      %v10804 = vld [vmem:[%s7 + $0xc] sm:$0xf]
      %v10805 = vld [vmem:[%s7 + $0x10] sm:$0xf]
      %v10806 = vld [vmem:[%s7 + $0x14] sm:$0xf]
      %v10807 = vld [vmem:[%s7 + $0x18] sm:$0xf]
      %v10808 = vld [vmem:[%s7 + $0x1c] sm:$0xf]
      %v10809 = vld [vmem:[%s7 + $0x20] sm:$0xf]
      %v10810 = vld [vmem:[%s7 + $0x24] sm:$0xf]
      %v10811 = vld [vmem:[%s7 + $0x28] sm:$0xf]
      %v10812 = vld [vmem:[%s7 + $0x2c] sm:$0xf]
      %v10813 = vld [vmem:[%s7 + $0x30] sm:$0xf]
      %v10814 = vld [vmem:[%s7 + $0x34] sm:$0xf]
      %v10815 = vld [vmem:[%s7 + $0x38] sm:$0xf]
      %v10816 = vld [vmem:[%s7 + $0x3c] sm:$0xf]
      %v10833 = vunpack.c.l.b16 %v10801
      %v10834 = vunpack.c.l.b16 %v10802
      %v10835 = vunpack.c.l.b16 %v10803
      %v10836 = vunpack.c.l.b16 %v10804
      %v10837 = vunpack.c.l.b16 %v10805
      %v10838 = vunpack.c.l.b16 %v10806
      %v10839 = vunpack.c.l.b16 %v10807
      %v10840 = vunpack.c.l.b16 %v10808
      %v10841 = vunpack.c.l.b16 %v10809
      %v10842 = vunpack.c.l.b16 %v10810
      %v10843 = vunpack.c.l.b16 %v10811
      %v10844 = vunpack.c.l.b16 %v10812
      %v10845 = vunpack.c.l.b16 %v10813
      %v10846 = vunpack.c.l.b16 %v10814
      %v10847 = vunpack.c.l.b16 %v10815
      %v10848 = vunpack.c.l.b16 %v10816
      %v10849 = vpack.c.b16 %v10834, %v10833
      %v10850 = vpack.c.b16 %v10836, %v10835
      %v10851 = vpack.c.b16 %v10838, %v10837
      %v10852 = vpack.c.b16 %v10840, %v10839
      %v10853 = vpack.c.b16 %v10842, %v10841
      %v10854 = vpack.c.b16 %v10844, %v10843
      %v10855 = vpack.c.b16 %v10846, %v10845
      %v10856 = vpack.c.b16 %v10848, %v10847
      %10865 = vmatprep.subr.bf16.mxu0 0
      %10866 = vmatpush1.bf16.msra.mxu0 %v10849
      %10867 = vmatprep.subr.bf16.mxu0 0
      %10868 = vmatpush1.bf16.msra.mxu0 %v10850
      %10869 = vmatprep.subr.bf16.mxu0 0
      %10870 = vmatpush1.bf16.msra.mxu0 %v10851
      %10871 = vmatprep.subr.bf16.mxu0 0
      %10872 = vmatpush1.bf16.msra.mxu0 %v10852
      %10873 = vmatprep.subr.bf16.mxu0 0
      %10874 = vmatpush1.bf16.msra.mxu0 %v10853
      %10875 = vmatprep.subr.bf16.mxu0 0
      %10876 = vmatpush1.bf16.msra.mxu0 %v10854
      %10877 = vmatprep.subr.bf16.mxu0 0
      %10878 = vmatpush1.bf16.msra.mxu0 %v10855
      %10879 = vmatprep.subr.bf16.mxu0 0
      %10880 = vmatpush1.bf16.msra.mxu0 %v10856
      %10881 = vmatprep.subr.bf16.mxu0 0
      %10882 = vmatpush1.bf16.msra.mxu0 0
      %10883 = vmatprep.subr.bf16.mxu0 0
      %10884 = vmatpush1.bf16.msra.mxu0 0
      %10885 = vmatprep.subr.bf16.mxu0 0
      %10886 = vmatpush1.bf16.msra.mxu0 0
      %10887 = vmatprep.subr.bf16.mxu0 0
      %10888 = vmatpush1.bf16.msra.mxu0 0
      %10889 = vmatprep.subr.bf16.mxu0 0
      %10890 = vmatpush1.bf16.msra.mxu0 0
      %10891 = vmatprep.subr.bf16.mxu0 0
      %10892 = vmatpush1.bf16.msra.mxu0 0
      %10893 = vmatprep.subr.bf16.mxu0 0
      %10894 = vmatpush1.bf16.msra.mxu0 0
      %10895 = vmatprep.subr.bf16.mxu0 0
      %10896 = vmatpush1.bf16.msra.mxu0 0
      %10897 = vmatprep.mubr.bf16.mxu0 0
      %10898 = vmatmul.mubr.bf16.gmra.mrb[0].mxu0 %v2760
      %v10899 = vpop.f32.mrb[0].mxu0
      %v10900 = vadd.f32 0.0, %v10899
      %v10901 = vpop.f32.mrb[0].mxu0
      %v10902 = vpop.f32.mrb[0].mxu0
      %v10903 = vadd.f32 0.0, %v10902
      %v10904 = vpop.f32.mrb[0].mxu0
      %10905 = vmatprep.mubr.bf16.mxu0 0
      %10906 = vmatmul.mubr.bf16.gmra.mrb[0].mxu0 %v2761
      %v10907 = vpop.f32.mrb[0].mxu0
      %v10908 = vadd.f32 0.0, %v10907
      %v10909 = vpop.f32.mrb[0].mxu0
      %v10910 = vpop.f32.mrb[0].mxu0
      %v10911 = vadd.f32 0.0, %v10910
      %v10912 = vpop.f32.mrb[0].mxu0
      %10913 = vmatprep.mubr.bf16.mxu0 0
      %10914 = vmatmul.mubr.bf16.gmra.mrb[0].mxu0 %v2762
      %v10915 = vpop.f32.mrb[0].mxu0
      %v10916 = vadd.f32 0.0, %v10915
      %v10917 = vpop.f32.mrb[0].mxu0
      %v10918 = vpop.f32.mrb[0].mxu0
      %v10919 = vadd.f32 0.0, %v10918
      %v10920 = vpop.f32.mrb[0].mxu0
      %10921 = vmatprep.mubr.bf16.mxu0 0
      %10922 = vmatmul.mubr.bf16.gmra.mrb[0].mxu0 %v2763
      %v10923 = vpop.f32.mrb[0].mxu0
      %v10924 = vadd.f32 0.0, %v10923
      %v10925 = vpop.f32.mrb[0].mxu0
      %v10926 = vpop.f32.mrb[0].mxu0
      %v10927 = vadd.f32 0.0, %v10926
      %v10928 = vpop.f32.mrb[0].mxu0
      %10929 = vmatprep.mubr.bf16.mxu0 0
      %10930 = vmatmul.mubr.bf16.gmra.mrb[0].mxu0 %v2764
      %v10931 = vpop.f32.mrb[0].mxu0
      %v10932 = vadd.f32 0.0, %v10931
      %v10933 = vpop.f32.mrb[0].mxu0
      %v10934 = vpop.f32.mrb[0].mxu0
      %v10935 = vadd.f32 0.0, %v10934
      %v10936 = vpop.f32.mrb[0].mxu0
      %10937 = vmatprep.mubr.bf16.mxu0 0
      %10938 = vmatmul.mubr.bf16.gmra.mrb[0].mxu0 %v2765
      %v10939 = vpop.f32.mrb[0].mxu0
      %v10940 = vadd.f32 0.0, %v10939
      %v10941 = vpop.f32.mrb[0].mxu0
      %v10942 = vpop.f32.mrb[0].mxu0
      %v10943 = vadd.f32 0.0, %v10942
      %v10944 = vpop.f32.mrb[0].mxu0
      %10945 = vmatprep.mubr.bf16.mxu0 0
      %10946 = vmatmul.mubr.bf16.gmra.mrb[0].mxu0 %v2766
      %v10947 = vpop.f32.mrb[0].mxu0
      %v10948 = vadd.f32 0.0, %v10947
      %v10949 = vpop.f32.mrb[0].mxu0
      %v10950 = vpop.f32.mrb[0].mxu0
      %v10951 = vadd.f32 0.0, %v10950
      %v10952 = vpop.f32.mrb[0].mxu0
      %10953 = vmatprep.mubr.bf16.mxu0 0
      %10954 = vmatmul.mubr.bf16.gmra.mrb[0].mxu0 %v2767
      %v10955 = vpop.f32.mrb[0].mxu0
      %v10956 = vadd.f32 0.0, %v10955
      %v10957 = vpop.f32.mrb[0].mxu0
      %v10958 = vpop.f32.mrb[0].mxu0
      %v10959 = vadd.f32 0.0, %v10958
      %v10960 = vpop.f32.mrb[0].mxu0
      %10961 = vmatprep.mubr.bf16.mxu0 0
      %10962 = vmatmul.mubr.bf16.gmra.mrb[0].mxu0 %v2768
      %v10963 = vpop.f32.mrb[0].mxu0
      %v10964 = vadd.f32 0.0, %v10963
      %v10965 = vpop.f32.mrb[0].mxu0
      %v10966 = vpop.f32.mrb[0].mxu0
      %v10967 = vadd.f32 0.0, %v10966
      %v10968 = vpop.f32.mrb[0].mxu0
      %10969 = vmatprep.mubr.bf16.mxu0 0
      %10970 = vmatmul.mubr.bf16.gmra.mrb[0].mxu0 %v2769
      %v10971 = vpop.f32.mrb[0].mxu0
      %v10972 = vadd.f32 0.0, %v10971
      %v10973 = vpop.f32.mrb[0].mxu0
      %v10974 = vpop.f32.mrb[0].mxu0
      %v10975 = vadd.f32 0.0, %v10974
      %v10976 = vpop.f32.mrb[0].mxu0
      %10977 = vmatprep.mubr.bf16.mxu0 0
      %10978 = vmatmul.mubr.bf16.gmra.mrb[0].mxu0 %v2770
      %v10979 = vpop.f32.mrb[0].mxu0
      %v10980 = vadd.f32 0.0, %v10979
      %v10981 = vpop.f32.mrb[0].mxu0
      %v10982 = vpop.f32.mrb[0].mxu0
      %v10983 = vadd.f32 0.0, %v10982
      %v10984 = vpop.f32.mrb[0].mxu0
      %10985 = vmatprep.mubr.bf16.mxu0 0
      %10986 = vmatmul.mubr.bf16.gmra.mrb[0].mxu0 %v2771
      %v10987 = vpop.f32.mrb[0].mxu0
      %v10988 = vadd.f32 0.0, %v10987
      %v10989 = vpop.f32.mrb[0].mxu0
      %v10990 = vpop.f32.mrb[0].mxu0
      %v10991 = vadd.f32 0.0, %v10990
      %v10992 = vpop.f32.mrb[0].mxu0
      %10993 = vmatprep.mubr.bf16.mxu0 0
      %10994 = vmatmul.mubr.bf16.gmra.mrb[0].mxu0 %v2772
      %v10995 = vpop.f32.mrb[0].mxu0
      %v10996 = vadd.f32 0.0, %v10995
      %v10997 = vpop.f32.mrb[0].mxu0
      %v10998 = vpop.f32.mrb[0].mxu0
      %v10999 = vadd.f32 0.0, %v10998
      %v11000 = vpop.f32.mrb[0].mxu0
      %11001 = vmatprep.mubr.bf16.mxu0 0
      %11002 = vmatmul.mubr.bf16.gmra.mrb[0].mxu0 %v2773
      %v11003 = vpop.f32.mrb[0].mxu0
      %v11004 = vadd.f32 0.0, %v11003
      %v11005 = vpop.f32.mrb[0].mxu0
      %v11006 = vpop.f32.mrb[0].mxu0
      %v11007 = vadd.f32 0.0, %v11006
      %v11008 = vpop.f32.mrb[0].mxu0
      %11009 = vmatprep.mubr.bf16.mxu0 0
      %11010 = vmatmul.mubr.bf16.gmra.mrb[0].mxu0 %v2774
      %v11011 = vpop.f32.mrb[0].mxu0
      %v11012 = vadd.f32 0.0, %v11011
      %v11013 = vpop.f32.mrb[0].mxu0
      %v11014 = vpop.f32.mrb[0].mxu0
      %v11015 = vadd.f32 0.0, %v11014
      %v11016 = vpop.f32.mrb[0].mxu0
      %11017 = vmatprep.mubr.bf16.mxu0 0
      %11018 = vmatmul.mubr.bf16.gmra.mrb[0].mxu0 %v2775
      %v11019 = vpop.f32.mrb[0].mxu0
      %v11020 = vadd.f32 0.0, %v11019
      %v11021 = vpop.f32.mrb[0].mxu0
      %v11022 = vpop.f32.mrb[0].mxu0
      %v11023 = vadd.f32 0.0, %v11022
      %v11024 = vpop.f32.mrb[0].mxu0
      %11025 = vdwg.mxu0
      %v11026 = vld [vmem:[%s8] sm:$0x1]
      %v11028 = vlaneseq
      %v11029 = vshrl.u32 %v11028, 7
      %v11030 = vsub.s32 0, %v11029
      %v11031 = vrot.slane %v11026, %v11030
      %v11033 = vmul.f32 %v10900, %v11031
      %v11034 = vmul.f32 %v10903, %v11031
      %v11035 = vmul.f32 %v10908, %v11031
      %v11036 = vmul.f32 %v10911, %v11031
      %v11037 = vmul.f32 %v10916, %v11031
      %v11038 = vmul.f32 %v10919, %v11031
      %v11039 = vmul.f32 %v10924, %v11031
      %v11040 = vmul.f32 %v10927, %v11031
      %v11041 = vmul.f32 %v10932, %v11031
      %v11042 = vmul.f32 %v10935, %v11031
      %v11043 = vmul.f32 %v10940, %v11031
      %v11044 = vmul.f32 %v10943, %v11031
      %v11045 = vmul.f32 %v10948, %v11031
      %v11046 = vmul.f32 %v10951, %v11031
      %v11047 = vmul.f32 %v10956, %v11031
      %v11048 = vmul.f32 %v10959, %v11031
      %v11049 = vmul.f32 %v10964, %v11031
      %v11050 = vmul.f32 %v10967, %v11031
      %v11051 = vmul.f32 %v10972, %v11031
      %v11052 = vmul.f32 %v10975, %v11031
      %v11053 = vmul.f32 %v10980, %v11031
      %v11054 = vmul.f32 %v10983, %v11031
      %v11055 = vmul.f32 %v10988, %v11031
      %v11056 = vmul.f32 %v10991, %v11031
      %v11057 = vmul.f32 %v10996, %v11031
      %v11058 = vmul.f32 %v10999, %v11031
      %v11059 = vmul.f32 %v11004, %v11031
      %v11060 = vmul.f32 %v11007, %v11031
      %v11061 = vmul.f32 %v11012, %v11031
      %v11062 = vmul.f32 %v11015, %v11031
      %v11063 = vmul.f32 %v11020, %v11031
      %v11064 = vmul.f32 %v11023, %v11031
      %v11065 = vld [vmem:[%s9] sm:$0x1]
      %v11067 = vlaneseq
      %v11068 = vshrl.u32 %v11067, 7
      %v11069 = vsub.s32 0, %v11068
      %v11070 = vrot.slane %v11065, %v11069
      %v11072 = vadd.f32 %v11033, %v11070
      %v11073 = vadd.f32 %v11034, %v11070
      %v11074 = vadd.f32 %v11035, %v11070
      %v11075 = vadd.f32 %v11036, %v11070
      %v11076 = vadd.f32 %v11037, %v11070
      %v11077 = vadd.f32 %v11038, %v11070
      %v11078 = vadd.f32 %v11039, %v11070
      %v11079 = vadd.f32 %v11040, %v11070
      %v11080 = vadd.f32 %v11041, %v11070
      %v11081 = vadd.f32 %v11042, %v11070
      %v11082 = vadd.f32 %v11043, %v11070
      %v11083 = vadd.f32 %v11044, %v11070
      %v11084 = vadd.f32 %v11045, %v11070
      %v11085 = vadd.f32 %v11046, %v11070
      %v11086 = vadd.f32 %v11047, %v11070
      %v11087 = vadd.f32 %v11048, %v11070
      %v11088 = vadd.f32 %v11049, %v11070
      %v11089 = vadd.f32 %v11050, %v11070
      %v11090 = vadd.f32 %v11051, %v11070
      %v11091 = vadd.f32 %v11052, %v11070
      %v11092 = vadd.f32 %v11053, %v11070
      %v11093 = vadd.f32 %v11054, %v11070
      %v11094 = vadd.f32 %v11055, %v11070
      %v11095 = vadd.f32 %v11056, %v11070
      %v11096 = vadd.f32 %v11057, %v11070
      %v11097 = vadd.f32 %v11058, %v11070
      %v11098 = vadd.f32 %v11059, %v11070
      %v11099 = vadd.f32 %v11060, %v11070
      %v11100 = vadd.f32 %v11061, %v11070
      %v11101 = vadd.f32 %v11062, %v11070
      %v11102 = vadd.f32 %v11063, %v11070
      %v11103 = vadd.f32 %v11064, %v11070
      %v11104 = vadd.f32 %v10769, %v11072
      %v11105 = vadd.f32 %v10770, %v11073
      %v11106 = vadd.f32 %v10771, %v11074
      %v11107 = vadd.f32 %v10772, %v11075
      %v11108 = vadd.f32 %v10773, %v11076
      %v11109 = vadd.f32 %v10774, %v11077
      %v11110 = vadd.f32 %v10775, %v11078
      %v11111 = vadd.f32 %v10776, %v11079
      %v11112 = vadd.f32 %v10777, %v11080
      %v11113 = vadd.f32 %v10778, %v11081
      %v11114 = vadd.f32 %v10779, %v11082
      %v11115 = vadd.f32 %v10780, %v11083
      %v11116 = vadd.f32 %v10781, %v11084
      %v11117 = vadd.f32 %v10782, %v11085
      %v11118 = vadd.f32 %v10783, %v11086
      %v11119 = vadd.f32 %v10784, %v11087
      %v11120 = vadd.f32 %v10785, %v11088
      %v11121 = vadd.f32 %v10786, %v11089
      %v11122 = vadd.f32 %v10787, %v11090
      %v11123 = vadd.f32 %v10788, %v11091
      %v11124 = vadd.f32 %v10789, %v11092
      %v11125 = vadd.f32 %v10790, %v11093
      %v11126 = vadd.f32 %v10791, %v11094
      %v11127 = vadd.f32 %v10792, %v11095
      %v11128 = vadd.f32 %v10793, %v11096
      %v11129 = vadd.f32 %v10794, %v11097
      %v11130 = vadd.f32 %v10795, %v11098
      %v11131 = vadd.f32 %v10796, %v11099
      %v11132 = vadd.f32 %v10797, %v11100
      %v11133 = vadd.f32 %v10798, %v11101
      %v11134 = vadd.f32 %v10799, %v11102
      %v11135 = vadd.f32 %v10800, %v11103
      %v11136 = vmax.f32 %v11104, 0.0
      %v11137 = vmax.f32 %v11105, 0.0
      %v11138 = vmax.f32 %v11106, 0.0
      %v11139 = vmax.f32 %v11107, 0.0
      %v11140 = vmax.f32 %v11108, 0.0
      %v11141 = vmax.f32 %v11109, 0.0
      %v11142 = vmax.f32 %v11110, 0.0
      %v11143 = vmax.f32 %v11111, 0.0
      %v11144 = vmax.f32 %v11112, 0.0
      %v11145 = vmax.f32 %v11113, 0.0
      %v11146 = vmax.f32 %v11114, 0.0
      %v11147 = vmax.f32 %v11115, 0.0
      %v11148 = vmax.f32 %v11116, 0.0
      %v11149 = vmax.f32 %v11117, 0.0
      %v11150 = vmax.f32 %v11118, 0.0
      %v11151 = vmax.f32 %v11119, 0.0
      %v11152 = vmax.f32 %v11120, 0.0
      %v11153 = vmax.f32 %v11121, 0.0
      %v11154 = vmax.f32 %v11122, 0.0
      %v11155 = vmax.f32 %v11123, 0.0
      %v11156 = vmax.f32 %v11124, 0.0
      %v11157 = vmax.f32 %v11125, 0.0
      %v11158 = vmax.f32 %v11126, 0.0
      %v11159 = vmax.f32 %v11127, 0.0
      %v11160 = vmax.f32 %v11128, 0.0
      %v11161 = vmax.f32 %v11129, 0.0
      %v11162 = vmax.f32 %v11130, 0.0
      %v11163 = vmax.f32 %v11131, 0.0
      %v11164 = vmax.f32 %v11132, 0.0
      %v11165 = vmax.f32 %v11133, 0.0
      %v11166 = vmax.f32 %v11134, 0.0
      %v11167 = vmax.f32 %v11135, 0.0
      %11168 = vst [vmem:[%s359] sm:$0xff] %v11136
      %11169 = vst [vmem:[%s359 + $0x8] sm:$0xff] %v11137
      %11170 = vst [vmem:[%s359 + $0x10] sm:$0xff] %v11138
      %11171 = vst [vmem:[%s359 + $0x18] sm:$0xff] %v11139
      %11172 = vst [vmem:[%s359 + $0x20] sm:$0xff] %v11140
      %11173 = vst [vmem:[%s359 + $0x28] sm:$0xff] %v11141
      %11174 = vst [vmem:[%s359 + $0x30] sm:$0xff] %v11142
      %11175 = vst [vmem:[%s359 + $0x38] sm:$0xff] %v11143
      %11176 = vst [vmem:[%s359 + $0x40] sm:$0xff] %v11144
      %11177 = vst [vmem:[%s359 + $0x48] sm:$0xff] %v11145
      %11178 = vst [vmem:[%s359 + $0x50] sm:$0xff] %v11146
      %11179 = vst [vmem:[%s359 + $0x58] sm:$0xff] %v11147
      %11180 = vst [vmem:[%s359 + $0x60] sm:$0xff] %v11148
      %11181 = vst [vmem:[%s359 + $0x68] sm:$0xff] %v11149
      %11182 = vst [vmem:[%s359 + $0x70] sm:$0xff] %v11150
      %11183 = vst [vmem:[%s359 + $0x78] sm:$0xff] %v11151
      %11184 = vst [vmem:[%s359 + $0x80] sm:$0xff] %v11152
      %11185 = vst [vmem:[%s359 + $0x88] sm:$0xff] %v11153
      %11186 = vst [vmem:[%s359 + $0x90] sm:$0xff] %v11154
      %11187 = vst [vmem:[%s359 + $0x98] sm:$0xff] %v11155
      %11188 = vst [vmem:[%s359 + $0xa0] sm:$0xff] %v11156
      %11189 = vst [vmem:[%s359 + $0xa8] sm:$0xff] %v11157
      %11190 = vst [vmem:[%s359 + $0xb0] sm:$0xff] %v11158
      %11191 = vst [vmem:[%s359 + $0xb8] sm:$0xff] %v11159
      %11192 = vst [vmem:[%s359 + $0xc0] sm:$0xff] %v11160
      %11193 = vst [vmem:[%s359 + $0xc8] sm:$0xff] %v11161
      %11194 = vst [vmem:[%s359 + $0xd0] sm:$0xff] %v11162
      %11195 = vst [vmem:[%s359 + $0xd8] sm:$0xff] %v11163
      %11196 = vst [vmem:[%s359 + $0xe0] sm:$0xff] %v11164
      %11197 = vst [vmem:[%s359 + $0xe8] sm:$0xff] %v11165
      %11198 = vst [vmem:[%s359 + $0xf0] sm:$0xff] %v11166
      %11199 = vst [vmem:[%s359 + $0xf8] sm:$0xff] %v11167
      %p11200 = scmp.lt.s32.totalorder %s21, 1
      %s11201 = scalar_select %p11200, %s21, 1
      %s11202 = smul.addr %s11201, 32
      %s11203 = smul.addr %s11202, 8
      %s11204 = scalar_lea.vmem %s10, %s11203
      // Predicated region
      $region61: #{basic_block4gem_pallas_nhwc.1} parent=59 // pred_check
        %p11205 = pneg %p254
      $region62: #{basic_block4gem_pallas_nhwc.1} parent=59 // pred_check_branch
        %11207 = sbr.rel (%p11205) target = $region64
      $region63: #{basic_block4gem_pallas_nhwc.1} parent=59 // pred_region
        _
      $region64: #{basic_block4gem_pallas_nhwc.1} parent=59 // pred_fallthru
        _
    $region60: #{basic_block4gem_pallas_nhwc.1} parent=5 // pred_fallthru
      _
    %p11208 = scmp.le.s32.totalorder 2, %s16
    // Predicated region
    $region65: #{basic_block4gem_pallas_nhwc.1} parent=5 // pred_check
      %p11209 = pneg %p11208
    $region66: #{basic_block4gem_pallas_nhwc.1} parent=5 // pred_check_branch
      %11211 = sbr.rel (%p11209) target = $region68
    $region67: #{basic_block4gem_pallas_nhwc.1} parent=5 // pred_region
      %s11212 = ssub.s32 %s16, 2
      // Predicated region
      $region69: #{basic_block4gem_pallas_nhwc.1} parent=67 // pred_check
        %p11213 = pneg %p260
      $region70: #{basic_block4gem_pallas_nhwc.1} parent=67 // pred_check_branch
        %11215 = sbr.rel (%p11213) target = $region72
      $region71: #{basic_block4gem_pallas_nhwc.1} parent=67 // pred_region
        %p11216 = scmp.lt.s32.totalorder %s22, 1
        %s11217 = scalar_select %p11216, %s22, 1
        %s11218 = smul.addr %s11217, 32
        %s11219 = smul.addr %s11218, 8
        %s11220 = scalar_lea.vmem %s10, %s11219
      $region72: #{basic_block4gem_pallas_nhwc.1} parent=67 // pred_fallthru
        _
    $region68: #{basic_block4gem_pallas_nhwc.1} parent=5 // pred_fallthru
      _
  $region6: #{basic_block4gem_pallas_nhwc.1} parent=0 // loop_footer
    %s20 = sadd.s32 1, %s16
  $region7: #{basic_block4gem_pallas_nhwc.1} parent=0 // loop_footer_branch
    %15 = sbr.rel target = $region3
  $region8: #{basic_block4gem_pallas_nhwc.1} parent=0 // loop_exit
    _

</llo_original>
